<compile_context>
chip_gen: v7x
topology: tpu7x:2x2x1
jax: 0.10.0
libtpu: 0.0.40
codegen_flags: <defaults>
</compile_context>

<pallas_src>
import functools

import jax
import jax.numpy as jnp
from jax.experimental import pallas as pl
from jax.experimental.pallas import tpu as pltpu


class Config:
    POOL_SIZE = 7
    IMAGE_MAX_DIM = 128
    IMAGES_PER_GPU = 2
    NUM_CLASSES = 8


# -----------------------------------------------------------------------------
# Pallas kernel 1: ROIAlign gather + bilinear blend (crop_and_resize hot path).
# -----------------------------------------------------------------------------
def _roi_align_kernel(idx_ref, w_ref, feat_ref, out_ref, *,
                      rois_per_block, pp, c):
    blk = pl.program_id(0)

    def roi_body(i, carry):
        roi = blk * rois_per_block + i
        # Static unroll over the P*P sample points: each point does 4 dynamic
        # row gathers + a weighted blend and is stored straight into its output
        # row, so there is exactly one live accumulator and no sublane
        # concatenate (tiny vreg pressure vs. the previous 49-way concat).
        for p in range(pp):
            b4 = p * 4
            r0 = idx_ref[roi, b4 + 0]
            r1 = idx_ref[roi, b4 + 1]
            r2 = idx_ref[roi, b4 + 2]
            r3 = idx_ref[roi, b4 + 3]
            acc = (w_ref[roi, b4 + 0] * feat_ref[pl.ds(r0, 1), :]
                   + w_ref[roi, b4 + 1] * feat_ref[pl.ds(r1, 1), :]
                   + w_ref[roi, b4 + 2] * feat_ref[pl.ds(r2, 1), :]
                   + w_ref[roi, b4 + 3] * feat_ref[pl.ds(r3, 1), :])
            out_ref[i, p:p + 1, :] = acc          # lane-dense (1, 256) store
        return carry

    jax.lax.fori_loop(0, rois_per_block, roi_body, 0)


def roi_align_gather(feat_flat, idx, wts, n_rois, pool, channels):
    pp = pool * pool
    total = feat_flat.shape[0]
    # Collapse the per-ROI grid: 2 parallel steps (uses both v7x TensorCores,
    # removes ~14 x 0.35us of grid overhead on single-core v5e/v6e).
    num_blocks = 2 if n_rois % 2 == 0 else 1
    rois_per_block = n_rois // num_blocks
    kernel = functools.partial(_roi_align_kernel,
                               rois_per_block=rois_per_block, pp=pp, c=channels)
    return pl.pallas_call(
        kernel,
        out_shape=jax.ShapeDtypeStruct((n_rois, pp, channels), jnp.float32),
        grid=(num_blocks,),
        in_specs=[
            pl.BlockSpec(memory_space=pltpu.MemorySpace.SMEM),   # neighbour idx
            pl.BlockSpec(memory_space=pltpu.MemorySpace.SMEM),   # bilinear wts
            pl.BlockSpec((total, channels), lambda b: (0, 0)),   # whole pyramid
        ],
        out_specs=pl.BlockSpec((rois_per_block, pp, channels),
                               lambda b: (b, 0, 0)),
        compiler_params=pltpu.CompilerParams(
            dimension_semantics=("parallel",),
            vmem_limit_bytes=16 * 1024 * 1024),   # ~4 MB actually needed
    )(idx, wts, feat_flat)


# -----------------------------------------------------------------------------
# Pallas kernel 2: fused head (conv1-as-matmul + BN1 + ReLU + conv2-as-matmul +
# BN2 + ReLU + class logits + softmax + bbox regression), packed lane-dense
# output: [logits(nc) | probs(nc) | bbox(4*nc) | zero pad] in 128 lanes.
# -----------------------------------------------------------------------------
def _head_kernel(x_ref, w1_ref, b1_ref, g1_ref, be1_ref,
                 w2_ref, b2_ref, g2_ref, be2_ref,
                 wl_ref, bl_ref, wb_ref, bb_ref,
                 out_ref, acc_ref, *, num_classes):
    eps = 0.001
    k = pl.program_id(0)

    @pl.when(k == 0)
    def _():
        acc_ref[...] = jnp.zeros_like(acc_ref)

    # conv1 with a full PxP kernel on a PxP input == matmul over 256*P*P feats.
    # Weights are streamed in bf16 (halves the HBM-bound weight traffic); the
    # small (N_roi, tk) activation block is cast on the fly -> bf16xbf16 MXU.
    acc_ref[...] += jnp.dot(x_ref[...].astype(jnp.bfloat16), w1_ref[...],
                            preferred_element_type=jnp.float32)

    @pl.when(k == pl.num_programs(0) - 1)
    def _():
        n_rows = acc_ref.shape[0]
        inv_n = 1.0 / float(n_rows)
        nc = num_classes

        # BatchNorm2d (train-mode batch stats over the roi batch; H=W=1) + ReLU
        h = acc_ref[...] + b1_ref[...]
        mu = jnp.sum(h, axis=0, keepdims=True) * inv_n
        var = jnp.sum((h - mu) * (h - mu), axis=0, keepdims=True) * inv_n
        scale = g1_ref[...] * jax.lax.rsqrt(var + eps)      # folded gamma*rsqrt
        h = (h - mu) * scale + be1_ref[...]
        h = jnp.maximum(h, 0.0)

        # conv2 (1x1 conv == matmul) + BN2 + ReLU
        h = jnp.dot(h.astype(jnp.bfloat16), w2_ref[...],
                    preferred_element_type=jnp.float32) + b2_ref[...]
        mu = jnp.sum(h, axis=0, keepdims=True) * inv_n
        var = jnp.sum((h - mu) * (h - mu), axis=0, keepdims=True) * inv_n
        scale = g2_ref[...] * jax.lax.rsqrt(var + eps)
        h = (h - mu) * scale + be2_ref[...]
        shared = jnp.maximum(h, 0.0).astype(jnp.bfloat16)   # permute/view == id

        # mrcnn_class_logits + softmax (EUP reciprocal for the denominator)
        logits = jnp.dot(shared, wl_ref[...],
                         preferred_element_type=jnp.float32) + bl_ref[...]
        m = jnp.max(logits, axis=-1, keepdims=True)
        e = jnp.exp(logits - m)
        probs = e * pl.reciprocal(jnp.sum(e, axis=-1, keepdims=True), approx=True)

        # mrcnn_bbox_fc
        bbox = jnp.dot(shared, wb_ref[...],
                       preferred_element_type=jnp.float32) + bb_ref[...]

        # Fill the single 128-lane-wide output block so the HBM write-back is
        # one dense (n, 128) store instead of three narrow masked stores.
        out_ref[:, 0:nc] = logits
        out_ref[:, nc:2 * nc] = probs
        out_ref[:, 2 * nc:6 * nc] = bbox
        out_ref[:, 6 * nc:] = jnp.zeros(
            (n_rows, out_ref.shape[1] - 6 * nc), jnp.float32)


def rcnn_head_matmuls(x_flat, params, num_classes, tk=6272):
    n, kdim = x_flat.shape
    assert kdim % tk == 0, (kdim, tk)
    nc = num_classes
    out_w = 128
    assert 6 * nc <= out_w
    hidden = params["w2"].shape[0]
    full = lambda kk: (0, 0)

    # TODO(synk): on v7x the K reduction could additionally be split across the
    # two TensorCores (each streaming half of w1); not implemented here.
    grid_spec = pltpu.PrefetchScalarGridSpec(
        num_scalar_prefetch=0,
        grid=(kdim // tk,),
        in_specs=[
            pl.BlockSpec((n, tk), lambda kk: (0, kk)),        # pooled feats (f32)
            pl.BlockSpec((tk, hidden), lambda kk: (kk, 0)),   # conv1 weight (bf16)
            pl.BlockSpec((1, hidden), full),                  # conv1 bias
            pl.BlockSpec((1, hidden), full),                  # bn1 gamma
            pl.BlockSpec((1, hidden), full),                  # bn1 beta
            pl.BlockSpec((hidden, hidden), full),             # conv2 weight (bf16)
            pl.BlockSpec((1, hidden), full),                  # conv2 bias
            pl.BlockSpec((1, hidden), full),                  # bn2 gamma
            pl.BlockSpec((1, hidden), full),                  # bn2 beta
            pl.BlockSpec((hidden, nc), full),                 # class logits w (bf16)
            pl.BlockSpec((1, nc), full),                      # class logits bias
            pl.BlockSpec((hidden, 4 * nc), full),             # bbox weight (bf16)
            pl.BlockSpec((1, 4 * nc), full),                  # bbox bias
        ],
        out_specs=pl.BlockSpec((n, out_w), full),
        scratch_shapes=[pltpu.VMEM((n, hidden), jnp.float32)],
    )
    kernel = functools.partial(_head_kernel, num_classes=nc)
    packed = pl.pallas_call(
        kernel,
        out_shape=jax.ShapeDtypeStruct((n, out_w), jnp.float32),
        grid_spec=grid_spec,
        compiler_params=pltpu.CompilerParams(
            dimension_semantics=("arbitrary",),
            # ~31 MB actually needed (double-buffered bf16 w1 tiles + resident
            # w2/consts); leave headroom but stay well below v7x's 64 MiB VMEM.
            vmem_limit_bytes=44 * 1024 * 1024),
    )(x_flat,
      params["w1"], params["b1"], params["g1"], params["beta1"],
      params["w2"], params["b2"], params["g2"], params["beta2"],
      params["wl"], params["bl"], params["wb"], params["bb"])

    logits = packed[:, :nc]
    probs = packed[:, nc:2 * nc]
    bbox = packed[:, 2 * nc:6 * nc]
    return logits, probs, bbox


# -----------------------------------------------------------------------------
# JAX glue: ROIAlign level assignment and bilinear sample-grid computation.
# -----------------------------------------------------------------------------
# TODO(synk): the per-ROI pyramid-level selection + crop_and_resize sample
# grid (scalar math over a handful of rois, originally masked_select/scatter)
# stays in plain JAX; the gather/blend and all matmul/BN/softmax compute run
# inside the Pallas kernels above.
def roi_align_prepare(feature_maps, rois, config):
    pool = config.POOL_SIZE
    img = float(config.IMAGE_MAX_DIM)
    b, r, _ = rois.shape
    n = b * r
    rois_flat = rois.reshape(n, 4)
    x1, y1, x2, y2 = (rois_flat[:, 0], rois_flat[:, 1],
                      rois_flat[:, 2], rois_flat[:, 3])

    # roi_level = clamp(round(log2(sqrt(h*w)/224)) + 4, 2, 5)
    area = (y2 - y1) * (x2 - x1)
    roi_level = jnp.log2(jnp.sqrt(jnp.maximum(area, 1e-12)) / 224.0)
    level = jnp.clip(jnp.round(roi_level) + 4.0, 2.0, 5.0)
    level_idx = (level - 2.0).astype(jnp.int32)             # 0..3 -> P2..P5

    channels = feature_maps[0].shape[1]
    heights = jnp.array([fm.shape[2] for fm in feature_maps], jnp.int32)
    widths = jnp.array([fm.shape[3] for fm in feature_maps], jnp.int32)
    sizes = [fm.shape[2] * fm.shape[3] for fm in feature_maps]
    offs, acc = [], 0
    for s in sizes:
        offs.append(acc)
        acc += s
    offsets = jnp.array(offs, jnp.int32)

    # Flatten pyramid, batch 0 only (reference uses box_indices = ix * 0).
    feat_flat = jnp.concatenate(
        [jnp.transpose(fm[0], (1, 2, 0)).reshape(-1, channels)
         for fm in feature_maps], axis=0).astype(jnp.float32)

    h_i = jnp.take(heights, level_idx)
    w_i = jnp.take(widths, level_idx)
    off = jnp.take(offsets, level_idx)
    h_f = h_i.astype(jnp.float32)
    w_f = w_i.astype(jnp.float32)

    # Normalized (y1, x1, y2, x2) as in level_boxes / IMAGE_MAX_DIM, [1,0,3,2]
    ny1, nx1, ny2, nx2 = y1 / img, x1 / img, y2 / img, x2 / img

    i = jnp.arange(pool, dtype=jnp.float32)
    in_y = (ny1[:, None] * (h_f[:, None] - 1.0)
            + i[None, :] * (ny2 - ny1)[:, None] * (h_f[:, None] - 1.0) / (pool - 1))
    in_x = (nx1[:, None] * (w_f[:, None] - 1.0)
            + i[None, :] * (nx2 - nx1)[:, None] * (w_f[:, None] - 1.0) / (pool - 1))

    y_lo_f = jnp.floor(in_y)
    x_lo_f = jnp.floor(in_x)
    ly = in_y - y_lo_f
    lx = in_x - x_lo_f
    y_lo = jnp.clip(y_lo_f.astype(jnp.int32), 0, h_i[:, None] - 1)
    y_hi = jnp.clip(y_lo + 1, 0, h_i[:, None] - 1)
    x_lo = jnp.clip(x_lo_f.astype(jnp.int32), 0, w_i[:, None] - 1)
    x_hi = jnp.clip(x_lo + 1, 0, w_i[:, None] - 1)

    base = off[:, None, None]
    stride = w_i[:, None, None]
    idx00 = base + y_lo[:, :, None] * stride + x_lo[:, None, :]
    idx01 = base + y_lo[:, :, None] * stride + x_hi[:, None, :]
    idx10 = base + y_hi[:, :, None] * stride + x_lo[:, None, :]
    idx11 = base + y_hi[:, :, None] * stride + x_hi[:, None, :]
    w00 = (1.0 - ly)[:, :, None] * (1.0 - lx)[:, None, :]
    w01 = (1.0 - ly)[:, :, None] * lx[:, None, :]
    w10 = ly[:, :, None] * (1.0 - lx)[:, None, :]
    w11 = ly[:, :, None] * lx[:, None, :]

    idx = jnp.stack([idx00, idx01, idx10, idx11],
                    axis=-1).reshape(n, pool * pool * 4).astype(jnp.int32)
    wts = jnp.stack([w00, w01, w10, w11],
                    axis=-1).reshape(n, pool * pool * 4).astype(jnp.float32)
    return feat_flat, idx, wts


def rcnn_head_forward(feature_maps, rois, params, config):
    pool = config.POOL_SIZE
    channels = feature_maps[0].shape[1]
    b, r, _ = rois.shape
    n = b * r

    feat_flat, idx, wts = roi_align_prepare(feature_maps, rois, config)
    pooled = roi_align_gather(feat_flat, idx, wts, n, pool, channels)  # [N,P*P,C]
    # Row-major collapse of the trailing dims -> layout bitcast, no HBM copy.
    x_flat = pooled.reshape(n, pool * pool * channels)

    logits, probs, bbox = rcnn_head_matmuls(x_flat, params, config.NUM_CLASSES)
    nc = config.NUM_CLASSES
    return (logits.reshape(b, r, nc),
            probs.reshape(b, r, nc),
            bbox.reshape(b, r, nc, 4))


# -----------------------------------------------------------------------------
# Deterministic parameter initialization (shapes from RCNNHead.__init__).
# Matmul weights are stored in bf16 (streamed weights dominate HBM traffic);
# biases and BatchNorm affine parameters stay f32.
# -----------------------------------------------------------------------------
def init_params(key, num_classes, pool, channels=256, hidden=1024):
    ks = jax.random.split(key, 14)
    k_in = pool * pool * channels

    # conv1: [1024, 256, P, P] -> flattened [(i*P+j)*C + c, out]
    w1_conv = 0.02 * jax.random.normal(ks[0], (hidden, channels, pool, pool), jnp.float32)
    w1 = jnp.transpose(w1_conv, (2, 3, 1, 0)).reshape(k_in, hidden).astype(jnp.bfloat16)
    b1 = 0.01 * jax.random.normal(ks[1], (1, hidden), jnp.float32)
    g1 = 1.0 + 0.1 * jax.random.normal(ks[2], (1, hidden), jnp.float32)
    beta1 = 0.1 * jax.random.normal(ks[3], (1, hidden), jnp.float32)

    # conv2: 1x1 conv [1024, 1024, 1, 1] -> [in, out]
    w2_conv = 0.02 * jax.random.normal(ks[4], (hidden, hidden, 1, 1), jnp.float32)
    w2 = jnp.transpose(w2_conv.reshape(hidden, hidden), (1, 0)).astype(jnp.bfloat16)
    b2 = 0.01 * jax.random.normal(ks[5], (1, hidden), jnp.float32)
    g2 = 1.0 + 0.1 * jax.random.normal(ks[6], (1, hidden), jnp.float32)
    beta2 = 0.1 * jax.random.normal(ks[7], (1, hidden), jnp.float32)

    # mrcnn_class_logits: Linear(1024, num_classes)
    wl = (0.02 * jax.random.normal(ks[8], (hidden, num_classes), jnp.float32)
          ).astype(jnp.bfloat16)
    bl = 0.01 * jax.random.normal(ks[9], (1, num_classes), jnp.float32)
    # mrcnn_bbox_fc: Linear(1024, num_classes * 4)
    wb = (0.02 * jax.random.normal(ks[10], (hidden, num_classes * 4), jnp.float32)
          ).astype(jnp.bfloat16)
    bb = 0.01 * jax.random.normal(ks[11], (1, num_classes * 4), jnp.float32)

    return dict(w1=w1, b1=b1, g1=g1, beta1=beta1,
                w2=w2, b2=b2, g2=g2, beta2=beta2,
                wl=wl, bl=bl, wb=wb, bb=bb)


if __name__ == "__main__":
    cfg = Config()
    key = jax.random.PRNGKey(0)
    k_param, k_feat, k_roi = jax.random.split(key, 3)

    params = init_params(k_param, cfg.NUM_CLASSES, cfg.POOL_SIZE)

    # Feature pyramid P2..P5: [batch, 256, H, W] with H = IMAGE_MAX_DIM / 2^lvl
    fkeys = jax.random.split(k_feat, 4)
    feature_maps = []
    for li, lvl in enumerate(range(2, 6)):
        hw = cfg.IMAGE_MAX_DIM // (2 ** lvl)
        feature_maps.append(jax.random.normal(
            fkeys[li], (cfg.IMAGES_PER_GPU, 256, hw, hw), jnp.float32))

    # rpn_rois: [batch, num_rois, (x1, y1, x2, y2)] in pixel coordinates
    rkeys = jax.random.split(k_roi, 4)
    b, r = cfg.IMAGES_PER_GPU, 8
    rx1 = jax.random.uniform(rkeys[0], (b, r), minval=0.0, maxval=60.0)
    ry1 = jax.random.uniform(rkeys[1], (b, r), minval=0.0, maxval=60.0)
    rw = jax.random.uniform(rkeys[2], (b, r), minval=10.0, maxval=120.0)
    rh = jax.random.uniform(rkeys[3], (b, r), minval=10.0, maxval=120.0)
    rx2 = jnp.minimum(rx1 + rw, cfg.IMAGE_MAX_DIM - 1.0)
    ry2 = jnp.minimum(ry1 + rh, cfg.IMAGE_MAX_DIM - 1.0)
    rois = jnp.stack([rx1, ry1, rx2, ry2], axis=-1)

    logits, probs, bbox = rcnn_head_forward(feature_maps, rois, params, cfg)
    jax.block_until_ready((logits, probs, bbox))

    assert logits.shape == (b, r, cfg.NUM_CLASSES)
    assert probs.shape == (b, r, cfg.NUM_CLASSES)
    assert bbox.shape == (b, r, cfg.NUM_CLASSES, 4)
    print("KERNEL_OK")
</pallas_src>

<mosaic_0001>
module attributes {stable_mosaic.version = 11 : i64} {
  func.func @_roi_align_kernel(%arg0: i32, %arg1: memref<16x196xi32, #tpu.memory_space<smem>>, %arg2: memref<16x196xf32, #tpu.memory_space<smem>>, %arg3: memref<1360x256xf32, #tpu.memory_space<vmem>>, %arg4: memref<8x49x256xf32, #tpu.memory_space<vmem>>) attributes {dimension_semantics = [#tpu.dimension_semantics<parallel>], iteration_bounds = array<i64: 2>, scalar_prefetch = 0 : i64, scratch_operands = 0 : i64, tpu.core_type = #tpu.core_type<tc>, window_params = [{transform_indices = @transform_0, window_bounds = array<i64: 16, 196>}, {transform_indices = @transform_1, window_bounds = array<i64: 16, 196>}, {pipeline_mode = #tpu.pipeline_mode<synchronous>, transform_indices = @transform_2, window_bounds = array<i64: 1360, 256>}, {transform_indices = @transform_3, window_bounds = array<i64: 8, 49, 256>}]} {
    %c0_i32 = arith.constant 0 : i32
    %c8_i32 = arith.constant 8 : i32
    %0 = arith.addi %c0_i32, %c8_i32 : i32
    %c1_i32 = arith.constant 1 : i32
    scf.for %arg5 = %c0_i32 to %0 step %c1_i32  : i32 {
      %c8_i32_1 = arith.constant 8 : i32
      %1 = arith.muli %arg0, %c8_i32_1 : i32
      %2 = arith.addi %1, %arg5 : i32
      %3 = arith.index_cast %2 : i32 to index
      %c0 = arith.constant 0 : index
      %4 = memref.load %arg1[%3, %c0] : memref<16x196xi32, #tpu.memory_space<smem>>
      %5 = arith.index_cast %2 : i32 to index
      %c1 = arith.constant 1 : index
      %6 = memref.load %arg1[%5, %c1] : memref<16x196xi32, #tpu.memory_space<smem>>
      %7 = arith.index_cast %2 : i32 to index
      %c2 = arith.constant 2 : index
      %8 = memref.load %arg1[%7, %c2] : memref<16x196xi32, #tpu.memory_space<smem>>
      %9 = arith.index_cast %2 : i32 to index
      %c3 = arith.constant 3 : index
      %10 = memref.load %arg1[%9, %c3] : memref<16x196xi32, #tpu.memory_space<smem>>
      %11 = arith.index_cast %2 : i32 to index
      %c0_2 = arith.constant 0 : index
      %12 = memref.load %arg2[%11, %c0_2] : memref<16x196xf32, #tpu.memory_space<smem>>
      %13 = arith.index_cast %4 : i32 to index
      %c0_3 = arith.constant 0 : index
      %14 = vector.load %arg3[%13, %c0_3] : memref<1360x256xf32, #tpu.memory_space<vmem>>, vector<1x256xf32>
      %15 = vector.broadcast %12 : f32 to vector<1x256xf32>
      %16 = arith.mulf %15, %14 : vector<1x256xf32>
      %17 = arith.index_cast %2 : i32 to index
      %c1_4 = arith.constant 1 : index
      %18 = memref.load %arg2[%17, %c1_4] : memref<16x196xf32, #tpu.memory_space<smem>>
      %19 = arith.index_cast %6 : i32 to index
      %c0_5 = arith.constant 0 : index
      %20 = vector.load %arg3[%19, %c0_5] : memref<1360x256xf32, #tpu.memory_space<vmem>>, vector<1x256xf32>
      %21 = vector.broadcast %18 : f32 to vector<1x256xf32>
      %22 = arith.mulf %21, %20 : vector<1x256xf32>
      %23 = arith.addf %16, %22 : vector<1x256xf32>
      %24 = arith.index_cast %2 : i32 to index
      %c2_6 = arith.constant 2 : index
      %25 = memref.load %arg2[%24, %c2_6] : memref<16x196xf32, #tpu.memory_space<smem>>
      %26 = arith.index_cast %8 : i32 to index
      %c0_7 = arith.constant 0 : index
      %27 = vector.load %arg3[%26, %c0_7] : memref<1360x256xf32, #tpu.memory_space<vmem>>, vector<1x256xf32>
      %28 = vector.broadcast %25 : f32 to vector<1x256xf32>
      %29 = arith.mulf %28, %27 : vector<1x256xf32>
      %30 = arith.addf %23, %29 : vector<1x256xf32>
      %31 = arith.index_cast %2 : i32 to index
      %c3_8 = arith.constant 3 : index
      %32 = memref.load %arg2[%31, %c3_8] : memref<16x196xf32, #tpu.memory_space<smem>>
      %33 = arith.index_cast %10 : i32 to index
      %c0_9 = arith.constant 0 : index
      %34 = vector.load %arg3[%33, %c0_9] : memref<1360x256xf32, #tpu.memory_space<vmem>>, vector<1x256xf32>
      %35 = vector.broadcast %32 : f32 to vector<1x256xf32>
      %36 = arith.mulf %35, %34 : vector<1x256xf32>
      %37 = arith.addf %30, %36 : vector<1x256xf32>
      %38 = arith.index_cast %arg5 : i32 to index
      %c0_10 = arith.constant 0 : index
      %c0_11 = arith.constant 0 : index
      %39 = vector.load %arg4[%38, %c0_10, %c0_11] : memref<8x49x256xf32, #tpu.memory_space<vmem>>, vector<1x1x256xf32>
      %40 = vector.shape_cast %39 : vector<1x1x256xf32> to vector<1x256xf32>
      %41 = vector.shape_cast %37 : vector<1x256xf32> to vector<1x1x256xf32>
      tpu.vector_store %arg4[%38, %c0_10, %c0_11], %41 {strides = array<i32>} : memref<8x49x256xf32, #tpu.memory_space<vmem>>, vector<1x1x256xf32>,
      %42 = arith.index_cast %2 : i32 to index
      %c4 = arith.constant 4 : index
      %43 = memref.load %arg1[%42, %c4] : memref<16x196xi32, #tpu.memory_space<smem>>
      %44 = arith.index_cast %2 : i32 to index
      %c5 = arith.constant 5 : index
      %45 = memref.load %arg1[%44, %c5] : memref<16x196xi32, #tpu.memory_space<smem>>
      %46 = arith.index_cast %2 : i32 to index
      %c6 = arith.constant 6 : index
      %47 = memref.load %arg1[%46, %c6] : memref<16x196xi32, #tpu.memory_space<smem>>
      %48 = arith.index_cast %2 : i32 to index
      %c7 = arith.constant 7 : index
      %49 = memref.load %arg1[%48, %c7] : memref<16x196xi32, #tpu.memory_space<smem>>
      %50 = arith.index_cast %2 : i32 to index
      %c4_12 = arith.constant 4 : index
      %51 = memref.load %arg2[%50, %c4_12] : memref<16x196xf32, #tpu.memory_space<smem>>
      %52 = arith.index_cast %43 : i32 to index
      %c0_13 = arith.constant 0 : index
      %53 = vector.load %arg3[%52, %c0_13] : memref<1360x256xf32, #tpu.memory_space<vmem>>, vector<1x256xf32>
      %54 = vector.broadcast %51 : f32 to vector<1x256xf32>
      %55 = arith.mulf %54, %53 : vector<1x256xf32>
      %56 = arith.index_cast %2 : i32 to index
      %c5_14 = arith.constant 5 : index
      %57 = memref.load %arg2[%56, %c5_14] : memref<16x196xf32, #tpu.memory_space<smem>>
      %58 = arith.index_cast %45 : i32 to index
      %c0_15 = arith.constant 0 : index
      %59 = vector.load %arg3[%58, %c0_15] : memref<1360x256xf32, #tpu.memory_space<vmem>>, vector<1x256xf32>
      %60 = vector.broadcast %57 : f32 to vector<1x256xf32>
      %61 = arith.mulf %60, %59 : vector<1x256xf32>
      %62 = arith.addf %55, %61 : vector<1x256xf32>
      %63 = arith.index_cast %2 : i32 to index
      %c6_16 = arith.constant 6 : index
      %64 = memref.load %arg2[%63, %c6_16] : memref<16x196xf32, #tpu.memory_space<smem>>
      %65 = arith.index_cast %47 : i32 to index
      %c0_17 = arith.constant 0 : index
      %66 = vector.load %arg3[%65, %c0_17] : memref<1360x256xf32, #tpu.memory_space<vmem>>, vector<1x256xf32>
      %67 = vector.broadcast %64 : f32 to vector<1x256xf32>
      %68 = arith.mulf %67, %66 : vector<1x256xf32>
      %69 = arith.addf %62, %68 : vector<1x256xf32>
      %70 = arith.index_cast %2 : i32 to index
      %c7_18 = arith.constant 7 : index
      %71 = memref.load %arg2[%70, %c7_18] : memref<16x196xf32, #tpu.memory_space<smem>>
      %72 = arith.index_cast %49 : i32 to index
      %c0_19 = arith.constant 0 : index
      %73 = vector.load %arg3[%72, %c0_19] : memref<1360x256xf32, #tpu.memory_space<vmem>>, vector<1x256xf32>
      %74 = vector.broadcast %71 : f32 to vector<1x256xf32>
      %75 = arith.mulf %74, %73 : vector<1x256xf32>
      %76 = arith.addf %69, %75 : vector<1x256xf32>
      %77 = arith.index_cast %arg5 : i32 to index
      %c1_20 = arith.constant 1 : index
      %c0_21 = arith.constant 0 : index
      %78 = vector.load %arg4[%77, %c1_20, %c0_21] : memref<8x49x256xf32, #tpu.memory_space<vmem>>, vector<1x1x256xf32>
      %79 = vector.shape_cast %78 : vector<1x1x256xf32> to vector<1x256xf32>
      %80 = vector.shape_cast %76 : vector<1x256xf32> to vector<1x1x256xf32>
      tpu.vector_store %arg4[%77, %c1_20, %c0_21], %80 {strides = array<i32>} : memref<8x49x256xf32, #tpu.memory_space<vmem>>, vector<1x1x256xf32>,
      %81 = arith.index_cast %2 : i32 to index
      %c8 = arith.constant 8 : index
      %82 = memref.load %arg1[%81, %c8] : memref<16x196xi32, #tpu.memory_space<smem>>
      %83 = arith.index_cast %2 : i32 to index
      %c9 = arith.constant 9 : index
      %84 = memref.load %arg1[%83, %c9] : memref<16x196xi32, #tpu.memory_space<smem>>
      %85 = arith.index_cast %2 : i32 to index
      %c10 = arith.constant 10 : index
      %86 = memref.load %arg1[%85, %c10] : memref<16x196xi32, #tpu.memory_space<smem>>
      %87 = arith.index_cast %2 : i32 to index
      %c11 = arith.constant 11 : index
      %88 = memref.load %arg1[%87, %c11] : memref<16x196xi32, #tpu.memory_space<smem>>
      %89 = arith.index_cast %2 : i32 to index
      %c8_22 = arith.constant 8 : index
      %90 = memref.load %arg2[%89, %c8_22] : memref<16x196xf32, #tpu.memory_space<smem>>
      %91 = arith.index_cast %82 : i32 to index
      %c0_23 = arith.constant 0 : index
      %92 = vector.load %arg3[%91, %c0_23] : memref<1360x256xf32, #tpu.memory_space<vmem>>, vector<1x256xf32>
      %93 = vector.broadcast %90 : f32 to vector<1x256xf32>
      %94 = arith.mulf %93, %92 : vector<1x256xf32>
      %95 = arith.index_cast %2 : i32 to index
      %c9_24 = arith.constant 9 : index
      %96 = memref.load %arg2[%95, %c9_24] : memref<16x196xf32, #tpu.memory_space<smem>>
      %97 = arith.index_cast %84 : i32 to index
      %c0_25 = arith.constant 0 : index
      %98 = vector.load %arg3[%97, %c0_25] : memref<1360x256xf32, #tpu.memory_space<vmem>>, vector<1x256xf32>
      %99 = vector.broadcast %96 : f32 to vector<1x256xf32>
      %100 = arith.mulf %99, %98 : vector<1x256xf32>
      %101 = arith.addf %94, %100 : vector<1x256xf32>
      %102 = arith.index_cast %2 : i32 to index
      %c10_26 = arith.constant 10 : index
      %103 = memref.load %arg2[%102, %c10_26] : memref<16x196xf32, #tpu.memory_space<smem>>
      %104 = arith.index_cast %86 : i32 to index
      %c0_27 = arith.constant 0 : index
      %105 = vector.load %arg3[%104, %c0_27] : memref<1360x256xf32, #tpu.memory_space<vmem>>, vector<1x256xf32>
      %106 = vector.broadcast %103 : f32 to vector<1x256xf32>
      %107 = arith.mulf %106, %105 : vector<1x256xf32>
      %108 = arith.addf %101, %107 : vector<1x256xf32>
      %109 = arith.index_cast %2 : i32 to index
      %c11_28 = arith.constant 11 : index
      %110 = memref.load %arg2[%109, %c11_28] : memref<16x196xf32, #tpu.memory_space<smem>>
      %111 = arith.index_cast %88 : i32 to index
      %c0_29 = arith.constant 0 : index
      %112 = vector.load %arg3[%111, %c0_29] : memref<1360x256xf32, #tpu.memory_space<vmem>>, vector<1x256xf32>
      %113 = vector.broadcast %110 : f32 to vector<1x256xf32>
      %114 = arith.mulf %113, %112 : vector<1x256xf32>
      %115 = arith.addf %108, %114 : vector<1x256xf32>
      %116 = arith.index_cast %arg5 : i32 to index
      %c2_30 = arith.constant 2 : index
      %c0_31 = arith.constant 0 : index
      %117 = vector.load %arg4[%116, %c2_30, %c0_31] : memref<8x49x256xf32, #tpu.memory_space<vmem>>, vector<1x1x256xf32>
      %118 = vector.shape_cast %117 : vector<1x1x256xf32> to vector<1x256xf32>
      %119 = vector.shape_cast %115 : vector<1x256xf32> to vector<1x1x256xf32>
      tpu.vector_store %arg4[%116, %c2_30, %c0_31], %119 {strides = array<i32>} : memref<8x49x256xf32, #tpu.memory_space<vmem>>, vector<1x1x256xf32>,
      %120 = arith.index_cast %2 : i32 to index
      %c12 = arith.constant 12 : index
      %121 = memref.load %arg1[%120, %c12] : memref<16x196xi32, #tpu.memory_space<smem>>
      %122 = arith.index_cast %2 : i32 to index
      %c13 = arith.constant 13 : index
      %123 = memref.load %arg1[%122, %c13] : memref<16x196xi32, #tpu.memory_space<smem>>
      %124 = arith.index_cast %2 : i32 to index
      %c14 = arith.constant 14 : index
      %125 = memref.load %arg1[%124, %c14] : memref<16x196xi32, #tpu.memory_space<smem>>
      %126 = arith.index_cast %2 : i32 to index
      %c15 = arith.constant 15 : index
      %127 = memref.load %arg1[%126, %c15] : memref<16x196xi32, #tpu.memory_space<smem>>
      %128 = arith.index_cast %2 : i32 to index
      %c12_32 = arith.constant 12 : index
      %129 = memref.load %arg2[%128, %c12_32] : memref<16x196xf32, #tpu.memory_space<smem>>
      %130 = arith.index_cast %121 : i32 to index
      %c0_33 = arith.constant 0 : index
      %131 = vector.load %arg3[%130, %c0_33] : memref<1360x256xf32, #tpu.memory_space<vmem>>, vector<1x256xf32>
      %132 = vector.broadcast %129 : f32 to vector<1x256xf32>
      %133 = arith.mulf %132, %131 : vector<1x256xf32>
      %134 = arith.index_cast %2 : i32 to index
      %c13_34 = arith.constant 13 : index
      %135 = memref.load %arg2[%134, %c13_34] : memref<16x196xf32, #tpu.memory_space<smem>>
      %136 = arith.index_cast %123 : i32 to index
      %c0_35 = arith.constant 0 : index
      %137 = vector.load %arg3[%136, %c0_35] : memref<1360x256xf32, #tpu.memory_space<vmem>>, vector<1x256xf32>
      %138 = vector.broadcast %135 : f32 to vector<1x256xf32>
      %139 = arith.mulf %138, %137 : vector<1x256xf32>
      %140 = arith.addf %133, %139 : vector<1x256xf32>
      %141 = arith.index_cast %2 : i32 to index
      %c14_36 = arith.constant 14 : index
      %142 = memref.load %arg2[%141, %c14_36] : memref<16x196xf32, #tpu.memory_space<smem>>
      %143 = arith.index_cast %125 : i32 to index
      %c0_37 = arith.constant 0 : index
      %144 = vector.load %arg3[%143, %c0_37] : memref<1360x256xf32, #tpu.memory_space<vmem>>, vector<1x256xf32>
      %145 = vector.broadcast %142 : f32 to vector<1x256xf32>
      %146 = arith.mulf %145, %144 : vector<1x256xf32>
      %147 = arith.addf %140, %146 : vector<1x256xf32>
      %148 = arith.index_cast %2 : i32 to index
      %c15_38 = arith.constant 15 : index
      %149 = memref.load %arg2[%148, %c15_38] : memref<16x196xf32, #tpu.memory_space<smem>>
      %150 = arith.index_cast %127 : i32 to index
      %c0_39 = arith.constant 0 : index
      %151 = vector.load %arg3[%150, %c0_39] : memref<1360x256xf32, #tpu.memory_space<vmem>>, vector<1x256xf32>
      %152 = vector.broadcast %149 : f32 to vector<1x256xf32>
      %153 = arith.mulf %152, %151 : vector<1x256xf32>
      %154 = arith.addf %147, %153 : vector<1x256xf32>
      %155 = arith.index_cast %arg5 : i32 to index
      %c3_40 = arith.constant 3 : index
      %c0_41 = arith.constant 0 : index
      %156 = vector.load %arg4[%155, %c3_40, %c0_41] : memref<8x49x256xf32, #tpu.memory_space<vmem>>, vector<1x1x256xf32>
      %157 = vector.shape_cast %156 : vector<1x1x256xf32> to vector<1x256xf32>
      %158 = vector.shape_cast %154 : vector<1x256xf32> to vector<1x1x256xf32>
      tpu.vector_store %arg4[%155, %c3_40, %c0_41], %158 {strides = array<i32>} : memref<8x49x256xf32, #tpu.memory_space<vmem>>, vector<1x1x256xf32>,
      %159 = arith.index_cast %2 : i32 to index
      %c16 = arith.constant 16 : index
      %160 = memref.load %arg1[%159, %c16] : memref<16x196xi32, #tpu.memory_space<smem>>
      %161 = arith.index_cast %2 : i32 to index
      %c17 = arith.constant 17 : index
      %162 = memref.load %arg1[%161, %c17] : memref<16x196xi32, #tpu.memory_space<smem>>
      %163 = arith.index_cast %2 : i32 to index
      %c18 = arith.constant 18 : index
      %164 = memref.load %arg1[%163, %c18] : memref<16x196xi32, #tpu.memory_space<smem>>
      %165 = arith.index_cast %2 : i32 to index
      %c19 = arith.constant 19 : index
      %166 = memref.load %arg1[%165, %c19] : memref<16x196xi32, #tpu.memory_space<smem>>
      %167 = arith.index_cast %2 : i32 to index
      %c16_42 = arith.constant 16 : index
      %168 = memref.load %arg2[%167, %c16_42] : memref<16x196xf32, #tpu.memory_space<smem>>
      %169 = arith.index_cast %160 : i32 to index
      %c0_43 = arith.constant 0 : index
      %170 = vector.load %arg3[%169, %c0_43] : memref<1360x256xf32, #tpu.memory_space<vmem>>, vector<1x256xf32>
      %171 = vector.broadcast %168 : f32 to vector<1x256xf32>
      %172 = arith.mulf %171, %170 : vector<1x256xf32>
      %173 = arith.index_cast %2 : i32 to index
      %c17_44 = arith.constant 17 : index
      %174 = memref.load %arg2[%173, %c17_44] : memref<16x196xf32, #tpu.memory_space<smem>>
      %175 = arith.index_cast %162 : i32 to index
      %c0_45 = arith.constant 0 : index
      %176 = vector.load %arg3[%175, %c0_45] : memref<1360x256xf32, #tpu.memory_space<vmem>>, vector<1x256xf32>
      %177 = vector.broadcast %174 : f32 to vector<1x256xf32>
      %178 = arith.mulf %177, %176 : vector<1x256xf32>
      %179 = arith.addf %172, %178 : vector<1x256xf32>
      %180 = arith.index_cast %2 : i32 to index
      %c18_46 = arith.constant 18 : index
      %181 = memref.load %arg2[%180, %c18_46] : memref<16x196xf32, #tpu.memory_space<smem>>
      %182 = arith.index_cast %164 : i32 to index
      %c0_47 = arith.constant 0 : index
      %183 = vector.load %arg3[%182, %c0_47] : memref<1360x256xf32, #tpu.memory_space<vmem>>, vector<1x256xf32>
      %184 = vector.broadcast %181 : f32 to vector<1x256xf32>
      %185 = arith.mulf %184, %183 : vector<1x256xf32>
      %186 = arith.addf %179, %185 : vector<1x256xf32>
      %187 = arith.index_cast %2 : i32 to index
      %c19_48 = arith.constant 19 : index
      %188 = memref.load %arg2[%187, %c19_48] : memref<16x196xf32, #tpu.memory_space<smem>>
      %189 = arith.index_cast %166 : i32 to index
      %c0_49 = arith.constant 0 : index
      %190 = vector.load %arg3[%189, %c0_49] : memref<1360x256xf32, #tpu.memory_space<vmem>>, vector<1x256xf32>
      %191 = vector.broadcast %188 : f32 to vector<1x256xf32>
      %192 = arith.mulf %191, %190 : vector<1x256xf32>
      %193 = arith.addf %186, %192 : vector<1x256xf32>
      %194 = arith.index_cast %arg5 : i32 to index
      %c4_50 = arith.constant 4 : index
      %c0_51 = arith.constant 0 : index
      %195 = vector.load %arg4[%194, %c4_50, %c0_51] : memref<8x49x256xf32, #tpu.memory_space<vmem>>, vector<1x1x256xf32>
      %196 = vector.shape_cast %195 : vector<1x1x256xf32> to vector<1x256xf32>
      %197 = vector.shape_cast %193 : vector<1x256xf32> to vector<1x1x256xf32>
      tpu.vector_store %arg4[%194, %c4_50, %c0_51], %197 {strides = array<i32>} : memref<8x49x256xf32, #tpu.memory_space<vmem>>, vector<1x1x256xf32>,
      %198 = arith.index_cast %2 : i32 to index
      %c20 = arith.constant 20 : index
      %199 = memref.load %arg1[%198, %c20] : memref<16x196xi32, #tpu.memory_space<smem>>
      %200 = arith.index_cast %2 : i32 to index
      %c21 = arith.constant 21 : index
      %201 = memref.load %arg1[%200, %c21] : memref<16x196xi32, #tpu.memory_space<smem>>
      %202 = arith.index_cast %2 : i32 to index
      %c22 = arith.constant 22 : index
      %203 = memref.load %arg1[%202, %c22] : memref<16x196xi32, #tpu.memory_space<smem>>
      %204 = arith.index_cast %2 : i32 to index
      %c23 = arith.constant 23 : index
      %205 = memref.load %arg1[%204, %c23] : memref<16x196xi32, #tpu.memory_space<smem>>
      %206 = arith.index_cast %2 : i32 to index
      %c20_52 = arith.constant 20 : index
      %207 = memref.load %arg2[%206, %c20_52] : memref<16x196xf32, #tpu.memory_space<smem>>
      %208 = arith.index_cast %199 : i32 to index
      %c0_53 = arith.constant 0 : index
      %209 = vector.load %arg3[%208, %c0_53] : memref<1360x256xf32, #tpu.memory_space<vmem>>, vector<1x256xf32>
      %210 = vector.broadcast %207 : f32 to vector<1x256xf32>
      %211 = arith.mulf %210, %209 : vector<1x256xf32>
      %212 = arith.index_cast %2 : i32 to index
      %c21_54 = arith.constant 21 : index
      %213 = memref.load %arg2[%212, %c21_54] : memref<16x196xf32, #tpu.memory_space<smem>>
      %214 = arith.index_cast %201 : i32 to index
      %c0_55 = arith.constant 0 : index
      %215 = vector.load %arg3[%214, %c0_55] : memref<1360x256xf32, #tpu.memory_space<vmem>>, vector<1x256xf32>
      %216 = vector.broadcast %213 : f32 to vector<1x256xf32>
      %217 = arith.mulf %216, %215 : vector<1x256xf32>
      %218 = arith.addf %211, %217 : vector<1x256xf32>
      %219 = arith.index_cast %2 : i32 to index
      %c22_56 = arith.constant 22 : index
      %220 = memref.load %arg2[%219, %c22_56] : memref<16x196xf32, #tpu.memory_space<smem>>
      %221 = arith.index_cast %203 : i32 to index
      %c0_57 = arith.constant 0 : index
      %222 = vector.load %arg3[%221, %c0_57] : memref<1360x256xf32, #tpu.memory_space<vmem>>, vector<1x256xf32>
      %223 = vector.broadcast %220 : f32 to vector<1x256xf32>
      %224 = arith.mulf %223, %222 : vector<1x256xf32>
      %225 = arith.addf %218, %224 : vector<1x256xf32>
      %226 = arith.index_cast %2 : i32 to index
      %c23_58 = arith.constant 23 : index
      %227 = memref.load %arg2[%226, %c23_58] : memref<16x196xf32, #tpu.memory_space<smem>>
      %228 = arith.index_cast %205 : i32 to index
      %c0_59 = arith.constant 0 : index
      %229 = vector.load %arg3[%228, %c0_59] : memref<1360x256xf32, #tpu.memory_space<vmem>>, vector<1x256xf32>
      %230 = vector.broadcast %227 : f32 to vector<1x256xf32>
      %231 = arith.mulf %230, %229 : vector<1x256xf32>
      %232 = arith.addf %225, %231 : vector<1x256xf32>
      %233 = arith.index_cast %arg5 : i32 to index
      %c5_60 = arith.constant 5 : index
      %c0_61 = arith.constant 0 : index
      %234 = vector.load %arg4[%233, %c5_60, %c0_61] : memref<8x49x256xf32, #tpu.memory_space<vmem>>, vector<1x1x256xf32>
      %235 = vector.shape_cast %234 : vector<1x1x256xf32> to vector<1x256xf32>
      %236 = vector.shape_cast %232 : vector<1x256xf32> to vector<1x1x256xf32>
      tpu.vector_store %arg4[%233, %c5_60, %c0_61], %236 {strides = array<i32>} : memref<8x49x256xf32, #tpu.memory_space<vmem>>, vector<1x1x256xf32>,
      %237 = arith.index_cast %2 : i32 to index
      %c24 = arith.constant 24 : index
      %238 = memref.load %arg1[%237, %c24] : memref<16x196xi32, #tpu.memory_space<smem>>
      %239 = arith.index_cast %2 : i32 to index
      %c25 = arith.constant 25 : index
      %240 = memref.load %arg1[%239, %c25] : memref<16x196xi32, #tpu.memory_space<smem>>
      %241 = arith.index_cast %2 : i32 to index
      %c26 = arith.constant 26 : index
      %242 = memref.load %arg1[%241, %c26] : memref<16x196xi32, #tpu.memory_space<smem>>
      %243 = arith.index_cast %2 : i32 to index
      %c27 = arith.constant 27 : index
      %244 = memref.load %arg1[%243, %c27] : memref<16x196xi32, #tpu.memory_space<smem>>
      %245 = arith.index_cast %2 : i32 to index
      %c24_62 = arith.constant 24 : index
      %246 = memref.load %arg2[%245, %c24_62] : memref<16x196xf32, #tpu.memory_space<smem>>
      %247 = arith.index_cast %238 : i32 to index
      %c0_63 = arith.constant 0 : index
      %248 = vector.load %arg3[%247, %c0_63] : memref<1360x256xf32, #tpu.memory_space<vmem>>, vector<1x256xf32>
      %249 = vector.broadcast %246 : f32 to vector<1x256xf32>
      %250 = arith.mulf %249, %248 : vector<1x256xf32>
      %251 = arith.index_cast %2 : i32 to index
      %c25_64 = arith.constant 25 : index
      %252 = memref.load %arg2[%251, %c25_64] : memref<16x196xf32, #tpu.memory_space<smem>>
      %253 = arith.index_cast %240 : i32 to index
      %c0_65 = arith.constant 0 : index
      %254 = vector.load %arg3[%253, %c0_65] : memref<1360x256xf32, #tpu.memory_space<vmem>>, vector<1x256xf32>
      %255 = vector.broadcast %252 : f32 to vector<1x256xf32>
      %256 = arith.mulf %255, %254 : vector<1x256xf32>
      %257 = arith.addf %250, %256 : vector<1x256xf32>
      %258 = arith.index_cast %2 : i32 to index
      %c26_66 = arith.constant 26 : index
      %259 = memref.load %arg2[%258, %c26_66] : memref<16x196xf32, #tpu.memory_space<smem>>
      %260 = arith.index_cast %242 : i32 to index
      %c0_67 = arith.constant 0 : index
      %261 = vector.load %arg3[%260, %c0_67] : memref<1360x256xf32, #tpu.memory_space<vmem>>, vector<1x256xf32>
      %262 = vector.broadcast %259 : f32 to vector<1x256xf32>
      %263 = arith.mulf %262, %261 : vector<1x256xf32>
      %264 = arith.addf %257, %263 : vector<1x256xf32>
      %265 = arith.index_cast %2 : i32 to index
      %c27_68 = arith.constant 27 : index
      %266 = memref.load %arg2[%265, %c27_68] : memref<16x196xf32, #tpu.memory_space<smem>>
      %267 = arith.index_cast %244 : i32 to index
      %c0_69 = arith.constant 0 : index
      %268 = vector.load %arg3[%267, %c0_69] : memref<1360x256xf32, #tpu.memory_space<vmem>>, vector<1x256xf32>
      %269 = vector.broadcast %266 : f32 to vector<1x256xf32>
      %270 = arith.mulf %269, %268 : vector<1x256xf32>
      %271 = arith.addf %264, %270 : vector<1x256xf32>
      %272 = arith.index_cast %arg5 : i32 to index
      %c6_70 = arith.constant 6 : index
      %c0_71 = arith.constant 0 : index
      %273 = vector.load %arg4[%272, %c6_70, %c0_71] : memref<8x49x256xf32, #tpu.memory_space<vmem>>, vector<1x1x256xf32>
      %274 = vector.shape_cast %273 : vector<1x1x256xf32> to vector<1x256xf32>
      %275 = vector.shape_cast %271 : vector<1x256xf32> to vector<1x1x256xf32>
      tpu.vector_store %arg4[%272, %c6_70, %c0_71], %275 {strides = array<i32>} : memref<8x49x256xf32, #tpu.memory_space<vmem>>, vector<1x1x256xf32>,
      %276 = arith.index_cast %2 : i32 to index
      %c28 = arith.constant 28 : index
      %277 = memref.load %arg1[%276, %c28] : memref<16x196xi32, #tpu.memory_space<smem>>
      %278 = arith.index_cast %2 : i32 to index
      %c29 = arith.constant 29 : index
      %279 = memref.load %arg1[%278, %c29] : memref<16x196xi32, #tpu.memory_space<smem>>
      %280 = arith.index_cast %2 : i32 to index
      %c30 = arith.constant 30 : index
      %281 = memref.load %arg1[%280, %c30] : memref<16x196xi32, #tpu.memory_space<smem>>
      %282 = arith.index_cast %2 : i32 to index
      %c31 = arith.constant 31 : index
      %283 = memref.load %arg1[%282, %c31] : memref<16x196xi32, #tpu.memory_space<smem>>
      %284 = arith.index_cast %2 : i32 to index
      %c28_72 = arith.constant 28 : index
      %285 = memref.load %arg2[%284, %c28_72] : memref<16x196xf32, #tpu.memory_space<smem>>
      %286 = arith.index_cast %277 : i32 to index
      %c0_73 = arith.constant 0 : index
      %287 = vector.load %arg3[%286, %c0_73] : memref<1360x256xf32, #tpu.memory_space<vmem>>, vector<1x256xf32>
      %288 = vector.broadcast %285 : f32 to vector<1x256xf32>
      %289 = arith.mulf %288, %287 : vector<1x256xf32>
      %290 = arith.index_cast %2 : i32 to index
      %c29_74 = arith.constant 29 : index
      %291 = memref.load %arg2[%290, %c29_74] : memref<16x196xf32, #tpu.memory_space<smem>>
      %292 = arith.index_cast %279 : i32 to index
      %c0_75 = arith.constant 0 : index
      %293 = vector.load %arg3[%292, %c0_75] : memref<1360x256xf32, #tpu.memory_space<vmem>>, vector<1x256xf32>
      %294 = vector.broadcast %291 : f32 to vector<1x256xf32>
      %295 = arith.mulf %294, %293 : vector<1x256xf32>
      %296 = arith.addf %289, %295 : vector<1x256xf32>
      %297 = arith.index_cast %2 : i32 to index
      %c30_76 = arith.constant 30 : index
      %298 = memref.load %arg2[%297, %c30_76] : memref<16x196xf32, #tpu.memory_space<smem>>
      %299 = arith.index_cast %281 : i32 to index
      %c0_77 = arith.constant 0 : index
      %300 = vector.load %arg3[%299, %c0_77] : memref<1360x256xf32, #tpu.memory_space<vmem>>, vector<1x256xf32>
      %301 = vector.broadcast %298 : f32 to vector<1x256xf32>
      %302 = arith.mulf %301, %300 : vector<1x256xf32>
      %303 = arith.addf %296, %302 : vector<1x256xf32>
      %304 = arith.index_cast %2 : i32 to index
      %c31_78 = arith.constant 31 : index
      %305 = memref.load %arg2[%304, %c31_78] : memref<16x196xf32, #tpu.memory_space<smem>>
      %306 = arith.index_cast %283 : i32 to index
      %c0_79 = arith.constant 0 : index
      %307 = vector.load %arg3[%306, %c0_79] : memref<1360x256xf32, #tpu.memory_space<vmem>>, vector<1x256xf32>
      %308 = vector.broadcast %305 : f32 to vector<1x256xf32>
      %309 = arith.mulf %308, %307 : vector<1x256xf32>
      %310 = arith.addf %303, %309 : vector<1x256xf32>
      %311 = arith.index_cast %arg5 : i32 to index
      %c7_80 = arith.constant 7 : index
      %c0_81 = arith.constant 0 : index
      %312 = vector.load %arg4[%311, %c7_80, %c0_81] : memref<8x49x256xf32, #tpu.memory_space<vmem>>, vector<1x1x256xf32>
      %313 = vector.shape_cast %312 : vector<1x1x256xf32> to vector<1x256xf32>
      %314 = vector.shape_cast %310 : vector<1x256xf32> to vector<1x1x256xf32>
      tpu.vector_store %arg4[%311, %c7_80, %c0_81], %314 {strides = array<i32>} : memref<8x49x256xf32, #tpu.memory_space<vmem>>, vector<1x1x256xf32>,
      %315 = arith.index_cast %2 : i32 to index
      %c32 = arith.constant 32 : index
      %316 = memref.load %arg1[%315, %c32] : memref<16x196xi32, #tpu.memory_space<smem>>
      %317 = arith.index_cast %2 : i32 to index
      %c33 = arith.constant 33 : index
      %318 = memref.load %arg1[%317, %c33] : memref<16x196xi32, #tpu.memory_space<smem>>
      %319 = arith.index_cast %2 : i32 to index
      %c34 = arith.constant 34 : index
      %320 = memref.load %arg1[%319, %c34] : memref<16x196xi32, #tpu.memory_space<smem>>
      %321 = arith.index_cast %2 : i32 to index
      %c35 = arith.constant 35 : index
      %322 = memref.load %arg1[%321, %c35] : memref<16x196xi32, #tpu.memory_space<smem>>
      %323 = arith.index_cast %2 : i32 to index
      %c32_82 = arith.constant 32 : index
      %324 = memref.load %arg2[%323, %c32_82] : memref<16x196xf32, #tpu.memory_space<smem>>
      %325 = arith.index_cast %316 : i32 to index
      %c0_83 = arith.constant 0 : index
      %326 = vector.load %arg3[%325, %c0_83] : memref<1360x256xf32, #tpu.memory_space<vmem>>, vector<1x256xf32>
      %327 = vector.broadcast %324 : f32 to vector<1x256xf32>
      %328 = arith.mulf %327, %326 : vector<1x256xf32>
      %329 = arith.index_cast %2 : i32 to index
      %c33_84 = arith.constant 33 : index
      %330 = memref.load %arg2[%329, %c33_84] : memref<16x196xf32, #tpu.memory_space<smem>>
      %331 = arith.index_cast %318 : i32 to index
      %c0_85 = arith.constant 0 : index
      %332 = vector.load %arg3[%331, %c0_85] : memref<1360x256xf32, #tpu.memory_space<vmem>>, vector<1x256xf32>
      %333 = vector.broadcast %330 : f32 to vector<1x256xf32>
      %334 = arith.mulf %333, %332 : vector<1x256xf32>
      %335 = arith.addf %328, %334 : vector<1x256xf32>
      %336 = arith.index_cast %2 : i32 to index
      %c34_86 = arith.constant 34 : index
      %337 = memref.load %arg2[%336, %c34_86] : memref<16x196xf32, #tpu.memory_space<smem>>
      %338 = arith.index_cast %320 : i32 to index
      %c0_87 = arith.constant 0 : index
      %339 = vector.load %arg3[%338, %c0_87] : memref<1360x256xf32, #tpu.memory_space<vmem>>, vector<1x256xf32>
      %340 = vector.broadcast %337 : f32 to vector<1x256xf32>
      %341 = arith.mulf %340, %339 : vector<1x256xf32>
      %342 = arith.addf %335, %341 : vector<1x256xf32>
      %343 = arith.index_cast %2 : i32 to index
      %c35_88 = arith.constant 35 : index
      %344 = memref.load %arg2[%343, %c35_88] : memref<16x196xf32, #tpu.memory_space<smem>>
      %345 = arith.index_cast %322 : i32 to index
      %c0_89 = arith.constant 0 : index
      %346 = vector.load %arg3[%345, %c0_89] : memref<1360x256xf32, #tpu.memory_space<vmem>>, vector<1x256xf32>
      %347 = vector.broadcast %344 : f32 to vector<1x256xf32>
      %348 = arith.mulf %347, %346 : vector<1x256xf32>
      %349 = arith.addf %342, %348 : vector<1x256xf32>
      %350 = arith.index_cast %arg5 : i32 to index
      %c8_90 = arith.constant 8 : index
      %c0_91 = arith.constant 0 : index
      %351 = vector.load %arg4[%350, %c8_90, %c0_91] : memref<8x49x256xf32, #tpu.memory_space<vmem>>, vector<1x1x256xf32>
      %352 = vector.shape_cast %351 : vector<1x1x256xf32> to vector<1x256xf32>
      %353 = vector.shape_cast %349 : vector<1x256xf32> to vector<1x1x256xf32>
      tpu.vector_store %arg4[%350, %c8_90, %c0_91], %353 {strides = array<i32>} : memref<8x49x256xf32, #tpu.memory_space<vmem>>, vector<1x1x256xf32>,
      %354 = arith.index_cast %2 : i32 to index
      %c36 = arith.constant 36 : index
      %355 = memref.load %arg1[%354, %c36] : memref<16x196xi32, #tpu.memory_space<smem>>
      %356 = arith.index_cast %2 : i32 to index
      %c37 = arith.constant 37 : index
      %357 = memref.load %arg1[%356, %c37] : memref<16x196xi32, #tpu.memory_space<smem>>
      %358 = arith.index_cast %2 : i32 to index
      %c38 = arith.constant 38 : index
      %359 = memref.load %arg1[%358, %c38] : memref<16x196xi32, #tpu.memory_space<smem>>
      %360 = arith.index_cast %2 : i32 to index
      %c39 = arith.constant 39 : index
      %361 = memref.load %arg1[%360, %c39] : memref<16x196xi32, #tpu.memory_space<smem>>
      %362 = arith.index_cast %2 : i32 to index
      %c36_92 = arith.constant 36 : index
      %363 = memref.load %arg2[%362, %c36_92] : memref<16x196xf32, #tpu.memory_space<smem>>
      %364 = arith.index_cast %355 : i32 to index
      %c0_93 = arith.constant 0 : index
      %365 = vector.load %arg3[%364, %c0_93] : memref<1360x256xf32, #tpu.memory_space<vmem>>, vector<1x256xf32>
      %366 = vector.broadcast %363 : f32 to vector<1x256xf32>
      %367 = arith.mulf %366, %365 : vector<1x256xf32>
      %368 = arith.index_cast %2 : i32 to index
      %c37_94 = arith.constant 37 : index
      %369 = memref.load %arg2[%368, %c37_94] : memref<16x196xf32, #tpu.memory_space<smem>>
      %370 = arith.index_cast %357 : i32 to index
      %c0_95 = arith.constant 0 : index
      %371 = vector.load %arg3[%370, %c0_95] : memref<1360x256xf32, #tpu.memory_space<vmem>>, vector<1x256xf32>
      %372 = vector.broadcast %369 : f32 to vector<1x256xf32>
      %373 = arith.mulf %372, %371 : vector<1x256xf32>
      %374 = arith.addf %367, %373 : vector<1x256xf32>
      %375 = arith.index_cast %2 : i32 to index
      %c38_96 = arith.constant 38 : index
      %376 = memref.load %arg2[%375, %c38_96] : memref<16x196xf32, #tpu.memory_space<smem>>
      %377 = arith.index_cast %359 : i32 to index
      %c0_97 = arith.constant 0 : index
      %378 = vector.load %arg3[%377, %c0_97] : memref<1360x256xf32, #tpu.memory_space<vmem>>, vector<1x256xf32>
      %379 = vector.broadcast %376 : f32 to vector<1x256xf32>
      %380 = arith.mulf %379, %378 : vector<1x256xf32>
      %381 = arith.addf %374, %380 : vector<1x256xf32>
      %382 = arith.index_cast %2 : i32 to index
      %c39_98 = arith.constant 39 : index
      %383 = memref.load %arg2[%382, %c39_98] : memref<16x196xf32, #tpu.memory_space<smem>>
      %384 = arith.index_cast %361 : i32 to index
      %c0_99 = arith.constant 0 : index
      %385 = vector.load %arg3[%384, %c0_99] : memref<1360x256xf32, #tpu.memory_space<vmem>>, vector<1x256xf32>
      %386 = vector.broadcast %383 : f32 to vector<1x256xf32>
      %387 = arith.mulf %386, %385 : vector<1x256xf32>
      %388 = arith.addf %381, %387 : vector<1x256xf32>
      %389 = arith.index_cast %arg5 : i32 to index
      %c9_100 = arith.constant 9 : index
      %c0_101 = arith.constant 0 : index
      %390 = vector.load %arg4[%389, %c9_100, %c0_101] : memref<8x49x256xf32, #tpu.memory_space<vmem>>, vector<1x1x256xf32>
      %391 = vector.shape_cast %390 : vector<1x1x256xf32> to vector<1x256xf32>
      %392 = vector.shape_cast %388 : vector<1x256xf32> to vector<1x1x256xf32>
      tpu.vector_store %arg4[%389, %c9_100, %c0_101], %392 {strides = array<i32>} : memref<8x49x256xf32, #tpu.memory_space<vmem>>, vector<1x1x256xf32>,
      %393 = arith.index_cast %2 : i32 to index
      %c40 = arith.constant 40 : index
      %394 = memref.load %arg1[%393, %c40] : memref<16x196xi32, #tpu.memory_space<smem>>
      %395 = arith.index_cast %2 : i32 to index
      %c41 = arith.constant 41 : index
      %396 = memref.load %arg1[%395, %c41] : memref<16x196xi32, #tpu.memory_space<smem>>
      %397 = arith.index_cast %2 : i32 to index
      %c42 = arith.constant 42 : index
      %398 = memref.load %arg1[%397, %c42] : memref<16x196xi32, #tpu.memory_space<smem>>
      %399 = arith.index_cast %2 : i32 to index
      %c43 = arith.constant 43 : index
      %400 = memref.load %arg1[%399, %c43] : memref<16x196xi32, #tpu.memory_space<smem>>
      %401 = arith.index_cast %2 : i32 to index
      %c40_102 = arith.constant 40 : index
      %402 = memref.load %arg2[%401, %c40_102] : memref<16x196xf32, #tpu.memory_space<smem>>
      %403 = arith.index_cast %394 : i32 to index
      %c0_103 = arith.constant 0 : index
      %404 = vector.load %arg3[%403, %c0_103] : memref<1360x256xf32, #tpu.memory_space<vmem>>, vector<1x256xf32>
      %405 = vector.broadcast %402 : f32 to vector<1x256xf32>
      %406 = arith.mulf %405, %404 : vector<1x256xf32>
      %407 = arith.index_cast %2 : i32 to index
      %c41_104 = arith.constant 41 : index
      %408 = memref.load %arg2[%407, %c41_104] : memref<16x196xf32, #tpu.memory_space<smem>>
      %409 = arith.index_cast %396 : i32 to index
      %c0_105 = arith.constant 0 : index
      %410 = vector.load %arg3[%409, %c0_105] : memref<1360x256xf32, #tpu.memory_space<vmem>>, vector<1x256xf32>
      %411 = vector.broadcast %408 : f32 to vector<1x256xf32>
      %412 = arith.mulf %411, %410 : vector<1x256xf32>
      %413 = arith.addf %406, %412 : vector<1x256xf32>
      %414 = arith.index_cast %2 : i32 to index
      %c42_106 = arith.constant 42 : index
      %415 = memref.load %arg2[%414, %c42_106] : memref<16x196xf32, #tpu.memory_space<smem>>
      %416 = arith.index_cast %398 : i32 to index
      %c0_107 = arith.constant 0 : index
      %417 = vector.load %arg3[%416, %c0_107] : memref<1360x256xf32, #tpu.memory_space<vmem>>, vector<1x256xf32>
      %418 = vector.broadcast %415 : f32 to vector<1x256xf32>
      %419 = arith.mulf %418, %417 : vector<1x256xf32>
      %420 = arith.addf %413, %419 : vector<1x256xf32>
      %421 = arith.index_cast %2 : i32 to index
      %c43_108 = arith.constant 43 : index
      %422 = memref.load %arg2[%421, %c43_108] : memref<16x196xf32, #tpu.memory_space<smem>>
      %423 = arith.index_cast %400 : i32 to index
      %c0_109 = arith.constant 0 : index
      %424 = vector.load %arg3[%423, %c0_109] : memref<1360x256xf32, #tpu.memory_space<vmem>>, vector<1x256xf32>
      %425 = vector.broadcast %422 : f32 to vector<1x256xf32>
      %426 = arith.mulf %425, %424 : vector<1x256xf32>
      %427 = arith.addf %420, %426 : vector<1x256xf32>
      %428 = arith.index_cast %arg5 : i32 to index
      %c10_110 = arith.constant 10 : index
      %c0_111 = arith.constant 0 : index
      %429 = vector.load %arg4[%428, %c10_110, %c0_111] : memref<8x49x256xf32, #tpu.memory_space<vmem>>, vector<1x1x256xf32>
      %430 = vector.shape_cast %429 : vector<1x1x256xf32> to vector<1x256xf32>
      %431 = vector.shape_cast %427 : vector<1x256xf32> to vector<1x1x256xf32>
      tpu.vector_store %arg4[%428, %c10_110, %c0_111], %431 {strides = array<i32>} : memref<8x49x256xf32, #tpu.memory_space<vmem>>, vector<1x1x256xf32>,
      %432 = arith.index_cast %2 : i32 to index
      %c44 = arith.constant 44 : index
      %433 = memref.load %arg1[%432, %c44] : memref<16x196xi32, #tpu.memory_space<smem>>
      %434 = arith.index_cast %2 : i32 to index
      %c45 = arith.constant 45 : index
      %435 = memref.load %arg1[%434, %c45] : memref<16x196xi32, #tpu.memory_space<smem>>
      %436 = arith.index_cast %2 : i32 to index
      %c46 = arith.constant 46 : index
      %437 = memref.load %arg1[%436, %c46] : memref<16x196xi32, #tpu.memory_space<smem>>
      %438 = arith.index_cast %2 : i32 to index
      %c47 = arith.constant 47 : index
      %439 = memref.load %arg1[%438, %c47] : memref<16x196xi32, #tpu.memory_space<smem>>
      %440 = arith.index_cast %2 : i32 to index
      %c44_112 = arith.constant 44 : index
      %441 = memref.load %arg2[%440, %c44_112] : memref<16x196xf32, #tpu.memory_space<smem>>
      %442 = arith.index_cast %433 : i32 to index
      %c0_113 = arith.constant 0 : index
      %443 = vector.load %arg3[%442, %c0_113] : memref<1360x256xf32, #tpu.memory_space<vmem>>, vector<1x256xf32>
      %444 = vector.broadcast %441 : f32 to vector<1x256xf32>
      %445 = arith.mulf %444, %443 : vector<1x256xf32>
      %446 = arith.index_cast %2 : i32 to index
      %c45_114 = arith.constant 45 : index
      %447 = memref.load %arg2[%446, %c45_114] : memref<16x196xf32, #tpu.memory_space<smem>>
      %448 = arith.index_cast %435 : i32 to index
      %c0_115 = arith.constant 0 : index
      %449 = vector.load %arg3[%448, %c0_115] : memref<1360x256xf32, #tpu.memory_space<vmem>>, vector<1x256xf32>
      %450 = vector.broadcast %447 : f32 to vector<1x256xf32>
      %451 = arith.mulf %450, %449 : vector<1x256xf32>
      %452 = arith.addf %445, %451 : vector<1x256xf32>
      %453 = arith.index_cast %2 : i32 to index
      %c46_116 = arith.constant 46 : index
      %454 = memref.load %arg2[%453, %c46_116] : memref<16x196xf32, #tpu.memory_space<smem>>
      %455 = arith.index_cast %437 : i32 to index
      %c0_117 = arith.constant 0 : index
      %456 = vector.load %arg3[%455, %c0_117] : memref<1360x256xf32, #tpu.memory_space<vmem>>, vector<1x256xf32>
      %457 = vector.broadcast %454 : f32 to vector<1x256xf32>
      %458 = arith.mulf %457, %456 : vector<1x256xf32>
      %459 = arith.addf %452, %458 : vector<1x256xf32>
      %460 = arith.index_cast %2 : i32 to index
      %c47_118 = arith.constant 47 : index
      %461 = memref.load %arg2[%460, %c47_118] : memref<16x196xf32, #tpu.memory_space<smem>>
      %462 = arith.index_cast %439 : i32 to index
      %c0_119 = arith.constant 0 : index
      %463 = vector.load %arg3[%462, %c0_119] : memref<1360x256xf32, #tpu.memory_space<vmem>>, vector<1x256xf32>
      %464 = vector.broadcast %461 : f32 to vector<1x256xf32>
      %465 = arith.mulf %464, %463 : vector<1x256xf32>
      %466 = arith.addf %459, %465 : vector<1x256xf32>
      %467 = arith.index_cast %arg5 : i32 to index
      %c11_120 = arith.constant 11 : index
      %c0_121 = arith.constant 0 : index
      %468 = vector.load %arg4[%467, %c11_120, %c0_121] : memref<8x49x256xf32, #tpu.memory_space<vmem>>, vector<1x1x256xf32>
      %469 = vector.shape_cast %468 : vector<1x1x256xf32> to vector<1x256xf32>
      %470 = vector.shape_cast %466 : vector<1x256xf32> to vector<1x1x256xf32>
      tpu.vector_store %arg4[%467, %c11_120, %c0_121], %470 {strides = array<i32>} : memref<8x49x256xf32, #tpu.memory_space<vmem>>, vector<1x1x256xf32>,
      %471 = arith.index_cast %2 : i32 to index
      %c48 = arith.constant 48 : index
      %472 = memref.load %arg1[%471, %c48] : memref<16x196xi32, #tpu.memory_space<smem>>
      %473 = arith.index_cast %2 : i32 to index
      %c49 = arith.constant 49 : index
      %474 = memref.load %arg1[%473, %c49] : memref<16x196xi32, #tpu.memory_space<smem>>
      %475 = arith.index_cast %2 : i32 to index
      %c50 = arith.constant 50 : index
      %476 = memref.load %arg1[%475, %c50] : memref<16x196xi32, #tpu.memory_space<smem>>
      %477 = arith.index_cast %2 : i32 to index
      %c51 = arith.constant 51 : index
      %478 = memref.load %arg1[%477, %c51] : memref<16x196xi32, #tpu.memory_space<smem>>
      %479 = arith.index_cast %2 : i32 to index
      %c48_122 = arith.constant 48 : index
      %480 = memref.load %arg2[%479, %c48_122] : memref<16x196xf32, #tpu.memory_space<smem>>
      %481 = arith.index_cast %472 : i32 to index
      %c0_123 = arith.constant 0 : index
      %482 = vector.load %arg3[%481, %c0_123] : memref<1360x256xf32, #tpu.memory_space<vmem>>, vector<1x256xf32>
      %483 = vector.broadcast %480 : f32 to vector<1x256xf32>
      %484 = arith.mulf %483, %482 : vector<1x256xf32>
      %485 = arith.index_cast %2 : i32 to index
      %c49_124 = arith.constant 49 : index
      %486 = memref.load %arg2[%485, %c49_124] : memref<16x196xf32, #tpu.memory_space<smem>>
      %487 = arith.index_cast %474 : i32 to index
      %c0_125 = arith.constant 0 : index
      %488 = vector.load %arg3[%487, %c0_125] : memref<1360x256xf32, #tpu.memory_space<vmem>>, vector<1x256xf32>
      %489 = vector.broadcast %486 : f32 to vector<1x256xf32>
      %490 = arith.mulf %489, %488 : vector<1x256xf32>
      %491 = arith.addf %484, %490 : vector<1x256xf32>
      %492 = arith.index_cast %2 : i32 to index
      %c50_126 = arith.constant 50 : index
      %493 = memref.load %arg2[%492, %c50_126] : memref<16x196xf32, #tpu.memory_space<smem>>
      %494 = arith.index_cast %476 : i32 to index
      %c0_127 = arith.constant 0 : index
      %495 = vector.load %arg3[%494, %c0_127] : memref<1360x256xf32, #tpu.memory_space<vmem>>, vector<1x256xf32>
      %496 = vector.broadcast %493 : f32 to vector<1x256xf32>
      %497 = arith.mulf %496, %495 : vector<1x256xf32>
      %498 = arith.addf %491, %497 : vector<1x256xf32>
      %499 = arith.index_cast %2 : i32 to index
      %c51_128 = arith.constant 51 : index
      %500 = memref.load %arg2[%499, %c51_128] : memref<16x196xf32, #tpu.memory_space<smem>>
      %501 = arith.index_cast %478 : i32 to index
      %c0_129 = arith.constant 0 : index
      %502 = vector.load %arg3[%501, %c0_129] : memref<1360x256xf32, #tpu.memory_space<vmem>>, vector<1x256xf32>
      %503 = vector.broadcast %500 : f32 to vector<1x256xf32>
      %504 = arith.mulf %503, %502 : vector<1x256xf32>
      %505 = arith.addf %498, %504 : vector<1x256xf32>
      %506 = arith.index_cast %arg5 : i32 to index
      %c12_130 = arith.constant 12 : index
      %c0_131 = arith.constant 0 : index
      %507 = vector.load %arg4[%506, %c12_130, %c0_131] : memref<8x49x256xf32, #tpu.memory_space<vmem>>, vector<1x1x256xf32>
      %508 = vector.shape_cast %507 : vector<1x1x256xf32> to vector<1x256xf32>
      %509 = vector.shape_cast %505 : vector<1x256xf32> to vector<1x1x256xf32>
      tpu.vector_store %arg4[%506, %c12_130, %c0_131], %509 {strides = array<i32>} : memref<8x49x256xf32, #tpu.memory_space<vmem>>, vector<1x1x256xf32>,
      %510 = arith.index_cast %2 : i32 to index
      %c52 = arith.constant 52 : index
      %511 = memref.load %arg1[%510, %c52] : memref<16x196xi32, #tpu.memory_space<smem>>
      %512 = arith.index_cast %2 : i32 to index
      %c53 = arith.constant 53 : index
      %513 = memref.load %arg1[%512, %c53] : memref<16x196xi32, #tpu.memory_space<smem>>
      %514 = arith.index_cast %2 : i32 to index
      %c54 = arith.constant 54 : index
      %515 = memref.load %arg1[%514, %c54] : memref<16x196xi32, #tpu.memory_space<smem>>
      %516 = arith.index_cast %2 : i32 to index
      %c55 = arith.constant 55 : index
      %517 = memref.load %arg1[%516, %c55] : memref<16x196xi32, #tpu.memory_space<smem>>
      %518 = arith.index_cast %2 : i32 to index
      %c52_132 = arith.constant 52 : index
      %519 = memref.load %arg2[%518, %c52_132] : memref<16x196xf32, #tpu.memory_space<smem>>
      %520 = arith.index_cast %511 : i32 to index
      %c0_133 = arith.constant 0 : index
      %521 = vector.load %arg3[%520, %c0_133] : memref<1360x256xf32, #tpu.memory_space<vmem>>, vector<1x256xf32>
      %522 = vector.broadcast %519 : f32 to vector<1x256xf32>
      %523 = arith.mulf %522, %521 : vector<1x256xf32>
      %524 = arith.index_cast %2 : i32 to index
      %c53_134 = arith.constant 53 : index
      %525 = memref.load %arg2[%524, %c53_134] : memref<16x196xf32, #tpu.memory_space<smem>>
      %526 = arith.index_cast %513 : i32 to index
      %c0_135 = arith.constant 0 : index
      %527 = vector.load %arg3[%526, %c0_135] : memref<1360x256xf32, #tpu.memory_space<vmem>>, vector<1x256xf32>
      %528 = vector.broadcast %525 : f32 to vector<1x256xf32>
      %529 = arith.mulf %528, %527 : vector<1x256xf32>
      %530 = arith.addf %523, %529 : vector<1x256xf32>
      %531 = arith.index_cast %2 : i32 to index
      %c54_136 = arith.constant 54 : index
      %532 = memref.load %arg2[%531, %c54_136] : memref<16x196xf32, #tpu.memory_space<smem>>
      %533 = arith.index_cast %515 : i32 to index
      %c0_137 = arith.constant 0 : index
      %534 = vector.load %arg3[%533, %c0_137] : memref<1360x256xf32, #tpu.memory_space<vmem>>, vector<1x256xf32>
      %535 = vector.broadcast %532 : f32 to vector<1x256xf32>
      %536 = arith.mulf %535, %534 : vector<1x256xf32>
      %537 = arith.addf %530, %536 : vector<1x256xf32>
      %538 = arith.index_cast %2 : i32 to index
      %c55_138 = arith.constant 55 : index
      %539 = memref.load %arg2[%538, %c55_138] : memref<16x196xf32, #tpu.memory_space<smem>>
      %540 = arith.index_cast %517 : i32 to index
      %c0_139 = arith.constant 0 : index
      %541 = vector.load %arg3[%540, %c0_139] : memref<1360x256xf32, #tpu.memory_space<vmem>>, vector<1x256xf32>
      %542 = vector.broadcast %539 : f32 to vector<1x256xf32>
      %543 = arith.mulf %542, %541 : vector<1x256xf32>
      %544 = arith.addf %537, %543 : vector<1x256xf32>
      %545 = arith.index_cast %arg5 : i32 to index
      %c13_140 = arith.constant 13 : index
      %c0_141 = arith.constant 0 : index
      %546 = vector.load %arg4[%545, %c13_140, %c0_141] : memref<8x49x256xf32, #tpu.memory_space<vmem>>, vector<1x1x256xf32>
      %547 = vector.shape_cast %546 : vector<1x1x256xf32> to vector<1x256xf32>
      %548 = vector.shape_cast %544 : vector<1x256xf32> to vector<1x1x256xf32>
      tpu.vector_store %arg4[%545, %c13_140, %c0_141], %548 {strides = array<i32>} : memref<8x49x256xf32, #tpu.memory_space<vmem>>, vector<1x1x256xf32>,
      %549 = arith.index_cast %2 : i32 to index
      %c56 = arith.constant 56 : index
      %550 = memref.load %arg1[%549, %c56] : memref<16x196xi32, #tpu.memory_space<smem>>
      %551 = arith.index_cast %2 : i32 to index
      %c57 = arith.constant 57 : index
      %552 = memref.load %arg1[%551, %c57] : memref<16x196xi32, #tpu.memory_space<smem>>
      %553 = arith.index_cast %2 : i32 to index
      %c58 = arith.constant 58 : index
      %554 = memref.load %arg1[%553, %c58] : memref<16x196xi32, #tpu.memory_space<smem>>
      %555 = arith.index_cast %2 : i32 to index
      %c59 = arith.constant 59 : index
      %556 = memref.load %arg1[%555, %c59] : memref<16x196xi32, #tpu.memory_space<smem>>
      %557 = arith.index_cast %2 : i32 to index
      %c56_142 = arith.constant 56 : index
      %558 = memref.load %arg2[%557, %c56_142] : memref<16x196xf32, #tpu.memory_space<smem>>
      %559 = arith.index_cast %550 : i32 to index
      %c0_143 = arith.constant 0 : index
      %560 = vector.load %arg3[%559, %c0_143] : memref<1360x256xf32, #tpu.memory_space<vmem>>, vector<1x256xf32>
      %561 = vector.broadcast %558 : f32 to vector<1x256xf32>
      %562 = arith.mulf %561, %560 : vector<1x256xf32>
      %563 = arith.index_cast %2 : i32 to index
      %c57_144 = arith.constant 57 : index
      %564 = memref.load %arg2[%563, %c57_144] : memref<16x196xf32, #tpu.memory_space<smem>>
      %565 = arith.index_cast %552 : i32 to index
      %c0_145 = arith.constant 0 : index
      %566 = vector.load %arg3[%565, %c0_145] : memref<1360x256xf32, #tpu.memory_space<vmem>>, vector<1x256xf32>
      %567 = vector.broadcast %564 : f32 to vector<1x256xf32>
      %568 = arith.mulf %567, %566 : vector<1x256xf32>
      %569 = arith.addf %562, %568 : vector<1x256xf32>
      %570 = arith.index_cast %2 : i32 to index
      %c58_146 = arith.constant 58 : index
      %571 = memref.load %arg2[%570, %c58_146] : memref<16x196xf32, #tpu.memory_space<smem>>
      %572 = arith.index_cast %554 : i32 to index
      %c0_147 = arith.constant 0 : index
      %573 = vector.load %arg3[%572, %c0_147] : memref<1360x256xf32, #tpu.memory_space<vmem>>, vector<1x256xf32>
      %574 = vector.broadcast %571 : f32 to vector<1x256xf32>
      %575 = arith.mulf %574, %573 : vector<1x256xf32>
      %576 = arith.addf %569, %575 : vector<1x256xf32>
      %577 = arith.index_cast %2 : i32 to index
      %c59_148 = arith.constant 59 : index
      %578 = memref.load %arg2[%577, %c59_148] : memref<16x196xf32, #tpu.memory_space<smem>>
      %579 = arith.index_cast %556 : i32 to index
      %c0_149 = arith.constant 0 : index
      %580 = vector.load %arg3[%579, %c0_149] : memref<1360x256xf32, #tpu.memory_space<vmem>>, vector<1x256xf32>
      %581 = vector.broadcast %578 : f32 to vector<1x256xf32>
      %582 = arith.mulf %581, %580 : vector<1x256xf32>
      %583 = arith.addf %576, %582 : vector<1x256xf32>
      %584 = arith.index_cast %arg5 : i32 to index
      %c14_150 = arith.constant 14 : index
      %c0_151 = arith.constant 0 : index
      %585 = vector.load %arg4[%584, %c14_150, %c0_151] : memref<8x49x256xf32, #tpu.memory_space<vmem>>, vector<1x1x256xf32>
      %586 = vector.shape_cast %585 : vector<1x1x256xf32> to vector<1x256xf32>
      %587 = vector.shape_cast %583 : vector<1x256xf32> to vector<1x1x256xf32>
      tpu.vector_store %arg4[%584, %c14_150, %c0_151], %587 {strides = array<i32>} : memref<8x49x256xf32, #tpu.memory_space<vmem>>, vector<1x1x256xf32>,
      %588 = arith.index_cast %2 : i32 to index
      %c60 = arith.constant 60 : index
      %589 = memref.load %arg1[%588, %c60] : memref<16x196xi32, #tpu.memory_space<smem>>
      %590 = arith.index_cast %2 : i32 to index
      %c61 = arith.constant 61 : index
      %591 = memref.load %arg1[%590, %c61] : memref<16x196xi32, #tpu.memory_space<smem>>
      %592 = arith.index_cast %2 : i32 to index
      %c62 = arith.constant 62 : index
      %593 = memref.load %arg1[%592, %c62] : memref<16x196xi32, #tpu.memory_space<smem>>
      %594 = arith.index_cast %2 : i32 to index
      %c63 = arith.constant 63 : index
      %595 = memref.load %arg1[%594, %c63] : memref<16x196xi32, #tpu.memory_space<smem>>
      %596 = arith.index_cast %2 : i32 to index
      %c60_152 = arith.constant 60 : index
      %597 = memref.load %arg2[%596, %c60_152] : memref<16x196xf32, #tpu.memory_space<smem>>
      %598 = arith.index_cast %589 : i32 to index
      %c0_153 = arith.constant 0 : index
      %599 = vector.load %arg3[%598, %c0_153] : memref<1360x256xf32, #tpu.memory_space<vmem>>, vector<1x256xf32>
      %600 = vector.broadcast %597 : f32 to vector<1x256xf32>
      %601 = arith.mulf %600, %599 : vector<1x256xf32>
      %602 = arith.index_cast %2 : i32 to index
      %c61_154 = arith.constant 61 : index
      %603 = memref.load %arg2[%602, %c61_154] : memref<16x196xf32, #tpu.memory_space<smem>>
      %604 = arith.index_cast %591 : i32 to index
      %c0_155 = arith.constant 0 : index
      %605 = vector.load %arg3[%604, %c0_155] : memref<1360x256xf32, #tpu.memory_space<vmem>>, vector<1x256xf32>
      %606 = vector.broadcast %603 : f32 to vector<1x256xf32>
      %607 = arith.mulf %606, %605 : vector<1x256xf32>
      %608 = arith.addf %601, %607 : vector<1x256xf32>
      %609 = arith.index_cast %2 : i32 to index
      %c62_156 = arith.constant 62 : index
      %610 = memref.load %arg2[%609, %c62_156] : memref<16x196xf32, #tpu.memory_space<smem>>
      %611 = arith.index_cast %593 : i32 to index
      %c0_157 = arith.constant 0 : index
      %612 = vector.load %arg3[%611, %c0_157] : memref<1360x256xf32, #tpu.memory_space<vmem>>, vector<1x256xf32>
      %613 = vector.broadcast %610 : f32 to vector<1x256xf32>
      %614 = arith.mulf %613, %612 : vector<1x256xf32>
      %615 = arith.addf %608, %614 : vector<1x256xf32>
      %616 = arith.index_cast %2 : i32 to index
      %c63_158 = arith.constant 63 : index
      %617 = memref.load %arg2[%616, %c63_158] : memref<16x196xf32, #tpu.memory_space<smem>>
      %618 = arith.index_cast %595 : i32 to index
      %c0_159 = arith.constant 0 : index
      %619 = vector.load %arg3[%618, %c0_159] : memref<1360x256xf32, #tpu.memory_space<vmem>>, vector<1x256xf32>
      %620 = vector.broadcast %617 : f32 to vector<1x256xf32>
      %621 = arith.mulf %620, %619 : vector<1x256xf32>
      %622 = arith.addf %615, %621 : vector<1x256xf32>
      %623 = arith.index_cast %arg5 : i32 to index
      %c15_160 = arith.constant 15 : index
      %c0_161 = arith.constant 0 : index
      %624 = vector.load %arg4[%623, %c15_160, %c0_161] : memref<8x49x256xf32, #tpu.memory_space<vmem>>, vector<1x1x256xf32>
      %625 = vector.shape_cast %624 : vector<1x1x256xf32> to vector<1x256xf32>
      %626 = vector.shape_cast %622 : vector<1x256xf32> to vector<1x1x256xf32>
      tpu.vector_store %arg4[%623, %c15_160, %c0_161], %626 {strides = array<i32>} : memref<8x49x256xf32, #tpu.memory_space<vmem>>, vector<1x1x256xf32>,
      %627 = arith.index_cast %2 : i32 to index
      %c64 = arith.constant 64 : index
      %628 = memref.load %arg1[%627, %c64] : memref<16x196xi32, #tpu.memory_space<smem>>
      %629 = arith.index_cast %2 : i32 to index
      %c65 = arith.constant 65 : index
      %630 = memref.load %arg1[%629, %c65] : memref<16x196xi32, #tpu.memory_space<smem>>
      %631 = arith.index_cast %2 : i32 to index
      %c66 = arith.constant 66 : index
      %632 = memref.load %arg1[%631, %c66] : memref<16x196xi32, #tpu.memory_space<smem>>
      %633 = arith.index_cast %2 : i32 to index
      %c67 = arith.constant 67 : index
      %634 = memref.load %arg1[%633, %c67] : memref<16x196xi32, #tpu.memory_space<smem>>
      %635 = arith.index_cast %2 : i32 to index
      %c64_162 = arith.constant 64 : index
      %636 = memref.load %arg2[%635, %c64_162] : memref<16x196xf32, #tpu.memory_space<smem>>
      %637 = arith.index_cast %628 : i32 to index
      %c0_163 = arith.constant 0 : index
      %638 = vector.load %arg3[%637, %c0_163] : memref<1360x256xf32, #tpu.memory_space<vmem>>, vector<1x256xf32>
      %639 = vector.broadcast %636 : f32 to vector<1x256xf32>
      %640 = arith.mulf %639, %638 : vector<1x256xf32>
      %641 = arith.index_cast %2 : i32 to index
      %c65_164 = arith.constant 65 : index
      %642 = memref.load %arg2[%641, %c65_164] : memref<16x196xf32, #tpu.memory_space<smem>>
      %643 = arith.index_cast %630 : i32 to index
      %c0_165 = arith.constant 0 : index
      %644 = vector.load %arg3[%643, %c0_165] : memref<1360x256xf32, #tpu.memory_space<vmem>>, vector<1x256xf32>
      %645 = vector.broadcast %642 : f32 to vector<1x256xf32>
      %646 = arith.mulf %645, %644 : vector<1x256xf32>
      %647 = arith.addf %640, %646 : vector<1x256xf32>
      %648 = arith.index_cast %2 : i32 to index
      %c66_166 = arith.constant 66 : index
      %649 = memref.load %arg2[%648, %c66_166] : memref<16x196xf32, #tpu.memory_space<smem>>
      %650 = arith.index_cast %632 : i32 to index
      %c0_167 = arith.constant 0 : index
      %651 = vector.load %arg3[%650, %c0_167] : memref<1360x256xf32, #tpu.memory_space<vmem>>, vector<1x256xf32>
      %652 = vector.broadcast %649 : f32 to vector<1x256xf32>
      %653 = arith.mulf %652, %651 : vector<1x256xf32>
      %654 = arith.addf %647, %653 : vector<1x256xf32>
      %655 = arith.index_cast %2 : i32 to index
      %c67_168 = arith.constant 67 : index
      %656 = memref.load %arg2[%655, %c67_168] : memref<16x196xf32, #tpu.memory_space<smem>>
      %657 = arith.index_cast %634 : i32 to index
      %c0_169 = arith.constant 0 : index
      %658 = vector.load %arg3[%657, %c0_169] : memref<1360x256xf32, #tpu.memory_space<vmem>>, vector<1x256xf32>
      %659 = vector.broadcast %656 : f32 to vector<1x256xf32>
      %660 = arith.mulf %659, %658 : vector<1x256xf32>
      %661 = arith.addf %654, %660 : vector<1x256xf32>
      %662 = arith.index_cast %arg5 : i32 to index
      %c16_170 = arith.constant 16 : index
      %c0_171 = arith.constant 0 : index
      %663 = vector.load %arg4[%662, %c16_170, %c0_171] : memref<8x49x256xf32, #tpu.memory_space<vmem>>, vector<1x1x256xf32>
      %664 = vector.shape_cast %663 : vector<1x1x256xf32> to vector<1x256xf32>
      %665 = vector.shape_cast %661 : vector<1x256xf32> to vector<1x1x256xf32>
      tpu.vector_store %arg4[%662, %c16_170, %c0_171], %665 {strides = array<i32>} : memref<8x49x256xf32, #tpu.memory_space<vmem>>, vector<1x1x256xf32>,
      %666 = arith.index_cast %2 : i32 to index
      %c68 = arith.constant 68 : index
      %667 = memref.load %arg1[%666, %c68] : memref<16x196xi32, #tpu.memory_space<smem>>
      %668 = arith.index_cast %2 : i32 to index
      %c69 = arith.constant 69 : index
      %669 = memref.load %arg1[%668, %c69] : memref<16x196xi32, #tpu.memory_space<smem>>
      %670 = arith.index_cast %2 : i32 to index
      %c70 = arith.constant 70 : index
      %671 = memref.load %arg1[%670, %c70] : memref<16x196xi32, #tpu.memory_space<smem>>
      %672 = arith.index_cast %2 : i32 to index
      %c71 = arith.constant 71 : index
      %673 = memref.load %arg1[%672, %c71] : memref<16x196xi32, #tpu.memory_space<smem>>
      %674 = arith.index_cast %2 : i32 to index
      %c68_172 = arith.constant 68 : index
      %675 = memref.load %arg2[%674, %c68_172] : memref<16x196xf32, #tpu.memory_space<smem>>
      %676 = arith.index_cast %667 : i32 to index
      %c0_173 = arith.constant 0 : index
      %677 = vector.load %arg3[%676, %c0_173] : memref<1360x256xf32, #tpu.memory_space<vmem>>, vector<1x256xf32>
      %678 = vector.broadcast %675 : f32 to vector<1x256xf32>
      %679 = arith.mulf %678, %677 : vector<1x256xf32>
      %680 = arith.index_cast %2 : i32 to index
      %c69_174 = arith.constant 69 : index
      %681 = memref.load %arg2[%680, %c69_174] : memref<16x196xf32, #tpu.memory_space<smem>>
      %682 = arith.index_cast %669 : i32 to index
      %c0_175 = arith.constant 0 : index
      %683 = vector.load %arg3[%682, %c0_175] : memref<1360x256xf32, #tpu.memory_space<vmem>>, vector<1x256xf32>
      %684 = vector.broadcast %681 : f32 to vector<1x256xf32>
      %685 = arith.mulf %684, %683 : vector<1x256xf32>
      %686 = arith.addf %679, %685 : vector<1x256xf32>
      %687 = arith.index_cast %2 : i32 to index
      %c70_176 = arith.constant 70 : index
      %688 = memref.load %arg2[%687, %c70_176] : memref<16x196xf32, #tpu.memory_space<smem>>
      %689 = arith.index_cast %671 : i32 to index
      %c0_177 = arith.constant 0 : index
      %690 = vector.load %arg3[%689, %c0_177] : memref<1360x256xf32, #tpu.memory_space<vmem>>, vector<1x256xf32>
      %691 = vector.broadcast %688 : f32 to vector<1x256xf32>
      %692 = arith.mulf %691, %690 : vector<1x256xf32>
      %693 = arith.addf %686, %692 : vector<1x256xf32>
      %694 = arith.index_cast %2 : i32 to index
      %c71_178 = arith.constant 71 : index
      %695 = memref.load %arg2[%694, %c71_178] : memref<16x196xf32, #tpu.memory_space<smem>>
      %696 = arith.index_cast %673 : i32 to index
      %c0_179 = arith.constant 0 : index
      %697 = vector.load %arg3[%696, %c0_179] : memref<1360x256xf32, #tpu.memory_space<vmem>>, vector<1x256xf32>
      %698 = vector.broadcast %695 : f32 to vector<1x256xf32>
      %699 = arith.mulf %698, %697 : vector<1x256xf32>
      %700 = arith.addf %693, %699 : vector<1x256xf32>
      %701 = arith.index_cast %arg5 : i32 to index
      %c17_180 = arith.constant 17 : index
      %c0_181 = arith.constant 0 : index
      %702 = vector.load %arg4[%701, %c17_180, %c0_181] : memref<8x49x256xf32, #tpu.memory_space<vmem>>, vector<1x1x256xf32>
      %703 = vector.shape_cast %702 : vector<1x1x256xf32> to vector<1x256xf32>
      %704 = vector.shape_cast %700 : vector<1x256xf32> to vector<1x1x256xf32>
      tpu.vector_store %arg4[%701, %c17_180, %c0_181], %704 {strides = array<i32>} : memref<8x49x256xf32, #tpu.memory_space<vmem>>, vector<1x1x256xf32>,
      %705 = arith.index_cast %2 : i32 to index
      %c72 = arith.constant 72 : index
      %706 = memref.load %arg1[%705, %c72] : memref<16x196xi32, #tpu.memory_space<smem>>
      %707 = arith.index_cast %2 : i32 to index
      %c73 = arith.constant 73 : index
      %708 = memref.load %arg1[%707, %c73] : memref<16x196xi32, #tpu.memory_space<smem>>
      %709 = arith.index_cast %2 : i32 to index
      %c74 = arith.constant 74 : index
      %710 = memref.load %arg1[%709, %c74] : memref<16x196xi32, #tpu.memory_space<smem>>
      %711 = arith.index_cast %2 : i32 to index
      %c75 = arith.constant 75 : index
      %712 = memref.load %arg1[%711, %c75] : memref<16x196xi32, #tpu.memory_space<smem>>
      %713 = arith.index_cast %2 : i32 to index
      %c72_182 = arith.constant 72 : index
      %714 = memref.load %arg2[%713, %c72_182] : memref<16x196xf32, #tpu.memory_space<smem>>
      %715 = arith.index_cast %706 : i32 to index
      %c0_183 = arith.constant 0 : index
      %716 = vector.load %arg3[%715, %c0_183] : memref<1360x256xf32, #tpu.memory_space<vmem>>, vector<1x256xf32>
      %717 = vector.broadcast %714 : f32 to vector<1x256xf32>
      %718 = arith.mulf %717, %716 : vector<1x256xf32>
      %719 = arith.index_cast %2 : i32 to index
      %c73_184 = arith.constant 73 : index
      %720 = memref.load %arg2[%719, %c73_184] : memref<16x196xf32, #tpu.memory_space<smem>>
      %721 = arith.index_cast %708 : i32 to index
      %c0_185 = arith.constant 0 : index
      %722 = vector.load %arg3[%721, %c0_185] : memref<1360x256xf32, #tpu.memory_space<vmem>>, vector<1x256xf32>
      %723 = vector.broadcast %720 : f32 to vector<1x256xf32>
      %724 = arith.mulf %723, %722 : vector<1x256xf32>
      %725 = arith.addf %718, %724 : vector<1x256xf32>
      %726 = arith.index_cast %2 : i32 to index
      %c74_186 = arith.constant 74 : index
      %727 = memref.load %arg2[%726, %c74_186] : memref<16x196xf32, #tpu.memory_space<smem>>
      %728 = arith.index_cast %710 : i32 to index
      %c0_187 = arith.constant 0 : index
      %729 = vector.load %arg3[%728, %c0_187] : memref<1360x256xf32, #tpu.memory_space<vmem>>, vector<1x256xf32>
      %730 = vector.broadcast %727 : f32 to vector<1x256xf32>
      %731 = arith.mulf %730, %729 : vector<1x256xf32>
      %732 = arith.addf %725, %731 : vector<1x256xf32>
      %733 = arith.index_cast %2 : i32 to index
      %c75_188 = arith.constant 75 : index
      %734 = memref.load %arg2[%733, %c75_188] : memref<16x196xf32, #tpu.memory_space<smem>>
      %735 = arith.index_cast %712 : i32 to index
      %c0_189 = arith.constant 0 : index
      %736 = vector.load %arg3[%735, %c0_189] : memref<1360x256xf32, #tpu.memory_space<vmem>>, vector<1x256xf32>
      %737 = vector.broadcast %734 : f32 to vector<1x256xf32>
      %738 = arith.mulf %737, %736 : vector<1x256xf32>
      %739 = arith.addf %732, %738 : vector<1x256xf32>
      %740 = arith.index_cast %arg5 : i32 to index
      %c18_190 = arith.constant 18 : index
      %c0_191 = arith.constant 0 : index
      %741 = vector.load %arg4[%740, %c18_190, %c0_191] : memref<8x49x256xf32, #tpu.memory_space<vmem>>, vector<1x1x256xf32>
      %742 = vector.shape_cast %741 : vector<1x1x256xf32> to vector<1x256xf32>
      %743 = vector.shape_cast %739 : vector<1x256xf32> to vector<1x1x256xf32>
      tpu.vector_store %arg4[%740, %c18_190, %c0_191], %743 {strides = array<i32>} : memref<8x49x256xf32, #tpu.memory_space<vmem>>, vector<1x1x256xf32>,
      %744 = arith.index_cast %2 : i32 to index
      %c76 = arith.constant 76 : index
      %745 = memref.load %arg1[%744, %c76] : memref<16x196xi32, #tpu.memory_space<smem>>
      %746 = arith.index_cast %2 : i32 to index
      %c77 = arith.constant 77 : index
      %747 = memref.load %arg1[%746, %c77] : memref<16x196xi32, #tpu.memory_space<smem>>
      %748 = arith.index_cast %2 : i32 to index
      %c78 = arith.constant 78 : index
      %749 = memref.load %arg1[%748, %c78] : memref<16x196xi32, #tpu.memory_space<smem>>
      %750 = arith.index_cast %2 : i32 to index
      %c79 = arith.constant 79 : index
      %751 = memref.load %arg1[%750, %c79] : memref<16x196xi32, #tpu.memory_space<smem>>
      %752 = arith.index_cast %2 : i32 to index
      %c76_192 = arith.constant 76 : index
      %753 = memref.load %arg2[%752, %c76_192] : memref<16x196xf32, #tpu.memory_space<smem>>
      %754 = arith.index_cast %745 : i32 to index
      %c0_193 = arith.constant 0 : index
      %755 = vector.load %arg3[%754, %c0_193] : memref<1360x256xf32, #tpu.memory_space<vmem>>, vector<1x256xf32>
      %756 = vector.broadcast %753 : f32 to vector<1x256xf32>
      %757 = arith.mulf %756, %755 : vector<1x256xf32>
      %758 = arith.index_cast %2 : i32 to index
      %c77_194 = arith.constant 77 : index
      %759 = memref.load %arg2[%758, %c77_194] : memref<16x196xf32, #tpu.memory_space<smem>>
      %760 = arith.index_cast %747 : i32 to index
      %c0_195 = arith.constant 0 : index
      %761 = vector.load %arg3[%760, %c0_195] : memref<1360x256xf32, #tpu.memory_space<vmem>>, vector<1x256xf32>
      %762 = vector.broadcast %759 : f32 to vector<1x256xf32>
      %763 = arith.mulf %762, %761 : vector<1x256xf32>
      %764 = arith.addf %757, %763 : vector<1x256xf32>
      %765 = arith.index_cast %2 : i32 to index
      %c78_196 = arith.constant 78 : index
      %766 = memref.load %arg2[%765, %c78_196] : memref<16x196xf32, #tpu.memory_space<smem>>
      %767 = arith.index_cast %749 : i32 to index
      %c0_197 = arith.constant 0 : index
      %768 = vector.load %arg3[%767, %c0_197] : memref<1360x256xf32, #tpu.memory_space<vmem>>, vector<1x256xf32>
      %769 = vector.broadcast %766 : f32 to vector<1x256xf32>
      %770 = arith.mulf %769, %768 : vector<1x256xf32>
      %771 = arith.addf %764, %770 : vector<1x256xf32>
      %772 = arith.index_cast %2 : i32 to index
      %c79_198 = arith.constant 79 : index
      %773 = memref.load %arg2[%772, %c79_198] : memref<16x196xf32, #tpu.memory_space<smem>>
      %774 = arith.index_cast %751 : i32 to index
      %c0_199 = arith.constant 0 : index
      %775 = vector.load %arg3[%774, %c0_199] : memref<1360x256xf32, #tpu.memory_space<vmem>>, vector<1x256xf32>
      %776 = vector.broadcast %773 : f32 to vector<1x256xf32>
      %777 = arith.mulf %776, %775 : vector<1x256xf32>
      %778 = arith.addf %771, %777 : vector<1x256xf32>
      %779 = arith.index_cast %arg5 : i32 to index
      %c19_200 = arith.constant 19 : index
      %c0_201 = arith.constant 0 : index
      %780 = vector.load %arg4[%779, %c19_200, %c0_201] : memref<8x49x256xf32, #tpu.memory_space<vmem>>, vector<1x1x256xf32>
      %781 = vector.shape_cast %780 : vector<1x1x256xf32> to vector<1x256xf32>
      %782 = vector.shape_cast %778 : vector<1x256xf32> to vector<1x1x256xf32>
      tpu.vector_store %arg4[%779, %c19_200, %c0_201], %782 {strides = array<i32>} : memref<8x49x256xf32, #tpu.memory_space<vmem>>, vector<1x1x256xf32>,
      %783 = arith.index_cast %2 : i32 to index
      %c80 = arith.constant 80 : index
      %784 = memref.load %arg1[%783, %c80] : memref<16x196xi32, #tpu.memory_space<smem>>
      %785 = arith.index_cast %2 : i32 to index
      %c81 = arith.constant 81 : index
      %786 = memref.load %arg1[%785, %c81] : memref<16x196xi32, #tpu.memory_space<smem>>
      %787 = arith.index_cast %2 : i32 to index
      %c82 = arith.constant 82 : index
      %788 = memref.load %arg1[%787, %c82] : memref<16x196xi32, #tpu.memory_space<smem>>
      %789 = arith.index_cast %2 : i32 to index
      %c83 = arith.constant 83 : index
      %790 = memref.load %arg1[%789, %c83] : memref<16x196xi32, #tpu.memory_space<smem>>
      %791 = arith.index_cast %2 : i32 to index
      %c80_202 = arith.constant 80 : index
      %792 = memref.load %arg2[%791, %c80_202] : memref<16x196xf32, #tpu.memory_space<smem>>
      %793 = arith.index_cast %784 : i32 to index
      %c0_203 = arith.constant 0 : index
      %794 = vector.load %arg3[%793, %c0_203] : memref<1360x256xf32, #tpu.memory_space<vmem>>, vector<1x256xf32>
      %795 = vector.broadcast %792 : f32 to vector<1x256xf32>
      %796 = arith.mulf %795, %794 : vector<1x256xf32>
      %797 = arith.index_cast %2 : i32 to index
      %c81_204 = arith.constant 81 : index
      %798 = memref.load %arg2[%797, %c81_204] : memref<16x196xf32, #tpu.memory_space<smem>>
      %799 = arith.index_cast %786 : i32 to index
      %c0_205 = arith.constant 0 : index
      %800 = vector.load %arg3[%799, %c0_205] : memref<1360x256xf32, #tpu.memory_space<vmem>>, vector<1x256xf32>
      %801 = vector.broadcast %798 : f32 to vector<1x256xf32>
      %802 = arith.mulf %801, %800 : vector<1x256xf32>
      %803 = arith.addf %796, %802 : vector<1x256xf32>
      %804 = arith.index_cast %2 : i32 to index
      %c82_206 = arith.constant 82 : index
      %805 = memref.load %arg2[%804, %c82_206] : memref<16x196xf32, #tpu.memory_space<smem>>
      %806 = arith.index_cast %788 : i32 to index
      %c0_207 = arith.constant 0 : index
      %807 = vector.load %arg3[%806, %c0_207] : memref<1360x256xf32, #tpu.memory_space<vmem>>, vector<1x256xf32>
      %808 = vector.broadcast %805 : f32 to vector<1x256xf32>
      %809 = arith.mulf %808, %807 : vector<1x256xf32>
      %810 = arith.addf %803, %809 : vector<1x256xf32>
      %811 = arith.index_cast %2 : i32 to index
      %c83_208 = arith.constant 83 : index
      %812 = memref.load %arg2[%811, %c83_208] : memref<16x196xf32, #tpu.memory_space<smem>>
      %813 = arith.index_cast %790 : i32 to index
      %c0_209 = arith.constant 0 : index
      %814 = vector.load %arg3[%813, %c0_209] : memref<1360x256xf32, #tpu.memory_space<vmem>>, vector<1x256xf32>
      %815 = vector.broadcast %812 : f32 to vector<1x256xf32>
      %816 = arith.mulf %815, %814 : vector<1x256xf32>
      %817 = arith.addf %810, %816 : vector<1x256xf32>
      %818 = arith.index_cast %arg5 : i32 to index
      %c20_210 = arith.constant 20 : index
      %c0_211 = arith.constant 0 : index
      %819 = vector.load %arg4[%818, %c20_210, %c0_211] : memref<8x49x256xf32, #tpu.memory_space<vmem>>, vector<1x1x256xf32>
      %820 = vector.shape_cast %819 : vector<1x1x256xf32> to vector<1x256xf32>
      %821 = vector.shape_cast %817 : vector<1x256xf32> to vector<1x1x256xf32>
      tpu.vector_store %arg4[%818, %c20_210, %c0_211], %821 {strides = array<i32>} : memref<8x49x256xf32, #tpu.memory_space<vmem>>, vector<1x1x256xf32>,
      %822 = arith.index_cast %2 : i32 to index
      %c84 = arith.constant 84 : index
      %823 = memref.load %arg1[%822, %c84] : memref<16x196xi32, #tpu.memory_space<smem>>
      %824 = arith.index_cast %2 : i32 to index
      %c85 = arith.constant 85 : index
      %825 = memref.load %arg1[%824, %c85] : memref<16x196xi32, #tpu.memory_space<smem>>
      %826 = arith.index_cast %2 : i32 to index
      %c86 = arith.constant 86 : index
      %827 = memref.load %arg1[%826, %c86] : memref<16x196xi32, #tpu.memory_space<smem>>
      %828 = arith.index_cast %2 : i32 to index
      %c87 = arith.constant 87 : index
      %829 = memref.load %arg1[%828, %c87] : memref<16x196xi32, #tpu.memory_space<smem>>
      %830 = arith.index_cast %2 : i32 to index
      %c84_212 = arith.constant 84 : index
      %831 = memref.load %arg2[%830, %c84_212] : memref<16x196xf32, #tpu.memory_space<smem>>
      %832 = arith.index_cast %823 : i32 to index
      %c0_213 = arith.constant 0 : index
      %833 = vector.load %arg3[%832, %c0_213] : memref<1360x256xf32, #tpu.memory_space<vmem>>, vector<1x256xf32>
      %834 = vector.broadcast %831 : f32 to vector<1x256xf32>
      %835 = arith.mulf %834, %833 : vector<1x256xf32>
      %836 = arith.index_cast %2 : i32 to index
      %c85_214 = arith.constant 85 : index
      %837 = memref.load %arg2[%836, %c85_214] : memref<16x196xf32, #tpu.memory_space<smem>>
      %838 = arith.index_cast %825 : i32 to index
      %c0_215 = arith.constant 0 : index
      %839 = vector.load %arg3[%838, %c0_215] : memref<1360x256xf32, #tpu.memory_space<vmem>>, vector<1x256xf32>
      %840 = vector.broadcast %837 : f32 to vector<1x256xf32>
      %841 = arith.mulf %840, %839 : vector<1x256xf32>
      %842 = arith.addf %835, %841 : vector<1x256xf32>
      %843 = arith.index_cast %2 : i32 to index
      %c86_216 = arith.constant 86 : index
      %844 = memref.load %arg2[%843, %c86_216] : memref<16x196xf32, #tpu.memory_space<smem>>
      %845 = arith.index_cast %827 : i32 to index
      %c0_217 = arith.constant 0 : index
      %846 = vector.load %arg3[%845, %c0_217] : memref<1360x256xf32, #tpu.memory_space<vmem>>, vector<1x256xf32>
      %847 = vector.broadcast %844 : f32 to vector<1x256xf32>
      %848 = arith.mulf %847, %846 : vector<1x256xf32>
      %849 = arith.addf %842, %848 : vector<1x256xf32>
      %850 = arith.index_cast %2 : i32 to index
      %c87_218 = arith.constant 87 : index
      %851 = memref.load %arg2[%850, %c87_218] : memref<16x196xf32, #tpu.memory_space<smem>>
      %852 = arith.index_cast %829 : i32 to index
      %c0_219 = arith.constant 0 : index
      %853 = vector.load %arg3[%852, %c0_219] : memref<1360x256xf32, #tpu.memory_space<vmem>>, vector<1x256xf32>
      %854 = vector.broadcast %851 : f32 to vector<1x256xf32>
      %855 = arith.mulf %854, %853 : vector<1x256xf32>
      %856 = arith.addf %849, %855 : vector<1x256xf32>
      %857 = arith.index_cast %arg5 : i32 to index
      %c21_220 = arith.constant 21 : index
      %c0_221 = arith.constant 0 : index
      %858 = vector.load %arg4[%857, %c21_220, %c0_221] : memref<8x49x256xf32, #tpu.memory_space<vmem>>, vector<1x1x256xf32>
      %859 = vector.shape_cast %858 : vector<1x1x256xf32> to vector<1x256xf32>
      %860 = vector.shape_cast %856 : vector<1x256xf32> to vector<1x1x256xf32>
      tpu.vector_store %arg4[%857, %c21_220, %c0_221], %860 {strides = array<i32>} : memref<8x49x256xf32, #tpu.memory_space<vmem>>, vector<1x1x256xf32>,
      %861 = arith.index_cast %2 : i32 to index
      %c88 = arith.constant 88 : index
      %862 = memref.load %arg1[%861, %c88] : memref<16x196xi32, #tpu.memory_space<smem>>
      %863 = arith.index_cast %2 : i32 to index
      %c89 = arith.constant 89 : index
      %864 = memref.load %arg1[%863, %c89] : memref<16x196xi32, #tpu.memory_space<smem>>
      %865 = arith.index_cast %2 : i32 to index
      %c90 = arith.constant 90 : index
      %866 = memref.load %arg1[%865, %c90] : memref<16x196xi32, #tpu.memory_space<smem>>
      %867 = arith.index_cast %2 : i32 to index
      %c91 = arith.constant 91 : index
      %868 = memref.load %arg1[%867, %c91] : memref<16x196xi32, #tpu.memory_space<smem>>
      %869 = arith.index_cast %2 : i32 to index
      %c88_222 = arith.constant 88 : index
      %870 = memref.load %arg2[%869, %c88_222] : memref<16x196xf32, #tpu.memory_space<smem>>
      %871 = arith.index_cast %862 : i32 to index
      %c0_223 = arith.constant 0 : index
      %872 = vector.load %arg3[%871, %c0_223] : memref<1360x256xf32, #tpu.memory_space<vmem>>, vector<1x256xf32>
      %873 = vector.broadcast %870 : f32 to vector<1x256xf32>
      %874 = arith.mulf %873, %872 : vector<1x256xf32>
      %875 = arith.index_cast %2 : i32 to index
      %c89_224 = arith.constant 89 : index
      %876 = memref.load %arg2[%875, %c89_224] : memref<16x196xf32, #tpu.memory_space<smem>>
      %877 = arith.index_cast %864 : i32 to index
      %c0_225 = arith.constant 0 : index
      %878 = vector.load %arg3[%877, %c0_225] : memref<1360x256xf32, #tpu.memory_space<vmem>>, vector<1x256xf32>
      %879 = vector.broadcast %876 : f32 to vector<1x256xf32>
      %880 = arith.mulf %879, %878 : vector<1x256xf32>
      %881 = arith.addf %874, %880 : vector<1x256xf32>
      %882 = arith.index_cast %2 : i32 to index
      %c90_226 = arith.constant 90 : index
      %883 = memref.load %arg2[%882, %c90_226] : memref<16x196xf32, #tpu.memory_space<smem>>
      %884 = arith.index_cast %866 : i32 to index
      %c0_227 = arith.constant 0 : index
      %885 = vector.load %arg3[%884, %c0_227] : memref<1360x256xf32, #tpu.memory_space<vmem>>, vector<1x256xf32>
      %886 = vector.broadcast %883 : f32 to vector<1x256xf32>
      %887 = arith.mulf %886, %885 : vector<1x256xf32>
      %888 = arith.addf %881, %887 : vector<1x256xf32>
      %889 = arith.index_cast %2 : i32 to index
      %c91_228 = arith.constant 91 : index
      %890 = memref.load %arg2[%889, %c91_228] : memref<16x196xf32, #tpu.memory_space<smem>>
      %891 = arith.index_cast %868 : i32 to index
      %c0_229 = arith.constant 0 : index
      %892 = vector.load %arg3[%891, %c0_229] : memref<1360x256xf32, #tpu.memory_space<vmem>>, vector<1x256xf32>
      %893 = vector.broadcast %890 : f32 to vector<1x256xf32>
      %894 = arith.mulf %893, %892 : vector<1x256xf32>
      %895 = arith.addf %888, %894 : vector<1x256xf32>
      %896 = arith.index_cast %arg5 : i32 to index
      %c22_230 = arith.constant 22 : index
      %c0_231 = arith.constant 0 : index
      %897 = vector.load %arg4[%896, %c22_230, %c0_231] : memref<8x49x256xf32, #tpu.memory_space<vmem>>, vector<1x1x256xf32>
      %898 = vector.shape_cast %897 : vector<1x1x256xf32> to vector<1x256xf32>
      %899 = vector.shape_cast %895 : vector<1x256xf32> to vector<1x1x256xf32>
      tpu.vector_store %arg4[%896, %c22_230, %c0_231], %899 {strides = array<i32>} : memref<8x49x256xf32, #tpu.memory_space<vmem>>, vector<1x1x256xf32>,
      %900 = arith.index_cast %2 : i32 to index
      %c92 = arith.constant 92 : index
      %901 = memref.load %arg1[%900, %c92] : memref<16x196xi32, #tpu.memory_space<smem>>
      %902 = arith.index_cast %2 : i32 to index
      %c93 = arith.constant 93 : index
      %903 = memref.load %arg1[%902, %c93] : memref<16x196xi32, #tpu.memory_space<smem>>
      %904 = arith.index_cast %2 : i32 to index
      %c94 = arith.constant 94 : index
      %905 = memref.load %arg1[%904, %c94] : memref<16x196xi32, #tpu.memory_space<smem>>
      %906 = arith.index_cast %2 : i32 to index
      %c95 = arith.constant 95 : index
      %907 = memref.load %arg1[%906, %c95] : memref<16x196xi32, #tpu.memory_space<smem>>
      %908 = arith.index_cast %2 : i32 to index
      %c92_232 = arith.constant 92 : index
      %909 = memref.load %arg2[%908, %c92_232] : memref<16x196xf32, #tpu.memory_space<smem>>
      %910 = arith.index_cast %901 : i32 to index
      %c0_233 = arith.constant 0 : index
      %911 = vector.load %arg3[%910, %c0_233] : memref<1360x256xf32, #tpu.memory_space<vmem>>, vector<1x256xf32>
      %912 = vector.broadcast %909 : f32 to vector<1x256xf32>
      %913 = arith.mulf %912, %911 : vector<1x256xf32>
      %914 = arith.index_cast %2 : i32 to index
      %c93_234 = arith.constant 93 : index
      %915 = memref.load %arg2[%914, %c93_234] : memref<16x196xf32, #tpu.memory_space<smem>>
      %916 = arith.index_cast %903 : i32 to index
      %c0_235 = arith.constant 0 : index
      %917 = vector.load %arg3[%916, %c0_235] : memref<1360x256xf32, #tpu.memory_space<vmem>>, vector<1x256xf32>
      %918 = vector.broadcast %915 : f32 to vector<1x256xf32>
      %919 = arith.mulf %918, %917 : vector<1x256xf32>
      %920 = arith.addf %913, %919 : vector<1x256xf32>
      %921 = arith.index_cast %2 : i32 to index
      %c94_236 = arith.constant 94 : index
      %922 = memref.load %arg2[%921, %c94_236] : memref<16x196xf32, #tpu.memory_space<smem>>
      %923 = arith.index_cast %905 : i32 to index
      %c0_237 = arith.constant 0 : index
      %924 = vector.load %arg3[%923, %c0_237] : memref<1360x256xf32, #tpu.memory_space<vmem>>, vector<1x256xf32>
      %925 = vector.broadcast %922 : f32 to vector<1x256xf32>
      %926 = arith.mulf %925, %924 : vector<1x256xf32>
      %927 = arith.addf %920, %926 : vector<1x256xf32>
      %928 = arith.index_cast %2 : i32 to index
      %c95_238 = arith.constant 95 : index
      %929 = memref.load %arg2[%928, %c95_238] : memref<16x196xf32, #tpu.memory_space<smem>>
      %930 = arith.index_cast %907 : i32 to index
      %c0_239 = arith.constant 0 : index
      %931 = vector.load %arg3[%930, %c0_239] : memref<1360x256xf32, #tpu.memory_space<vmem>>, vector<1x256xf32>
      %932 = vector.broadcast %929 : f32 to vector<1x256xf32>
      %933 = arith.mulf %932, %931 : vector<1x256xf32>
      %934 = arith.addf %927, %933 : vector<1x256xf32>
      %935 = arith.index_cast %arg5 : i32 to index
      %c23_240 = arith.constant 23 : index
      %c0_241 = arith.constant 0 : index
      %936 = vector.load %arg4[%935, %c23_240, %c0_241] : memref<8x49x256xf32, #tpu.memory_space<vmem>>, vector<1x1x256xf32>
      %937 = vector.shape_cast %936 : vector<1x1x256xf32> to vector<1x256xf32>
      %938 = vector.shape_cast %934 : vector<1x256xf32> to vector<1x1x256xf32>
      tpu.vector_store %arg4[%935, %c23_240, %c0_241], %938 {strides = array<i32>} : memref<8x49x256xf32, #tpu.memory_space<vmem>>, vector<1x1x256xf32>,
      %939 = arith.index_cast %2 : i32 to index
      %c96 = arith.constant 96 : index
      %940 = memref.load %arg1[%939, %c96] : memref<16x196xi32, #tpu.memory_space<smem>>
      %941 = arith.index_cast %2 : i32 to index
      %c97 = arith.constant 97 : index
      %942 = memref.load %arg1[%941, %c97] : memref<16x196xi32, #tpu.memory_space<smem>>
      %943 = arith.index_cast %2 : i32 to index
      %c98 = arith.constant 98 : index
      %944 = memref.load %arg1[%943, %c98] : memref<16x196xi32, #tpu.memory_space<smem>>
      %945 = arith.index_cast %2 : i32 to index
      %c99 = arith.constant 99 : index
      %946 = memref.load %arg1[%945, %c99] : memref<16x196xi32, #tpu.memory_space<smem>>
      %947 = arith.index_cast %2 : i32 to index
      %c96_242 = arith.constant 96 : index
      %948 = memref.load %arg2[%947, %c96_242] : memref<16x196xf32, #tpu.memory_space<smem>>
      %949 = arith.index_cast %940 : i32 to index
      %c0_243 = arith.constant 0 : index
      %950 = vector.load %arg3[%949, %c0_243] : memref<1360x256xf32, #tpu.memory_space<vmem>>, vector<1x256xf32>
      %951 = vector.broadcast %948 : f32 to vector<1x256xf32>
      %952 = arith.mulf %951, %950 : vector<1x256xf32>
      %953 = arith.index_cast %2 : i32 to index
      %c97_244 = arith.constant 97 : index
      %954 = memref.load %arg2[%953, %c97_244] : memref<16x196xf32, #tpu.memory_space<smem>>
      %955 = arith.index_cast %942 : i32 to index
      %c0_245 = arith.constant 0 : index
      %956 = vector.load %arg3[%955, %c0_245] : memref<1360x256xf32, #tpu.memory_space<vmem>>, vector<1x256xf32>
      %957 = vector.broadcast %954 : f32 to vector<1x256xf32>
      %958 = arith.mulf %957, %956 : vector<1x256xf32>
      %959 = arith.addf %952, %958 : vector<1x256xf32>
      %960 = arith.index_cast %2 : i32 to index
      %c98_246 = arith.constant 98 : index
      %961 = memref.load %arg2[%960, %c98_246] : memref<16x196xf32, #tpu.memory_space<smem>>
      %962 = arith.index_cast %944 : i32 to index
      %c0_247 = arith.constant 0 : index
      %963 = vector.load %arg3[%962, %c0_247] : memref<1360x256xf32, #tpu.memory_space<vmem>>, vector<1x256xf32>
      %964 = vector.broadcast %961 : f32 to vector<1x256xf32>
      %965 = arith.mulf %964, %963 : vector<1x256xf32>
      %966 = arith.addf %959, %965 : vector<1x256xf32>
      %967 = arith.index_cast %2 : i32 to index
      %c99_248 = arith.constant 99 : index
      %968 = memref.load %arg2[%967, %c99_248] : memref<16x196xf32, #tpu.memory_space<smem>>
      %969 = arith.index_cast %946 : i32 to index
      %c0_249 = arith.constant 0 : index
      %970 = vector.load %arg3[%969, %c0_249] : memref<1360x256xf32, #tpu.memory_space<vmem>>, vector<1x256xf32>
      %971 = vector.broadcast %968 : f32 to vector<1x256xf32>
      %972 = arith.mulf %971, %970 : vector<1x256xf32>
      %973 = arith.addf %966, %972 : vector<1x256xf32>
      %974 = arith.index_cast %arg5 : i32 to index
      %c24_250 = arith.constant 24 : index
      %c0_251 = arith.constant 0 : index
      %975 = vector.load %arg4[%974, %c24_250, %c0_251] : memref<8x49x256xf32, #tpu.memory_space<vmem>>, vector<1x1x256xf32>
      %976 = vector.shape_cast %975 : vector<1x1x256xf32> to vector<1x256xf32>
      %977 = vector.shape_cast %973 : vector<1x256xf32> to vector<1x1x256xf32>
      tpu.vector_store %arg4[%974, %c24_250, %c0_251], %977 {strides = array<i32>} : memref<8x49x256xf32, #tpu.memory_space<vmem>>, vector<1x1x256xf32>,
      %978 = arith.index_cast %2 : i32 to index
      %c100 = arith.constant 100 : index
      %979 = memref.load %arg1[%978, %c100] : memref<16x196xi32, #tpu.memory_space<smem>>
      %980 = arith.index_cast %2 : i32 to index
      %c101 = arith.constant 101 : index
      %981 = memref.load %arg1[%980, %c101] : memref<16x196xi32, #tpu.memory_space<smem>>
      %982 = arith.index_cast %2 : i32 to index
      %c102 = arith.constant 102 : index
      %983 = memref.load %arg1[%982, %c102] : memref<16x196xi32, #tpu.memory_space<smem>>
      %984 = arith.index_cast %2 : i32 to index
      %c103 = arith.constant 103 : index
      %985 = memref.load %arg1[%984, %c103] : memref<16x196xi32, #tpu.memory_space<smem>>
      %986 = arith.index_cast %2 : i32 to index
      %c100_252 = arith.constant 100 : index
      %987 = memref.load %arg2[%986, %c100_252] : memref<16x196xf32, #tpu.memory_space<smem>>
      %988 = arith.index_cast %979 : i32 to index
      %c0_253 = arith.constant 0 : index
      %989 = vector.load %arg3[%988, %c0_253] : memref<1360x256xf32, #tpu.memory_space<vmem>>, vector<1x256xf32>
      %990 = vector.broadcast %987 : f32 to vector<1x256xf32>
      %991 = arith.mulf %990, %989 : vector<1x256xf32>
      %992 = arith.index_cast %2 : i32 to index
      %c101_254 = arith.constant 101 : index
      %993 = memref.load %arg2[%992, %c101_254] : memref<16x196xf32, #tpu.memory_space<smem>>
      %994 = arith.index_cast %981 : i32 to index
      %c0_255 = arith.constant 0 : index
      %995 = vector.load %arg3[%994, %c0_255] : memref<1360x256xf32, #tpu.memory_space<vmem>>, vector<1x256xf32>
      %996 = vector.broadcast %993 : f32 to vector<1x256xf32>
      %997 = arith.mulf %996, %995 : vector<1x256xf32>
      %998 = arith.addf %991, %997 : vector<1x256xf32>
      %999 = arith.index_cast %2 : i32 to index
      %c102_256 = arith.constant 102 : index
      %1000 = memref.load %arg2[%999, %c102_256] : memref<16x196xf32, #tpu.memory_space<smem>>
      %1001 = arith.index_cast %983 : i32 to index
      %c0_257 = arith.constant 0 : index
      %1002 = vector.load %arg3[%1001, %c0_257] : memref<1360x256xf32, #tpu.memory_space<vmem>>, vector<1x256xf32>
      %1003 = vector.broadcast %1000 : f32 to vector<1x256xf32>
      %1004 = arith.mulf %1003, %1002 : vector<1x256xf32>
      %1005 = arith.addf %998, %1004 : vector<1x256xf32>
      %1006 = arith.index_cast %2 : i32 to index
      %c103_258 = arith.constant 103 : index
      %1007 = memref.load %arg2[%1006, %c103_258] : memref<16x196xf32, #tpu.memory_space<smem>>
      %1008 = arith.index_cast %985 : i32 to index
      %c0_259 = arith.constant 0 : index
      %1009 = vector.load %arg3[%1008, %c0_259] : memref<1360x256xf32, #tpu.memory_space<vmem>>, vector<1x256xf32>
      %1010 = vector.broadcast %1007 : f32 to vector<1x256xf32>
      %1011 = arith.mulf %1010, %1009 : vector<1x256xf32>
      %1012 = arith.addf %1005, %1011 : vector<1x256xf32>
      %1013 = arith.index_cast %arg5 : i32 to index
      %c25_260 = arith.constant 25 : index
      %c0_261 = arith.constant 0 : index
      %1014 = vector.load %arg4[%1013, %c25_260, %c0_261] : memref<8x49x256xf32, #tpu.memory_space<vmem>>, vector<1x1x256xf32>
      %1015 = vector.shape_cast %1014 : vector<1x1x256xf32> to vector<1x256xf32>
      %1016 = vector.shape_cast %1012 : vector<1x256xf32> to vector<1x1x256xf32>
      tpu.vector_store %arg4[%1013, %c25_260, %c0_261], %1016 {strides = array<i32>} : memref<8x49x256xf32, #tpu.memory_space<vmem>>, vector<1x1x256xf32>,
      %1017 = arith.index_cast %2 : i32 to index
      %c104 = arith.constant 104 : index
      %1018 = memref.load %arg1[%1017, %c104] : memref<16x196xi32, #tpu.memory_space<smem>>
      %1019 = arith.index_cast %2 : i32 to index
      %c105 = arith.constant 105 : index
      %1020 = memref.load %arg1[%1019, %c105] : memref<16x196xi32, #tpu.memory_space<smem>>
      %1021 = arith.index_cast %2 : i32 to index
      %c106 = arith.constant 106 : index
      %1022 = memref.load %arg1[%1021, %c106] : memref<16x196xi32, #tpu.memory_space<smem>>
      %1023 = arith.index_cast %2 : i32 to index
      %c107 = arith.constant 107 : index
      %1024 = memref.load %arg1[%1023, %c107] : memref<16x196xi32, #tpu.memory_space<smem>>
      %1025 = arith.index_cast %2 : i32 to index
      %c104_262 = arith.constant 104 : index
      %1026 = memref.load %arg2[%1025, %c104_262] : memref<16x196xf32, #tpu.memory_space<smem>>
      %1027 = arith.index_cast %1018 : i32 to index
      %c0_263 = arith.constant 0 : index
      %1028 = vector.load %arg3[%1027, %c0_263] : memref<1360x256xf32, #tpu.memory_space<vmem>>, vector<1x256xf32>
      %1029 = vector.broadcast %1026 : f32 to vector<1x256xf32>
      %1030 = arith.mulf %1029, %1028 : vector<1x256xf32>
      %1031 = arith.index_cast %2 : i32 to index
      %c105_264 = arith.constant 105 : index
      %1032 = memref.load %arg2[%1031, %c105_264] : memref<16x196xf32, #tpu.memory_space<smem>>
      %1033 = arith.index_cast %1020 : i32 to index
      %c0_265 = arith.constant 0 : index
      %1034 = vector.load %arg3[%1033, %c0_265] : memref<1360x256xf32, #tpu.memory_space<vmem>>, vector<1x256xf32>
      %1035 = vector.broadcast %1032 : f32 to vector<1x256xf32>
      %1036 = arith.mulf %1035, %1034 : vector<1x256xf32>
      %1037 = arith.addf %1030, %1036 : vector<1x256xf32>
      %1038 = arith.index_cast %2 : i32 to index
      %c106_266 = arith.constant 106 : index
      %1039 = memref.load %arg2[%1038, %c106_266] : memref<16x196xf32, #tpu.memory_space<smem>>
      %1040 = arith.index_cast %1022 : i32 to index
      %c0_267 = arith.constant 0 : index
      %1041 = vector.load %arg3[%1040, %c0_267] : memref<1360x256xf32, #tpu.memory_space<vmem>>, vector<1x256xf32>
      %1042 = vector.broadcast %1039 : f32 to vector<1x256xf32>
      %1043 = arith.mulf %1042, %1041 : vector<1x256xf32>
      %1044 = arith.addf %1037, %1043 : vector<1x256xf32>
      %1045 = arith.index_cast %2 : i32 to index
      %c107_268 = arith.constant 107 : index
      %1046 = memref.load %arg2[%1045, %c107_268] : memref<16x196xf32, #tpu.memory_space<smem>>
      %1047 = arith.index_cast %1024 : i32 to index
      %c0_269 = arith.constant 0 : index
      %1048 = vector.load %arg3[%1047, %c0_269] : memref<1360x256xf32, #tpu.memory_space<vmem>>, vector<1x256xf32>
      %1049 = vector.broadcast %1046 : f32 to vector<1x256xf32>
      %1050 = arith.mulf %1049, %1048 : vector<1x256xf32>
      %1051 = arith.addf %1044, %1050 : vector<1x256xf32>
      %1052 = arith.index_cast %arg5 : i32 to index
      %c26_270 = arith.constant 26 : index
      %c0_271 = arith.constant 0 : index
      %1053 = vector.load %arg4[%1052, %c26_270, %c0_271] : memref<8x49x256xf32, #tpu.memory_space<vmem>>, vector<1x1x256xf32>
      %1054 = vector.shape_cast %1053 : vector<1x1x256xf32> to vector<1x256xf32>
      %1055 = vector.shape_cast %1051 : vector<1x256xf32> to vector<1x1x256xf32>
      tpu.vector_store %arg4[%1052, %c26_270, %c0_271], %1055 {strides = array<i32>} : memref<8x49x256xf32, #tpu.memory_space<vmem>>, vector<1x1x256xf32>,
      %1056 = arith.index_cast %2 : i32 to index
      %c108 = arith.constant 108 : index
      %1057 = memref.load %arg1[%1056, %c108] : memref<16x196xi32, #tpu.memory_space<smem>>
      %1058 = arith.index_cast %2 : i32 to index
      %c109 = arith.constant 109 : index
      %1059 = memref.load %arg1[%1058, %c109] : memref<16x196xi32, #tpu.memory_space<smem>>
      %1060 = arith.index_cast %2 : i32 to index
      %c110 = arith.constant 110 : index
      %1061 = memref.load %arg1[%1060, %c110] : memref<16x196xi32, #tpu.memory_space<smem>>
      %1062 = arith.index_cast %2 : i32 to index
      %c111 = arith.constant 111 : index
      %1063 = memref.load %arg1[%1062, %c111] : memref<16x196xi32, #tpu.memory_space<smem>>
      %1064 = arith.index_cast %2 : i32 to index
      %c108_272 = arith.constant 108 : index
      %1065 = memref.load %arg2[%1064, %c108_272] : memref<16x196xf32, #tpu.memory_space<smem>>
      %1066 = arith.index_cast %1057 : i32 to index
      %c0_273 = arith.constant 0 : index
      %1067 = vector.load %arg3[%1066, %c0_273] : memref<1360x256xf32, #tpu.memory_space<vmem>>, vector<1x256xf32>
      %1068 = vector.broadcast %1065 : f32 to vector<1x256xf32>
      %1069 = arith.mulf %1068, %1067 : vector<1x256xf32>
      %1070 = arith.index_cast %2 : i32 to index
      %c109_274 = arith.constant 109 : index
      %1071 = memref.load %arg2[%1070, %c109_274] : memref<16x196xf32, #tpu.memory_space<smem>>
      %1072 = arith.index_cast %1059 : i32 to index
      %c0_275 = arith.constant 0 : index
      %1073 = vector.load %arg3[%1072, %c0_275] : memref<1360x256xf32, #tpu.memory_space<vmem>>, vector<1x256xf32>
      %1074 = vector.broadcast %1071 : f32 to vector<1x256xf32>
      %1075 = arith.mulf %1074, %1073 : vector<1x256xf32>
      %1076 = arith.addf %1069, %1075 : vector<1x256xf32>
      %1077 = arith.index_cast %2 : i32 to index
      %c110_276 = arith.constant 110 : index
      %1078 = memref.load %arg2[%1077, %c110_276] : memref<16x196xf32, #tpu.memory_space<smem>>
      %1079 = arith.index_cast %1061 : i32 to index
      %c0_277 = arith.constant 0 : index
      %1080 = vector.load %arg3[%1079, %c0_277] : memref<1360x256xf32, #tpu.memory_space<vmem>>, vector<1x256xf32>
      %1081 = vector.broadcast %1078 : f32 to vector<1x256xf32>
      %1082 = arith.mulf %1081, %1080 : vector<1x256xf32>
      %1083 = arith.addf %1076, %1082 : vector<1x256xf32>
      %1084 = arith.index_cast %2 : i32 to index
      %c111_278 = arith.constant 111 : index
      %1085 = memref.load %arg2[%1084, %c111_278] : memref<16x196xf32, #tpu.memory_space<smem>>
      %1086 = arith.index_cast %1063 : i32 to index
      %c0_279 = arith.constant 0 : index
      %1087 = vector.load %arg3[%1086, %c0_279] : memref<1360x256xf32, #tpu.memory_space<vmem>>, vector<1x256xf32>
      %1088 = vector.broadcast %1085 : f32 to vector<1x256xf32>
      %1089 = arith.mulf %1088, %1087 : vector<1x256xf32>
      %1090 = arith.addf %1083, %1089 : vector<1x256xf32>
      %1091 = arith.index_cast %arg5 : i32 to index
      %c27_280 = arith.constant 27 : index
      %c0_281 = arith.constant 0 : index
      %1092 = vector.load %arg4[%1091, %c27_280, %c0_281] : memref<8x49x256xf32, #tpu.memory_space<vmem>>, vector<1x1x256xf32>
      %1093 = vector.shape_cast %1092 : vector<1x1x256xf32> to vector<1x256xf32>
      %1094 = vector.shape_cast %1090 : vector<1x256xf32> to vector<1x1x256xf32>
      tpu.vector_store %arg4[%1091, %c27_280, %c0_281], %1094 {strides = array<i32>} : memref<8x49x256xf32, #tpu.memory_space<vmem>>, vector<1x1x256xf32>,
      %1095 = arith.index_cast %2 : i32 to index
      %c112 = arith.constant 112 : index
      %1096 = memref.load %arg1[%1095, %c112] : memref<16x196xi32, #tpu.memory_space<smem>>
      %1097 = arith.index_cast %2 : i32 to index
      %c113 = arith.constant 113 : index
      %1098 = memref.load %arg1[%1097, %c113] : memref<16x196xi32, #tpu.memory_space<smem>>
      %1099 = arith.index_cast %2 : i32 to index
      %c114 = arith.constant 114 : index
      %1100 = memref.load %arg1[%1099, %c114] : memref<16x196xi32, #tpu.memory_space<smem>>
      %1101 = arith.index_cast %2 : i32 to index
      %c115 = arith.constant 115 : index
      %1102 = memref.load %arg1[%1101, %c115] : memref<16x196xi32, #tpu.memory_space<smem>>
      %1103 = arith.index_cast %2 : i32 to index
      %c112_282 = arith.constant 112 : index
      %1104 = memref.load %arg2[%1103, %c112_282] : memref<16x196xf32, #tpu.memory_space<smem>>
      %1105 = arith.index_cast %1096 : i32 to index
      %c0_283 = arith.constant 0 : index
      %1106 = vector.load %arg3[%1105, %c0_283] : memref<1360x256xf32, #tpu.memory_space<vmem>>, vector<1x256xf32>
      %1107 = vector.broadcast %1104 : f32 to vector<1x256xf32>
      %1108 = arith.mulf %1107, %1106 : vector<1x256xf32>
      %1109 = arith.index_cast %2 : i32 to index
      %c113_284 = arith.constant 113 : index
      %1110 = memref.load %arg2[%1109, %c113_284] : memref<16x196xf32, #tpu.memory_space<smem>>
      %1111 = arith.index_cast %1098 : i32 to index
      %c0_285 = arith.constant 0 : index
      %1112 = vector.load %arg3[%1111, %c0_285] : memref<1360x256xf32, #tpu.memory_space<vmem>>, vector<1x256xf32>
      %1113 = vector.broadcast %1110 : f32 to vector<1x256xf32>
      %1114 = arith.mulf %1113, %1112 : vector<1x256xf32>
      %1115 = arith.addf %1108, %1114 : vector<1x256xf32>
      %1116 = arith.index_cast %2 : i32 to index
      %c114_286 = arith.constant 114 : index
      %1117 = memref.load %arg2[%1116, %c114_286] : memref<16x196xf32, #tpu.memory_space<smem>>
      %1118 = arith.index_cast %1100 : i32 to index
      %c0_287 = arith.constant 0 : index
      %1119 = vector.load %arg3[%1118, %c0_287] : memref<1360x256xf32, #tpu.memory_space<vmem>>, vector<1x256xf32>
      %1120 = vector.broadcast %1117 : f32 to vector<1x256xf32>
      %1121 = arith.mulf %1120, %1119 : vector<1x256xf32>
      %1122 = arith.addf %1115, %1121 : vector<1x256xf32>
      %1123 = arith.index_cast %2 : i32 to index
      %c115_288 = arith.constant 115 : index
      %1124 = memref.load %arg2[%1123, %c115_288] : memref<16x196xf32, #tpu.memory_space<smem>>
      %1125 = arith.index_cast %1102 : i32 to index
      %c0_289 = arith.constant 0 : index
      %1126 = vector.load %arg3[%1125, %c0_289] : memref<1360x256xf32, #tpu.memory_space<vmem>>, vector<1x256xf32>
      %1127 = vector.broadcast %1124 : f32 to vector<1x256xf32>
      %1128 = arith.mulf %1127, %1126 : vector<1x256xf32>
      %1129 = arith.addf %1122, %1128 : vector<1x256xf32>
      %1130 = arith.index_cast %arg5 : i32 to index
      %c28_290 = arith.constant 28 : index
      %c0_291 = arith.constant 0 : index
      %1131 = vector.load %arg4[%1130, %c28_290, %c0_291] : memref<8x49x256xf32, #tpu.memory_space<vmem>>, vector<1x1x256xf32>
      %1132 = vector.shape_cast %1131 : vector<1x1x256xf32> to vector<1x256xf32>
      %1133 = vector.shape_cast %1129 : vector<1x256xf32> to vector<1x1x256xf32>
      tpu.vector_store %arg4[%1130, %c28_290, %c0_291], %1133 {strides = array<i32>} : memref<8x49x256xf32, #tpu.memory_space<vmem>>, vector<1x1x256xf32>,
      %1134 = arith.index_cast %2 : i32 to index
      %c116 = arith.constant 116 : index
      %1135 = memref.load %arg1[%1134, %c116] : memref<16x196xi32, #tpu.memory_space<smem>>
      %1136 = arith.index_cast %2 : i32 to index
      %c117 = arith.constant 117 : index
      %1137 = memref.load %arg1[%1136, %c117] : memref<16x196xi32, #tpu.memory_space<smem>>
      %1138 = arith.index_cast %2 : i32 to index
      %c118 = arith.constant 118 : index
      %1139 = memref.load %arg1[%1138, %c118] : memref<16x196xi32, #tpu.memory_space<smem>>
      %1140 = arith.index_cast %2 : i32 to index
      %c119 = arith.constant 119 : index
      %1141 = memref.load %arg1[%1140, %c119] : memref<16x196xi32, #tpu.memory_space<smem>>
      %1142 = arith.index_cast %2 : i32 to index
      %c116_292 = arith.constant 116 : index
      %1143 = memref.load %arg2[%1142, %c116_292] : memref<16x196xf32, #tpu.memory_space<smem>>
      %1144 = arith.index_cast %1135 : i32 to index
      %c0_293 = arith.constant 0 : index
      %1145 = vector.load %arg3[%1144, %c0_293] : memref<1360x256xf32, #tpu.memory_space<vmem>>, vector<1x256xf32>
      %1146 = vector.broadcast %1143 : f32 to vector<1x256xf32>
      %1147 = arith.mulf %1146, %1145 : vector<1x256xf32>
      %1148 = arith.index_cast %2 : i32 to index
      %c117_294 = arith.constant 117 : index
      %1149 = memref.load %arg2[%1148, %c117_294] : memref<16x196xf32, #tpu.memory_space<smem>>
      %1150 = arith.index_cast %1137 : i32 to index
      %c0_295 = arith.constant 0 : index
      %1151 = vector.load %arg3[%1150, %c0_295] : memref<1360x256xf32, #tpu.memory_space<vmem>>, vector<1x256xf32>
      %1152 = vector.broadcast %1149 : f32 to vector<1x256xf32>
      %1153 = arith.mulf %1152, %1151 : vector<1x256xf32>
      %1154 = arith.addf %1147, %1153 : vector<1x256xf32>
      %1155 = arith.index_cast %2 : i32 to index
      %c118_296 = arith.constant 118 : index
      %1156 = memref.load %arg2[%1155, %c118_296] : memref<16x196xf32, #tpu.memory_space<smem>>
      %1157 = arith.index_cast %1139 : i32 to index
      %c0_297 = arith.constant 0 : index
      %1158 = vector.load %arg3[%1157, %c0_297] : memref<1360x256xf32, #tpu.memory_space<vmem>>, vector<1x256xf32>
      %1159 = vector.broadcast %1156 : f32 to vector<1x256xf32>
      %1160 = arith.mulf %1159, %1158 : vector<1x256xf32>
      %1161 = arith.addf %1154, %1160 : vector<1x256xf32>
      %1162 = arith.index_cast %2 : i32 to index
      %c119_298 = arith.constant 119 : index
      %1163 = memref.load %arg2[%1162, %c119_298] : memref<16x196xf32, #tpu.memory_space<smem>>
      %1164 = arith.index_cast %1141 : i32 to index
      %c0_299 = arith.constant 0 : index
      %1165 = vector.load %arg3[%1164, %c0_299] : memref<1360x256xf32, #tpu.memory_space<vmem>>, vector<1x256xf32>
      %1166 = vector.broadcast %1163 : f32 to vector<1x256xf32>
      %1167 = arith.mulf %1166, %1165 : vector<1x256xf32>
      %1168 = arith.addf %1161, %1167 : vector<1x256xf32>
      %1169 = arith.index_cast %arg5 : i32 to index
      %c29_300 = arith.constant 29 : index
      %c0_301 = arith.constant 0 : index
      %1170 = vector.load %arg4[%1169, %c29_300, %c0_301] : memref<8x49x256xf32, #tpu.memory_space<vmem>>, vector<1x1x256xf32>
      %1171 = vector.shape_cast %1170 : vector<1x1x256xf32> to vector<1x256xf32>
      %1172 = vector.shape_cast %1168 : vector<1x256xf32> to vector<1x1x256xf32>
      tpu.vector_store %arg4[%1169, %c29_300, %c0_301], %1172 {strides = array<i32>} : memref<8x49x256xf32, #tpu.memory_space<vmem>>, vector<1x1x256xf32>,
      %1173 = arith.index_cast %2 : i32 to index
      %c120 = arith.constant 120 : index
      %1174 = memref.load %arg1[%1173, %c120] : memref<16x196xi32, #tpu.memory_space<smem>>
      %1175 = arith.index_cast %2 : i32 to index
      %c121 = arith.constant 121 : index
      %1176 = memref.load %arg1[%1175, %c121] : memref<16x196xi32, #tpu.memory_space<smem>>
      %1177 = arith.index_cast %2 : i32 to index
      %c122 = arith.constant 122 : index
      %1178 = memref.load %arg1[%1177, %c122] : memref<16x196xi32, #tpu.memory_space<smem>>
      %1179 = arith.index_cast %2 : i32 to index
      %c123 = arith.constant 123 : index
      %1180 = memref.load %arg1[%1179, %c123] : memref<16x196xi32, #tpu.memory_space<smem>>
      %1181 = arith.index_cast %2 : i32 to index
      %c120_302 = arith.constant 120 : index
      %1182 = memref.load %arg2[%1181, %c120_302] : memref<16x196xf32, #tpu.memory_space<smem>>
      %1183 = arith.index_cast %1174 : i32 to index
      %c0_303 = arith.constant 0 : index
      %1184 = vector.load %arg3[%1183, %c0_303] : memref<1360x256xf32, #tpu.memory_space<vmem>>, vector<1x256xf32>
      %1185 = vector.broadcast %1182 : f32 to vector<1x256xf32>
      %1186 = arith.mulf %1185, %1184 : vector<1x256xf32>
      %1187 = arith.index_cast %2 : i32 to index
      %c121_304 = arith.constant 121 : index
      %1188 = memref.load %arg2[%1187, %c121_304] : memref<16x196xf32, #tpu.memory_space<smem>>
      %1189 = arith.index_cast %1176 : i32 to index
      %c0_305 = arith.constant 0 : index
      %1190 = vector.load %arg3[%1189, %c0_305] : memref<1360x256xf32, #tpu.memory_space<vmem>>, vector<1x256xf32>
      %1191 = vector.broadcast %1188 : f32 to vector<1x256xf32>
      %1192 = arith.mulf %1191, %1190 : vector<1x256xf32>
      %1193 = arith.addf %1186, %1192 : vector<1x256xf32>
      %1194 = arith.index_cast %2 : i32 to index
      %c122_306 = arith.constant 122 : index
      %1195 = memref.load %arg2[%1194, %c122_306] : memref<16x196xf32, #tpu.memory_space<smem>>
      %1196 = arith.index_cast %1178 : i32 to index
      %c0_307 = arith.constant 0 : index
      %1197 = vector.load %arg3[%1196, %c0_307] : memref<1360x256xf32, #tpu.memory_space<vmem>>, vector<1x256xf32>
      %1198 = vector.broadcast %1195 : f32 to vector<1x256xf32>
      %1199 = arith.mulf %1198, %1197 : vector<1x256xf32>
      %1200 = arith.addf %1193, %1199 : vector<1x256xf32>
      %1201 = arith.index_cast %2 : i32 to index
      %c123_308 = arith.constant 123 : index
      %1202 = memref.load %arg2[%1201, %c123_308] : memref<16x196xf32, #tpu.memory_space<smem>>
      %1203 = arith.index_cast %1180 : i32 to index
      %c0_309 = arith.constant 0 : index
      %1204 = vector.load %arg3[%1203, %c0_309] : memref<1360x256xf32, #tpu.memory_space<vmem>>, vector<1x256xf32>
      %1205 = vector.broadcast %1202 : f32 to vector<1x256xf32>
      %1206 = arith.mulf %1205, %1204 : vector<1x256xf32>
      %1207 = arith.addf %1200, %1206 : vector<1x256xf32>
      %1208 = arith.index_cast %arg5 : i32 to index
      %c30_310 = arith.constant 30 : index
      %c0_311 = arith.constant 0 : index
      %1209 = vector.load %arg4[%1208, %c30_310, %c0_311] : memref<8x49x256xf32, #tpu.memory_space<vmem>>, vector<1x1x256xf32>
      %1210 = vector.shape_cast %1209 : vector<1x1x256xf32> to vector<1x256xf32>
      %1211 = vector.shape_cast %1207 : vector<1x256xf32> to vector<1x1x256xf32>
      tpu.vector_store %arg4[%1208, %c30_310, %c0_311], %1211 {strides = array<i32>} : memref<8x49x256xf32, #tpu.memory_space<vmem>>, vector<1x1x256xf32>,
      %1212 = arith.index_cast %2 : i32 to index
      %c124 = arith.constant 124 : index
      %1213 = memref.load %arg1[%1212, %c124] : memref<16x196xi32, #tpu.memory_space<smem>>
      %1214 = arith.index_cast %2 : i32 to index
      %c125 = arith.constant 125 : index
      %1215 = memref.load %arg1[%1214, %c125] : memref<16x196xi32, #tpu.memory_space<smem>>
      %1216 = arith.index_cast %2 : i32 to index
      %c126 = arith.constant 126 : index
      %1217 = memref.load %arg1[%1216, %c126] : memref<16x196xi32, #tpu.memory_space<smem>>
      %1218 = arith.index_cast %2 : i32 to index
      %c127 = arith.constant 127 : index
      %1219 = memref.load %arg1[%1218, %c127] : memref<16x196xi32, #tpu.memory_space<smem>>
      %1220 = arith.index_cast %2 : i32 to index
      %c124_312 = arith.constant 124 : index
      %1221 = memref.load %arg2[%1220, %c124_312] : memref<16x196xf32, #tpu.memory_space<smem>>
      %1222 = arith.index_cast %1213 : i32 to index
      %c0_313 = arith.constant 0 : index
      %1223 = vector.load %arg3[%1222, %c0_313] : memref<1360x256xf32, #tpu.memory_space<vmem>>, vector<1x256xf32>
      %1224 = vector.broadcast %1221 : f32 to vector<1x256xf32>
      %1225 = arith.mulf %1224, %1223 : vector<1x256xf32>
      %1226 = arith.index_cast %2 : i32 to index
      %c125_314 = arith.constant 125 : index
      %1227 = memref.load %arg2[%1226, %c125_314] : memref<16x196xf32, #tpu.memory_space<smem>>
      %1228 = arith.index_cast %1215 : i32 to index
      %c0_315 = arith.constant 0 : index
      %1229 = vector.load %arg3[%1228, %c0_315] : memref<1360x256xf32, #tpu.memory_space<vmem>>, vector<1x256xf32>
      %1230 = vector.broadcast %1227 : f32 to vector<1x256xf32>
      %1231 = arith.mulf %1230, %1229 : vector<1x256xf32>
      %1232 = arith.addf %1225, %1231 : vector<1x256xf32>
      %1233 = arith.index_cast %2 : i32 to index
      %c126_316 = arith.constant 126 : index
      %1234 = memref.load %arg2[%1233, %c126_316] : memref<16x196xf32, #tpu.memory_space<smem>>
      %1235 = arith.index_cast %1217 : i32 to index
      %c0_317 = arith.constant 0 : index
      %1236 = vector.load %arg3[%1235, %c0_317] : memref<1360x256xf32, #tpu.memory_space<vmem>>, vector<1x256xf32>
      %1237 = vector.broadcast %1234 : f32 to vector<1x256xf32>
      %1238 = arith.mulf %1237, %1236 : vector<1x256xf32>
      %1239 = arith.addf %1232, %1238 : vector<1x256xf32>
      %1240 = arith.index_cast %2 : i32 to index
      %c127_318 = arith.constant 127 : index
      %1241 = memref.load %arg2[%1240, %c127_318] : memref<16x196xf32, #tpu.memory_space<smem>>
      %1242 = arith.index_cast %1219 : i32 to index
      %c0_319 = arith.constant 0 : index
      %1243 = vector.load %arg3[%1242, %c0_319] : memref<1360x256xf32, #tpu.memory_space<vmem>>, vector<1x256xf32>
      %1244 = vector.broadcast %1241 : f32 to vector<1x256xf32>
      %1245 = arith.mulf %1244, %1243 : vector<1x256xf32>
      %1246 = arith.addf %1239, %1245 : vector<1x256xf32>
      %1247 = arith.index_cast %arg5 : i32 to index
      %c31_320 = arith.constant 31 : index
      %c0_321 = arith.constant 0 : index
      %1248 = vector.load %arg4[%1247, %c31_320, %c0_321] : memref<8x49x256xf32, #tpu.memory_space<vmem>>, vector<1x1x256xf32>
      %1249 = vector.shape_cast %1248 : vector<1x1x256xf32> to vector<1x256xf32>
      %1250 = vector.shape_cast %1246 : vector<1x256xf32> to vector<1x1x256xf32>
      tpu.vector_store %arg4[%1247, %c31_320, %c0_321], %1250 {strides = array<i32>} : memref<8x49x256xf32, #tpu.memory_space<vmem>>, vector<1x1x256xf32>,
      %1251 = arith.index_cast %2 : i32 to index
      %c128 = arith.constant 128 : index
      %1252 = memref.load %arg1[%1251, %c128] : memref<16x196xi32, #tpu.memory_space<smem>>
      %1253 = arith.index_cast %2 : i32 to index
      %c129 = arith.constant 129 : index
      %1254 = memref.load %arg1[%1253, %c129] : memref<16x196xi32, #tpu.memory_space<smem>>
      %1255 = arith.index_cast %2 : i32 to index
      %c130 = arith.constant 130 : index
      %1256 = memref.load %arg1[%1255, %c130] : memref<16x196xi32, #tpu.memory_space<smem>>
      %1257 = arith.index_cast %2 : i32 to index
      %c131 = arith.constant 131 : index
      %1258 = memref.load %arg1[%1257, %c131] : memref<16x196xi32, #tpu.memory_space<smem>>
      %1259 = arith.index_cast %2 : i32 to index
      %c128_322 = arith.constant 128 : index
      %1260 = memref.load %arg2[%1259, %c128_322] : memref<16x196xf32, #tpu.memory_space<smem>>
      %1261 = arith.index_cast %1252 : i32 to index
      %c0_323 = arith.constant 0 : index
      %1262 = vector.load %arg3[%1261, %c0_323] : memref<1360x256xf32, #tpu.memory_space<vmem>>, vector<1x256xf32>
      %1263 = vector.broadcast %1260 : f32 to vector<1x256xf32>
      %1264 = arith.mulf %1263, %1262 : vector<1x256xf32>
      %1265 = arith.index_cast %2 : i32 to index
      %c129_324 = arith.constant 129 : index
      %1266 = memref.load %arg2[%1265, %c129_324] : memref<16x196xf32, #tpu.memory_space<smem>>
      %1267 = arith.index_cast %1254 : i32 to index
      %c0_325 = arith.constant 0 : index
      %1268 = vector.load %arg3[%1267, %c0_325] : memref<1360x256xf32, #tpu.memory_space<vmem>>, vector<1x256xf32>
      %1269 = vector.broadcast %1266 : f32 to vector<1x256xf32>
      %1270 = arith.mulf %1269, %1268 : vector<1x256xf32>
      %1271 = arith.addf %1264, %1270 : vector<1x256xf32>
      %1272 = arith.index_cast %2 : i32 to index
      %c130_326 = arith.constant 130 : index
      %1273 = memref.load %arg2[%1272, %c130_326] : memref<16x196xf32, #tpu.memory_space<smem>>
      %1274 = arith.index_cast %1256 : i32 to index
      %c0_327 = arith.constant 0 : index
      %1275 = vector.load %arg3[%1274, %c0_327] : memref<1360x256xf32, #tpu.memory_space<vmem>>, vector<1x256xf32>
      %1276 = vector.broadcast %1273 : f32 to vector<1x256xf32>
      %1277 = arith.mulf %1276, %1275 : vector<1x256xf32>
      %1278 = arith.addf %1271, %1277 : vector<1x256xf32>
      %1279 = arith.index_cast %2 : i32 to index
      %c131_328 = arith.constant 131 : index
      %1280 = memref.load %arg2[%1279, %c131_328] : memref<16x196xf32, #tpu.memory_space<smem>>
      %1281 = arith.index_cast %1258 : i32 to index
      %c0_329 = arith.constant 0 : index
      %1282 = vector.load %arg3[%1281, %c0_329] : memref<1360x256xf32, #tpu.memory_space<vmem>>, vector<1x256xf32>
      %1283 = vector.broadcast %1280 : f32 to vector<1x256xf32>
      %1284 = arith.mulf %1283, %1282 : vector<1x256xf32>
      %1285 = arith.addf %1278, %1284 : vector<1x256xf32>
      %1286 = arith.index_cast %arg5 : i32 to index
      %c32_330 = arith.constant 32 : index
      %c0_331 = arith.constant 0 : index
      %1287 = vector.load %arg4[%1286, %c32_330, %c0_331] : memref<8x49x256xf32, #tpu.memory_space<vmem>>, vector<1x1x256xf32>
      %1288 = vector.shape_cast %1287 : vector<1x1x256xf32> to vector<1x256xf32>
      %1289 = vector.shape_cast %1285 : vector<1x256xf32> to vector<1x1x256xf32>
      tpu.vector_store %arg4[%1286, %c32_330, %c0_331], %1289 {strides = array<i32>} : memref<8x49x256xf32, #tpu.memory_space<vmem>>, vector<1x1x256xf32>,
      %1290 = arith.index_cast %2 : i32 to index
      %c132 = arith.constant 132 : index
      %1291 = memref.load %arg1[%1290, %c132] : memref<16x196xi32, #tpu.memory_space<smem>>
      %1292 = arith.index_cast %2 : i32 to index
      %c133 = arith.constant 133 : index
      %1293 = memref.load %arg1[%1292, %c133] : memref<16x196xi32, #tpu.memory_space<smem>>
      %1294 = arith.index_cast %2 : i32 to index
      %c134 = arith.constant 134 : index
      %1295 = memref.load %arg1[%1294, %c134] : memref<16x196xi32, #tpu.memory_space<smem>>
      %1296 = arith.index_cast %2 : i32 to index
      %c135 = arith.constant 135 : index
      %1297 = memref.load %arg1[%1296, %c135] : memref<16x196xi32, #tpu.memory_space<smem>>
      %1298 = arith.index_cast %2 : i32 to index
      %c132_332 = arith.constant 132 : index
      %1299 = memref.load %arg2[%1298, %c132_332] : memref<16x196xf32, #tpu.memory_space<smem>>
      %1300 = arith.index_cast %1291 : i32 to index
      %c0_333 = arith.constant 0 : index
      %1301 = vector.load %arg3[%1300, %c0_333] : memref<1360x256xf32, #tpu.memory_space<vmem>>, vector<1x256xf32>
      %1302 = vector.broadcast %1299 : f32 to vector<1x256xf32>
      %1303 = arith.mulf %1302, %1301 : vector<1x256xf32>
      %1304 = arith.index_cast %2 : i32 to index
      %c133_334 = arith.constant 133 : index
      %1305 = memref.load %arg2[%1304, %c133_334] : memref<16x196xf32, #tpu.memory_space<smem>>
      %1306 = arith.index_cast %1293 : i32 to index
      %c0_335 = arith.constant 0 : index
      %1307 = vector.load %arg3[%1306, %c0_335] : memref<1360x256xf32, #tpu.memory_space<vmem>>, vector<1x256xf32>
      %1308 = vector.broadcast %1305 : f32 to vector<1x256xf32>
      %1309 = arith.mulf %1308, %1307 : vector<1x256xf32>
      %1310 = arith.addf %1303, %1309 : vector<1x256xf32>
      %1311 = arith.index_cast %2 : i32 to index
      %c134_336 = arith.constant 134 : index
      %1312 = memref.load %arg2[%1311, %c134_336] : memref<16x196xf32, #tpu.memory_space<smem>>
      %1313 = arith.index_cast %1295 : i32 to index
      %c0_337 = arith.constant 0 : index
      %1314 = vector.load %arg3[%1313, %c0_337] : memref<1360x256xf32, #tpu.memory_space<vmem>>, vector<1x256xf32>
      %1315 = vector.broadcast %1312 : f32 to vector<1x256xf32>
      %1316 = arith.mulf %1315, %1314 : vector<1x256xf32>
      %1317 = arith.addf %1310, %1316 : vector<1x256xf32>
      %1318 = arith.index_cast %2 : i32 to index
      %c135_338 = arith.constant 135 : index
      %1319 = memref.load %arg2[%1318, %c135_338] : memref<16x196xf32, #tpu.memory_space<smem>>
      %1320 = arith.index_cast %1297 : i32 to index
      %c0_339 = arith.constant 0 : index
      %1321 = vector.load %arg3[%1320, %c0_339] : memref<1360x256xf32, #tpu.memory_space<vmem>>, vector<1x256xf32>
      %1322 = vector.broadcast %1319 : f32 to vector<1x256xf32>
      %1323 = arith.mulf %1322, %1321 : vector<1x256xf32>
      %1324 = arith.addf %1317, %1323 : vector<1x256xf32>
      %1325 = arith.index_cast %arg5 : i32 to index
      %c33_340 = arith.constant 33 : index
      %c0_341 = arith.constant 0 : index
      %1326 = vector.load %arg4[%1325, %c33_340, %c0_341] : memref<8x49x256xf32, #tpu.memory_space<vmem>>, vector<1x1x256xf32>
      %1327 = vector.shape_cast %1326 : vector<1x1x256xf32> to vector<1x256xf32>
      %1328 = vector.shape_cast %1324 : vector<1x256xf32> to vector<1x1x256xf32>
      tpu.vector_store %arg4[%1325, %c33_340, %c0_341], %1328 {strides = array<i32>} : memref<8x49x256xf32, #tpu.memory_space<vmem>>, vector<1x1x256xf32>,
      %1329 = arith.index_cast %2 : i32 to index
      %c136 = arith.constant 136 : index
      %1330 = memref.load %arg1[%1329, %c136] : memref<16x196xi32, #tpu.memory_space<smem>>
      %1331 = arith.index_cast %2 : i32 to index
      %c137 = arith.constant 137 : index
      %1332 = memref.load %arg1[%1331, %c137] : memref<16x196xi32, #tpu.memory_space<smem>>
      %1333 = arith.index_cast %2 : i32 to index
      %c138 = arith.constant 138 : index
      %1334 = memref.load %arg1[%1333, %c138] : memref<16x196xi32, #tpu.memory_space<smem>>
      %1335 = arith.index_cast %2 : i32 to index
      %c139 = arith.constant 139 : index
      %1336 = memref.load %arg1[%1335, %c139] : memref<16x196xi32, #tpu.memory_space<smem>>
      %1337 = arith.index_cast %2 : i32 to index
      %c136_342 = arith.constant 136 : index
      %1338 = memref.load %arg2[%1337, %c136_342] : memref<16x196xf32, #tpu.memory_space<smem>>
      %1339 = arith.index_cast %1330 : i32 to index
      %c0_343 = arith.constant 0 : index
      %1340 = vector.load %arg3[%1339, %c0_343] : memref<1360x256xf32, #tpu.memory_space<vmem>>, vector<1x256xf32>
      %1341 = vector.broadcast %1338 : f32 to vector<1x256xf32>
      %1342 = arith.mulf %1341, %1340 : vector<1x256xf32>
      %1343 = arith.index_cast %2 : i32 to index
      %c137_344 = arith.constant 137 : index
      %1344 = memref.load %arg2[%1343, %c137_344] : memref<16x196xf32, #tpu.memory_space<smem>>
      %1345 = arith.index_cast %1332 : i32 to index
      %c0_345 = arith.constant 0 : index
      %1346 = vector.load %arg3[%1345, %c0_345] : memref<1360x256xf32, #tpu.memory_space<vmem>>, vector<1x256xf32>
      %1347 = vector.broadcast %1344 : f32 to vector<1x256xf32>
      %1348 = arith.mulf %1347, %1346 : vector<1x256xf32>
      %1349 = arith.addf %1342, %1348 : vector<1x256xf32>
      %1350 = arith.index_cast %2 : i32 to index
      %c138_346 = arith.constant 138 : index
      %1351 = memref.load %arg2[%1350, %c138_346] : memref<16x196xf32, #tpu.memory_space<smem>>
      %1352 = arith.index_cast %1334 : i32 to index
      %c0_347 = arith.constant 0 : index
      %1353 = vector.load %arg3[%1352, %c0_347] : memref<1360x256xf32, #tpu.memory_space<vmem>>, vector<1x256xf32>
      %1354 = vector.broadcast %1351 : f32 to vector<1x256xf32>
      %1355 = arith.mulf %1354, %1353 : vector<1x256xf32>
      %1356 = arith.addf %1349, %1355 : vector<1x256xf32>
      %1357 = arith.index_cast %2 : i32 to index
      %c139_348 = arith.constant 139 : index
      %1358 = memref.load %arg2[%1357, %c139_348] : memref<16x196xf32, #tpu.memory_space<smem>>
      %1359 = arith.index_cast %1336 : i32 to index
      %c0_349 = arith.constant 0 : index
      %1360 = vector.load %arg3[%1359, %c0_349] : memref<1360x256xf32, #tpu.memory_space<vmem>>, vector<1x256xf32>
      %1361 = vector.broadcast %1358 : f32 to vector<1x256xf32>
      %1362 = arith.mulf %1361, %1360 : vector<1x256xf32>
      %1363 = arith.addf %1356, %1362 : vector<1x256xf32>
      %1364 = arith.index_cast %arg5 : i32 to index
      %c34_350 = arith.constant 34 : index
      %c0_351 = arith.constant 0 : index
      %1365 = vector.load %arg4[%1364, %c34_350, %c0_351] : memref<8x49x256xf32, #tpu.memory_space<vmem>>, vector<1x1x256xf32>
      %1366 = vector.shape_cast %1365 : vector<1x1x256xf32> to vector<1x256xf32>
      %1367 = vector.shape_cast %1363 : vector<1x256xf32> to vector<1x1x256xf32>
      tpu.vector_store %arg4[%1364, %c34_350, %c0_351], %1367 {strides = array<i32>} : memref<8x49x256xf32, #tpu.memory_space<vmem>>, vector<1x1x256xf32>,
      %1368 = arith.index_cast %2 : i32 to index
      %c140 = arith.constant 140 : index
      %1369 = memref.load %arg1[%1368, %c140] : memref<16x196xi32, #tpu.memory_space<smem>>
      %1370 = arith.index_cast %2 : i32 to index
      %c141 = arith.constant 141 : index
      %1371 = memref.load %arg1[%1370, %c141] : memref<16x196xi32, #tpu.memory_space<smem>>
      %1372 = arith.index_cast %2 : i32 to index
      %c142 = arith.constant 142 : index
      %1373 = memref.load %arg1[%1372, %c142] : memref<16x196xi32, #tpu.memory_space<smem>>
      %1374 = arith.index_cast %2 : i32 to index
      %c143 = arith.constant 143 : index
      %1375 = memref.load %arg1[%1374, %c143] : memref<16x196xi32, #tpu.memory_space<smem>>
      %1376 = arith.index_cast %2 : i32 to index
      %c140_352 = arith.constant 140 : index
      %1377 = memref.load %arg2[%1376, %c140_352] : memref<16x196xf32, #tpu.memory_space<smem>>
      %1378 = arith.index_cast %1369 : i32 to index
      %c0_353 = arith.constant 0 : index
      %1379 = vector.load %arg3[%1378, %c0_353] : memref<1360x256xf32, #tpu.memory_space<vmem>>, vector<1x256xf32>
      %1380 = vector.broadcast %1377 : f32 to vector<1x256xf32>
      %1381 = arith.mulf %1380, %1379 : vector<1x256xf32>
      %1382 = arith.index_cast %2 : i32 to index
      %c141_354 = arith.constant 141 : index
      %1383 = memref.load %arg2[%1382, %c141_354] : memref<16x196xf32, #tpu.memory_space<smem>>
      %1384 = arith.index_cast %1371 : i32 to index
      %c0_355 = arith.constant 0 : index
      %1385 = vector.load %arg3[%1384, %c0_355] : memref<1360x256xf32, #tpu.memory_space<vmem>>, vector<1x256xf32>
      %1386 = vector.broadcast %1383 : f32 to vector<1x256xf32>
      %1387 = arith.mulf %1386, %1385 : vector<1x256xf32>
      %1388 = arith.addf %1381, %1387 : vector<1x256xf32>
      %1389 = arith.index_cast %2 : i32 to index
      %c142_356 = arith.constant 142 : index
      %1390 = memref.load %arg2[%1389, %c142_356] : memref<16x196xf32, #tpu.memory_space<smem>>
      %1391 = arith.index_cast %1373 : i32 to index
      %c0_357 = arith.constant 0 : index
      %1392 = vector.load %arg3[%1391, %c0_357] : memref<1360x256xf32, #tpu.memory_space<vmem>>, vector<1x256xf32>
      %1393 = vector.broadcast %1390 : f32 to vector<1x256xf32>
      %1394 = arith.mulf %1393, %1392 : vector<1x256xf32>
      %1395 = arith.addf %1388, %1394 : vector<1x256xf32>
      %1396 = arith.index_cast %2 : i32 to index
      %c143_358 = arith.constant 143 : index
      %1397 = memref.load %arg2[%1396, %c143_358] : memref<16x196xf32, #tpu.memory_space<smem>>
      %1398 = arith.index_cast %1375 : i32 to index
      %c0_359 = arith.constant 0 : index
      %1399 = vector.load %arg3[%1398, %c0_359] : memref<1360x256xf32, #tpu.memory_space<vmem>>, vector<1x256xf32>
      %1400 = vector.broadcast %1397 : f32 to vector<1x256xf32>
      %1401 = arith.mulf %1400, %1399 : vector<1x256xf32>
      %1402 = arith.addf %1395, %1401 : vector<1x256xf32>
      %1403 = arith.index_cast %arg5 : i32 to index
      %c35_360 = arith.constant 35 : index
      %c0_361 = arith.constant 0 : index
      %1404 = vector.load %arg4[%1403, %c35_360, %c0_361] : memref<8x49x256xf32, #tpu.memory_space<vmem>>, vector<1x1x256xf32>
      %1405 = vector.shape_cast %1404 : vector<1x1x256xf32> to vector<1x256xf32>
      %1406 = vector.shape_cast %1402 : vector<1x256xf32> to vector<1x1x256xf32>
      tpu.vector_store %arg4[%1403, %c35_360, %c0_361], %1406 {strides = array<i32>} : memref<8x49x256xf32, #tpu.memory_space<vmem>>, vector<1x1x256xf32>,
      %1407 = arith.index_cast %2 : i32 to index
      %c144 = arith.constant 144 : index
      %1408 = memref.load %arg1[%1407, %c144] : memref<16x196xi32, #tpu.memory_space<smem>>
      %1409 = arith.index_cast %2 : i32 to index
      %c145 = arith.constant 145 : index
      %1410 = memref.load %arg1[%1409, %c145] : memref<16x196xi32, #tpu.memory_space<smem>>
      %1411 = arith.index_cast %2 : i32 to index
      %c146 = arith.constant 146 : index
      %1412 = memref.load %arg1[%1411, %c146] : memref<16x196xi32, #tpu.memory_space<smem>>
      %1413 = arith.index_cast %2 : i32 to index
      %c147 = arith.constant 147 : index
      %1414 = memref.load %arg1[%1413, %c147] : memref<16x196xi32, #tpu.memory_space<smem>>
      %1415 = arith.index_cast %2 : i32 to index
      %c144_362 = arith.constant 144 : index
      %1416 = memref.load %arg2[%1415, %c144_362] : memref<16x196xf32, #tpu.memory_space<smem>>
      %1417 = arith.index_cast %1408 : i32 to index
      %c0_363 = arith.constant 0 : index
      %1418 = vector.load %arg3[%1417, %c0_363] : memref<1360x256xf32, #tpu.memory_space<vmem>>, vector<1x256xf32>
      %1419 = vector.broadcast %1416 : f32 to vector<1x256xf32>
      %1420 = arith.mulf %1419, %1418 : vector<1x256xf32>
      %1421 = arith.index_cast %2 : i32 to index
      %c145_364 = arith.constant 145 : index
      %1422 = memref.load %arg2[%1421, %c145_364] : memref<16x196xf32, #tpu.memory_space<smem>>
      %1423 = arith.index_cast %1410 : i32 to index
      %c0_365 = arith.constant 0 : index
      %1424 = vector.load %arg3[%1423, %c0_365] : memref<1360x256xf32, #tpu.memory_space<vmem>>, vector<1x256xf32>
      %1425 = vector.broadcast %1422 : f32 to vector<1x256xf32>
      %1426 = arith.mulf %1425, %1424 : vector<1x256xf32>
      %1427 = arith.addf %1420, %1426 : vector<1x256xf32>
      %1428 = arith.index_cast %2 : i32 to index
      %c146_366 = arith.constant 146 : index
      %1429 = memref.load %arg2[%1428, %c146_366] : memref<16x196xf32, #tpu.memory_space<smem>>
      %1430 = arith.index_cast %1412 : i32 to index
      %c0_367 = arith.constant 0 : index
      %1431 = vector.load %arg3[%1430, %c0_367] : memref<1360x256xf32, #tpu.memory_space<vmem>>, vector<1x256xf32>
      %1432 = vector.broadcast %1429 : f32 to vector<1x256xf32>
      %1433 = arith.mulf %1432, %1431 : vector<1x256xf32>
      %1434 = arith.addf %1427, %1433 : vector<1x256xf32>
      %1435 = arith.index_cast %2 : i32 to index
      %c147_368 = arith.constant 147 : index
      %1436 = memref.load %arg2[%1435, %c147_368] : memref<16x196xf32, #tpu.memory_space<smem>>
      %1437 = arith.index_cast %1414 : i32 to index
      %c0_369 = arith.constant 0 : index
      %1438 = vector.load %arg3[%1437, %c0_369] : memref<1360x256xf32, #tpu.memory_space<vmem>>, vector<1x256xf32>
      %1439 = vector.broadcast %1436 : f32 to vector<1x256xf32>
      %1440 = arith.mulf %1439, %1438 : vector<1x256xf32>
      %1441 = arith.addf %1434, %1440 : vector<1x256xf32>
      %1442 = arith.index_cast %arg5 : i32 to index
      %c36_370 = arith.constant 36 : index
      %c0_371 = arith.constant 0 : index
      %1443 = vector.load %arg4[%1442, %c36_370, %c0_371] : memref<8x49x256xf32, #tpu.memory_space<vmem>>, vector<1x1x256xf32>
      %1444 = vector.shape_cast %1443 : vector<1x1x256xf32> to vector<1x256xf32>
      %1445 = vector.shape_cast %1441 : vector<1x256xf32> to vector<1x1x256xf32>
      tpu.vector_store %arg4[%1442, %c36_370, %c0_371], %1445 {strides = array<i32>} : memref<8x49x256xf32, #tpu.memory_space<vmem>>, vector<1x1x256xf32>,
      %1446 = arith.index_cast %2 : i32 to index
      %c148 = arith.constant 148 : index
      %1447 = memref.load %arg1[%1446, %c148] : memref<16x196xi32, #tpu.memory_space<smem>>
      %1448 = arith.index_cast %2 : i32 to index
      %c149 = arith.constant 149 : index
      %1449 = memref.load %arg1[%1448, %c149] : memref<16x196xi32, #tpu.memory_space<smem>>
      %1450 = arith.index_cast %2 : i32 to index
      %c150 = arith.constant 150 : index
      %1451 = memref.load %arg1[%1450, %c150] : memref<16x196xi32, #tpu.memory_space<smem>>
      %1452 = arith.index_cast %2 : i32 to index
      %c151 = arith.constant 151 : index
      %1453 = memref.load %arg1[%1452, %c151] : memref<16x196xi32, #tpu.memory_space<smem>>
      %1454 = arith.index_cast %2 : i32 to index
      %c148_372 = arith.constant 148 : index
      %1455 = memref.load %arg2[%1454, %c148_372] : memref<16x196xf32, #tpu.memory_space<smem>>
      %1456 = arith.index_cast %1447 : i32 to index
      %c0_373 = arith.constant 0 : index
      %1457 = vector.load %arg3[%1456, %c0_373] : memref<1360x256xf32, #tpu.memory_space<vmem>>, vector<1x256xf32>
      %1458 = vector.broadcast %1455 : f32 to vector<1x256xf32>
      %1459 = arith.mulf %1458, %1457 : vector<1x256xf32>
      %1460 = arith.index_cast %2 : i32 to index
      %c149_374 = arith.constant 149 : index
      %1461 = memref.load %arg2[%1460, %c149_374] : memref<16x196xf32, #tpu.memory_space<smem>>
      %1462 = arith.index_cast %1449 : i32 to index
      %c0_375 = arith.constant 0 : index
      %1463 = vector.load %arg3[%1462, %c0_375] : memref<1360x256xf32, #tpu.memory_space<vmem>>, vector<1x256xf32>
      %1464 = vector.broadcast %1461 : f32 to vector<1x256xf32>
      %1465 = arith.mulf %1464, %1463 : vector<1x256xf32>
      %1466 = arith.addf %1459, %1465 : vector<1x256xf32>
      %1467 = arith.index_cast %2 : i32 to index
      %c150_376 = arith.constant 150 : index
      %1468 = memref.load %arg2[%1467, %c150_376] : memref<16x196xf32, #tpu.memory_space<smem>>
      %1469 = arith.index_cast %1451 : i32 to index
      %c0_377 = arith.constant 0 : index
      %1470 = vector.load %arg3[%1469, %c0_377] : memref<1360x256xf32, #tpu.memory_space<vmem>>, vector<1x256xf32>
      %1471 = vector.broadcast %1468 : f32 to vector<1x256xf32>
      %1472 = arith.mulf %1471, %1470 : vector<1x256xf32>
      %1473 = arith.addf %1466, %1472 : vector<1x256xf32>
      %1474 = arith.index_cast %2 : i32 to index
      %c151_378 = arith.constant 151 : index
      %1475 = memref.load %arg2[%1474, %c151_378] : memref<16x196xf32, #tpu.memory_space<smem>>
      %1476 = arith.index_cast %1453 : i32 to index
      %c0_379 = arith.constant 0 : index
      %1477 = vector.load %arg3[%1476, %c0_379] : memref<1360x256xf32, #tpu.memory_space<vmem>>, vector<1x256xf32>
      %1478 = vector.broadcast %1475 : f32 to vector<1x256xf32>
      %1479 = arith.mulf %1478, %1477 : vector<1x256xf32>
      %1480 = arith.addf %1473, %1479 : vector<1x256xf32>
      %1481 = arith.index_cast %arg5 : i32 to index
      %c37_380 = arith.constant 37 : index
      %c0_381 = arith.constant 0 : index
      %1482 = vector.load %arg4[%1481, %c37_380, %c0_381] : memref<8x49x256xf32, #tpu.memory_space<vmem>>, vector<1x1x256xf32>
      %1483 = vector.shape_cast %1482 : vector<1x1x256xf32> to vector<1x256xf32>
      %1484 = vector.shape_cast %1480 : vector<1x256xf32> to vector<1x1x256xf32>
      tpu.vector_store %arg4[%1481, %c37_380, %c0_381], %1484 {strides = array<i32>} : memref<8x49x256xf32, #tpu.memory_space<vmem>>, vector<1x1x256xf32>,
      %1485 = arith.index_cast %2 : i32 to index
      %c152 = arith.constant 152 : index
      %1486 = memref.load %arg1[%1485, %c152] : memref<16x196xi32, #tpu.memory_space<smem>>
      %1487 = arith.index_cast %2 : i32 to index
      %c153 = arith.constant 153 : index
      %1488 = memref.load %arg1[%1487, %c153] : memref<16x196xi32, #tpu.memory_space<smem>>
      %1489 = arith.index_cast %2 : i32 to index
      %c154 = arith.constant 154 : index
      %1490 = memref.load %arg1[%1489, %c154] : memref<16x196xi32, #tpu.memory_space<smem>>
      %1491 = arith.index_cast %2 : i32 to index
      %c155 = arith.constant 155 : index
      %1492 = memref.load %arg1[%1491, %c155] : memref<16x196xi32, #tpu.memory_space<smem>>
      %1493 = arith.index_cast %2 : i32 to index
      %c152_382 = arith.constant 152 : index
      %1494 = memref.load %arg2[%1493, %c152_382] : memref<16x196xf32, #tpu.memory_space<smem>>
      %1495 = arith.index_cast %1486 : i32 to index
      %c0_383 = arith.constant 0 : index
      %1496 = vector.load %arg3[%1495, %c0_383] : memref<1360x256xf32, #tpu.memory_space<vmem>>, vector<1x256xf32>
      %1497 = vector.broadcast %1494 : f32 to vector<1x256xf32>
      %1498 = arith.mulf %1497, %1496 : vector<1x256xf32>
      %1499 = arith.index_cast %2 : i32 to index
      %c153_384 = arith.constant 153 : index
      %1500 = memref.load %arg2[%1499, %c153_384] : memref<16x196xf32, #tpu.memory_space<smem>>
      %1501 = arith.index_cast %1488 : i32 to index
      %c0_385 = arith.constant 0 : index
      %1502 = vector.load %arg3[%1501, %c0_385] : memref<1360x256xf32, #tpu.memory_space<vmem>>, vector<1x256xf32>
      %1503 = vector.broadcast %1500 : f32 to vector<1x256xf32>
      %1504 = arith.mulf %1503, %1502 : vector<1x256xf32>
      %1505 = arith.addf %1498, %1504 : vector<1x256xf32>
      %1506 = arith.index_cast %2 : i32 to index
      %c154_386 = arith.constant 154 : index
      %1507 = memref.load %arg2[%1506, %c154_386] : memref<16x196xf32, #tpu.memory_space<smem>>
      %1508 = arith.index_cast %1490 : i32 to index
      %c0_387 = arith.constant 0 : index
      %1509 = vector.load %arg3[%1508, %c0_387] : memref<1360x256xf32, #tpu.memory_space<vmem>>, vector<1x256xf32>
      %1510 = vector.broadcast %1507 : f32 to vector<1x256xf32>
      %1511 = arith.mulf %1510, %1509 : vector<1x256xf32>
      %1512 = arith.addf %1505, %1511 : vector<1x256xf32>
      %1513 = arith.index_cast %2 : i32 to index
      %c155_388 = arith.constant 155 : index
      %1514 = memref.load %arg2[%1513, %c155_388] : memref<16x196xf32, #tpu.memory_space<smem>>
      %1515 = arith.index_cast %1492 : i32 to index
      %c0_389 = arith.constant 0 : index
      %1516 = vector.load %arg3[%1515, %c0_389] : memref<1360x256xf32, #tpu.memory_space<vmem>>, vector<1x256xf32>
      %1517 = vector.broadcast %1514 : f32 to vector<1x256xf32>
      %1518 = arith.mulf %1517, %1516 : vector<1x256xf32>
      %1519 = arith.addf %1512, %1518 : vector<1x256xf32>
      %1520 = arith.index_cast %arg5 : i32 to index
      %c38_390 = arith.constant 38 : index
      %c0_391 = arith.constant 0 : index
      %1521 = vector.load %arg4[%1520, %c38_390, %c0_391] : memref<8x49x256xf32, #tpu.memory_space<vmem>>, vector<1x1x256xf32>
      %1522 = vector.shape_cast %1521 : vector<1x1x256xf32> to vector<1x256xf32>
      %1523 = vector.shape_cast %1519 : vector<1x256xf32> to vector<1x1x256xf32>
      tpu.vector_store %arg4[%1520, %c38_390, %c0_391], %1523 {strides = array<i32>} : memref<8x49x256xf32, #tpu.memory_space<vmem>>, vector<1x1x256xf32>,
      %1524 = arith.index_cast %2 : i32 to index
      %c156 = arith.constant 156 : index
      %1525 = memref.load %arg1[%1524, %c156] : memref<16x196xi32, #tpu.memory_space<smem>>
      %1526 = arith.index_cast %2 : i32 to index
      %c157 = arith.constant 157 : index
      %1527 = memref.load %arg1[%1526, %c157] : memref<16x196xi32, #tpu.memory_space<smem>>
      %1528 = arith.index_cast %2 : i32 to index
      %c158 = arith.constant 158 : index
      %1529 = memref.load %arg1[%1528, %c158] : memref<16x196xi32, #tpu.memory_space<smem>>
      %1530 = arith.index_cast %2 : i32 to index
      %c159 = arith.constant 159 : index
      %1531 = memref.load %arg1[%1530, %c159] : memref<16x196xi32, #tpu.memory_space<smem>>
      %1532 = arith.index_cast %2 : i32 to index
      %c156_392 = arith.constant 156 : index
      %1533 = memref.load %arg2[%1532, %c156_392] : memref<16x196xf32, #tpu.memory_space<smem>>
      %1534 = arith.index_cast %1525 : i32 to index
      %c0_393 = arith.constant 0 : index
      %1535 = vector.load %arg3[%1534, %c0_393] : memref<1360x256xf32, #tpu.memory_space<vmem>>, vector<1x256xf32>
      %1536 = vector.broadcast %1533 : f32 to vector<1x256xf32>
      %1537 = arith.mulf %1536, %1535 : vector<1x256xf32>
      %1538 = arith.index_cast %2 : i32 to index
      %c157_394 = arith.constant 157 : index
      %1539 = memref.load %arg2[%1538, %c157_394] : memref<16x196xf32, #tpu.memory_space<smem>>
      %1540 = arith.index_cast %1527 : i32 to index
      %c0_395 = arith.constant 0 : index
      %1541 = vector.load %arg3[%1540, %c0_395] : memref<1360x256xf32, #tpu.memory_space<vmem>>, vector<1x256xf32>
      %1542 = vector.broadcast %1539 : f32 to vector<1x256xf32>
      %1543 = arith.mulf %1542, %1541 : vector<1x256xf32>
      %1544 = arith.addf %1537, %1543 : vector<1x256xf32>
      %1545 = arith.index_cast %2 : i32 to index
      %c158_396 = arith.constant 158 : index
      %1546 = memref.load %arg2[%1545, %c158_396] : memref<16x196xf32, #tpu.memory_space<smem>>
      %1547 = arith.index_cast %1529 : i32 to index
      %c0_397 = arith.constant 0 : index
      %1548 = vector.load %arg3[%1547, %c0_397] : memref<1360x256xf32, #tpu.memory_space<vmem>>, vector<1x256xf32>
      %1549 = vector.broadcast %1546 : f32 to vector<1x256xf32>
      %1550 = arith.mulf %1549, %1548 : vector<1x256xf32>
      %1551 = arith.addf %1544, %1550 : vector<1x256xf32>
      %1552 = arith.index_cast %2 : i32 to index
      %c159_398 = arith.constant 159 : index
      %1553 = memref.load %arg2[%1552, %c159_398] : memref<16x196xf32, #tpu.memory_space<smem>>
      %1554 = arith.index_cast %1531 : i32 to index
      %c0_399 = arith.constant 0 : index
      %1555 = vector.load %arg3[%1554, %c0_399] : memref<1360x256xf32, #tpu.memory_space<vmem>>, vector<1x256xf32>
      %1556 = vector.broadcast %1553 : f32 to vector<1x256xf32>
      %1557 = arith.mulf %1556, %1555 : vector<1x256xf32>
      %1558 = arith.addf %1551, %1557 : vector<1x256xf32>
      %1559 = arith.index_cast %arg5 : i32 to index
      %c39_400 = arith.constant 39 : index
      %c0_401 = arith.constant 0 : index
      %1560 = vector.load %arg4[%1559, %c39_400, %c0_401] : memref<8x49x256xf32, #tpu.memory_space<vmem>>, vector<1x1x256xf32>
      %1561 = vector.shape_cast %1560 : vector<1x1x256xf32> to vector<1x256xf32>
      %1562 = vector.shape_cast %1558 : vector<1x256xf32> to vector<1x1x256xf32>
      tpu.vector_store %arg4[%1559, %c39_400, %c0_401], %1562 {strides = array<i32>} : memref<8x49x256xf32, #tpu.memory_space<vmem>>, vector<1x1x256xf32>,
      %1563 = arith.index_cast %2 : i32 to index
      %c160 = arith.constant 160 : index
      %1564 = memref.load %arg1[%1563, %c160] : memref<16x196xi32, #tpu.memory_space<smem>>
      %1565 = arith.index_cast %2 : i32 to index
      %c161 = arith.constant 161 : index
      %1566 = memref.load %arg1[%1565, %c161] : memref<16x196xi32, #tpu.memory_space<smem>>
      %1567 = arith.index_cast %2 : i32 to index
      %c162 = arith.constant 162 : index
      %1568 = memref.load %arg1[%1567, %c162] : memref<16x196xi32, #tpu.memory_space<smem>>
      %1569 = arith.index_cast %2 : i32 to index
      %c163 = arith.constant 163 : index
      %1570 = memref.load %arg1[%1569, %c163] : memref<16x196xi32, #tpu.memory_space<smem>>
      %1571 = arith.index_cast %2 : i32 to index
      %c160_402 = arith.constant 160 : index
      %1572 = memref.load %arg2[%1571, %c160_402] : memref<16x196xf32, #tpu.memory_space<smem>>
      %1573 = arith.index_cast %1564 : i32 to index
      %c0_403 = arith.constant 0 : index
      %1574 = vector.load %arg3[%1573, %c0_403] : memref<1360x256xf32, #tpu.memory_space<vmem>>, vector<1x256xf32>
      %1575 = vector.broadcast %1572 : f32 to vector<1x256xf32>
      %1576 = arith.mulf %1575, %1574 : vector<1x256xf32>
      %1577 = arith.index_cast %2 : i32 to index
      %c161_404 = arith.constant 161 : index
      %1578 = memref.load %arg2[%1577, %c161_404] : memref<16x196xf32, #tpu.memory_space<smem>>
      %1579 = arith.index_cast %1566 : i32 to index
      %c0_405 = arith.constant 0 : index
      %1580 = vector.load %arg3[%1579, %c0_405] : memref<1360x256xf32, #tpu.memory_space<vmem>>, vector<1x256xf32>
      %1581 = vector.broadcast %1578 : f32 to vector<1x256xf32>
      %1582 = arith.mulf %1581, %1580 : vector<1x256xf32>
      %1583 = arith.addf %1576, %1582 : vector<1x256xf32>
      %1584 = arith.index_cast %2 : i32 to index
      %c162_406 = arith.constant 162 : index
      %1585 = memref.load %arg2[%1584, %c162_406] : memref<16x196xf32, #tpu.memory_space<smem>>
      %1586 = arith.index_cast %1568 : i32 to index
      %c0_407 = arith.constant 0 : index
      %1587 = vector.load %arg3[%1586, %c0_407] : memref<1360x256xf32, #tpu.memory_space<vmem>>, vector<1x256xf32>
      %1588 = vector.broadcast %1585 : f32 to vector<1x256xf32>
      %1589 = arith.mulf %1588, %1587 : vector<1x256xf32>
      %1590 = arith.addf %1583, %1589 : vector<1x256xf32>
      %1591 = arith.index_cast %2 : i32 to index
      %c163_408 = arith.constant 163 : index
      %1592 = memref.load %arg2[%1591, %c163_408] : memref<16x196xf32, #tpu.memory_space<smem>>
      %1593 = arith.index_cast %1570 : i32 to index
      %c0_409 = arith.constant 0 : index
      %1594 = vector.load %arg3[%1593, %c0_409] : memref<1360x256xf32, #tpu.memory_space<vmem>>, vector<1x256xf32>
      %1595 = vector.broadcast %1592 : f32 to vector<1x256xf32>
      %1596 = arith.mulf %1595, %1594 : vector<1x256xf32>
      %1597 = arith.addf %1590, %1596 : vector<1x256xf32>
      %1598 = arith.index_cast %arg5 : i32 to index
      %c40_410 = arith.constant 40 : index
      %c0_411 = arith.constant 0 : index
      %1599 = vector.load %arg4[%1598, %c40_410, %c0_411] : memref<8x49x256xf32, #tpu.memory_space<vmem>>, vector<1x1x256xf32>
      %1600 = vector.shape_cast %1599 : vector<1x1x256xf32> to vector<1x256xf32>
      %1601 = vector.shape_cast %1597 : vector<1x256xf32> to vector<1x1x256xf32>
      tpu.vector_store %arg4[%1598, %c40_410, %c0_411], %1601 {strides = array<i32>} : memref<8x49x256xf32, #tpu.memory_space<vmem>>, vector<1x1x256xf32>,
      %1602 = arith.index_cast %2 : i32 to index
      %c164 = arith.constant 164 : index
      %1603 = memref.load %arg1[%1602, %c164] : memref<16x196xi32, #tpu.memory_space<smem>>
      %1604 = arith.index_cast %2 : i32 to index
      %c165 = arith.constant 165 : index
      %1605 = memref.load %arg1[%1604, %c165] : memref<16x196xi32, #tpu.memory_space<smem>>
      %1606 = arith.index_cast %2 : i32 to index
      %c166 = arith.constant 166 : index
      %1607 = memref.load %arg1[%1606, %c166] : memref<16x196xi32, #tpu.memory_space<smem>>
      %1608 = arith.index_cast %2 : i32 to index
      %c167 = arith.constant 167 : index
      %1609 = memref.load %arg1[%1608, %c167] : memref<16x196xi32, #tpu.memory_space<smem>>
      %1610 = arith.index_cast %2 : i32 to index
      %c164_412 = arith.constant 164 : index
      %1611 = memref.load %arg2[%1610, %c164_412] : memref<16x196xf32, #tpu.memory_space<smem>>
      %1612 = arith.index_cast %1603 : i32 to index
      %c0_413 = arith.constant 0 : index
      %1613 = vector.load %arg3[%1612, %c0_413] : memref<1360x256xf32, #tpu.memory_space<vmem>>, vector<1x256xf32>
      %1614 = vector.broadcast %1611 : f32 to vector<1x256xf32>
      %1615 = arith.mulf %1614, %1613 : vector<1x256xf32>
      %1616 = arith.index_cast %2 : i32 to index
      %c165_414 = arith.constant 165 : index
      %1617 = memref.load %arg2[%1616, %c165_414] : memref<16x196xf32, #tpu.memory_space<smem>>
      %1618 = arith.index_cast %1605 : i32 to index
      %c0_415 = arith.constant 0 : index
      %1619 = vector.load %arg3[%1618, %c0_415] : memref<1360x256xf32, #tpu.memory_space<vmem>>, vector<1x256xf32>
      %1620 = vector.broadcast %1617 : f32 to vector<1x256xf32>
      %1621 = arith.mulf %1620, %1619 : vector<1x256xf32>
      %1622 = arith.addf %1615, %1621 : vector<1x256xf32>
      %1623 = arith.index_cast %2 : i32 to index
      %c166_416 = arith.constant 166 : index
      %1624 = memref.load %arg2[%1623, %c166_416] : memref<16x196xf32, #tpu.memory_space<smem>>
      %1625 = arith.index_cast %1607 : i32 to index
      %c0_417 = arith.constant 0 : index
      %1626 = vector.load %arg3[%1625, %c0_417] : memref<1360x256xf32, #tpu.memory_space<vmem>>, vector<1x256xf32>
      %1627 = vector.broadcast %1624 : f32 to vector<1x256xf32>
      %1628 = arith.mulf %1627, %1626 : vector<1x256xf32>
      %1629 = arith.addf %1622, %1628 : vector<1x256xf32>
      %1630 = arith.index_cast %2 : i32 to index
      %c167_418 = arith.constant 167 : index
      %1631 = memref.load %arg2[%1630, %c167_418] : memref<16x196xf32, #tpu.memory_space<smem>>
      %1632 = arith.index_cast %1609 : i32 to index
      %c0_419 = arith.constant 0 : index
      %1633 = vector.load %arg3[%1632, %c0_419] : memref<1360x256xf32, #tpu.memory_space<vmem>>, vector<1x256xf32>
      %1634 = vector.broadcast %1631 : f32 to vector<1x256xf32>
      %1635 = arith.mulf %1634, %1633 : vector<1x256xf32>
      %1636 = arith.addf %1629, %1635 : vector<1x256xf32>
      %1637 = arith.index_cast %arg5 : i32 to index
      %c41_420 = arith.constant 41 : index
      %c0_421 = arith.constant 0 : index
      %1638 = vector.load %arg4[%1637, %c41_420, %c0_421] : memref<8x49x256xf32, #tpu.memory_space<vmem>>, vector<1x1x256xf32>
      %1639 = vector.shape_cast %1638 : vector<1x1x256xf32> to vector<1x256xf32>
      %1640 = vector.shape_cast %1636 : vector<1x256xf32> to vector<1x1x256xf32>
      tpu.vector_store %arg4[%1637, %c41_420, %c0_421], %1640 {strides = array<i32>} : memref<8x49x256xf32, #tpu.memory_space<vmem>>, vector<1x1x256xf32>,
      %1641 = arith.index_cast %2 : i32 to index
      %c168 = arith.constant 168 : index
      %1642 = memref.load %arg1[%1641, %c168] : memref<16x196xi32, #tpu.memory_space<smem>>
      %1643 = arith.index_cast %2 : i32 to index
      %c169 = arith.constant 169 : index
      %1644 = memref.load %arg1[%1643, %c169] : memref<16x196xi32, #tpu.memory_space<smem>>
      %1645 = arith.index_cast %2 : i32 to index
      %c170 = arith.constant 170 : index
      %1646 = memref.load %arg1[%1645, %c170] : memref<16x196xi32, #tpu.memory_space<smem>>
      %1647 = arith.index_cast %2 : i32 to index
      %c171 = arith.constant 171 : index
      %1648 = memref.load %arg1[%1647, %c171] : memref<16x196xi32, #tpu.memory_space<smem>>
      %1649 = arith.index_cast %2 : i32 to index
      %c168_422 = arith.constant 168 : index
      %1650 = memref.load %arg2[%1649, %c168_422] : memref<16x196xf32, #tpu.memory_space<smem>>
      %1651 = arith.index_cast %1642 : i32 to index
      %c0_423 = arith.constant 0 : index
      %1652 = vector.load %arg3[%1651, %c0_423] : memref<1360x256xf32, #tpu.memory_space<vmem>>, vector<1x256xf32>
      %1653 = vector.broadcast %1650 : f32 to vector<1x256xf32>
      %1654 = arith.mulf %1653, %1652 : vector<1x256xf32>
      %1655 = arith.index_cast %2 : i32 to index
      %c169_424 = arith.constant 169 : index
      %1656 = memref.load %arg2[%1655, %c169_424] : memref<16x196xf32, #tpu.memory_space<smem>>
      %1657 = arith.index_cast %1644 : i32 to index
      %c0_425 = arith.constant 0 : index
      %1658 = vector.load %arg3[%1657, %c0_425] : memref<1360x256xf32, #tpu.memory_space<vmem>>, vector<1x256xf32>
      %1659 = vector.broadcast %1656 : f32 to vector<1x256xf32>
      %1660 = arith.mulf %1659, %1658 : vector<1x256xf32>
      %1661 = arith.addf %1654, %1660 : vector<1x256xf32>
      %1662 = arith.index_cast %2 : i32 to index
      %c170_426 = arith.constant 170 : index
      %1663 = memref.load %arg2[%1662, %c170_426] : memref<16x196xf32, #tpu.memory_space<smem>>
      %1664 = arith.index_cast %1646 : i32 to index
      %c0_427 = arith.constant 0 : index
      %1665 = vector.load %arg3[%1664, %c0_427] : memref<1360x256xf32, #tpu.memory_space<vmem>>, vector<1x256xf32>
      %1666 = vector.broadcast %1663 : f32 to vector<1x256xf32>
      %1667 = arith.mulf %1666, %1665 : vector<1x256xf32>
      %1668 = arith.addf %1661, %1667 : vector<1x256xf32>
      %1669 = arith.index_cast %2 : i32 to index
      %c171_428 = arith.constant 171 : index
      %1670 = memref.load %arg2[%1669, %c171_428] : memref<16x196xf32, #tpu.memory_space<smem>>
      %1671 = arith.index_cast %1648 : i32 to index
      %c0_429 = arith.constant 0 : index
      %1672 = vector.load %arg3[%1671, %c0_429] : memref<1360x256xf32, #tpu.memory_space<vmem>>, vector<1x256xf32>
      %1673 = vector.broadcast %1670 : f32 to vector<1x256xf32>
      %1674 = arith.mulf %1673, %1672 : vector<1x256xf32>
      %1675 = arith.addf %1668, %1674 : vector<1x256xf32>
      %1676 = arith.index_cast %arg5 : i32 to index
      %c42_430 = arith.constant 42 : index
      %c0_431 = arith.constant 0 : index
      %1677 = vector.load %arg4[%1676, %c42_430, %c0_431] : memref<8x49x256xf32, #tpu.memory_space<vmem>>, vector<1x1x256xf32>
      %1678 = vector.shape_cast %1677 : vector<1x1x256xf32> to vector<1x256xf32>
      %1679 = vector.shape_cast %1675 : vector<1x256xf32> to vector<1x1x256xf32>
      tpu.vector_store %arg4[%1676, %c42_430, %c0_431], %1679 {strides = array<i32>} : memref<8x49x256xf32, #tpu.memory_space<vmem>>, vector<1x1x256xf32>,
      %1680 = arith.index_cast %2 : i32 to index
      %c172 = arith.constant 172 : index
      %1681 = memref.load %arg1[%1680, %c172] : memref<16x196xi32, #tpu.memory_space<smem>>
      %1682 = arith.index_cast %2 : i32 to index
      %c173 = arith.constant 173 : index
      %1683 = memref.load %arg1[%1682, %c173] : memref<16x196xi32, #tpu.memory_space<smem>>
      %1684 = arith.index_cast %2 : i32 to index
      %c174 = arith.constant 174 : index
      %1685 = memref.load %arg1[%1684, %c174] : memref<16x196xi32, #tpu.memory_space<smem>>
      %1686 = arith.index_cast %2 : i32 to index
      %c175 = arith.constant 175 : index
      %1687 = memref.load %arg1[%1686, %c175] : memref<16x196xi32, #tpu.memory_space<smem>>
      %1688 = arith.index_cast %2 : i32 to index
      %c172_432 = arith.constant 172 : index
      %1689 = memref.load %arg2[%1688, %c172_432] : memref<16x196xf32, #tpu.memory_space<smem>>
      %1690 = arith.index_cast %1681 : i32 to index
      %c0_433 = arith.constant 0 : index
      %1691 = vector.load %arg3[%1690, %c0_433] : memref<1360x256xf32, #tpu.memory_space<vmem>>, vector<1x256xf32>
      %1692 = vector.broadcast %1689 : f32 to vector<1x256xf32>
      %1693 = arith.mulf %1692, %1691 : vector<1x256xf32>
      %1694 = arith.index_cast %2 : i32 to index
      %c173_434 = arith.constant 173 : index
      %1695 = memref.load %arg2[%1694, %c173_434] : memref<16x196xf32, #tpu.memory_space<smem>>
      %1696 = arith.index_cast %1683 : i32 to index
      %c0_435 = arith.constant 0 : index
      %1697 = vector.load %arg3[%1696, %c0_435] : memref<1360x256xf32, #tpu.memory_space<vmem>>, vector<1x256xf32>
      %1698 = vector.broadcast %1695 : f32 to vector<1x256xf32>
      %1699 = arith.mulf %1698, %1697 : vector<1x256xf32>
      %1700 = arith.addf %1693, %1699 : vector<1x256xf32>
      %1701 = arith.index_cast %2 : i32 to index
      %c174_436 = arith.constant 174 : index
      %1702 = memref.load %arg2[%1701, %c174_436] : memref<16x196xf32, #tpu.memory_space<smem>>
      %1703 = arith.index_cast %1685 : i32 to index
      %c0_437 = arith.constant 0 : index
      %1704 = vector.load %arg3[%1703, %c0_437] : memref<1360x256xf32, #tpu.memory_space<vmem>>, vector<1x256xf32>
      %1705 = vector.broadcast %1702 : f32 to vector<1x256xf32>
      %1706 = arith.mulf %1705, %1704 : vector<1x256xf32>
      %1707 = arith.addf %1700, %1706 : vector<1x256xf32>
      %1708 = arith.index_cast %2 : i32 to index
      %c175_438 = arith.constant 175 : index
      %1709 = memref.load %arg2[%1708, %c175_438] : memref<16x196xf32, #tpu.memory_space<smem>>
      %1710 = arith.index_cast %1687 : i32 to index
      %c0_439 = arith.constant 0 : index
      %1711 = vector.load %arg3[%1710, %c0_439] : memref<1360x256xf32, #tpu.memory_space<vmem>>, vector<1x256xf32>
      %1712 = vector.broadcast %1709 : f32 to vector<1x256xf32>
      %1713 = arith.mulf %1712, %1711 : vector<1x256xf32>
      %1714 = arith.addf %1707, %1713 : vector<1x256xf32>
      %1715 = arith.index_cast %arg5 : i32 to index
      %c43_440 = arith.constant 43 : index
      %c0_441 = arith.constant 0 : index
      %1716 = vector.load %arg4[%1715, %c43_440, %c0_441] : memref<8x49x256xf32, #tpu.memory_space<vmem>>, vector<1x1x256xf32>
      %1717 = vector.shape_cast %1716 : vector<1x1x256xf32> to vector<1x256xf32>
      %1718 = vector.shape_cast %1714 : vector<1x256xf32> to vector<1x1x256xf32>
      tpu.vector_store %arg4[%1715, %c43_440, %c0_441], %1718 {strides = array<i32>} : memref<8x49x256xf32, #tpu.memory_space<vmem>>, vector<1x1x256xf32>,
      %1719 = arith.index_cast %2 : i32 to index
      %c176 = arith.constant 176 : index
      %1720 = memref.load %arg1[%1719, %c176] : memref<16x196xi32, #tpu.memory_space<smem>>
      %1721 = arith.index_cast %2 : i32 to index
      %c177 = arith.constant 177 : index
      %1722 = memref.load %arg1[%1721, %c177] : memref<16x196xi32, #tpu.memory_space<smem>>
      %1723 = arith.index_cast %2 : i32 to index
      %c178 = arith.constant 178 : index
      %1724 = memref.load %arg1[%1723, %c178] : memref<16x196xi32, #tpu.memory_space<smem>>
      %1725 = arith.index_cast %2 : i32 to index
      %c179 = arith.constant 179 : index
      %1726 = memref.load %arg1[%1725, %c179] : memref<16x196xi32, #tpu.memory_space<smem>>
      %1727 = arith.index_cast %2 : i32 to index
      %c176_442 = arith.constant 176 : index
      %1728 = memref.load %arg2[%1727, %c176_442] : memref<16x196xf32, #tpu.memory_space<smem>>
      %1729 = arith.index_cast %1720 : i32 to index
      %c0_443 = arith.constant 0 : index
      %1730 = vector.load %arg3[%1729, %c0_443] : memref<1360x256xf32, #tpu.memory_space<vmem>>, vector<1x256xf32>
      %1731 = vector.broadcast %1728 : f32 to vector<1x256xf32>
      %1732 = arith.mulf %1731, %1730 : vector<1x256xf32>
      %1733 = arith.index_cast %2 : i32 to index
      %c177_444 = arith.constant 177 : index
      %1734 = memref.load %arg2[%1733, %c177_444] : memref<16x196xf32, #tpu.memory_space<smem>>
      %1735 = arith.index_cast %1722 : i32 to index
      %c0_445 = arith.constant 0 : index
      %1736 = vector.load %arg3[%1735, %c0_445] : memref<1360x256xf32, #tpu.memory_space<vmem>>, vector<1x256xf32>
      %1737 = vector.broadcast %1734 : f32 to vector<1x256xf32>
      %1738 = arith.mulf %1737, %1736 : vector<1x256xf32>
      %1739 = arith.addf %1732, %1738 : vector<1x256xf32>
      %1740 = arith.index_cast %2 : i32 to index
      %c178_446 = arith.constant 178 : index
      %1741 = memref.load %arg2[%1740, %c178_446] : memref<16x196xf32, #tpu.memory_space<smem>>
      %1742 = arith.index_cast %1724 : i32 to index
      %c0_447 = arith.constant 0 : index
      %1743 = vector.load %arg3[%1742, %c0_447] : memref<1360x256xf32, #tpu.memory_space<vmem>>, vector<1x256xf32>
      %1744 = vector.broadcast %1741 : f32 to vector<1x256xf32>
      %1745 = arith.mulf %1744, %1743 : vector<1x256xf32>
      %1746 = arith.addf %1739, %1745 : vector<1x256xf32>
      %1747 = arith.index_cast %2 : i32 to index
      %c179_448 = arith.constant 179 : index
      %1748 = memref.load %arg2[%1747, %c179_448] : memref<16x196xf32, #tpu.memory_space<smem>>
      %1749 = arith.index_cast %1726 : i32 to index
      %c0_449 = arith.constant 0 : index
      %1750 = vector.load %arg3[%1749, %c0_449] : memref<1360x256xf32, #tpu.memory_space<vmem>>, vector<1x256xf32>
      %1751 = vector.broadcast %1748 : f32 to vector<1x256xf32>
      %1752 = arith.mulf %1751, %1750 : vector<1x256xf32>
      %1753 = arith.addf %1746, %1752 : vector<1x256xf32>
      %1754 = arith.index_cast %arg5 : i32 to index
      %c44_450 = arith.constant 44 : index
      %c0_451 = arith.constant 0 : index
      %1755 = vector.load %arg4[%1754, %c44_450, %c0_451] : memref<8x49x256xf32, #tpu.memory_space<vmem>>, vector<1x1x256xf32>
      %1756 = vector.shape_cast %1755 : vector<1x1x256xf32> to vector<1x256xf32>
      %1757 = vector.shape_cast %1753 : vector<1x256xf32> to vector<1x1x256xf32>
      tpu.vector_store %arg4[%1754, %c44_450, %c0_451], %1757 {strides = array<i32>} : memref<8x49x256xf32, #tpu.memory_space<vmem>>, vector<1x1x256xf32>,
      %1758 = arith.index_cast %2 : i32 to index
      %c180 = arith.constant 180 : index
      %1759 = memref.load %arg1[%1758, %c180] : memref<16x196xi32, #tpu.memory_space<smem>>
      %1760 = arith.index_cast %2 : i32 to index
      %c181 = arith.constant 181 : index
      %1761 = memref.load %arg1[%1760, %c181] : memref<16x196xi32, #tpu.memory_space<smem>>
      %1762 = arith.index_cast %2 : i32 to index
      %c182 = arith.constant 182 : index
      %1763 = memref.load %arg1[%1762, %c182] : memref<16x196xi32, #tpu.memory_space<smem>>
      %1764 = arith.index_cast %2 : i32 to index
      %c183 = arith.constant 183 : index
      %1765 = memref.load %arg1[%1764, %c183] : memref<16x196xi32, #tpu.memory_space<smem>>
      %1766 = arith.index_cast %2 : i32 to index
      %c180_452 = arith.constant 180 : index
      %1767 = memref.load %arg2[%1766, %c180_452] : memref<16x196xf32, #tpu.memory_space<smem>>
      %1768 = arith.index_cast %1759 : i32 to index
      %c0_453 = arith.constant 0 : index
      %1769 = vector.load %arg3[%1768, %c0_453] : memref<1360x256xf32, #tpu.memory_space<vmem>>, vector<1x256xf32>
      %1770 = vector.broadcast %1767 : f32 to vector<1x256xf32>
      %1771 = arith.mulf %1770, %1769 : vector<1x256xf32>
      %1772 = arith.index_cast %2 : i32 to index
      %c181_454 = arith.constant 181 : index
      %1773 = memref.load %arg2[%1772, %c181_454] : memref<16x196xf32, #tpu.memory_space<smem>>
      %1774 = arith.index_cast %1761 : i32 to index
      %c0_455 = arith.constant 0 : index
      %1775 = vector.load %arg3[%1774, %c0_455] : memref<1360x256xf32, #tpu.memory_space<vmem>>, vector<1x256xf32>
      %1776 = vector.broadcast %1773 : f32 to vector<1x256xf32>
      %1777 = arith.mulf %1776, %1775 : vector<1x256xf32>
      %1778 = arith.addf %1771, %1777 : vector<1x256xf32>
      %1779 = arith.index_cast %2 : i32 to index
      %c182_456 = arith.constant 182 : index
      %1780 = memref.load %arg2[%1779, %c182_456] : memref<16x196xf32, #tpu.memory_space<smem>>
      %1781 = arith.index_cast %1763 : i32 to index
      %c0_457 = arith.constant 0 : index
      %1782 = vector.load %arg3[%1781, %c0_457] : memref<1360x256xf32, #tpu.memory_space<vmem>>, vector<1x256xf32>
      %1783 = vector.broadcast %1780 : f32 to vector<1x256xf32>
      %1784 = arith.mulf %1783, %1782 : vector<1x256xf32>
      %1785 = arith.addf %1778, %1784 : vector<1x256xf32>
      %1786 = arith.index_cast %2 : i32 to index
      %c183_458 = arith.constant 183 : index
      %1787 = memref.load %arg2[%1786, %c183_458] : memref<16x196xf32, #tpu.memory_space<smem>>
      %1788 = arith.index_cast %1765 : i32 to index
      %c0_459 = arith.constant 0 : index
      %1789 = vector.load %arg3[%1788, %c0_459] : memref<1360x256xf32, #tpu.memory_space<vmem>>, vector<1x256xf32>
      %1790 = vector.broadcast %1787 : f32 to vector<1x256xf32>
      %1791 = arith.mulf %1790, %1789 : vector<1x256xf32>
      %1792 = arith.addf %1785, %1791 : vector<1x256xf32>
      %1793 = arith.index_cast %arg5 : i32 to index
      %c45_460 = arith.constant 45 : index
      %c0_461 = arith.constant 0 : index
      %1794 = vector.load %arg4[%1793, %c45_460, %c0_461] : memref<8x49x256xf32, #tpu.memory_space<vmem>>, vector<1x1x256xf32>
      %1795 = vector.shape_cast %1794 : vector<1x1x256xf32> to vector<1x256xf32>
      %1796 = vector.shape_cast %1792 : vector<1x256xf32> to vector<1x1x256xf32>
      tpu.vector_store %arg4[%1793, %c45_460, %c0_461], %1796 {strides = array<i32>} : memref<8x49x256xf32, #tpu.memory_space<vmem>>, vector<1x1x256xf32>,
      %1797 = arith.index_cast %2 : i32 to index
      %c184 = arith.constant 184 : index
      %1798 = memref.load %arg1[%1797, %c184] : memref<16x196xi32, #tpu.memory_space<smem>>
      %1799 = arith.index_cast %2 : i32 to index
      %c185 = arith.constant 185 : index
      %1800 = memref.load %arg1[%1799, %c185] : memref<16x196xi32, #tpu.memory_space<smem>>
      %1801 = arith.index_cast %2 : i32 to index
      %c186 = arith.constant 186 : index
      %1802 = memref.load %arg1[%1801, %c186] : memref<16x196xi32, #tpu.memory_space<smem>>
      %1803 = arith.index_cast %2 : i32 to index
      %c187 = arith.constant 187 : index
      %1804 = memref.load %arg1[%1803, %c187] : memref<16x196xi32, #tpu.memory_space<smem>>
      %1805 = arith.index_cast %2 : i32 to index
      %c184_462 = arith.constant 184 : index
      %1806 = memref.load %arg2[%1805, %c184_462] : memref<16x196xf32, #tpu.memory_space<smem>>
      %1807 = arith.index_cast %1798 : i32 to index
      %c0_463 = arith.constant 0 : index
      %1808 = vector.load %arg3[%1807, %c0_463] : memref<1360x256xf32, #tpu.memory_space<vmem>>, vector<1x256xf32>
      %1809 = vector.broadcast %1806 : f32 to vector<1x256xf32>
      %1810 = arith.mulf %1809, %1808 : vector<1x256xf32>
      %1811 = arith.index_cast %2 : i32 to index
      %c185_464 = arith.constant 185 : index
      %1812 = memref.load %arg2[%1811, %c185_464] : memref<16x196xf32, #tpu.memory_space<smem>>
      %1813 = arith.index_cast %1800 : i32 to index
      %c0_465 = arith.constant 0 : index
      %1814 = vector.load %arg3[%1813, %c0_465] : memref<1360x256xf32, #tpu.memory_space<vmem>>, vector<1x256xf32>
      %1815 = vector.broadcast %1812 : f32 to vector<1x256xf32>
      %1816 = arith.mulf %1815, %1814 : vector<1x256xf32>
      %1817 = arith.addf %1810, %1816 : vector<1x256xf32>
      %1818 = arith.index_cast %2 : i32 to index
      %c186_466 = arith.constant 186 : index
      %1819 = memref.load %arg2[%1818, %c186_466] : memref<16x196xf32, #tpu.memory_space<smem>>
      %1820 = arith.index_cast %1802 : i32 to index
      %c0_467 = arith.constant 0 : index
      %1821 = vector.load %arg3[%1820, %c0_467] : memref<1360x256xf32, #tpu.memory_space<vmem>>, vector<1x256xf32>
      %1822 = vector.broadcast %1819 : f32 to vector<1x256xf32>
      %1823 = arith.mulf %1822, %1821 : vector<1x256xf32>
      %1824 = arith.addf %1817, %1823 : vector<1x256xf32>
      %1825 = arith.index_cast %2 : i32 to index
      %c187_468 = arith.constant 187 : index
      %1826 = memref.load %arg2[%1825, %c187_468] : memref<16x196xf32, #tpu.memory_space<smem>>
      %1827 = arith.index_cast %1804 : i32 to index
      %c0_469 = arith.constant 0 : index
      %1828 = vector.load %arg3[%1827, %c0_469] : memref<1360x256xf32, #tpu.memory_space<vmem>>, vector<1x256xf32>
      %1829 = vector.broadcast %1826 : f32 to vector<1x256xf32>
      %1830 = arith.mulf %1829, %1828 : vector<1x256xf32>
      %1831 = arith.addf %1824, %1830 : vector<1x256xf32>
      %1832 = arith.index_cast %arg5 : i32 to index
      %c46_470 = arith.constant 46 : index
      %c0_471 = arith.constant 0 : index
      %1833 = vector.load %arg4[%1832, %c46_470, %c0_471] : memref<8x49x256xf32, #tpu.memory_space<vmem>>, vector<1x1x256xf32>
      %1834 = vector.shape_cast %1833 : vector<1x1x256xf32> to vector<1x256xf32>
      %1835 = vector.shape_cast %1831 : vector<1x256xf32> to vector<1x1x256xf32>
      tpu.vector_store %arg4[%1832, %c46_470, %c0_471], %1835 {strides = array<i32>} : memref<8x49x256xf32, #tpu.memory_space<vmem>>, vector<1x1x256xf32>,
      %1836 = arith.index_cast %2 : i32 to index
      %c188 = arith.constant 188 : index
      %1837 = memref.load %arg1[%1836, %c188] : memref<16x196xi32, #tpu.memory_space<smem>>
      %1838 = arith.index_cast %2 : i32 to index
      %c189 = arith.constant 189 : index
      %1839 = memref.load %arg1[%1838, %c189] : memref<16x196xi32, #tpu.memory_space<smem>>
      %1840 = arith.index_cast %2 : i32 to index
      %c190 = arith.constant 190 : index
      %1841 = memref.load %arg1[%1840, %c190] : memref<16x196xi32, #tpu.memory_space<smem>>
      %1842 = arith.index_cast %2 : i32 to index
      %c191 = arith.constant 191 : index
      %1843 = memref.load %arg1[%1842, %c191] : memref<16x196xi32, #tpu.memory_space<smem>>
      %1844 = arith.index_cast %2 : i32 to index
      %c188_472 = arith.constant 188 : index
      %1845 = memref.load %arg2[%1844, %c188_472] : memref<16x196xf32, #tpu.memory_space<smem>>
      %1846 = arith.index_cast %1837 : i32 to index
      %c0_473 = arith.constant 0 : index
      %1847 = vector.load %arg3[%1846, %c0_473] : memref<1360x256xf32, #tpu.memory_space<vmem>>, vector<1x256xf32>
      %1848 = vector.broadcast %1845 : f32 to vector<1x256xf32>
      %1849 = arith.mulf %1848, %1847 : vector<1x256xf32>
      %1850 = arith.index_cast %2 : i32 to index
      %c189_474 = arith.constant 189 : index
      %1851 = memref.load %arg2[%1850, %c189_474] : memref<16x196xf32, #tpu.memory_space<smem>>
      %1852 = arith.index_cast %1839 : i32 to index
      %c0_475 = arith.constant 0 : index
      %1853 = vector.load %arg3[%1852, %c0_475] : memref<1360x256xf32, #tpu.memory_space<vmem>>, vector<1x256xf32>
      %1854 = vector.broadcast %1851 : f32 to vector<1x256xf32>
      %1855 = arith.mulf %1854, %1853 : vector<1x256xf32>
      %1856 = arith.addf %1849, %1855 : vector<1x256xf32>
      %1857 = arith.index_cast %2 : i32 to index
      %c190_476 = arith.constant 190 : index
      %1858 = memref.load %arg2[%1857, %c190_476] : memref<16x196xf32, #tpu.memory_space<smem>>
      %1859 = arith.index_cast %1841 : i32 to index
      %c0_477 = arith.constant 0 : index
      %1860 = vector.load %arg3[%1859, %c0_477] : memref<1360x256xf32, #tpu.memory_space<vmem>>, vector<1x256xf32>
      %1861 = vector.broadcast %1858 : f32 to vector<1x256xf32>
      %1862 = arith.mulf %1861, %1860 : vector<1x256xf32>
      %1863 = arith.addf %1856, %1862 : vector<1x256xf32>
      %1864 = arith.index_cast %2 : i32 to index
      %c191_478 = arith.constant 191 : index
      %1865 = memref.load %arg2[%1864, %c191_478] : memref<16x196xf32, #tpu.memory_space<smem>>
      %1866 = arith.index_cast %1843 : i32 to index
      %c0_479 = arith.constant 0 : index
      %1867 = vector.load %arg3[%1866, %c0_479] : memref<1360x256xf32, #tpu.memory_space<vmem>>, vector<1x256xf32>
      %1868 = vector.broadcast %1865 : f32 to vector<1x256xf32>
      %1869 = arith.mulf %1868, %1867 : vector<1x256xf32>
      %1870 = arith.addf %1863, %1869 : vector<1x256xf32>
      %1871 = arith.index_cast %arg5 : i32 to index
      %c47_480 = arith.constant 47 : index
      %c0_481 = arith.constant 0 : index
      %1872 = vector.load %arg4[%1871, %c47_480, %c0_481] : memref<8x49x256xf32, #tpu.memory_space<vmem>>, vector<1x1x256xf32>
      %1873 = vector.shape_cast %1872 : vector<1x1x256xf32> to vector<1x256xf32>
      %1874 = vector.shape_cast %1870 : vector<1x256xf32> to vector<1x1x256xf32>
      tpu.vector_store %arg4[%1871, %c47_480, %c0_481], %1874 {strides = array<i32>} : memref<8x49x256xf32, #tpu.memory_space<vmem>>, vector<1x1x256xf32>,
      %1875 = arith.index_cast %2 : i32 to index
      %c192 = arith.constant 192 : index
      %1876 = memref.load %arg1[%1875, %c192] : memref<16x196xi32, #tpu.memory_space<smem>>
      %1877 = arith.index_cast %2 : i32 to index
      %c193 = arith.constant 193 : index
      %1878 = memref.load %arg1[%1877, %c193] : memref<16x196xi32, #tpu.memory_space<smem>>
      %1879 = arith.index_cast %2 : i32 to index
      %c194 = arith.constant 194 : index
      %1880 = memref.load %arg1[%1879, %c194] : memref<16x196xi32, #tpu.memory_space<smem>>
      %1881 = arith.index_cast %2 : i32 to index
      %c195 = arith.constant 195 : index
      %1882 = memref.load %arg1[%1881, %c195] : memref<16x196xi32, #tpu.memory_space<smem>>
      %1883 = arith.index_cast %2 : i32 to index
      %c192_482 = arith.constant 192 : index
      %1884 = memref.load %arg2[%1883, %c192_482] : memref<16x196xf32, #tpu.memory_space<smem>>
      %1885 = arith.index_cast %1876 : i32 to index
      %c0_483 = arith.constant 0 : index
      %1886 = vector.load %arg3[%1885, %c0_483] : memref<1360x256xf32, #tpu.memory_space<vmem>>, vector<1x256xf32>
      %1887 = vector.broadcast %1884 : f32 to vector<1x256xf32>
      %1888 = arith.mulf %1887, %1886 : vector<1x256xf32>
      %1889 = arith.index_cast %2 : i32 to index
      %c193_484 = arith.constant 193 : index
      %1890 = memref.load %arg2[%1889, %c193_484] : memref<16x196xf32, #tpu.memory_space<smem>>
      %1891 = arith.index_cast %1878 : i32 to index
      %c0_485 = arith.constant 0 : index
      %1892 = vector.load %arg3[%1891, %c0_485] : memref<1360x256xf32, #tpu.memory_space<vmem>>, vector<1x256xf32>
      %1893 = vector.broadcast %1890 : f32 to vector<1x256xf32>
      %1894 = arith.mulf %1893, %1892 : vector<1x256xf32>
      %1895 = arith.addf %1888, %1894 : vector<1x256xf32>
      %1896 = arith.index_cast %2 : i32 to index
      %c194_486 = arith.constant 194 : index
      %1897 = memref.load %arg2[%1896, %c194_486] : memref<16x196xf32, #tpu.memory_space<smem>>
      %1898 = arith.index_cast %1880 : i32 to index
      %c0_487 = arith.constant 0 : index
      %1899 = vector.load %arg3[%1898, %c0_487] : memref<1360x256xf32, #tpu.memory_space<vmem>>, vector<1x256xf32>
      %1900 = vector.broadcast %1897 : f32 to vector<1x256xf32>
      %1901 = arith.mulf %1900, %1899 : vector<1x256xf32>
      %1902 = arith.addf %1895, %1901 : vector<1x256xf32>
      %1903 = arith.index_cast %2 : i32 to index
      %c195_488 = arith.constant 195 : index
      %1904 = memref.load %arg2[%1903, %c195_488] : memref<16x196xf32, #tpu.memory_space<smem>>
      %1905 = arith.index_cast %1882 : i32 to index
      %c0_489 = arith.constant 0 : index
      %1906 = vector.load %arg3[%1905, %c0_489] : memref<1360x256xf32, #tpu.memory_space<vmem>>, vector<1x256xf32>
      %1907 = vector.broadcast %1904 : f32 to vector<1x256xf32>
      %1908 = arith.mulf %1907, %1906 : vector<1x256xf32>
      %1909 = arith.addf %1902, %1908 : vector<1x256xf32>
      %1910 = arith.index_cast %arg5 : i32 to index
      %c48_490 = arith.constant 48 : index
      %c0_491 = arith.constant 0 : index
      %1911 = vector.load %arg4[%1910, %c48_490, %c0_491] : memref<8x49x256xf32, #tpu.memory_space<vmem>>, vector<1x1x256xf32>
      %1912 = vector.shape_cast %1911 : vector<1x1x256xf32> to vector<1x256xf32>
      %1913 = vector.shape_cast %1909 : vector<1x256xf32> to vector<1x1x256xf32>
      tpu.vector_store %arg4[%1910, %c48_490, %c0_491], %1913 {strides = array<i32>} : memref<8x49x256xf32, #tpu.memory_space<vmem>>, vector<1x1x256xf32>,
    }
    %c8_i32_0 = arith.constant 8 : i32
    return
  }
  func.func @transform_0(%arg0: i32) -> (i32, i32) {
    %c0_i32 = arith.constant 0 : i32
    %c0_i32_0 = arith.constant 0 : i32
    %c0_i32_1 = arith.constant 0 : i32
    return %c0_i32, %c0_i32_0 : i32, i32
  }
  func.func @transform_1(%arg0: i32) -> (i32, i32) {
    %c0_i32 = arith.constant 0 : i32
    %c0_i32_0 = arith.constant 0 : i32
    %c0_i32_1 = arith.constant 0 : i32
    return %c0_i32, %c0_i32_0 : i32, i32
  }
  func.func @transform_2(%arg0: i32) -> (i32, i32) {
    %c0_i32 = arith.constant 0 : i32
    %c0_i32_0 = arith.constant 0 : i32
    %c0_i32_1 = arith.constant 0 : i32
    return %c0_i32, %c0_i32_0 : i32, i32
  }
  func.func @transform_3(%arg0: i32) -> (i32, i32, i32) {
    %c0_i32 = arith.constant 0 : i32
    %c0_i32_0 = arith.constant 0 : i32
    %c0_i32_1 = arith.constant 0 : i32
    return %arg0, %c0_i32, %c0_i32_0 : i32, i32, i32
  }
}

</mosaic_0001>

<llo_original>
// kernel: tpu_custom_call.1
$region0: #{tpu_custom_call.1}
  #allocation0 [shape = 'u32[]', space=smem, size = 0x4, offset = 0x4, fixed_abs, tag = 'smem constant byte address 0x4 - core index']
  #allocation1 [shape = 'u32[144,128]{1,0:T(1,128)}', space=vmem, size = 0x12000, scoped, tag = 'internal scratch']
  %s0 = inlined_call_operand.hbm [shape: s32[16,196], index: 0, kind: input, shape index: {}]
  %s1 = inlined_call_operand.hbm [shape: f32[16,196], index: 1, kind: input, shape index: {}]
  %s2 = inlined_call_operand.hbm [shape: f32[1360,256], index: 2, kind: input, shape index: {}]
  %s3 = inlined_call_operand.vmem [shape: f32[16,49,256], index: 3, kind: output, shape index: {}]
  %s4 = sld [smem:[#allocation0]]
  $region64: #{tpu_custom_call.1} parent=0
    _
  %s6 = ssub.s32 1, %s4
  %s7 = scalar_select 0, %s6, %s4
  $region1: #{tpu_custom_call.1} parent=0
    #allocation2 [shape = 'u8[16384]{0}', space=smem, size = 0x4000, scoped, tag = 'input window, operand 0, single buffered']
    #allocation3 [shape = 's32[2]{0}', space=sflag, size = 0x8, scoped, tag = 'scoped memory for tpu_custom_call.1']
    #allocation4 [shape = 's32[2]{0}', space=sflag, size = 0x8, scoped, tag = 'scoped memory for tpu_custom_call.1']
    #allocation5 [shape = 'u8[16384]{0}', space=smem, size = 0x4000, scoped, tag = 'input window, operand 1, single buffered']
    #allocation6 [shape = 's32[1]{0}', space=sflag, size = 0x4, scoped, tag = 'scoped memory for tpu_custom_call.1']
    #allocation7 [shape = 'u8[1392640]{0}', space=vmem, size = 0x154000, scoped, tag = 'input window, operand 2, single buffered']
    %8 = vsyncpa [#allocation4], 0
    %9 = vsyncpa [#allocation6], 0
    %10 = vsyncpa [#allocation3], 0
    loop: start=0, step=1, limit=4
    $region2: #{tpu_custom_call.1} parent=1 // loop_pre_header
      _
    $region3: #{tpu_custom_call.1} parent=1 // loop_header
      %s12 = sphi 0, %s16
      %p13 = scmp.ge.s32.totalorder %s12, 4
      %s20 = sphi 0, %s20
      %s22 = sphi 0, %s20
      %s23 = sphi 0, %s22
      %s37 = sphi 0, %s23
      %s41 = sphi 0, %s41
      %s43 = sphi 0, %s41
      %s44 = sphi 0, %s43
      %s58 = sphi 0, %s44
      %s62 = sphi 0, %s62
      %s64 = sphi 0, %s62
      %s65 = sphi 0, %s64
      %s79 = sphi 0, %s65
      %s85 = sphi 0, %s87
      %s88 = sphi 0, %s85
      %s89 = sphi 0, %s88
      %s105 = sphi 0, %s89
    $region4: #{tpu_custom_call.1} parent=1 // loop_header_branch
      %15 = sbr.rel (%p13) target = $region8
    $region5: #{tpu_custom_call.1} parent=1 // loop_body
      %s17 = ssub.s32 %s12, 1
      %s18 = ssub.s32 %s12, 2
      %s19 = sadd.s32 %s12, 1
      %s21 = sadd.s32 %s20, 1
      %p24 = scmp.eq.s32.totalorder %s12, 1
      %p25 = scmp.ne.s32.totalorder %s20, %s22
      %p26 = scmp.eq.s32.totalorder %s12, 0
      %p27 = por %p25, %p26
      %p28 = scmp.ne.s32.totalorder %s20, %s22
      %p29 = scmp.eq.s32.totalorder %s17, 1
      %p30 = por %p28, %p29
      %p31 = scmp.ne.s32.totalorder %s22, %s23
      %p32 = scmp.eq.s32.totalorder %s17, 0
      %p33 = por %p31, %p32
      %p34 = scmp.ne.s32.totalorder %s22, %s23
      %p35 = scmp.eq.s32.totalorder %s18, 1
      %p36 = por %p34, %p35
      %p38 = scmp.ne.s32.totalorder %s23, %s37
      %p39 = scmp.eq.s32.totalorder %s18, 0
      %p40 = por %p38, %p39
      %s42 = sadd.s32 %s41, 1
      %p45 = scmp.eq.s32.totalorder %s12, 1
      %p46 = scmp.ne.s32.totalorder %s41, %s43
      %p47 = scmp.eq.s32.totalorder %s12, 0
      %p48 = por %p46, %p47
      %p49 = scmp.ne.s32.totalorder %s41, %s43
      %p50 = scmp.eq.s32.totalorder %s17, 1
      %p51 = por %p49, %p50
      %p52 = scmp.ne.s32.totalorder %s43, %s44
      %p53 = scmp.eq.s32.totalorder %s17, 0
      %p54 = por %p52, %p53
      %p55 = scmp.ne.s32.totalorder %s43, %s44
      %p56 = scmp.eq.s32.totalorder %s18, 1
      %p57 = por %p55, %p56
      %p59 = scmp.ne.s32.totalorder %s44, %s58
      %p60 = scmp.eq.s32.totalorder %s18, 0
      %p61 = por %p59, %p60
      %s63 = sadd.s32 %s62, 1
      %p66 = scmp.eq.s32.totalorder %s12, 1
      %p67 = scmp.ne.s32.totalorder %s62, %s64
      %p68 = scmp.eq.s32.totalorder %s12, 0
      %p69 = por %p67, %p68
      %p70 = scmp.ne.s32.totalorder %s62, %s64
      %p71 = scmp.eq.s32.totalorder %s17, 1
      %p72 = por %p70, %p71
      %p73 = scmp.ne.s32.totalorder %s64, %s65
      %p74 = scmp.eq.s32.totalorder %s17, 0
      %p75 = por %p73, %p74
      %p76 = scmp.ne.s32.totalorder %s64, %s65
      %p77 = scmp.eq.s32.totalorder %s18, 1
      %p78 = por %p76, %p77
      %p80 = scmp.ne.s32.totalorder %s65, %s79
      %p81 = scmp.eq.s32.totalorder %s18, 0
      %p82 = por %p80, %p81
      %s83 = ssub.s32 %s12, %s19
      %p84 = scmp.eq.s32.totalorder %s83, 0
      %s86 = sadd.s32 %s85, 1
      %s87 = scalar_select %p84, %s85, %s86
      %p90 = pneg %p84
      %p91 = scmp.eq.s32.totalorder %s12, 1
      %p92 = por %p90, %p91
      %p93 = scmp.ne.s32.totalorder %s85, %s88
      %p94 = scmp.eq.s32.totalorder %s12, 0
      %p95 = por %p93, %p94
      %p96 = scmp.ne.s32.totalorder %s85, %s88
      %p97 = scmp.eq.s32.totalorder %s17, 1
      %p98 = por %p96, %p97
      %p99 = scmp.ne.s32.totalorder %s88, %s89
      %p100 = scmp.eq.s32.totalorder %s17, 0
      %p101 = por %p99, %p100
      %p102 = scmp.ne.s32.totalorder %s88, %s89
      %p103 = scmp.eq.s32.totalorder %s18, 1
      %p104 = por %p102, %p103
      %p106 = scmp.ne.s32.totalorder %s89, %s105
      %p107 = scmp.eq.s32.totalorder %s18, 0
      %p108 = por %p106, %p107
      %p109 = scmp.le.s32.totalorder 1, %s12
      %p110 = scmp.lt.s32.totalorder %s12, 3
      %p111 = pnand %p109, %p110
      %p112 = pneg %p111
      // Predicated region
      $region9: #{tpu_custom_call.1} parent=5 // pred_check
        _
      $region10: #{tpu_custom_call.1} parent=5 // pred_check_branch
        %114 = sbr.rel (%p111) target = $region12
      $region11: #{tpu_custom_call.1} parent=5 // pred_region
        %s115 = ssub.s32 %s12, 1
        // Predicated region
        $region13: #{tpu_custom_call.1} parent=11 // pred_check
          %p116 = pneg %p33
        $region14: #{tpu_custom_call.1} parent=11 // pred_check_branch
          %118 = sbr.rel (%p116) target = $region16
        $region15: #{tpu_custom_call.1} parent=11 // pred_region
          %s120 = ssub.s32 512, 512
          %121 = vsyncadd [#allocation4], %s120
          %126 = dma.hbm_to_smem %s0, 512, [#allocation2], [#allocation4], 256, 256, 16
        $region16: #{tpu_custom_call.1} parent=11 // pred_fallthru
          _
        // Predicated region
        $region17: #{tpu_custom_call.1} parent=11 // pred_check
          %p127 = pneg %p54
        $region18: #{tpu_custom_call.1} parent=11 // pred_check_branch
          %129 = sbr.rel (%p127) target = $region20
        $region19: #{tpu_custom_call.1} parent=11 // pred_region
          %s131 = ssub.s32 512, 512
          %132 = vsyncadd [#allocation6], %s131
          %137 = dma.hbm_to_smem %s1, 512, [#allocation5], [#allocation6], 256, 256, 16
        $region20: #{tpu_custom_call.1} parent=11 // pred_fallthru
          _
        // Predicated region
        $region21: #{tpu_custom_call.1} parent=11 // pred_check
          %p138 = pneg %p75
        $region22: #{tpu_custom_call.1} parent=11 // pred_check_branch
          %140 = sbr.rel (%p138) target = $region24
        $region23: #{tpu_custom_call.1} parent=11 // pred_region
          %s142 = ssub.s32 43520, 43520
          %143 = vsyncadd [#allocation3], %s142
          %s144 = sshll.u32 [#allocation7], 4
          %s145 = int_to_ptr.vmem [resolvable:$true] %s144
          %150 = dma.hbm_to_vmem [thread:$0]  %s2, 43520, %s145, [#allocation3], 256, 256, 16
        $region24: #{tpu_custom_call.1} parent=11 // pred_fallthru
          _
      $region12: #{tpu_custom_call.1} parent=5 // pred_fallthru
        _
      %p151 = scmp.lt.s32.totalorder %s12, 2
      // Predicated region
      $region25: #{tpu_custom_call.1} parent=5 // pred_check
        %p152 = pneg %p151
      $region26: #{tpu_custom_call.1} parent=5 // pred_check_branch
        %154 = sbr.rel (%p152) target = $region28
      $region27: #{tpu_custom_call.1} parent=5 // pred_region
        _
      $region28: #{tpu_custom_call.1} parent=5 // pred_fallthru
        _
      %p155 = scmp.le.s32.totalorder 1, %s12
      %p156 = scmp.lt.s32.totalorder %s12, 3
      %p157 = pnand %p155, %p156
      %p158 = pneg %p157
      // Predicated region
      $region29: #{tpu_custom_call.1} parent=5 // pred_check
        _
      $region30: #{tpu_custom_call.1} parent=5 // pred_check_branch
        %160 = sbr.rel (%p157) target = $region32
      $region31: #{tpu_custom_call.1} parent=5 // pred_region
        %s161 = ssub.s32 %s12, 1
        // Predicated region
        $region33: #{tpu_custom_call.1} parent=31 // pred_check
          %p162 = pneg %p33
        $region34: #{tpu_custom_call.1} parent=31 // pred_check_branch
          %164 = sbr.rel (%p162) target = $region36
        $region35: #{tpu_custom_call.1} parent=31 // pred_region
          %165 = dma.done [#allocation4], 512
        $region36: #{tpu_custom_call.1} parent=31 // pred_fallthru
          _
        // Predicated region
        $region37: #{tpu_custom_call.1} parent=31 // pred_check
          %p166 = pneg %p54
        $region38: #{tpu_custom_call.1} parent=31 // pred_check_branch
          %168 = sbr.rel (%p166) target = $region40
        $region39: #{tpu_custom_call.1} parent=31 // pred_region
          %169 = dma.done [#allocation6], 512
        $region40: #{tpu_custom_call.1} parent=31 // pred_fallthru
          _
        // Predicated region
        $region41: #{tpu_custom_call.1} parent=31 // pred_check
          %p170 = pneg %p75
        $region42: #{tpu_custom_call.1} parent=31 // pred_check_branch
          %172 = sbr.rel (%p170) target = $region44
        $region43: #{tpu_custom_call.1} parent=31 // pred_region
          %173 = dma.done [#allocation3], 43520
        $region44: #{tpu_custom_call.1} parent=31 // pred_fallthru
          _
        %174 = sfence
        %p175 = pneg %p33
        %p176 = pneg %p30
        %p177 = pneg %p54
        %p178 = pneg %p51
        %p179 = pneg %p75
        %p180 = pneg %p72
        %p181 = pneg %p101
        %p182 = pneg %p98
        %s183 = smul.u32 8, %s17
        %p184 = scmp.lt.s32.totalorder %s183, 15
        %s185 = scalar_select %p184, %s183, 15
        %s186 = smul.addr %s185, 14
        %s187 = smul.addr %s186, 8
        %s188 = scalar_lea.vmem %s3, %s187
        %s189 = smul.u32 8, %s17
        %p190 = scmp.lt.s32.totalorder %s189, 15
        %s191 = scalar_select %p190, %s189, 15
        %s192 = smul.addr %s191, 14
        %s193 = smul.addr %s192, 8
        %s194 = scalar_lea.vmem %s3, %s193
        %s195 = smul.u32 8, %s17
        loop: start=0, step=1, limit=8
        $region45: #{tpu_custom_call.1} parent=31 // loop_pre_header
          _
        $region46: #{tpu_custom_call.1} parent=31 // loop_header
          %s197 = sphi 0, %s201
          %p198 = scmp.ge.s32.totalorder %s197, 8
        $region47: #{tpu_custom_call.1} parent=31 // loop_header_branch
          %200 = sbr.rel (%p198) target = $region51
        $region48: #{tpu_custom_call.1} parent=31 // loop_body
          %s202 = smul.u32 %s17, 8
          %s203 = sadd.s32 %s202, %s197
          %s204 = sshra.s32 %s203, 3
          %s205 = sand.u32 %s203, 7
          %s206 = smul.u32 %s204, 2
          %s207 = smul.u32 %s206, 1024
          %s208 = sshra.s32 %s203, 3
          %s209 = sand.u32 %s203, 7
          %s210 = smul.u32 %s209, 128
          %s211 = sadd.s32 %s207, %s210
          %s212 = sld [smem:[#allocation2 + %s211]]
          %s213 = sadd.s32 %s210, 1
          %s214 = sadd.s32 %s207, %s213
          %s215 = sld [smem:[#allocation2 + %s214]]
          %s216 = sadd.s32 %s210, 2
          %s217 = sadd.s32 %s207, %s216
          %s218 = sld [smem:[#allocation2 + %s217]]
          %s219 = sadd.s32 %s210, 3
          %s220 = sadd.s32 %s207, %s219
          %s221 = sld [smem:[#allocation2 + %s220]]
          %s222 = sld [smem:[#allocation5 + %s211]]
          %s223 = sshra.s32 %s212, 3
          %s224 = sand.u32 %s212, 7
          %s225 = sshra.s32 %s212, 3
          %s226 = sand.u32 %s212, 7
          %s227 = smul.u32 %s223, 2
          %s228 = smul.u32 %s227, 8
          %s229 = sadd.s32 %s228, %s226
          %s230 = scalar_lea.vmem [#allocation7], %s229
          %v231 = vld [vmem:[%s230] ss:$8 sm:$0x3]
          %v232 = vstv %s222
          %v233 = vmul.f32 %v232, %v231
          %s234 = sld [smem:[#allocation5 + %s214]]
          %s235 = sshra.s32 %s215, 3
          %s236 = sand.u32 %s215, 7
          %s237 = sshra.s32 %s215, 3
          %s238 = sand.u32 %s215, 7
          %s239 = smul.u32 %s235, 2
          %s240 = smul.u32 %s239, 8
          %s241 = sadd.s32 %s240, %s238
          %s242 = scalar_lea.vmem [#allocation7], %s241
          %v243 = vld [vmem:[%s242] ss:$8 sm:$0x3]
          %v244 = vstv %s234
          %v245 = vmul.f32 %v244, %v243
          %v246 = vadd.f32 %v233, %v245
          %s247 = sld [smem:[#allocation5 + %s217]]
          %s248 = sshra.s32 %s218, 3
          %s249 = sand.u32 %s218, 7
          %s250 = sshra.s32 %s218, 3
          %s251 = sand.u32 %s218, 7
          %s252 = smul.u32 %s248, 2
          %s253 = smul.u32 %s252, 8
          %s254 = sadd.s32 %s253, %s251
          %s255 = scalar_lea.vmem [#allocation7], %s254
          %v256 = vld [vmem:[%s255] ss:$8 sm:$0x3]
          %v257 = vstv %s247
          %v258 = vmul.f32 %v257, %v256
          %v259 = vadd.f32 %v246, %v258
          %s260 = sld [smem:[#allocation5 + %s220]]
          %s261 = sshra.s32 %s221, 3
          %s262 = sand.u32 %s221, 7
          %s263 = sshra.s32 %s221, 3
          %s264 = sand.u32 %s221, 7
          %s265 = smul.u32 %s261, 2
          %s266 = smul.u32 %s265, 8
          %s267 = sadd.s32 %s266, %s264
          %s268 = scalar_lea.vmem [#allocation7], %s267
          %v269 = vld [vmem:[%s268] ss:$8 sm:$0x3]
          %v270 = vstv %s260
          %v271 = vmul.f32 %v270, %v269
          %v272 = vadd.f32 %v259, %v271
          %s273 = smul.u32 %s197, 14
          %s274 = smul.addr %s273, 8
          %s275 = scalar_lea.vmem %s194, %s274
          %v276 = vlaneseq
          %vm277 = vcmp.ge.s32.totalorder %v276, 0
          %vm278 = vcmp.lt.s32.totalorder %v276, 256
          %vm279 = vmand %vm277, %vm278
          %280 = vst.msk [vmem:[%s275] ss:$8 sm:$0x3] %vm279, %v272
          %281 = vst.msk [vmem:[%s275] ss:$8 sm:$0x0] %vm279, %v272
          %s282 = sadd.s32 %s210, 4
          %s283 = sadd.s32 %s207, %s282
          %s284 = sld [smem:[#allocation2 + %s283]]
          %s285 = sadd.s32 %s210, 5
          %s286 = sadd.s32 %s207, %s285
          %s287 = sld [smem:[#allocation2 + %s286]]
          %s288 = sadd.s32 %s210, 6
          %s289 = sadd.s32 %s207, %s288
          %s290 = sld [smem:[#allocation2 + %s289]]
          %s291 = sadd.s32 %s210, 7
          %s292 = sadd.s32 %s207, %s291
          %s293 = sld [smem:[#allocation2 + %s292]]
          %s294 = sld [smem:[#allocation5 + %s283]]
          %s295 = sshra.s32 %s284, 3
          %s296 = sand.u32 %s284, 7
          %s297 = sshra.s32 %s284, 3
          %s298 = sand.u32 %s284, 7
          %s299 = smul.u32 %s295, 2
          %s300 = smul.u32 %s299, 8
          %s301 = sadd.s32 %s300, %s298
          %s302 = scalar_lea.vmem [#allocation7], %s301
          %v303 = vld [vmem:[%s302] ss:$8 sm:$0x3]
          %v304 = vstv %s294
          %v305 = vmul.f32 %v304, %v303
          %s306 = sld [smem:[#allocation5 + %s286]]
          %s307 = sshra.s32 %s287, 3
          %s308 = sand.u32 %s287, 7
          %s309 = sshra.s32 %s287, 3
          %s310 = sand.u32 %s287, 7
          %s311 = smul.u32 %s307, 2
          %s312 = smul.u32 %s311, 8
          %s313 = sadd.s32 %s312, %s310
          %s314 = scalar_lea.vmem [#allocation7], %s313
          %v315 = vld [vmem:[%s314] ss:$8 sm:$0x3]
          %v316 = vstv %s306
          %v317 = vmul.f32 %v316, %v315
          %v318 = vadd.f32 %v305, %v317
          %s319 = sld [smem:[#allocation5 + %s289]]
          %s320 = sshra.s32 %s290, 3
          %s321 = sand.u32 %s290, 7
          %s322 = sshra.s32 %s290, 3
          %s323 = sand.u32 %s290, 7
          %s324 = smul.u32 %s320, 2
          %s325 = smul.u32 %s324, 8
          %s326 = sadd.s32 %s325, %s323
          %s327 = scalar_lea.vmem [#allocation7], %s326
          %v328 = vld [vmem:[%s327] ss:$8 sm:$0x3]
          %v329 = vstv %s319
          %v330 = vmul.f32 %v329, %v328
          %v331 = vadd.f32 %v318, %v330
          %s332 = sld [smem:[#allocation5 + %s292]]
          %s333 = sshra.s32 %s293, 3
          %s334 = sand.u32 %s293, 7
          %s335 = sshra.s32 %s293, 3
          %s336 = sand.u32 %s293, 7
          %s337 = smul.u32 %s333, 2
          %s338 = smul.u32 %s337, 8
          %s339 = sadd.s32 %s338, %s336
          %s340 = scalar_lea.vmem [#allocation7], %s339
          %v341 = vld [vmem:[%s340] ss:$8 sm:$0x3]
          %v342 = vstv %s332
          %v343 = vmul.f32 %v342, %v341
          %v344 = vadd.f32 %v331, %v343
          %s345 = scalar_lea.vmem %s275, 1
          %346 = vst.msk [vmem:[%s345] ss:$8 sm:$0x3] %vm279, %v344
          %347 = vst.msk [vmem:[%s345] ss:$8 sm:$0x0] %vm279, %v344
          %s348 = sadd.s32 %s210, 8
          %s349 = sadd.s32 %s207, %s348
          %s350 = sld [smem:[#allocation2 + %s349]]
          %s351 = sadd.s32 %s210, 9
          %s352 = sadd.s32 %s207, %s351
          %s353 = sld [smem:[#allocation2 + %s352]]
          %s354 = sadd.s32 %s210, 10
          %s355 = sadd.s32 %s207, %s354
          %s356 = sld [smem:[#allocation2 + %s355]]
          %s357 = sadd.s32 %s210, 11
          %s358 = sadd.s32 %s207, %s357
          %s359 = sld [smem:[#allocation2 + %s358]]
          %s360 = sld [smem:[#allocation5 + %s349]]
          %s361 = sshra.s32 %s350, 3
          %s362 = sand.u32 %s350, 7
          %s363 = sshra.s32 %s350, 3
          %s364 = sand.u32 %s350, 7
          %s365 = smul.u32 %s361, 2
          %s366 = smul.u32 %s365, 8
          %s367 = sadd.s32 %s366, %s364
          %s368 = scalar_lea.vmem [#allocation7], %s367
          %v369 = vld [vmem:[%s368] ss:$8 sm:$0x3]
          %v370 = vstv %s360
          %v371 = vmul.f32 %v370, %v369
          %s372 = sld [smem:[#allocation5 + %s352]]
          %s373 = sshra.s32 %s353, 3
          %s374 = sand.u32 %s353, 7
          %s375 = sshra.s32 %s353, 3
          %s376 = sand.u32 %s353, 7
          %s377 = smul.u32 %s373, 2
          %s378 = smul.u32 %s377, 8
          %s379 = sadd.s32 %s378, %s376
          %s380 = scalar_lea.vmem [#allocation7], %s379
          %v381 = vld [vmem:[%s380] ss:$8 sm:$0x3]
          %v382 = vstv %s372
          %v383 = vmul.f32 %v382, %v381
          %v384 = vadd.f32 %v371, %v383
          %s385 = sld [smem:[#allocation5 + %s355]]
          %s386 = sshra.s32 %s356, 3
          %s387 = sand.u32 %s356, 7
          %s388 = sshra.s32 %s356, 3
          %s389 = sand.u32 %s356, 7
          %s390 = smul.u32 %s386, 2
          %s391 = smul.u32 %s390, 8
          %s392 = sadd.s32 %s391, %s389
          %s393 = scalar_lea.vmem [#allocation7], %s392
          %v394 = vld [vmem:[%s393] ss:$8 sm:$0x3]
          %v395 = vstv %s385
          %v396 = vmul.f32 %v395, %v394
          %v397 = vadd.f32 %v384, %v396
          %s398 = sld [smem:[#allocation5 + %s358]]
          %s399 = sshra.s32 %s359, 3
          %s400 = sand.u32 %s359, 7
          %s401 = sshra.s32 %s359, 3
          %s402 = sand.u32 %s359, 7
          %s403 = smul.u32 %s399, 2
          %s404 = smul.u32 %s403, 8
          %s405 = sadd.s32 %s404, %s402
          %s406 = scalar_lea.vmem [#allocation7], %s405
          %v407 = vld [vmem:[%s406] ss:$8 sm:$0x3]
          %v408 = vstv %s398
          %v409 = vmul.f32 %v408, %v407
          %v410 = vadd.f32 %v397, %v409
          %s411 = scalar_lea.vmem %s275, 2
          %412 = vst.msk [vmem:[%s411] ss:$8 sm:$0x3] %vm279, %v410
          %413 = vst.msk [vmem:[%s411] ss:$8 sm:$0x0] %vm279, %v410
          %s414 = sadd.s32 %s210, 12
          %s415 = sadd.s32 %s207, %s414
          %s416 = sld [smem:[#allocation2 + %s415]]
          %s417 = sadd.s32 %s210, 13
          %s418 = sadd.s32 %s207, %s417
          %s419 = sld [smem:[#allocation2 + %s418]]
          %s420 = sadd.s32 %s210, 14
          %s421 = sadd.s32 %s207, %s420
          %s422 = sld [smem:[#allocation2 + %s421]]
          %s423 = sadd.s32 %s210, 15
          %s424 = sadd.s32 %s207, %s423
          %s425 = sld [smem:[#allocation2 + %s424]]
          %s426 = sld [smem:[#allocation5 + %s415]]
          %s427 = sshra.s32 %s416, 3
          %s428 = sand.u32 %s416, 7
          %s429 = sshra.s32 %s416, 3
          %s430 = sand.u32 %s416, 7
          %s431 = smul.u32 %s427, 2
          %s432 = smul.u32 %s431, 8
          %s433 = sadd.s32 %s432, %s430
          %s434 = scalar_lea.vmem [#allocation7], %s433
          %v435 = vld [vmem:[%s434] ss:$8 sm:$0x3]
          %v436 = vstv %s426
          %v437 = vmul.f32 %v436, %v435
          %s438 = sld [smem:[#allocation5 + %s418]]
          %s439 = sshra.s32 %s419, 3
          %s440 = sand.u32 %s419, 7
          %s441 = sshra.s32 %s419, 3
          %s442 = sand.u32 %s419, 7
          %s443 = smul.u32 %s439, 2
          %s444 = smul.u32 %s443, 8
          %s445 = sadd.s32 %s444, %s442
          %s446 = scalar_lea.vmem [#allocation7], %s445
          %v447 = vld [vmem:[%s446] ss:$8 sm:$0x3]
          %v448 = vstv %s438
          %v449 = vmul.f32 %v448, %v447
          %v450 = vadd.f32 %v437, %v449
          %s451 = sld [smem:[#allocation5 + %s421]]
          %s452 = sshra.s32 %s422, 3
          %s453 = sand.u32 %s422, 7
          %s454 = sshra.s32 %s422, 3
          %s455 = sand.u32 %s422, 7
          %s456 = smul.u32 %s452, 2
          %s457 = smul.u32 %s456, 8
          %s458 = sadd.s32 %s457, %s455
          %s459 = scalar_lea.vmem [#allocation7], %s458
          %v460 = vld [vmem:[%s459] ss:$8 sm:$0x3]
          %v461 = vstv %s451
          %v462 = vmul.f32 %v461, %v460
          %v463 = vadd.f32 %v450, %v462
          %s464 = sld [smem:[#allocation5 + %s424]]
          %s465 = sshra.s32 %s425, 3
          %s466 = sand.u32 %s425, 7
          %s467 = sshra.s32 %s425, 3
          %s468 = sand.u32 %s425, 7
          %s469 = smul.u32 %s465, 2
          %s470 = smul.u32 %s469, 8
          %s471 = sadd.s32 %s470, %s468
          %s472 = scalar_lea.vmem [#allocation7], %s471
          %v473 = vld [vmem:[%s472] ss:$8 sm:$0x3]
          %v474 = vstv %s464
          %v475 = vmul.f32 %v474, %v473
          %v476 = vadd.f32 %v463, %v475
          %s477 = scalar_lea.vmem %s275, 3
          %478 = vst.msk [vmem:[%s477] ss:$8 sm:$0x3] %vm279, %v476
          %479 = vst.msk [vmem:[%s477] ss:$8 sm:$0x0] %vm279, %v476
          %s480 = sadd.s32 %s210, 16
          %s481 = sadd.s32 %s207, %s480
          %s482 = sld [smem:[#allocation2 + %s481]]
          %s483 = sadd.s32 %s210, 17
          %s484 = sadd.s32 %s207, %s483
          %s485 = sld [smem:[#allocation2 + %s484]]
          %s486 = sadd.s32 %s210, 18
          %s487 = sadd.s32 %s207, %s486
          %s488 = sld [smem:[#allocation2 + %s487]]
          %s489 = sadd.s32 %s210, 19
          %s490 = sadd.s32 %s207, %s489
          %s491 = sld [smem:[#allocation2 + %s490]]
          %s492 = sld [smem:[#allocation5 + %s481]]
          %s493 = sshra.s32 %s482, 3
          %s494 = sand.u32 %s482, 7
          %s495 = sshra.s32 %s482, 3
          %s496 = sand.u32 %s482, 7
          %s497 = smul.u32 %s493, 2
          %s498 = smul.u32 %s497, 8
          %s499 = sadd.s32 %s498, %s496
          %s500 = scalar_lea.vmem [#allocation7], %s499
          %v501 = vld [vmem:[%s500] ss:$8 sm:$0x3]
          %v502 = vstv %s492
          %v503 = vmul.f32 %v502, %v501
          %s504 = sld [smem:[#allocation5 + %s484]]
          %s505 = sshra.s32 %s485, 3
          %s506 = sand.u32 %s485, 7
          %s507 = sshra.s32 %s485, 3
          %s508 = sand.u32 %s485, 7
          %s509 = smul.u32 %s505, 2
          %s510 = smul.u32 %s509, 8
          %s511 = sadd.s32 %s510, %s508
          %s512 = scalar_lea.vmem [#allocation7], %s511
          %v513 = vld [vmem:[%s512] ss:$8 sm:$0x3]
          %v514 = vstv %s504
          %v515 = vmul.f32 %v514, %v513
          %v516 = vadd.f32 %v503, %v515
          %s517 = sld [smem:[#allocation5 + %s487]]
          %s518 = sshra.s32 %s488, 3
          %s519 = sand.u32 %s488, 7
          %s520 = sshra.s32 %s488, 3
          %s521 = sand.u32 %s488, 7
          %s522 = smul.u32 %s518, 2
          %s523 = smul.u32 %s522, 8
          %s524 = sadd.s32 %s523, %s521
          %s525 = scalar_lea.vmem [#allocation7], %s524
          %v526 = vld [vmem:[%s525] ss:$8 sm:$0x3]
          %v527 = vstv %s517
          %v528 = vmul.f32 %v527, %v526
          %v529 = vadd.f32 %v516, %v528
          %s530 = sld [smem:[#allocation5 + %s490]]
          %s531 = sshra.s32 %s491, 3
          %s532 = sand.u32 %s491, 7
          %s533 = sshra.s32 %s491, 3
          %s534 = sand.u32 %s491, 7
          %s535 = smul.u32 %s531, 2
          %s536 = smul.u32 %s535, 8
          %s537 = sadd.s32 %s536, %s534
          %s538 = scalar_lea.vmem [#allocation7], %s537
          %v539 = vld [vmem:[%s538] ss:$8 sm:$0x3]
          %v540 = vstv %s530
          %v541 = vmul.f32 %v540, %v539
          %v542 = vadd.f32 %v529, %v541
          %s543 = scalar_lea.vmem %s275, 4
          %544 = vst.msk [vmem:[%s543] ss:$8 sm:$0x3] %vm279, %v542
          %545 = vst.msk [vmem:[%s543] ss:$8 sm:$0x0] %vm279, %v542
          %s546 = sadd.s32 %s210, 20
          %s547 = sadd.s32 %s207, %s546
          %s548 = sld [smem:[#allocation2 + %s547]]
          %s549 = sadd.s32 %s210, 21
          %s550 = sadd.s32 %s207, %s549
          %s551 = sld [smem:[#allocation2 + %s550]]
          %s552 = sadd.s32 %s210, 22
          %s553 = sadd.s32 %s207, %s552
          %s554 = sld [smem:[#allocation2 + %s553]]
          %s555 = sadd.s32 %s210, 23
          %s556 = sadd.s32 %s207, %s555
          %s557 = sld [smem:[#allocation2 + %s556]]
          %s558 = sld [smem:[#allocation5 + %s547]]
          %s559 = sshra.s32 %s548, 3
          %s560 = sand.u32 %s548, 7
          %s561 = sshra.s32 %s548, 3
          %s562 = sand.u32 %s548, 7
          %s563 = smul.u32 %s559, 2
          %s564 = smul.u32 %s563, 8
          %s565 = sadd.s32 %s564, %s562
          %s566 = scalar_lea.vmem [#allocation7], %s565
          %v567 = vld [vmem:[%s566] ss:$8 sm:$0x3]
          %v568 = vstv %s558
          %v569 = vmul.f32 %v568, %v567
          %s570 = sld [smem:[#allocation5 + %s550]]
          %s571 = sshra.s32 %s551, 3
          %s572 = sand.u32 %s551, 7
          %s573 = sshra.s32 %s551, 3
          %s574 = sand.u32 %s551, 7
          %s575 = smul.u32 %s571, 2
          %s576 = smul.u32 %s575, 8
          %s577 = sadd.s32 %s576, %s574
          %s578 = scalar_lea.vmem [#allocation7], %s577
          %v579 = vld [vmem:[%s578] ss:$8 sm:$0x3]
          %v580 = vstv %s570
          %v581 = vmul.f32 %v580, %v579
          %v582 = vadd.f32 %v569, %v581
          %s583 = sld [smem:[#allocation5 + %s553]]
          %s584 = sshra.s32 %s554, 3
          %s585 = sand.u32 %s554, 7
          %s586 = sshra.s32 %s554, 3
          %s587 = sand.u32 %s554, 7
          %s588 = smul.u32 %s584, 2
          %s589 = smul.u32 %s588, 8
          %s590 = sadd.s32 %s589, %s587
          %s591 = scalar_lea.vmem [#allocation7], %s590
          %v592 = vld [vmem:[%s591] ss:$8 sm:$0x3]
          %v593 = vstv %s583
          %v594 = vmul.f32 %v593, %v592
          %v595 = vadd.f32 %v582, %v594
          %s596 = sld [smem:[#allocation5 + %s556]]
          %s597 = sshra.s32 %s557, 3
          %s598 = sand.u32 %s557, 7
          %s599 = sshra.s32 %s557, 3
          %s600 = sand.u32 %s557, 7
          %s601 = smul.u32 %s597, 2
          %s602 = smul.u32 %s601, 8
          %s603 = sadd.s32 %s602, %s600
          %s604 = scalar_lea.vmem [#allocation7], %s603
          %v605 = vld [vmem:[%s604] ss:$8 sm:$0x3]
          %v606 = vstv %s596
          %v607 = vmul.f32 %v606, %v605
          %v608 = vadd.f32 %v595, %v607
          %s609 = scalar_lea.vmem %s275, 5
          %610 = vst.msk [vmem:[%s609] ss:$8 sm:$0x3] %vm279, %v608
          %611 = vst.msk [vmem:[%s609] ss:$8 sm:$0x0] %vm279, %v608
          %s612 = sadd.s32 %s210, 24
          %s613 = sadd.s32 %s207, %s612
          %s614 = sld [smem:[#allocation2 + %s613]]
          %s615 = sadd.s32 %s210, 25
          %s616 = sadd.s32 %s207, %s615
          %s617 = sld [smem:[#allocation2 + %s616]]
          %s618 = sadd.s32 %s210, 26
          %s619 = sadd.s32 %s207, %s618
          %s620 = sld [smem:[#allocation2 + %s619]]
          %s621 = sadd.s32 %s210, 27
          %s622 = sadd.s32 %s207, %s621
          %s623 = sld [smem:[#allocation2 + %s622]]
          %s624 = sld [smem:[#allocation5 + %s613]]
          %s625 = sshra.s32 %s614, 3
          %s626 = sand.u32 %s614, 7
          %s627 = sshra.s32 %s614, 3
          %s628 = sand.u32 %s614, 7
          %s629 = smul.u32 %s625, 2
          %s630 = smul.u32 %s629, 8
          %s631 = sadd.s32 %s630, %s628
          %s632 = scalar_lea.vmem [#allocation7], %s631
          %v633 = vld [vmem:[%s632] ss:$8 sm:$0x3]
          %v634 = vstv %s624
          %v635 = vmul.f32 %v634, %v633
          %s636 = sld [smem:[#allocation5 + %s616]]
          %s637 = sshra.s32 %s617, 3
          %s638 = sand.u32 %s617, 7
          %s639 = sshra.s32 %s617, 3
          %s640 = sand.u32 %s617, 7
          %s641 = smul.u32 %s637, 2
          %s642 = smul.u32 %s641, 8
          %s643 = sadd.s32 %s642, %s640
          %s644 = scalar_lea.vmem [#allocation7], %s643
          %v645 = vld [vmem:[%s644] ss:$8 sm:$0x3]
          %v646 = vstv %s636
          %v647 = vmul.f32 %v646, %v645
          %v648 = vadd.f32 %v635, %v647
          %s649 = sld [smem:[#allocation5 + %s619]]
          %s650 = sshra.s32 %s620, 3
          %s651 = sand.u32 %s620, 7
          %s652 = sshra.s32 %s620, 3
          %s653 = sand.u32 %s620, 7
          %s654 = smul.u32 %s650, 2
          %s655 = smul.u32 %s654, 8
          %s656 = sadd.s32 %s655, %s653
          %s657 = scalar_lea.vmem [#allocation7], %s656
          %v658 = vld [vmem:[%s657] ss:$8 sm:$0x3]
          %v659 = vstv %s649
          %v660 = vmul.f32 %v659, %v658
          %v661 = vadd.f32 %v648, %v660
          %s662 = sld [smem:[#allocation5 + %s622]]
          %s663 = sshra.s32 %s623, 3
          %s664 = sand.u32 %s623, 7
          %s665 = sshra.s32 %s623, 3
          %s666 = sand.u32 %s623, 7
          %s667 = smul.u32 %s663, 2
          %s668 = smul.u32 %s667, 8
          %s669 = sadd.s32 %s668, %s666
          %s670 = scalar_lea.vmem [#allocation7], %s669
          %v671 = vld [vmem:[%s670] ss:$8 sm:$0x3]
          %v672 = vstv %s662
          %v673 = vmul.f32 %v672, %v671
          %v674 = vadd.f32 %v661, %v673
          %s675 = scalar_lea.vmem %s275, 6
          %676 = vst.msk [vmem:[%s675] ss:$8 sm:$0x3] %vm279, %v674
          %677 = vst.msk [vmem:[%s675] ss:$8 sm:$0x0] %vm279, %v674
          %s678 = sadd.s32 %s210, 28
          %s679 = sadd.s32 %s207, %s678
          %s680 = sld [smem:[#allocation2 + %s679]]
          %s681 = sadd.s32 %s210, 29
          %s682 = sadd.s32 %s207, %s681
          %s683 = sld [smem:[#allocation2 + %s682]]
          %s684 = sadd.s32 %s210, 30
          %s685 = sadd.s32 %s207, %s684
          %s686 = sld [smem:[#allocation2 + %s685]]
          %s687 = sadd.s32 %s210, 31
          %s688 = sadd.s32 %s207, %s687
          %s689 = sld [smem:[#allocation2 + %s688]]
          %s690 = sld [smem:[#allocation5 + %s679]]
          %s691 = sshra.s32 %s680, 3
          %s692 = sand.u32 %s680, 7
          %s693 = sshra.s32 %s680, 3
          %s694 = sand.u32 %s680, 7
          %s695 = smul.u32 %s691, 2
          %s696 = smul.u32 %s695, 8
          %s697 = sadd.s32 %s696, %s694
          %s698 = scalar_lea.vmem [#allocation7], %s697
          %v699 = vld [vmem:[%s698] ss:$8 sm:$0x3]
          %v700 = vstv %s690
          %v701 = vmul.f32 %v700, %v699
          %s702 = sld [smem:[#allocation5 + %s682]]
          %s703 = sshra.s32 %s683, 3
          %s704 = sand.u32 %s683, 7
          %s705 = sshra.s32 %s683, 3
          %s706 = sand.u32 %s683, 7
          %s707 = smul.u32 %s703, 2
          %s708 = smul.u32 %s707, 8
          %s709 = sadd.s32 %s708, %s706
          %s710 = scalar_lea.vmem [#allocation7], %s709
          %v711 = vld [vmem:[%s710] ss:$8 sm:$0x3]
          %v712 = vstv %s702
          %v713 = vmul.f32 %v712, %v711
          %v714 = vadd.f32 %v701, %v713
          %s715 = sld [smem:[#allocation5 + %s685]]
          %s716 = sshra.s32 %s686, 3
          %s717 = sand.u32 %s686, 7
          %s718 = sshra.s32 %s686, 3
          %s719 = sand.u32 %s686, 7
          %s720 = smul.u32 %s716, 2
          %s721 = smul.u32 %s720, 8
          %s722 = sadd.s32 %s721, %s719
          %s723 = scalar_lea.vmem [#allocation7], %s722
          %v724 = vld [vmem:[%s723] ss:$8 sm:$0x3]
          %v725 = vstv %s715
          %v726 = vmul.f32 %v725, %v724
          %v727 = vadd.f32 %v714, %v726
          %s728 = sld [smem:[#allocation5 + %s688]]
          %s729 = sshra.s32 %s689, 3
          %s730 = sand.u32 %s689, 7
          %s731 = sshra.s32 %s689, 3
          %s732 = sand.u32 %s689, 7
          %s733 = smul.u32 %s729, 2
          %s734 = smul.u32 %s733, 8
          %s735 = sadd.s32 %s734, %s732
          %s736 = scalar_lea.vmem [#allocation7], %s735
          %v737 = vld [vmem:[%s736] ss:$8 sm:$0x3]
          %v738 = vstv %s728
          %v739 = vmul.f32 %v738, %v737
          %v740 = vadd.f32 %v727, %v739
          %s741 = scalar_lea.vmem %s275, 7
          %742 = vst.msk [vmem:[%s741] ss:$8 sm:$0x3] %vm279, %v740
          %743 = vst.msk [vmem:[%s741] ss:$8 sm:$0x0] %vm279, %v740
          %s744 = sadd.s32 %s210, 32
          %s745 = sadd.s32 %s207, %s744
          %s746 = sld [smem:[#allocation2 + %s745]]
          %s747 = sadd.s32 %s210, 33
          %s748 = sadd.s32 %s207, %s747
          %s749 = sld [smem:[#allocation2 + %s748]]
          %s750 = sadd.s32 %s210, 34
          %s751 = sadd.s32 %s207, %s750
          %s752 = sld [smem:[#allocation2 + %s751]]
          %s753 = sadd.s32 %s210, 35
          %s754 = sadd.s32 %s207, %s753
          %s755 = sld [smem:[#allocation2 + %s754]]
          %s756 = sld [smem:[#allocation5 + %s745]]
          %s757 = sshra.s32 %s746, 3
          %s758 = sand.u32 %s746, 7
          %s759 = sshra.s32 %s746, 3
          %s760 = sand.u32 %s746, 7
          %s761 = smul.u32 %s757, 2
          %s762 = smul.u32 %s761, 8
          %s763 = sadd.s32 %s762, %s760
          %s764 = scalar_lea.vmem [#allocation7], %s763
          %v765 = vld [vmem:[%s764] ss:$8 sm:$0x3]
          %v766 = vstv %s756
          %v767 = vmul.f32 %v766, %v765
          %s768 = sld [smem:[#allocation5 + %s748]]
          %s769 = sshra.s32 %s749, 3
          %s770 = sand.u32 %s749, 7
          %s771 = sshra.s32 %s749, 3
          %s772 = sand.u32 %s749, 7
          %s773 = smul.u32 %s769, 2
          %s774 = smul.u32 %s773, 8
          %s775 = sadd.s32 %s774, %s772
          %s776 = scalar_lea.vmem [#allocation7], %s775
          %v777 = vld [vmem:[%s776] ss:$8 sm:$0x3]
          %v778 = vstv %s768
          %v779 = vmul.f32 %v778, %v777
          %v780 = vadd.f32 %v767, %v779
          %s781 = sld [smem:[#allocation5 + %s751]]
          %s782 = sshra.s32 %s752, 3
          %s783 = sand.u32 %s752, 7
          %s784 = sshra.s32 %s752, 3
          %s785 = sand.u32 %s752, 7
          %s786 = smul.u32 %s782, 2
          %s787 = smul.u32 %s786, 8
          %s788 = sadd.s32 %s787, %s785
          %s789 = scalar_lea.vmem [#allocation7], %s788
          %v790 = vld [vmem:[%s789] ss:$8 sm:$0x3]
          %v791 = vstv %s781
          %v792 = vmul.f32 %v791, %v790
          %v793 = vadd.f32 %v780, %v792
          %s794 = sld [smem:[#allocation5 + %s754]]
          %s795 = sshra.s32 %s755, 3
          %s796 = sand.u32 %s755, 7
          %s797 = sshra.s32 %s755, 3
          %s798 = sand.u32 %s755, 7
          %s799 = smul.u32 %s795, 2
          %s800 = smul.u32 %s799, 8
          %s801 = sadd.s32 %s800, %s798
          %s802 = scalar_lea.vmem [#allocation7], %s801
          %v803 = vld [vmem:[%s802] ss:$8 sm:$0x3]
          %v804 = vstv %s794
          %v805 = vmul.f32 %v804, %v803
          %v806 = vadd.f32 %v793, %v805
          %s807 = scalar_lea.vmem %s275, 16
          %808 = vst.msk [vmem:[%s807] ss:$8 sm:$0x3] %vm279, %v806
          %809 = vst.msk [vmem:[%s807] ss:$8 sm:$0x0] %vm279, %v806
          %s810 = sadd.s32 %s210, 36
          %s811 = sadd.s32 %s207, %s810
          %s812 = sld [smem:[#allocation2 + %s811]]
          %s813 = sadd.s32 %s210, 37
          %s814 = sadd.s32 %s207, %s813
          %s815 = sld [smem:[#allocation2 + %s814]]
          %s816 = sadd.s32 %s210, 38
          %s817 = sadd.s32 %s207, %s816
          %s818 = sld [smem:[#allocation2 + %s817]]
          %s819 = sadd.s32 %s210, 39
          %s820 = sadd.s32 %s207, %s819
          %s821 = sld [smem:[#allocation2 + %s820]]
          %s822 = sld [smem:[#allocation5 + %s811]]
          %s823 = sshra.s32 %s812, 3
          %s824 = sand.u32 %s812, 7
          %s825 = sshra.s32 %s812, 3
          %s826 = sand.u32 %s812, 7
          %s827 = smul.u32 %s823, 2
          %s828 = smul.u32 %s827, 8
          %s829 = sadd.s32 %s828, %s826
          %s830 = scalar_lea.vmem [#allocation7], %s829
          %v831 = vld [vmem:[%s830] ss:$8 sm:$0x3]
          %v832 = vstv %s822
          %v833 = vmul.f32 %v832, %v831
          %s834 = sld [smem:[#allocation5 + %s814]]
          %s835 = sshra.s32 %s815, 3
          %s836 = sand.u32 %s815, 7
          %s837 = sshra.s32 %s815, 3
          %s838 = sand.u32 %s815, 7
          %s839 = smul.u32 %s835, 2
          %s840 = smul.u32 %s839, 8
          %s841 = sadd.s32 %s840, %s838
          %s842 = scalar_lea.vmem [#allocation7], %s841
          %v843 = vld [vmem:[%s842] ss:$8 sm:$0x3]
          %v844 = vstv %s834
          %v845 = vmul.f32 %v844, %v843
          %v846 = vadd.f32 %v833, %v845
          %s847 = sld [smem:[#allocation5 + %s817]]
          %s848 = sshra.s32 %s818, 3
          %s849 = sand.u32 %s818, 7
          %s850 = sshra.s32 %s818, 3
          %s851 = sand.u32 %s818, 7
          %s852 = smul.u32 %s848, 2
          %s853 = smul.u32 %s852, 8
          %s854 = sadd.s32 %s853, %s851
          %s855 = scalar_lea.vmem [#allocation7], %s854
          %v856 = vld [vmem:[%s855] ss:$8 sm:$0x3]
          %v857 = vstv %s847
          %v858 = vmul.f32 %v857, %v856
          %v859 = vadd.f32 %v846, %v858
          %s860 = sld [smem:[#allocation5 + %s820]]
          %s861 = sshra.s32 %s821, 3
          %s862 = sand.u32 %s821, 7
          %s863 = sshra.s32 %s821, 3
          %s864 = sand.u32 %s821, 7
          %s865 = smul.u32 %s861, 2
          %s866 = smul.u32 %s865, 8
          %s867 = sadd.s32 %s866, %s864
          %s868 = scalar_lea.vmem [#allocation7], %s867
          %v869 = vld [vmem:[%s868] ss:$8 sm:$0x3]
          %v870 = vstv %s860
          %v871 = vmul.f32 %v870, %v869
          %v872 = vadd.f32 %v859, %v871
          %s873 = scalar_lea.vmem %s275, 17
          %874 = vst.msk [vmem:[%s873] ss:$8 sm:$0x3] %vm279, %v872
          %875 = vst.msk [vmem:[%s873] ss:$8 sm:$0x0] %vm279, %v872
          %s876 = sadd.s32 %s210, 40
          %s877 = sadd.s32 %s207, %s876
          %s878 = sld [smem:[#allocation2 + %s877]]
          %s879 = sadd.s32 %s210, 41
          %s880 = sadd.s32 %s207, %s879
          %s881 = sld [smem:[#allocation2 + %s880]]
          %s882 = sadd.s32 %s210, 42
          %s883 = sadd.s32 %s207, %s882
          %s884 = sld [smem:[#allocation2 + %s883]]
          %s885 = sadd.s32 %s210, 43
          %s886 = sadd.s32 %s207, %s885
          %s887 = sld [smem:[#allocation2 + %s886]]
          %s888 = sld [smem:[#allocation5 + %s877]]
          %s889 = sshra.s32 %s878, 3
          %s890 = sand.u32 %s878, 7
          %s891 = sshra.s32 %s878, 3
          %s892 = sand.u32 %s878, 7
          %s893 = smul.u32 %s889, 2
          %s894 = smul.u32 %s893, 8
          %s895 = sadd.s32 %s894, %s892
          %s896 = scalar_lea.vmem [#allocation7], %s895
          %v897 = vld [vmem:[%s896] ss:$8 sm:$0x3]
          %v898 = vstv %s888
          %v899 = vmul.f32 %v898, %v897
          %s900 = sld [smem:[#allocation5 + %s880]]
          %s901 = sshra.s32 %s881, 3
          %s902 = sand.u32 %s881, 7
          %s903 = sshra.s32 %s881, 3
          %s904 = sand.u32 %s881, 7
          %s905 = smul.u32 %s901, 2
          %s906 = smul.u32 %s905, 8
          %s907 = sadd.s32 %s906, %s904
          %s908 = scalar_lea.vmem [#allocation7], %s907
          %v909 = vld [vmem:[%s908] ss:$8 sm:$0x3]
          %v910 = vstv %s900
          %v911 = vmul.f32 %v910, %v909
          %v912 = vadd.f32 %v899, %v911
          %s913 = sld [smem:[#allocation5 + %s883]]
          %s914 = sshra.s32 %s884, 3
          %s915 = sand.u32 %s884, 7
          %s916 = sshra.s32 %s884, 3
          %s917 = sand.u32 %s884, 7
          %s918 = smul.u32 %s914, 2
          %s919 = smul.u32 %s918, 8
          %s920 = sadd.s32 %s919, %s917
          %s921 = scalar_lea.vmem [#allocation7], %s920
          %v922 = vld [vmem:[%s921] ss:$8 sm:$0x3]
          %v923 = vstv %s913
          %v924 = vmul.f32 %v923, %v922
          %v925 = vadd.f32 %v912, %v924
          %s926 = sld [smem:[#allocation5 + %s886]]
          %s927 = sshra.s32 %s887, 3
          %s928 = sand.u32 %s887, 7
          %s929 = sshra.s32 %s887, 3
          %s930 = sand.u32 %s887, 7
          %s931 = smul.u32 %s927, 2
          %s932 = smul.u32 %s931, 8
          %s933 = sadd.s32 %s932, %s930
          %s934 = scalar_lea.vmem [#allocation7], %s933
          %v935 = vld [vmem:[%s934] ss:$8 sm:$0x3]
          %v936 = vstv %s926
          %v937 = vmul.f32 %v936, %v935
          %v938 = vadd.f32 %v925, %v937
          %s939 = scalar_lea.vmem %s275, 18
          %940 = vst.msk [vmem:[%s939] ss:$8 sm:$0x3] %vm279, %v938
          %941 = vst.msk [vmem:[%s939] ss:$8 sm:$0x0] %vm279, %v938
          %s942 = sadd.s32 %s210, 44
          %s943 = sadd.s32 %s207, %s942
          %s944 = sld [smem:[#allocation2 + %s943]]
          %s945 = sadd.s32 %s210, 45
          %s946 = sadd.s32 %s207, %s945
          %s947 = sld [smem:[#allocation2 + %s946]]
          %s948 = sadd.s32 %s210, 46
          %s949 = sadd.s32 %s207, %s948
          %s950 = sld [smem:[#allocation2 + %s949]]
          %s951 = sadd.s32 %s210, 47
          %s952 = sadd.s32 %s207, %s951
          %s953 = sld [smem:[#allocation2 + %s952]]
          %s954 = sld [smem:[#allocation5 + %s943]]
          %s955 = sshra.s32 %s944, 3
          %s956 = sand.u32 %s944, 7
          %s957 = sshra.s32 %s944, 3
          %s958 = sand.u32 %s944, 7
          %s959 = smul.u32 %s955, 2
          %s960 = smul.u32 %s959, 8
          %s961 = sadd.s32 %s960, %s958
          %s962 = scalar_lea.vmem [#allocation7], %s961
          %v963 = vld [vmem:[%s962] ss:$8 sm:$0x3]
          %v964 = vstv %s954
          %v965 = vmul.f32 %v964, %v963
          %s966 = sld [smem:[#allocation5 + %s946]]
          %s967 = sshra.s32 %s947, 3
          %s968 = sand.u32 %s947, 7
          %s969 = sshra.s32 %s947, 3
          %s970 = sand.u32 %s947, 7
          %s971 = smul.u32 %s967, 2
          %s972 = smul.u32 %s971, 8
          %s973 = sadd.s32 %s972, %s970
          %s974 = scalar_lea.vmem [#allocation7], %s973
          %v975 = vld [vmem:[%s974] ss:$8 sm:$0x3]
          %v976 = vstv %s966
          %v977 = vmul.f32 %v976, %v975
          %v978 = vadd.f32 %v965, %v977
          %s979 = sld [smem:[#allocation5 + %s949]]
          %s980 = sshra.s32 %s950, 3
          %s981 = sand.u32 %s950, 7
          %s982 = sshra.s32 %s950, 3
          %s983 = sand.u32 %s950, 7
          %s984 = smul.u32 %s980, 2
          %s985 = smul.u32 %s984, 8
          %s986 = sadd.s32 %s985, %s983
          %s987 = scalar_lea.vmem [#allocation7], %s986
          %v988 = vld [vmem:[%s987] ss:$8 sm:$0x3]
          %v989 = vstv %s979
          %v990 = vmul.f32 %v989, %v988
          %v991 = vadd.f32 %v978, %v990
          %s992 = sld [smem:[#allocation5 + %s952]]
          %s993 = sshra.s32 %s953, 3
          %s994 = sand.u32 %s953, 7
          %s995 = sshra.s32 %s953, 3
          %s996 = sand.u32 %s953, 7
          %s997 = smul.u32 %s993, 2
          %s998 = smul.u32 %s997, 8
          %s999 = sadd.s32 %s998, %s996
          %s1000 = scalar_lea.vmem [#allocation7], %s999
          %v1001 = vld [vmem:[%s1000] ss:$8 sm:$0x3]
          %v1002 = vstv %s992
          %v1003 = vmul.f32 %v1002, %v1001
          %v1004 = vadd.f32 %v991, %v1003
          %s1005 = scalar_lea.vmem %s275, 19
          %1006 = vst.msk [vmem:[%s1005] ss:$8 sm:$0x3] %vm279, %v1004
          %1007 = vst.msk [vmem:[%s1005] ss:$8 sm:$0x0] %vm279, %v1004
          %s1008 = sadd.s32 %s210, 48
          %s1009 = sadd.s32 %s207, %s1008
          %s1010 = sld [smem:[#allocation2 + %s1009]]
          %s1011 = sadd.s32 %s210, 49
          %s1012 = sadd.s32 %s207, %s1011
          %s1013 = sld [smem:[#allocation2 + %s1012]]
          %s1014 = sadd.s32 %s210, 50
          %s1015 = sadd.s32 %s207, %s1014
          %s1016 = sld [smem:[#allocation2 + %s1015]]
          %s1017 = sadd.s32 %s210, 51
          %s1018 = sadd.s32 %s207, %s1017
          %s1019 = sld [smem:[#allocation2 + %s1018]]
          %s1020 = sld [smem:[#allocation5 + %s1009]]
          %s1021 = sshra.s32 %s1010, 3
          %s1022 = sand.u32 %s1010, 7
          %s1023 = sshra.s32 %s1010, 3
          %s1024 = sand.u32 %s1010, 7
          %s1025 = smul.u32 %s1021, 2
          %s1026 = smul.u32 %s1025, 8
          %s1027 = sadd.s32 %s1026, %s1024
          %s1028 = scalar_lea.vmem [#allocation7], %s1027
          %v1029 = vld [vmem:[%s1028] ss:$8 sm:$0x3]
          %v1030 = vstv %s1020
          %v1031 = vmul.f32 %v1030, %v1029
          %s1032 = sld [smem:[#allocation5 + %s1012]]
          %s1033 = sshra.s32 %s1013, 3
          %s1034 = sand.u32 %s1013, 7
          %s1035 = sshra.s32 %s1013, 3
          %s1036 = sand.u32 %s1013, 7
          %s1037 = smul.u32 %s1033, 2
          %s1038 = smul.u32 %s1037, 8
          %s1039 = sadd.s32 %s1038, %s1036
          %s1040 = scalar_lea.vmem [#allocation7], %s1039
          %v1041 = vld [vmem:[%s1040] ss:$8 sm:$0x3]
          %v1042 = vstv %s1032
          %v1043 = vmul.f32 %v1042, %v1041
          %v1044 = vadd.f32 %v1031, %v1043
          %s1045 = sld [smem:[#allocation5 + %s1015]]
          %s1046 = sshra.s32 %s1016, 3
          %s1047 = sand.u32 %s1016, 7
          %s1048 = sshra.s32 %s1016, 3
          %s1049 = sand.u32 %s1016, 7
          %s1050 = smul.u32 %s1046, 2
          %s1051 = smul.u32 %s1050, 8
          %s1052 = sadd.s32 %s1051, %s1049
          %s1053 = scalar_lea.vmem [#allocation7], %s1052
          %v1054 = vld [vmem:[%s1053] ss:$8 sm:$0x3]
          %v1055 = vstv %s1045
          %v1056 = vmul.f32 %v1055, %v1054
          %v1057 = vadd.f32 %v1044, %v1056
          %s1058 = sld [smem:[#allocation5 + %s1018]]
          %s1059 = sshra.s32 %s1019, 3
          %s1060 = sand.u32 %s1019, 7
          %s1061 = sshra.s32 %s1019, 3
          %s1062 = sand.u32 %s1019, 7
          %s1063 = smul.u32 %s1059, 2
          %s1064 = smul.u32 %s1063, 8
          %s1065 = sadd.s32 %s1064, %s1062
          %s1066 = scalar_lea.vmem [#allocation7], %s1065
          %v1067 = vld [vmem:[%s1066] ss:$8 sm:$0x3]
          %v1068 = vstv %s1058
          %v1069 = vmul.f32 %v1068, %v1067
          %v1070 = vadd.f32 %v1057, %v1069
          %s1071 = scalar_lea.vmem %s275, 20
          %1072 = vst.msk [vmem:[%s1071] ss:$8 sm:$0x3] %vm279, %v1070
          %1073 = vst.msk [vmem:[%s1071] ss:$8 sm:$0x0] %vm279, %v1070
          %s1074 = sadd.s32 %s210, 52
          %s1075 = sadd.s32 %s207, %s1074
          %s1076 = sld [smem:[#allocation2 + %s1075]]
          %s1077 = sadd.s32 %s210, 53
          %s1078 = sadd.s32 %s207, %s1077
          %s1079 = sld [smem:[#allocation2 + %s1078]]
          %s1080 = sadd.s32 %s210, 54
          %s1081 = sadd.s32 %s207, %s1080
          %s1082 = sld [smem:[#allocation2 + %s1081]]
          %s1083 = sadd.s32 %s210, 55
          %s1084 = sadd.s32 %s207, %s1083
          %s1085 = sld [smem:[#allocation2 + %s1084]]
          %s1086 = sld [smem:[#allocation5 + %s1075]]
          %s1087 = sshra.s32 %s1076, 3
          %s1088 = sand.u32 %s1076, 7
          %s1089 = sshra.s32 %s1076, 3
          %s1090 = sand.u32 %s1076, 7
          %s1091 = smul.u32 %s1087, 2
          %s1092 = smul.u32 %s1091, 8
          %s1093 = sadd.s32 %s1092, %s1090
          %s1094 = scalar_lea.vmem [#allocation7], %s1093
          %v1095 = vld [vmem:[%s1094] ss:$8 sm:$0x3]
          %v1096 = vstv %s1086
          %v1097 = vmul.f32 %v1096, %v1095
          %s1098 = sld [smem:[#allocation5 + %s1078]]
          %s1099 = sshra.s32 %s1079, 3
          %s1100 = sand.u32 %s1079, 7
          %s1101 = sshra.s32 %s1079, 3
          %s1102 = sand.u32 %s1079, 7
          %s1103 = smul.u32 %s1099, 2
          %s1104 = smul.u32 %s1103, 8
          %s1105 = sadd.s32 %s1104, %s1102
          %s1106 = scalar_lea.vmem [#allocation7], %s1105
          %v1107 = vld [vmem:[%s1106] ss:$8 sm:$0x3]
          %v1108 = vstv %s1098
          %v1109 = vmul.f32 %v1108, %v1107
          %v1110 = vadd.f32 %v1097, %v1109
          %s1111 = sld [smem:[#allocation5 + %s1081]]
          %s1112 = sshra.s32 %s1082, 3
          %s1113 = sand.u32 %s1082, 7
          %s1114 = sshra.s32 %s1082, 3
          %s1115 = sand.u32 %s1082, 7
          %s1116 = smul.u32 %s1112, 2
          %s1117 = smul.u32 %s1116, 8
          %s1118 = sadd.s32 %s1117, %s1115
          %s1119 = scalar_lea.vmem [#allocation7], %s1118
          %v1120 = vld [vmem:[%s1119] ss:$8 sm:$0x3]
          %v1121 = vstv %s1111
          %v1122 = vmul.f32 %v1121, %v1120
          %v1123 = vadd.f32 %v1110, %v1122
          %s1124 = sld [smem:[#allocation5 + %s1084]]
          %s1125 = sshra.s32 %s1085, 3
          %s1126 = sand.u32 %s1085, 7
          %s1127 = sshra.s32 %s1085, 3
          %s1128 = sand.u32 %s1085, 7
          %s1129 = smul.u32 %s1125, 2
          %s1130 = smul.u32 %s1129, 8
          %s1131 = sadd.s32 %s1130, %s1128
          %s1132 = scalar_lea.vmem [#allocation7], %s1131
          %v1133 = vld [vmem:[%s1132] ss:$8 sm:$0x3]
          %v1134 = vstv %s1124
          %v1135 = vmul.f32 %v1134, %v1133
          %v1136 = vadd.f32 %v1123, %v1135
          %s1137 = scalar_lea.vmem %s275, 21
          %1138 = vst.msk [vmem:[%s1137] ss:$8 sm:$0x3] %vm279, %v1136
          %1139 = vst.msk [vmem:[%s1137] ss:$8 sm:$0x0] %vm279, %v1136
          %s1140 = sadd.s32 %s210, 56
          %s1141 = sadd.s32 %s207, %s1140
          %s1142 = sld [smem:[#allocation2 + %s1141]]
          %s1143 = sadd.s32 %s210, 57
          %s1144 = sadd.s32 %s207, %s1143
          %s1145 = sld [smem:[#allocation2 + %s1144]]
          %s1146 = sadd.s32 %s210, 58
          %s1147 = sadd.s32 %s207, %s1146
          %s1148 = sld [smem:[#allocation2 + %s1147]]
          %s1149 = sadd.s32 %s210, 59
          %s1150 = sadd.s32 %s207, %s1149
          %s1151 = sld [smem:[#allocation2 + %s1150]]
          %s1152 = sld [smem:[#allocation5 + %s1141]]
          %s1153 = sshra.s32 %s1142, 3
          %s1154 = sand.u32 %s1142, 7
          %s1155 = sshra.s32 %s1142, 3
          %s1156 = sand.u32 %s1142, 7
          %s1157 = smul.u32 %s1153, 2
          %s1158 = smul.u32 %s1157, 8
          %s1159 = sadd.s32 %s1158, %s1156
          %s1160 = scalar_lea.vmem [#allocation7], %s1159
          %v1161 = vld [vmem:[%s1160] ss:$8 sm:$0x3]
          %v1162 = vstv %s1152
          %v1163 = vmul.f32 %v1162, %v1161
          %s1164 = sld [smem:[#allocation5 + %s1144]]
          %s1165 = sshra.s32 %s1145, 3
          %s1166 = sand.u32 %s1145, 7
          %s1167 = sshra.s32 %s1145, 3
          %s1168 = sand.u32 %s1145, 7
          %s1169 = smul.u32 %s1165, 2
          %s1170 = smul.u32 %s1169, 8
          %s1171 = sadd.s32 %s1170, %s1168
          %s1172 = scalar_lea.vmem [#allocation7], %s1171
          %v1173 = vld [vmem:[%s1172] ss:$8 sm:$0x3]
          %v1174 = vstv %s1164
          %v1175 = vmul.f32 %v1174, %v1173
          %v1176 = vadd.f32 %v1163, %v1175
          %s1177 = sld [smem:[#allocation5 + %s1147]]
          %s1178 = sshra.s32 %s1148, 3
          %s1179 = sand.u32 %s1148, 7
          %s1180 = sshra.s32 %s1148, 3
          %s1181 = sand.u32 %s1148, 7
          %s1182 = smul.u32 %s1178, 2
          %s1183 = smul.u32 %s1182, 8
          %s1184 = sadd.s32 %s1183, %s1181
          %s1185 = scalar_lea.vmem [#allocation7], %s1184
          %v1186 = vld [vmem:[%s1185] ss:$8 sm:$0x3]
          %v1187 = vstv %s1177
          %v1188 = vmul.f32 %v1187, %v1186
          %v1189 = vadd.f32 %v1176, %v1188
          %s1190 = sld [smem:[#allocation5 + %s1150]]
          %s1191 = sshra.s32 %s1151, 3
          %s1192 = sand.u32 %s1151, 7
          %s1193 = sshra.s32 %s1151, 3
          %s1194 = sand.u32 %s1151, 7
          %s1195 = smul.u32 %s1191, 2
          %s1196 = smul.u32 %s1195, 8
          %s1197 = sadd.s32 %s1196, %s1194
          %s1198 = scalar_lea.vmem [#allocation7], %s1197
          %v1199 = vld [vmem:[%s1198] ss:$8 sm:$0x3]
          %v1200 = vstv %s1190
          %v1201 = vmul.f32 %v1200, %v1199
          %v1202 = vadd.f32 %v1189, %v1201
          %s1203 = scalar_lea.vmem %s275, 22
          %1204 = vst.msk [vmem:[%s1203] ss:$8 sm:$0x3] %vm279, %v1202
          %1205 = vst.msk [vmem:[%s1203] ss:$8 sm:$0x0] %vm279, %v1202
          %s1206 = sadd.s32 %s210, 60
          %s1207 = sadd.s32 %s207, %s1206
          %s1208 = sld [smem:[#allocation2 + %s1207]]
          %s1209 = sadd.s32 %s210, 61
          %s1210 = sadd.s32 %s207, %s1209
          %s1211 = sld [smem:[#allocation2 + %s1210]]
          %s1212 = sadd.s32 %s210, 62
          %s1213 = sadd.s32 %s207, %s1212
          %s1214 = sld [smem:[#allocation2 + %s1213]]
          %s1215 = sadd.s32 %s210, 63
          %s1216 = sadd.s32 %s207, %s1215
          %s1217 = sld [smem:[#allocation2 + %s1216]]
          %s1218 = sld [smem:[#allocation5 + %s1207]]
          %s1219 = sshra.s32 %s1208, 3
          %s1220 = sand.u32 %s1208, 7
          %s1221 = sshra.s32 %s1208, 3
          %s1222 = sand.u32 %s1208, 7
          %s1223 = smul.u32 %s1219, 2
          %s1224 = smul.u32 %s1223, 8
          %s1225 = sadd.s32 %s1224, %s1222
          %s1226 = scalar_lea.vmem [#allocation7], %s1225
          %v1227 = vld [vmem:[%s1226] ss:$8 sm:$0x3]
          %v1228 = vstv %s1218
          %v1229 = vmul.f32 %v1228, %v1227
          %s1230 = sld [smem:[#allocation5 + %s1210]]
          %s1231 = sshra.s32 %s1211, 3
          %s1232 = sand.u32 %s1211, 7
          %s1233 = sshra.s32 %s1211, 3
          %s1234 = sand.u32 %s1211, 7
          %s1235 = smul.u32 %s1231, 2
          %s1236 = smul.u32 %s1235, 8
          %s1237 = sadd.s32 %s1236, %s1234
          %s1238 = scalar_lea.vmem [#allocation7], %s1237
          %v1239 = vld [vmem:[%s1238] ss:$8 sm:$0x3]
          %v1240 = vstv %s1230
          %v1241 = vmul.f32 %v1240, %v1239
          %v1242 = vadd.f32 %v1229, %v1241
          %s1243 = sld [smem:[#allocation5 + %s1213]]
          %s1244 = sshra.s32 %s1214, 3
          %s1245 = sand.u32 %s1214, 7
          %s1246 = sshra.s32 %s1214, 3
          %s1247 = sand.u32 %s1214, 7
          %s1248 = smul.u32 %s1244, 2
          %s1249 = smul.u32 %s1248, 8
          %s1250 = sadd.s32 %s1249, %s1247
          %s1251 = scalar_lea.vmem [#allocation7], %s1250
          %v1252 = vld [vmem:[%s1251] ss:$8 sm:$0x3]
          %v1253 = vstv %s1243
          %v1254 = vmul.f32 %v1253, %v1252
          %v1255 = vadd.f32 %v1242, %v1254
          %s1256 = sld [smem:[#allocation5 + %s1216]]
          %s1257 = sshra.s32 %s1217, 3
          %s1258 = sand.u32 %s1217, 7
          %s1259 = sshra.s32 %s1217, 3
          %s1260 = sand.u32 %s1217, 7
          %s1261 = smul.u32 %s1257, 2
          %s1262 = smul.u32 %s1261, 8
          %s1263 = sadd.s32 %s1262, %s1260
          %s1264 = scalar_lea.vmem [#allocation7], %s1263
          %v1265 = vld [vmem:[%s1264] ss:$8 sm:$0x3]
          %v1266 = vstv %s1256
          %v1267 = vmul.f32 %v1266, %v1265
          %v1268 = vadd.f32 %v1255, %v1267
          %s1269 = scalar_lea.vmem %s275, 23
          %1270 = vst.msk [vmem:[%s1269] ss:$8 sm:$0x3] %vm279, %v1268
          %1271 = vst.msk [vmem:[%s1269] ss:$8 sm:$0x0] %vm279, %v1268
          %s1272 = sadd.s32 %s210, 64
          %s1273 = sadd.s32 %s207, %s1272
          %s1274 = sld [smem:[#allocation2 + %s1273]]
          %s1275 = sadd.s32 %s210, 65
          %s1276 = sadd.s32 %s207, %s1275
          %s1277 = sld [smem:[#allocation2 + %s1276]]
          %s1278 = sadd.s32 %s210, 66
          %s1279 = sadd.s32 %s207, %s1278
          %s1280 = sld [smem:[#allocation2 + %s1279]]
          %s1281 = sadd.s32 %s210, 67
          %s1282 = sadd.s32 %s207, %s1281
          %s1283 = sld [smem:[#allocation2 + %s1282]]
          %s1284 = sld [smem:[#allocation5 + %s1273]]
          %s1285 = sshra.s32 %s1274, 3
          %s1286 = sand.u32 %s1274, 7
          %s1287 = sshra.s32 %s1274, 3
          %s1288 = sand.u32 %s1274, 7
          %s1289 = smul.u32 %s1285, 2
          %s1290 = smul.u32 %s1289, 8
          %s1291 = sadd.s32 %s1290, %s1288
          %s1292 = scalar_lea.vmem [#allocation7], %s1291
          %v1293 = vld [vmem:[%s1292] ss:$8 sm:$0x3]
          %v1294 = vstv %s1284
          %v1295 = vmul.f32 %v1294, %v1293
          %s1296 = sld [smem:[#allocation5 + %s1276]]
          %s1297 = sshra.s32 %s1277, 3
          %s1298 = sand.u32 %s1277, 7
          %s1299 = sshra.s32 %s1277, 3
          %s1300 = sand.u32 %s1277, 7
          %s1301 = smul.u32 %s1297, 2
          %s1302 = smul.u32 %s1301, 8
          %s1303 = sadd.s32 %s1302, %s1300
          %s1304 = scalar_lea.vmem [#allocation7], %s1303
          %v1305 = vld [vmem:[%s1304] ss:$8 sm:$0x3]
          %v1306 = vstv %s1296
          %v1307 = vmul.f32 %v1306, %v1305
          %v1308 = vadd.f32 %v1295, %v1307
          %s1309 = sld [smem:[#allocation5 + %s1279]]
          %s1310 = sshra.s32 %s1280, 3
          %s1311 = sand.u32 %s1280, 7
          %s1312 = sshra.s32 %s1280, 3
          %s1313 = sand.u32 %s1280, 7
          %s1314 = smul.u32 %s1310, 2
          %s1315 = smul.u32 %s1314, 8
          %s1316 = sadd.s32 %s1315, %s1313
          %s1317 = scalar_lea.vmem [#allocation7], %s1316
          %v1318 = vld [vmem:[%s1317] ss:$8 sm:$0x3]
          %v1319 = vstv %s1309
          %v1320 = vmul.f32 %v1319, %v1318
          %v1321 = vadd.f32 %v1308, %v1320
          %s1322 = sld [smem:[#allocation5 + %s1282]]
          %s1323 = sshra.s32 %s1283, 3
          %s1324 = sand.u32 %s1283, 7
          %s1325 = sshra.s32 %s1283, 3
          %s1326 = sand.u32 %s1283, 7
          %s1327 = smul.u32 %s1323, 2
          %s1328 = smul.u32 %s1327, 8
          %s1329 = sadd.s32 %s1328, %s1326
          %s1330 = scalar_lea.vmem [#allocation7], %s1329
          %v1331 = vld [vmem:[%s1330] ss:$8 sm:$0x3]
          %v1332 = vstv %s1322
          %v1333 = vmul.f32 %v1332, %v1331
          %v1334 = vadd.f32 %v1321, %v1333
          %s1335 = scalar_lea.vmem %s275, 32
          %1336 = vst.msk [vmem:[%s1335] ss:$8 sm:$0x3] %vm279, %v1334
          %1337 = vst.msk [vmem:[%s1335] ss:$8 sm:$0x0] %vm279, %v1334
          %s1338 = sadd.s32 %s210, 68
          %s1339 = sadd.s32 %s207, %s1338
          %s1340 = sld [smem:[#allocation2 + %s1339]]
          %s1341 = sadd.s32 %s210, 69
          %s1342 = sadd.s32 %s207, %s1341
          %s1343 = sld [smem:[#allocation2 + %s1342]]
          %s1344 = sadd.s32 %s210, 70
          %s1345 = sadd.s32 %s207, %s1344
          %s1346 = sld [smem:[#allocation2 + %s1345]]
          %s1347 = sadd.s32 %s210, 71
          %s1348 = sadd.s32 %s207, %s1347
          %s1349 = sld [smem:[#allocation2 + %s1348]]
          %s1350 = sld [smem:[#allocation5 + %s1339]]
          %s1351 = sshra.s32 %s1340, 3
          %s1352 = sand.u32 %s1340, 7
          %s1353 = sshra.s32 %s1340, 3
          %s1354 = sand.u32 %s1340, 7
          %s1355 = smul.u32 %s1351, 2
          %s1356 = smul.u32 %s1355, 8
          %s1357 = sadd.s32 %s1356, %s1354
          %s1358 = scalar_lea.vmem [#allocation7], %s1357
          %v1359 = vld [vmem:[%s1358] ss:$8 sm:$0x3]
          %v1360 = vstv %s1350
          %v1361 = vmul.f32 %v1360, %v1359
          %s1362 = sld [smem:[#allocation5 + %s1342]]
          %s1363 = sshra.s32 %s1343, 3
          %s1364 = sand.u32 %s1343, 7
          %s1365 = sshra.s32 %s1343, 3
          %s1366 = sand.u32 %s1343, 7
          %s1367 = smul.u32 %s1363, 2
          %s1368 = smul.u32 %s1367, 8
          %s1369 = sadd.s32 %s1368, %s1366
          %s1370 = scalar_lea.vmem [#allocation7], %s1369
          %v1371 = vld [vmem:[%s1370] ss:$8 sm:$0x3]
          %v1372 = vstv %s1362
          %v1373 = vmul.f32 %v1372, %v1371
          %v1374 = vadd.f32 %v1361, %v1373
          %s1375 = sld [smem:[#allocation5 + %s1345]]
          %s1376 = sshra.s32 %s1346, 3
          %s1377 = sand.u32 %s1346, 7
          %s1378 = sshra.s32 %s1346, 3
          %s1379 = sand.u32 %s1346, 7
          %s1380 = smul.u32 %s1376, 2
          %s1381 = smul.u32 %s1380, 8
          %s1382 = sadd.s32 %s1381, %s1379
          %s1383 = scalar_lea.vmem [#allocation7], %s1382
          %v1384 = vld [vmem:[%s1383] ss:$8 sm:$0x3]
          %v1385 = vstv %s1375
          %v1386 = vmul.f32 %v1385, %v1384
          %v1387 = vadd.f32 %v1374, %v1386
          %s1388 = sld [smem:[#allocation5 + %s1348]]
          %s1389 = sshra.s32 %s1349, 3
          %s1390 = sand.u32 %s1349, 7
          %s1391 = sshra.s32 %s1349, 3
          %s1392 = sand.u32 %s1349, 7
          %s1393 = smul.u32 %s1389, 2
          %s1394 = smul.u32 %s1393, 8
          %s1395 = sadd.s32 %s1394, %s1392
          %s1396 = scalar_lea.vmem [#allocation7], %s1395
          %v1397 = vld [vmem:[%s1396] ss:$8 sm:$0x3]
          %v1398 = vstv %s1388
          %v1399 = vmul.f32 %v1398, %v1397
          %v1400 = vadd.f32 %v1387, %v1399
          %s1401 = scalar_lea.vmem %s275, 33
          %1402 = vst.msk [vmem:[%s1401] ss:$8 sm:$0x3] %vm279, %v1400
          %1403 = vst.msk [vmem:[%s1401] ss:$8 sm:$0x0] %vm279, %v1400
          %s1404 = sadd.s32 %s210, 72
          %s1405 = sadd.s32 %s207, %s1404
          %s1406 = sld [smem:[#allocation2 + %s1405]]
          %s1407 = sadd.s32 %s210, 73
          %s1408 = sadd.s32 %s207, %s1407
          %s1409 = sld [smem:[#allocation2 + %s1408]]
          %s1410 = sadd.s32 %s210, 74
          %s1411 = sadd.s32 %s207, %s1410
          %s1412 = sld [smem:[#allocation2 + %s1411]]
          %s1413 = sadd.s32 %s210, 75
          %s1414 = sadd.s32 %s207, %s1413
          %s1415 = sld [smem:[#allocation2 + %s1414]]
          %s1416 = sld [smem:[#allocation5 + %s1405]]
          %s1417 = sshra.s32 %s1406, 3
          %s1418 = sand.u32 %s1406, 7
          %s1419 = sshra.s32 %s1406, 3
          %s1420 = sand.u32 %s1406, 7
          %s1421 = smul.u32 %s1417, 2
          %s1422 = smul.u32 %s1421, 8
          %s1423 = sadd.s32 %s1422, %s1420
          %s1424 = scalar_lea.vmem [#allocation7], %s1423
          %v1425 = vld [vmem:[%s1424] ss:$8 sm:$0x3]
          %v1426 = vstv %s1416
          %v1427 = vmul.f32 %v1426, %v1425
          %s1428 = sld [smem:[#allocation5 + %s1408]]
          %s1429 = sshra.s32 %s1409, 3
          %s1430 = sand.u32 %s1409, 7
          %s1431 = sshra.s32 %s1409, 3
          %s1432 = sand.u32 %s1409, 7
          %s1433 = smul.u32 %s1429, 2
          %s1434 = smul.u32 %s1433, 8
          %s1435 = sadd.s32 %s1434, %s1432
          %s1436 = scalar_lea.vmem [#allocation7], %s1435
          %v1437 = vld [vmem:[%s1436] ss:$8 sm:$0x3]
          %v1438 = vstv %s1428
          %v1439 = vmul.f32 %v1438, %v1437
          %v1440 = vadd.f32 %v1427, %v1439
          %s1441 = sld [smem:[#allocation5 + %s1411]]
          %s1442 = sshra.s32 %s1412, 3
          %s1443 = sand.u32 %s1412, 7
          %s1444 = sshra.s32 %s1412, 3
          %s1445 = sand.u32 %s1412, 7
          %s1446 = smul.u32 %s1442, 2
          %s1447 = smul.u32 %s1446, 8
          %s1448 = sadd.s32 %s1447, %s1445
          %s1449 = scalar_lea.vmem [#allocation7], %s1448
          %v1450 = vld [vmem:[%s1449] ss:$8 sm:$0x3]
          %v1451 = vstv %s1441
          %v1452 = vmul.f32 %v1451, %v1450
          %v1453 = vadd.f32 %v1440, %v1452
          %s1454 = sld [smem:[#allocation5 + %s1414]]
          %s1455 = sshra.s32 %s1415, 3
          %s1456 = sand.u32 %s1415, 7
          %s1457 = sshra.s32 %s1415, 3
          %s1458 = sand.u32 %s1415, 7
          %s1459 = smul.u32 %s1455, 2
          %s1460 = smul.u32 %s1459, 8
          %s1461 = sadd.s32 %s1460, %s1458
          %s1462 = scalar_lea.vmem [#allocation7], %s1461
          %v1463 = vld [vmem:[%s1462] ss:$8 sm:$0x3]
          %v1464 = vstv %s1454
          %v1465 = vmul.f32 %v1464, %v1463
          %v1466 = vadd.f32 %v1453, %v1465
          %s1467 = scalar_lea.vmem %s275, 34
          %1468 = vst.msk [vmem:[%s1467] ss:$8 sm:$0x3] %vm279, %v1466
          %1469 = vst.msk [vmem:[%s1467] ss:$8 sm:$0x0] %vm279, %v1466
          %s1470 = sadd.s32 %s210, 76
          %s1471 = sadd.s32 %s207, %s1470
          %s1472 = sld [smem:[#allocation2 + %s1471]]
          %s1473 = sadd.s32 %s210, 77
          %s1474 = sadd.s32 %s207, %s1473
          %s1475 = sld [smem:[#allocation2 + %s1474]]
          %s1476 = sadd.s32 %s210, 78
          %s1477 = sadd.s32 %s207, %s1476
          %s1478 = sld [smem:[#allocation2 + %s1477]]
          %s1479 = sadd.s32 %s210, 79
          %s1480 = sadd.s32 %s207, %s1479
          %s1481 = sld [smem:[#allocation2 + %s1480]]
          %s1482 = sld [smem:[#allocation5 + %s1471]]
          %s1483 = sshra.s32 %s1472, 3
          %s1484 = sand.u32 %s1472, 7
          %s1485 = sshra.s32 %s1472, 3
          %s1486 = sand.u32 %s1472, 7
          %s1487 = smul.u32 %s1483, 2
          %s1488 = smul.u32 %s1487, 8
          %s1489 = sadd.s32 %s1488, %s1486
          %s1490 = scalar_lea.vmem [#allocation7], %s1489
          %v1491 = vld [vmem:[%s1490] ss:$8 sm:$0x3]
          %v1492 = vstv %s1482
          %v1493 = vmul.f32 %v1492, %v1491
          %s1494 = sld [smem:[#allocation5 + %s1474]]
          %s1495 = sshra.s32 %s1475, 3
          %s1496 = sand.u32 %s1475, 7
          %s1497 = sshra.s32 %s1475, 3
          %s1498 = sand.u32 %s1475, 7
          %s1499 = smul.u32 %s1495, 2
          %s1500 = smul.u32 %s1499, 8
          %s1501 = sadd.s32 %s1500, %s1498
          %s1502 = scalar_lea.vmem [#allocation7], %s1501
          %v1503 = vld [vmem:[%s1502] ss:$8 sm:$0x3]
          %v1504 = vstv %s1494
          %v1505 = vmul.f32 %v1504, %v1503
          %v1506 = vadd.f32 %v1493, %v1505
          %s1507 = sld [smem:[#allocation5 + %s1477]]
          %s1508 = sshra.s32 %s1478, 3
          %s1509 = sand.u32 %s1478, 7
          %s1510 = sshra.s32 %s1478, 3
          %s1511 = sand.u32 %s1478, 7
          %s1512 = smul.u32 %s1508, 2
          %s1513 = smul.u32 %s1512, 8
          %s1514 = sadd.s32 %s1513, %s1511
          %s1515 = scalar_lea.vmem [#allocation7], %s1514
          %v1516 = vld [vmem:[%s1515] ss:$8 sm:$0x3]
          %v1517 = vstv %s1507
          %v1518 = vmul.f32 %v1517, %v1516
          %v1519 = vadd.f32 %v1506, %v1518
          %s1520 = sld [smem:[#allocation5 + %s1480]]
          %s1521 = sshra.s32 %s1481, 3
          %s1522 = sand.u32 %s1481, 7
          %s1523 = sshra.s32 %s1481, 3
          %s1524 = sand.u32 %s1481, 7
          %s1525 = smul.u32 %s1521, 2
          %s1526 = smul.u32 %s1525, 8
          %s1527 = sadd.s32 %s1526, %s1524
          %s1528 = scalar_lea.vmem [#allocation7], %s1527
          %v1529 = vld [vmem:[%s1528] ss:$8 sm:$0x3]
          %v1530 = vstv %s1520
          %v1531 = vmul.f32 %v1530, %v1529
          %v1532 = vadd.f32 %v1519, %v1531
          %s1533 = scalar_lea.vmem %s275, 35
          %1534 = vst.msk [vmem:[%s1533] ss:$8 sm:$0x3] %vm279, %v1532
          %1535 = vst.msk [vmem:[%s1533] ss:$8 sm:$0x0] %vm279, %v1532
          %s1536 = sadd.s32 %s210, 80
          %s1537 = sadd.s32 %s207, %s1536
          %s1538 = sld [smem:[#allocation2 + %s1537]]
          %s1539 = sadd.s32 %s210, 81
          %s1540 = sadd.s32 %s207, %s1539
          %s1541 = sld [smem:[#allocation2 + %s1540]]
          %s1542 = sadd.s32 %s210, 82
          %s1543 = sadd.s32 %s207, %s1542
          %s1544 = sld [smem:[#allocation2 + %s1543]]
          %s1545 = sadd.s32 %s210, 83
          %s1546 = sadd.s32 %s207, %s1545
          %s1547 = sld [smem:[#allocation2 + %s1546]]
          %s1548 = sld [smem:[#allocation5 + %s1537]]
          %s1549 = sshra.s32 %s1538, 3
          %s1550 = sand.u32 %s1538, 7
          %s1551 = sshra.s32 %s1538, 3
          %s1552 = sand.u32 %s1538, 7
          %s1553 = smul.u32 %s1549, 2
          %s1554 = smul.u32 %s1553, 8
          %s1555 = sadd.s32 %s1554, %s1552
          %s1556 = scalar_lea.vmem [#allocation7], %s1555
          %v1557 = vld [vmem:[%s1556] ss:$8 sm:$0x3]
          %v1558 = vstv %s1548
          %v1559 = vmul.f32 %v1558, %v1557
          %s1560 = sld [smem:[#allocation5 + %s1540]]
          %s1561 = sshra.s32 %s1541, 3
          %s1562 = sand.u32 %s1541, 7
          %s1563 = sshra.s32 %s1541, 3
          %s1564 = sand.u32 %s1541, 7
          %s1565 = smul.u32 %s1561, 2
          %s1566 = smul.u32 %s1565, 8
          %s1567 = sadd.s32 %s1566, %s1564
          %s1568 = scalar_lea.vmem [#allocation7], %s1567
          %v1569 = vld [vmem:[%s1568] ss:$8 sm:$0x3]
          %v1570 = vstv %s1560
          %v1571 = vmul.f32 %v1570, %v1569
          %v1572 = vadd.f32 %v1559, %v1571
          %s1573 = sld [smem:[#allocation5 + %s1543]]
          %s1574 = sshra.s32 %s1544, 3
          %s1575 = sand.u32 %s1544, 7
          %s1576 = sshra.s32 %s1544, 3
          %s1577 = sand.u32 %s1544, 7
          %s1578 = smul.u32 %s1574, 2
          %s1579 = smul.u32 %s1578, 8
          %s1580 = sadd.s32 %s1579, %s1577
          %s1581 = scalar_lea.vmem [#allocation7], %s1580
          %v1582 = vld [vmem:[%s1581] ss:$8 sm:$0x3]
          %v1583 = vstv %s1573
          %v1584 = vmul.f32 %v1583, %v1582
          %v1585 = vadd.f32 %v1572, %v1584
          %s1586 = sld [smem:[#allocation5 + %s1546]]
          %s1587 = sshra.s32 %s1547, 3
          %s1588 = sand.u32 %s1547, 7
          %s1589 = sshra.s32 %s1547, 3
          %s1590 = sand.u32 %s1547, 7
          %s1591 = smul.u32 %s1587, 2
          %s1592 = smul.u32 %s1591, 8
          %s1593 = sadd.s32 %s1592, %s1590
          %s1594 = scalar_lea.vmem [#allocation7], %s1593
          %v1595 = vld [vmem:[%s1594] ss:$8 sm:$0x3]
          %v1596 = vstv %s1586
          %v1597 = vmul.f32 %v1596, %v1595
          %v1598 = vadd.f32 %v1585, %v1597
          %s1599 = scalar_lea.vmem %s275, 36
          %1600 = vst.msk [vmem:[%s1599] ss:$8 sm:$0x3] %vm279, %v1598
          %1601 = vst.msk [vmem:[%s1599] ss:$8 sm:$0x0] %vm279, %v1598
          %s1602 = sadd.s32 %s210, 84
          %s1603 = sadd.s32 %s207, %s1602
          %s1604 = sld [smem:[#allocation2 + %s1603]]
          %s1605 = sadd.s32 %s210, 85
          %s1606 = sadd.s32 %s207, %s1605
          %s1607 = sld [smem:[#allocation2 + %s1606]]
          %s1608 = sadd.s32 %s210, 86
          %s1609 = sadd.s32 %s207, %s1608
          %s1610 = sld [smem:[#allocation2 + %s1609]]
          %s1611 = sadd.s32 %s210, 87
          %s1612 = sadd.s32 %s207, %s1611
          %s1613 = sld [smem:[#allocation2 + %s1612]]
          %s1614 = sld [smem:[#allocation5 + %s1603]]
          %s1615 = sshra.s32 %s1604, 3
          %s1616 = sand.u32 %s1604, 7
          %s1617 = sshra.s32 %s1604, 3
          %s1618 = sand.u32 %s1604, 7
          %s1619 = smul.u32 %s1615, 2
          %s1620 = smul.u32 %s1619, 8
          %s1621 = sadd.s32 %s1620, %s1618
          %s1622 = scalar_lea.vmem [#allocation7], %s1621
          %v1623 = vld [vmem:[%s1622] ss:$8 sm:$0x3]
          %v1624 = vstv %s1614
          %v1625 = vmul.f32 %v1624, %v1623
          %s1626 = sld [smem:[#allocation5 + %s1606]]
          %s1627 = sshra.s32 %s1607, 3
          %s1628 = sand.u32 %s1607, 7
          %s1629 = sshra.s32 %s1607, 3
          %s1630 = sand.u32 %s1607, 7
          %s1631 = smul.u32 %s1627, 2
          %s1632 = smul.u32 %s1631, 8
          %s1633 = sadd.s32 %s1632, %s1630
          %s1634 = scalar_lea.vmem [#allocation7], %s1633
          %v1635 = vld [vmem:[%s1634] ss:$8 sm:$0x3]
          %v1636 = vstv %s1626
          %v1637 = vmul.f32 %v1636, %v1635
          %v1638 = vadd.f32 %v1625, %v1637
          %s1639 = sld [smem:[#allocation5 + %s1609]]
          %s1640 = sshra.s32 %s1610, 3
          %s1641 = sand.u32 %s1610, 7
          %s1642 = sshra.s32 %s1610, 3
          %s1643 = sand.u32 %s1610, 7
          %s1644 = smul.u32 %s1640, 2
          %s1645 = smul.u32 %s1644, 8
          %s1646 = sadd.s32 %s1645, %s1643
          %s1647 = scalar_lea.vmem [#allocation7], %s1646
          %v1648 = vld [vmem:[%s1647] ss:$8 sm:$0x3]
          %v1649 = vstv %s1639
          %v1650 = vmul.f32 %v1649, %v1648
          %v1651 = vadd.f32 %v1638, %v1650
          %s1652 = sld [smem:[#allocation5 + %s1612]]
          %s1653 = sshra.s32 %s1613, 3
          %s1654 = sand.u32 %s1613, 7
          %s1655 = sshra.s32 %s1613, 3
          %s1656 = sand.u32 %s1613, 7
          %s1657 = smul.u32 %s1653, 2
          %s1658 = smul.u32 %s1657, 8
          %s1659 = sadd.s32 %s1658, %s1656
          %s1660 = scalar_lea.vmem [#allocation7], %s1659
          %v1661 = vld [vmem:[%s1660] ss:$8 sm:$0x3]
          %v1662 = vstv %s1652
          %v1663 = vmul.f32 %v1662, %v1661
          %v1664 = vadd.f32 %v1651, %v1663
          %s1665 = scalar_lea.vmem %s275, 37
          %1666 = vst.msk [vmem:[%s1665] ss:$8 sm:$0x3] %vm279, %v1664
          %1667 = vst.msk [vmem:[%s1665] ss:$8 sm:$0x0] %vm279, %v1664
          %s1668 = sadd.s32 %s210, 88
          %s1669 = sadd.s32 %s207, %s1668
          %s1670 = sld [smem:[#allocation2 + %s1669]]
          %s1671 = sadd.s32 %s210, 89
          %s1672 = sadd.s32 %s207, %s1671
          %s1673 = sld [smem:[#allocation2 + %s1672]]
          %s1674 = sadd.s32 %s210, 90
          %s1675 = sadd.s32 %s207, %s1674
          %s1676 = sld [smem:[#allocation2 + %s1675]]
          %s1677 = sadd.s32 %s210, 91
          %s1678 = sadd.s32 %s207, %s1677
          %s1679 = sld [smem:[#allocation2 + %s1678]]
          %s1680 = sld [smem:[#allocation5 + %s1669]]
          %s1681 = sshra.s32 %s1670, 3
          %s1682 = sand.u32 %s1670, 7
          %s1683 = sshra.s32 %s1670, 3
          %s1684 = sand.u32 %s1670, 7
          %s1685 = smul.u32 %s1681, 2
          %s1686 = smul.u32 %s1685, 8
          %s1687 = sadd.s32 %s1686, %s1684
          %s1688 = scalar_lea.vmem [#allocation7], %s1687
          %v1689 = vld [vmem:[%s1688] ss:$8 sm:$0x3]
          %v1690 = vstv %s1680
          %v1691 = vmul.f32 %v1690, %v1689
          %s1692 = sld [smem:[#allocation5 + %s1672]]
          %s1693 = sshra.s32 %s1673, 3
          %s1694 = sand.u32 %s1673, 7
          %s1695 = sshra.s32 %s1673, 3
          %s1696 = sand.u32 %s1673, 7
          %s1697 = smul.u32 %s1693, 2
          %s1698 = smul.u32 %s1697, 8
          %s1699 = sadd.s32 %s1698, %s1696
          %s1700 = scalar_lea.vmem [#allocation7], %s1699
          %v1701 = vld [vmem:[%s1700] ss:$8 sm:$0x3]
          %v1702 = vstv %s1692
          %v1703 = vmul.f32 %v1702, %v1701
          %v1704 = vadd.f32 %v1691, %v1703
          %s1705 = sld [smem:[#allocation5 + %s1675]]
          %s1706 = sshra.s32 %s1676, 3
          %s1707 = sand.u32 %s1676, 7
          %s1708 = sshra.s32 %s1676, 3
          %s1709 = sand.u32 %s1676, 7
          %s1710 = smul.u32 %s1706, 2
          %s1711 = smul.u32 %s1710, 8
          %s1712 = sadd.s32 %s1711, %s1709
          %s1713 = scalar_lea.vmem [#allocation7], %s1712
          %v1714 = vld [vmem:[%s1713] ss:$8 sm:$0x3]
          %v1715 = vstv %s1705
          %v1716 = vmul.f32 %v1715, %v1714
          %v1717 = vadd.f32 %v1704, %v1716
          %s1718 = sld [smem:[#allocation5 + %s1678]]
          %s1719 = sshra.s32 %s1679, 3
          %s1720 = sand.u32 %s1679, 7
          %s1721 = sshra.s32 %s1679, 3
          %s1722 = sand.u32 %s1679, 7
          %s1723 = smul.u32 %s1719, 2
          %s1724 = smul.u32 %s1723, 8
          %s1725 = sadd.s32 %s1724, %s1722
          %s1726 = scalar_lea.vmem [#allocation7], %s1725
          %v1727 = vld [vmem:[%s1726] ss:$8 sm:$0x3]
          %v1728 = vstv %s1718
          %v1729 = vmul.f32 %v1728, %v1727
          %v1730 = vadd.f32 %v1717, %v1729
          %s1731 = scalar_lea.vmem %s275, 38
          %1732 = vst.msk [vmem:[%s1731] ss:$8 sm:$0x3] %vm279, %v1730
          %1733 = vst.msk [vmem:[%s1731] ss:$8 sm:$0x0] %vm279, %v1730
          %s1734 = sadd.s32 %s210, 92
          %s1735 = sadd.s32 %s207, %s1734
          %s1736 = sld [smem:[#allocation2 + %s1735]]
          %s1737 = sadd.s32 %s210, 93
          %s1738 = sadd.s32 %s207, %s1737
          %s1739 = sld [smem:[#allocation2 + %s1738]]
          %s1740 = sadd.s32 %s210, 94
          %s1741 = sadd.s32 %s207, %s1740
          %s1742 = sld [smem:[#allocation2 + %s1741]]
          %s1743 = sadd.s32 %s210, 95
          %s1744 = sadd.s32 %s207, %s1743
          %s1745 = sld [smem:[#allocation2 + %s1744]]
          %s1746 = sld [smem:[#allocation5 + %s1735]]
          %s1747 = sshra.s32 %s1736, 3
          %s1748 = sand.u32 %s1736, 7
          %s1749 = sshra.s32 %s1736, 3
          %s1750 = sand.u32 %s1736, 7
          %s1751 = smul.u32 %s1747, 2
          %s1752 = smul.u32 %s1751, 8
          %s1753 = sadd.s32 %s1752, %s1750
          %s1754 = scalar_lea.vmem [#allocation7], %s1753
          %v1755 = vld [vmem:[%s1754] ss:$8 sm:$0x3]
          %v1756 = vstv %s1746
          %v1757 = vmul.f32 %v1756, %v1755
          %s1758 = sld [smem:[#allocation5 + %s1738]]
          %s1759 = sshra.s32 %s1739, 3
          %s1760 = sand.u32 %s1739, 7
          %s1761 = sshra.s32 %s1739, 3
          %s1762 = sand.u32 %s1739, 7
          %s1763 = smul.u32 %s1759, 2
          %s1764 = smul.u32 %s1763, 8
          %s1765 = sadd.s32 %s1764, %s1762
          %s1766 = scalar_lea.vmem [#allocation7], %s1765
          %v1767 = vld [vmem:[%s1766] ss:$8 sm:$0x3]
          %v1768 = vstv %s1758
          %v1769 = vmul.f32 %v1768, %v1767
          %v1770 = vadd.f32 %v1757, %v1769
          %s1771 = sld [smem:[#allocation5 + %s1741]]
          %s1772 = sshra.s32 %s1742, 3
          %s1773 = sand.u32 %s1742, 7
          %s1774 = sshra.s32 %s1742, 3
          %s1775 = sand.u32 %s1742, 7
          %s1776 = smul.u32 %s1772, 2
          %s1777 = smul.u32 %s1776, 8
          %s1778 = sadd.s32 %s1777, %s1775
          %s1779 = scalar_lea.vmem [#allocation7], %s1778
          %v1780 = vld [vmem:[%s1779] ss:$8 sm:$0x3]
          %v1781 = vstv %s1771
          %v1782 = vmul.f32 %v1781, %v1780
          %v1783 = vadd.f32 %v1770, %v1782
          %s1784 = sld [smem:[#allocation5 + %s1744]]
          %s1785 = sshra.s32 %s1745, 3
          %s1786 = sand.u32 %s1745, 7
          %s1787 = sshra.s32 %s1745, 3
          %s1788 = sand.u32 %s1745, 7
          %s1789 = smul.u32 %s1785, 2
          %s1790 = smul.u32 %s1789, 8
          %s1791 = sadd.s32 %s1790, %s1788
          %s1792 = scalar_lea.vmem [#allocation7], %s1791
          %v1793 = vld [vmem:[%s1792] ss:$8 sm:$0x3]
          %v1794 = vstv %s1784
          %v1795 = vmul.f32 %v1794, %v1793
          %v1796 = vadd.f32 %v1783, %v1795
          %s1797 = scalar_lea.vmem %s275, 39
          %1798 = vst.msk [vmem:[%s1797] ss:$8 sm:$0x3] %vm279, %v1796
          %1799 = vst.msk [vmem:[%s1797] ss:$8 sm:$0x0] %vm279, %v1796
          %s1800 = sadd.s32 %s210, 96
          %s1801 = sadd.s32 %s207, %s1800
          %s1802 = sld [smem:[#allocation2 + %s1801]]
          %s1803 = sadd.s32 %s210, 97
          %s1804 = sadd.s32 %s207, %s1803
          %s1805 = sld [smem:[#allocation2 + %s1804]]
          %s1806 = sadd.s32 %s210, 98
          %s1807 = sadd.s32 %s207, %s1806
          %s1808 = sld [smem:[#allocation2 + %s1807]]
          %s1809 = sadd.s32 %s210, 99
          %s1810 = sadd.s32 %s207, %s1809
          %s1811 = sld [smem:[#allocation2 + %s1810]]
          %s1812 = sld [smem:[#allocation5 + %s1801]]
          %s1813 = sshra.s32 %s1802, 3
          %s1814 = sand.u32 %s1802, 7
          %s1815 = sshra.s32 %s1802, 3
          %s1816 = sand.u32 %s1802, 7
          %s1817 = smul.u32 %s1813, 2
          %s1818 = smul.u32 %s1817, 8
          %s1819 = sadd.s32 %s1818, %s1816
          %s1820 = scalar_lea.vmem [#allocation7], %s1819
          %v1821 = vld [vmem:[%s1820] ss:$8 sm:$0x3]
          %v1822 = vstv %s1812
          %v1823 = vmul.f32 %v1822, %v1821
          %s1824 = sld [smem:[#allocation5 + %s1804]]
          %s1825 = sshra.s32 %s1805, 3
          %s1826 = sand.u32 %s1805, 7
          %s1827 = sshra.s32 %s1805, 3
          %s1828 = sand.u32 %s1805, 7
          %s1829 = smul.u32 %s1825, 2
          %s1830 = smul.u32 %s1829, 8
          %s1831 = sadd.s32 %s1830, %s1828
          %s1832 = scalar_lea.vmem [#allocation7], %s1831
          %v1833 = vld [vmem:[%s1832] ss:$8 sm:$0x3]
          %v1834 = vstv %s1824
          %v1835 = vmul.f32 %v1834, %v1833
          %v1836 = vadd.f32 %v1823, %v1835
          %s1837 = sld [smem:[#allocation5 + %s1807]]
          %s1838 = sshra.s32 %s1808, 3
          %s1839 = sand.u32 %s1808, 7
          %s1840 = sshra.s32 %s1808, 3
          %s1841 = sand.u32 %s1808, 7
          %s1842 = smul.u32 %s1838, 2
          %s1843 = smul.u32 %s1842, 8
          %s1844 = sadd.s32 %s1843, %s1841
          %s1845 = scalar_lea.vmem [#allocation7], %s1844
          %v1846 = vld [vmem:[%s1845] ss:$8 sm:$0x3]
          %v1847 = vstv %s1837
          %v1848 = vmul.f32 %v1847, %v1846
          %v1849 = vadd.f32 %v1836, %v1848
          %s1850 = sld [smem:[#allocation5 + %s1810]]
          %s1851 = sshra.s32 %s1811, 3
          %s1852 = sand.u32 %s1811, 7
          %s1853 = sshra.s32 %s1811, 3
          %s1854 = sand.u32 %s1811, 7
          %s1855 = smul.u32 %s1851, 2
          %s1856 = smul.u32 %s1855, 8
          %s1857 = sadd.s32 %s1856, %s1854
          %s1858 = scalar_lea.vmem [#allocation7], %s1857
          %v1859 = vld [vmem:[%s1858] ss:$8 sm:$0x3]
          %v1860 = vstv %s1850
          %v1861 = vmul.f32 %v1860, %v1859
          %v1862 = vadd.f32 %v1849, %v1861
          %s1863 = scalar_lea.vmem %s275, 48
          %1864 = vst.msk [vmem:[%s1863] ss:$8 sm:$0x3] %vm279, %v1862
          %1865 = vst.msk [vmem:[%s1863] ss:$8 sm:$0x0] %vm279, %v1862
          %s1866 = sadd.s32 %s210, 100
          %s1867 = sadd.s32 %s207, %s1866
          %s1868 = sld [smem:[#allocation2 + %s1867]]
          %s1869 = sadd.s32 %s210, 101
          %s1870 = sadd.s32 %s207, %s1869
          %s1871 = sld [smem:[#allocation2 + %s1870]]
          %s1872 = sadd.s32 %s210, 102
          %s1873 = sadd.s32 %s207, %s1872
          %s1874 = sld [smem:[#allocation2 + %s1873]]
          %s1875 = sadd.s32 %s210, 103
          %s1876 = sadd.s32 %s207, %s1875
          %s1877 = sld [smem:[#allocation2 + %s1876]]
          %s1878 = sld [smem:[#allocation5 + %s1867]]
          %s1879 = sshra.s32 %s1868, 3
          %s1880 = sand.u32 %s1868, 7
          %s1881 = sshra.s32 %s1868, 3
          %s1882 = sand.u32 %s1868, 7
          %s1883 = smul.u32 %s1879, 2
          %s1884 = smul.u32 %s1883, 8
          %s1885 = sadd.s32 %s1884, %s1882
          %s1886 = scalar_lea.vmem [#allocation7], %s1885
          %v1887 = vld [vmem:[%s1886] ss:$8 sm:$0x3]
          %v1888 = vstv %s1878
          %v1889 = vmul.f32 %v1888, %v1887
          %s1890 = sld [smem:[#allocation5 + %s1870]]
          %s1891 = sshra.s32 %s1871, 3
          %s1892 = sand.u32 %s1871, 7
          %s1893 = sshra.s32 %s1871, 3
          %s1894 = sand.u32 %s1871, 7
          %s1895 = smul.u32 %s1891, 2
          %s1896 = smul.u32 %s1895, 8
          %s1897 = sadd.s32 %s1896, %s1894
          %s1898 = scalar_lea.vmem [#allocation7], %s1897
          %v1899 = vld [vmem:[%s1898] ss:$8 sm:$0x3]
          %v1900 = vstv %s1890
          %v1901 = vmul.f32 %v1900, %v1899
          %v1902 = vadd.f32 %v1889, %v1901
          %s1903 = sld [smem:[#allocation5 + %s1873]]
          %s1904 = sshra.s32 %s1874, 3
          %s1905 = sand.u32 %s1874, 7
          %s1906 = sshra.s32 %s1874, 3
          %s1907 = sand.u32 %s1874, 7
          %s1908 = smul.u32 %s1904, 2
          %s1909 = smul.u32 %s1908, 8
          %s1910 = sadd.s32 %s1909, %s1907
          %s1911 = scalar_lea.vmem [#allocation7], %s1910
          %v1912 = vld [vmem:[%s1911] ss:$8 sm:$0x3]
          %v1913 = vstv %s1903
          %v1914 = vmul.f32 %v1913, %v1912
          %v1915 = vadd.f32 %v1902, %v1914
          %s1916 = sld [smem:[#allocation5 + %s1876]]
          %s1917 = sshra.s32 %s1877, 3
          %s1918 = sand.u32 %s1877, 7
          %s1919 = sshra.s32 %s1877, 3
          %s1920 = sand.u32 %s1877, 7
          %s1921 = smul.u32 %s1917, 2
          %s1922 = smul.u32 %s1921, 8
          %s1923 = sadd.s32 %s1922, %s1920
          %s1924 = scalar_lea.vmem [#allocation7], %s1923
          %v1925 = vld [vmem:[%s1924] ss:$8 sm:$0x3]
          %v1926 = vstv %s1916
          %v1927 = vmul.f32 %v1926, %v1925
          %v1928 = vadd.f32 %v1915, %v1927
          %s1929 = scalar_lea.vmem %s275, 49
          %1930 = vst.msk [vmem:[%s1929] ss:$8 sm:$0x3] %vm279, %v1928
          %1931 = vst.msk [vmem:[%s1929] ss:$8 sm:$0x0] %vm279, %v1928
          %s1932 = sadd.s32 %s210, 104
          %s1933 = sadd.s32 %s207, %s1932
          %s1934 = sld [smem:[#allocation2 + %s1933]]
          %s1935 = sadd.s32 %s210, 105
          %s1936 = sadd.s32 %s207, %s1935
          %s1937 = sld [smem:[#allocation2 + %s1936]]
          %s1938 = sadd.s32 %s210, 106
          %s1939 = sadd.s32 %s207, %s1938
          %s1940 = sld [smem:[#allocation2 + %s1939]]
          %s1941 = sadd.s32 %s210, 107
          %s1942 = sadd.s32 %s207, %s1941
          %s1943 = sld [smem:[#allocation2 + %s1942]]
          %s1944 = sld [smem:[#allocation5 + %s1933]]
          %s1945 = sshra.s32 %s1934, 3
          %s1946 = sand.u32 %s1934, 7
          %s1947 = sshra.s32 %s1934, 3
          %s1948 = sand.u32 %s1934, 7
          %s1949 = smul.u32 %s1945, 2
          %s1950 = smul.u32 %s1949, 8
          %s1951 = sadd.s32 %s1950, %s1948
          %s1952 = scalar_lea.vmem [#allocation7], %s1951
          %v1953 = vld [vmem:[%s1952] ss:$8 sm:$0x3]
          %v1954 = vstv %s1944
          %v1955 = vmul.f32 %v1954, %v1953
          %s1956 = sld [smem:[#allocation5 + %s1936]]
          %s1957 = sshra.s32 %s1937, 3
          %s1958 = sand.u32 %s1937, 7
          %s1959 = sshra.s32 %s1937, 3
          %s1960 = sand.u32 %s1937, 7
          %s1961 = smul.u32 %s1957, 2
          %s1962 = smul.u32 %s1961, 8
          %s1963 = sadd.s32 %s1962, %s1960
          %s1964 = scalar_lea.vmem [#allocation7], %s1963
          %v1965 = vld [vmem:[%s1964] ss:$8 sm:$0x3]
          %v1966 = vstv %s1956
          %v1967 = vmul.f32 %v1966, %v1965
          %v1968 = vadd.f32 %v1955, %v1967
          %s1969 = sld [smem:[#allocation5 + %s1939]]
          %s1970 = sshra.s32 %s1940, 3
          %s1971 = sand.u32 %s1940, 7
          %s1972 = sshra.s32 %s1940, 3
          %s1973 = sand.u32 %s1940, 7
          %s1974 = smul.u32 %s1970, 2
          %s1975 = smul.u32 %s1974, 8
          %s1976 = sadd.s32 %s1975, %s1973
          %s1977 = scalar_lea.vmem [#allocation7], %s1976
          %v1978 = vld [vmem:[%s1977] ss:$8 sm:$0x3]
          %v1979 = vstv %s1969
          %v1980 = vmul.f32 %v1979, %v1978
          %v1981 = vadd.f32 %v1968, %v1980
          %s1982 = sld [smem:[#allocation5 + %s1942]]
          %s1983 = sshra.s32 %s1943, 3
          %s1984 = sand.u32 %s1943, 7
          %s1985 = sshra.s32 %s1943, 3
          %s1986 = sand.u32 %s1943, 7
          %s1987 = smul.u32 %s1983, 2
          %s1988 = smul.u32 %s1987, 8
          %s1989 = sadd.s32 %s1988, %s1986
          %s1990 = scalar_lea.vmem [#allocation7], %s1989
          %v1991 = vld [vmem:[%s1990] ss:$8 sm:$0x3]
          %v1992 = vstv %s1982
          %v1993 = vmul.f32 %v1992, %v1991
          %v1994 = vadd.f32 %v1981, %v1993
          %s1995 = scalar_lea.vmem %s275, 50
          %1996 = vst.msk [vmem:[%s1995] ss:$8 sm:$0x3] %vm279, %v1994
          %1997 = vst.msk [vmem:[%s1995] ss:$8 sm:$0x0] %vm279, %v1994
          %s1998 = sadd.s32 %s210, 108
          %s1999 = sadd.s32 %s207, %s1998
          %s2000 = sld [smem:[#allocation2 + %s1999]]
          %s2001 = sadd.s32 %s210, 109
          %s2002 = sadd.s32 %s207, %s2001
          %s2003 = sld [smem:[#allocation2 + %s2002]]
          %s2004 = sadd.s32 %s210, 110
          %s2005 = sadd.s32 %s207, %s2004
          %s2006 = sld [smem:[#allocation2 + %s2005]]
          %s2007 = sadd.s32 %s210, 111
          %s2008 = sadd.s32 %s207, %s2007
          %s2009 = sld [smem:[#allocation2 + %s2008]]
          %s2010 = sld [smem:[#allocation5 + %s1999]]
          %s2011 = sshra.s32 %s2000, 3
          %s2012 = sand.u32 %s2000, 7
          %s2013 = sshra.s32 %s2000, 3
          %s2014 = sand.u32 %s2000, 7
          %s2015 = smul.u32 %s2011, 2
          %s2016 = smul.u32 %s2015, 8
          %s2017 = sadd.s32 %s2016, %s2014
          %s2018 = scalar_lea.vmem [#allocation7], %s2017
          %v2019 = vld [vmem:[%s2018] ss:$8 sm:$0x3]
          %v2020 = vstv %s2010
          %v2021 = vmul.f32 %v2020, %v2019
          %s2022 = sld [smem:[#allocation5 + %s2002]]
          %s2023 = sshra.s32 %s2003, 3
          %s2024 = sand.u32 %s2003, 7
          %s2025 = sshra.s32 %s2003, 3
          %s2026 = sand.u32 %s2003, 7
          %s2027 = smul.u32 %s2023, 2
          %s2028 = smul.u32 %s2027, 8
          %s2029 = sadd.s32 %s2028, %s2026
          %s2030 = scalar_lea.vmem [#allocation7], %s2029
          %v2031 = vld [vmem:[%s2030] ss:$8 sm:$0x3]
          %v2032 = vstv %s2022
          %v2033 = vmul.f32 %v2032, %v2031
          %v2034 = vadd.f32 %v2021, %v2033
          %s2035 = sld [smem:[#allocation5 + %s2005]]
          %s2036 = sshra.s32 %s2006, 3
          %s2037 = sand.u32 %s2006, 7
          %s2038 = sshra.s32 %s2006, 3
          %s2039 = sand.u32 %s2006, 7
          %s2040 = smul.u32 %s2036, 2
          %s2041 = smul.u32 %s2040, 8
          %s2042 = sadd.s32 %s2041, %s2039
          %s2043 = scalar_lea.vmem [#allocation7], %s2042
          %v2044 = vld [vmem:[%s2043] ss:$8 sm:$0x3]
          %v2045 = vstv %s2035
          %v2046 = vmul.f32 %v2045, %v2044
          %v2047 = vadd.f32 %v2034, %v2046
          %s2048 = sld [smem:[#allocation5 + %s2008]]
          %s2049 = sshra.s32 %s2009, 3
          %s2050 = sand.u32 %s2009, 7
          %s2051 = sshra.s32 %s2009, 3
          %s2052 = sand.u32 %s2009, 7
          %s2053 = smul.u32 %s2049, 2
          %s2054 = smul.u32 %s2053, 8
          %s2055 = sadd.s32 %s2054, %s2052
          %s2056 = scalar_lea.vmem [#allocation7], %s2055
          %v2057 = vld [vmem:[%s2056] ss:$8 sm:$0x3]
          %v2058 = vstv %s2048
          %v2059 = vmul.f32 %v2058, %v2057
          %v2060 = vadd.f32 %v2047, %v2059
          %s2061 = scalar_lea.vmem %s275, 51
          %2062 = vst.msk [vmem:[%s2061] ss:$8 sm:$0x3] %vm279, %v2060
          %2063 = vst.msk [vmem:[%s2061] ss:$8 sm:$0x0] %vm279, %v2060
          %s2064 = sadd.s32 %s210, 112
          %s2065 = sadd.s32 %s207, %s2064
          %s2066 = sld [smem:[#allocation2 + %s2065]]
          %s2067 = sadd.s32 %s210, 113
          %s2068 = sadd.s32 %s207, %s2067
          %s2069 = sld [smem:[#allocation2 + %s2068]]
          %s2070 = sadd.s32 %s210, 114
          %s2071 = sadd.s32 %s207, %s2070
          %s2072 = sld [smem:[#allocation2 + %s2071]]
          %s2073 = sadd.s32 %s210, 115
          %s2074 = sadd.s32 %s207, %s2073
          %s2075 = sld [smem:[#allocation2 + %s2074]]
          %s2076 = sld [smem:[#allocation5 + %s2065]]
          %s2077 = sshra.s32 %s2066, 3
          %s2078 = sand.u32 %s2066, 7
          %s2079 = sshra.s32 %s2066, 3
          %s2080 = sand.u32 %s2066, 7
          %s2081 = smul.u32 %s2077, 2
          %s2082 = smul.u32 %s2081, 8
          %s2083 = sadd.s32 %s2082, %s2080
          %s2084 = scalar_lea.vmem [#allocation7], %s2083
          %v2085 = vld [vmem:[%s2084] ss:$8 sm:$0x3]
          %v2086 = vstv %s2076
          %v2087 = vmul.f32 %v2086, %v2085
          %s2088 = sld [smem:[#allocation5 + %s2068]]
          %s2089 = sshra.s32 %s2069, 3
          %s2090 = sand.u32 %s2069, 7
          %s2091 = sshra.s32 %s2069, 3
          %s2092 = sand.u32 %s2069, 7
          %s2093 = smul.u32 %s2089, 2
          %s2094 = smul.u32 %s2093, 8
          %s2095 = sadd.s32 %s2094, %s2092
          %s2096 = scalar_lea.vmem [#allocation7], %s2095
          %v2097 = vld [vmem:[%s2096] ss:$8 sm:$0x3]
          %v2098 = vstv %s2088
          %v2099 = vmul.f32 %v2098, %v2097
          %v2100 = vadd.f32 %v2087, %v2099
          %s2101 = sld [smem:[#allocation5 + %s2071]]
          %s2102 = sshra.s32 %s2072, 3
          %s2103 = sand.u32 %s2072, 7
          %s2104 = sshra.s32 %s2072, 3
          %s2105 = sand.u32 %s2072, 7
          %s2106 = smul.u32 %s2102, 2
          %s2107 = smul.u32 %s2106, 8
          %s2108 = sadd.s32 %s2107, %s2105
          %s2109 = scalar_lea.vmem [#allocation7], %s2108
          %v2110 = vld [vmem:[%s2109] ss:$8 sm:$0x3]
          %v2111 = vstv %s2101
          %v2112 = vmul.f32 %v2111, %v2110
          %v2113 = vadd.f32 %v2100, %v2112
          %s2114 = sld [smem:[#allocation5 + %s2074]]
          %s2115 = sshra.s32 %s2075, 3
          %s2116 = sand.u32 %s2075, 7
          %s2117 = sshra.s32 %s2075, 3
          %s2118 = sand.u32 %s2075, 7
          %s2119 = smul.u32 %s2115, 2
          %s2120 = smul.u32 %s2119, 8
          %s2121 = sadd.s32 %s2120, %s2118
          %s2122 = scalar_lea.vmem [#allocation7], %s2121
          %v2123 = vld [vmem:[%s2122] ss:$8 sm:$0x3]
          %v2124 = vstv %s2114
          %v2125 = vmul.f32 %v2124, %v2123
          %v2126 = vadd.f32 %v2113, %v2125
          %s2127 = scalar_lea.vmem %s275, 52
          %2128 = vst.msk [vmem:[%s2127] ss:$8 sm:$0x3] %vm279, %v2126
          %2129 = vst.msk [vmem:[%s2127] ss:$8 sm:$0x0] %vm279, %v2126
          %s2130 = sadd.s32 %s210, 116
          %s2131 = sadd.s32 %s207, %s2130
          %s2132 = sld [smem:[#allocation2 + %s2131]]
          %s2133 = sadd.s32 %s210, 117
          %s2134 = sadd.s32 %s207, %s2133
          %s2135 = sld [smem:[#allocation2 + %s2134]]
          %s2136 = sadd.s32 %s210, 118
          %s2137 = sadd.s32 %s207, %s2136
          %s2138 = sld [smem:[#allocation2 + %s2137]]
          %s2139 = sadd.s32 %s210, 119
          %s2140 = sadd.s32 %s207, %s2139
          %s2141 = sld [smem:[#allocation2 + %s2140]]
          %s2142 = sld [smem:[#allocation5 + %s2131]]
          %s2143 = sshra.s32 %s2132, 3
          %s2144 = sand.u32 %s2132, 7
          %s2145 = sshra.s32 %s2132, 3
          %s2146 = sand.u32 %s2132, 7
          %s2147 = smul.u32 %s2143, 2
          %s2148 = smul.u32 %s2147, 8
          %s2149 = sadd.s32 %s2148, %s2146
          %s2150 = scalar_lea.vmem [#allocation7], %s2149
          %v2151 = vld [vmem:[%s2150] ss:$8 sm:$0x3]
          %v2152 = vstv %s2142
          %v2153 = vmul.f32 %v2152, %v2151
          %s2154 = sld [smem:[#allocation5 + %s2134]]
          %s2155 = sshra.s32 %s2135, 3
          %s2156 = sand.u32 %s2135, 7
          %s2157 = sshra.s32 %s2135, 3
          %s2158 = sand.u32 %s2135, 7
          %s2159 = smul.u32 %s2155, 2
          %s2160 = smul.u32 %s2159, 8
          %s2161 = sadd.s32 %s2160, %s2158
          %s2162 = scalar_lea.vmem [#allocation7], %s2161
          %v2163 = vld [vmem:[%s2162] ss:$8 sm:$0x3]
          %v2164 = vstv %s2154
          %v2165 = vmul.f32 %v2164, %v2163
          %v2166 = vadd.f32 %v2153, %v2165
          %s2167 = sld [smem:[#allocation5 + %s2137]]
          %s2168 = sshra.s32 %s2138, 3
          %s2169 = sand.u32 %s2138, 7
          %s2170 = sshra.s32 %s2138, 3
          %s2171 = sand.u32 %s2138, 7
          %s2172 = smul.u32 %s2168, 2
          %s2173 = smul.u32 %s2172, 8
          %s2174 = sadd.s32 %s2173, %s2171
          %s2175 = scalar_lea.vmem [#allocation7], %s2174
          %v2176 = vld [vmem:[%s2175] ss:$8 sm:$0x3]
          %v2177 = vstv %s2167
          %v2178 = vmul.f32 %v2177, %v2176
          %v2179 = vadd.f32 %v2166, %v2178
          %s2180 = sld [smem:[#allocation5 + %s2140]]
          %s2181 = sshra.s32 %s2141, 3
          %s2182 = sand.u32 %s2141, 7
          %s2183 = sshra.s32 %s2141, 3
          %s2184 = sand.u32 %s2141, 7
          %s2185 = smul.u32 %s2181, 2
          %s2186 = smul.u32 %s2185, 8
          %s2187 = sadd.s32 %s2186, %s2184
          %s2188 = scalar_lea.vmem [#allocation7], %s2187
          %v2189 = vld [vmem:[%s2188] ss:$8 sm:$0x3]
          %v2190 = vstv %s2180
          %v2191 = vmul.f32 %v2190, %v2189
          %v2192 = vadd.f32 %v2179, %v2191
          %s2193 = scalar_lea.vmem %s275, 53
          %2194 = vst.msk [vmem:[%s2193] ss:$8 sm:$0x3] %vm279, %v2192
          %2195 = vst.msk [vmem:[%s2193] ss:$8 sm:$0x0] %vm279, %v2192
          %s2196 = sadd.s32 %s210, 120
          %s2197 = sadd.s32 %s207, %s2196
          %s2198 = sld [smem:[#allocation2 + %s2197]]
          %s2199 = sadd.s32 %s210, 121
          %s2200 = sadd.s32 %s207, %s2199
          %s2201 = sld [smem:[#allocation2 + %s2200]]
          %s2202 = sadd.s32 %s210, 122
          %s2203 = sadd.s32 %s207, %s2202
          %s2204 = sld [smem:[#allocation2 + %s2203]]
          %s2205 = sadd.s32 %s210, 123
          %s2206 = sadd.s32 %s207, %s2205
          %s2207 = sld [smem:[#allocation2 + %s2206]]
          %s2208 = sld [smem:[#allocation5 + %s2197]]
          %s2209 = sshra.s32 %s2198, 3
          %s2210 = sand.u32 %s2198, 7
          %s2211 = sshra.s32 %s2198, 3
          %s2212 = sand.u32 %s2198, 7
          %s2213 = smul.u32 %s2209, 2
          %s2214 = smul.u32 %s2213, 8
          %s2215 = sadd.s32 %s2214, %s2212
          %s2216 = scalar_lea.vmem [#allocation7], %s2215
          %v2217 = vld [vmem:[%s2216] ss:$8 sm:$0x3]
          %v2218 = vstv %s2208
          %v2219 = vmul.f32 %v2218, %v2217
          %s2220 = sld [smem:[#allocation5 + %s2200]]
          %s2221 = sshra.s32 %s2201, 3
          %s2222 = sand.u32 %s2201, 7
          %s2223 = sshra.s32 %s2201, 3
          %s2224 = sand.u32 %s2201, 7
          %s2225 = smul.u32 %s2221, 2
          %s2226 = smul.u32 %s2225, 8
          %s2227 = sadd.s32 %s2226, %s2224
          %s2228 = scalar_lea.vmem [#allocation7], %s2227
          %v2229 = vld [vmem:[%s2228] ss:$8 sm:$0x3]
          %v2230 = vstv %s2220
          %v2231 = vmul.f32 %v2230, %v2229
          %v2232 = vadd.f32 %v2219, %v2231
          %s2233 = sld [smem:[#allocation5 + %s2203]]
          %s2234 = sshra.s32 %s2204, 3
          %s2235 = sand.u32 %s2204, 7
          %s2236 = sshra.s32 %s2204, 3
          %s2237 = sand.u32 %s2204, 7
          %s2238 = smul.u32 %s2234, 2
          %s2239 = smul.u32 %s2238, 8
          %s2240 = sadd.s32 %s2239, %s2237
          %s2241 = scalar_lea.vmem [#allocation7], %s2240
          %v2242 = vld [vmem:[%s2241] ss:$8 sm:$0x3]
          %v2243 = vstv %s2233
          %v2244 = vmul.f32 %v2243, %v2242
          %v2245 = vadd.f32 %v2232, %v2244
          %s2246 = sld [smem:[#allocation5 + %s2206]]
          %s2247 = sshra.s32 %s2207, 3
          %s2248 = sand.u32 %s2207, 7
          %s2249 = sshra.s32 %s2207, 3
          %s2250 = sand.u32 %s2207, 7
          %s2251 = smul.u32 %s2247, 2
          %s2252 = smul.u32 %s2251, 8
          %s2253 = sadd.s32 %s2252, %s2250
          %s2254 = scalar_lea.vmem [#allocation7], %s2253
          %v2255 = vld [vmem:[%s2254] ss:$8 sm:$0x3]
          %v2256 = vstv %s2246
          %v2257 = vmul.f32 %v2256, %v2255
          %v2258 = vadd.f32 %v2245, %v2257
          %s2259 = scalar_lea.vmem %s275, 54
          %2260 = vst.msk [vmem:[%s2259] ss:$8 sm:$0x3] %vm279, %v2258
          %2261 = vst.msk [vmem:[%s2259] ss:$8 sm:$0x0] %vm279, %v2258
          %s2262 = sadd.s32 %s210, 124
          %s2263 = sadd.s32 %s207, %s2262
          %s2264 = sld [smem:[#allocation2 + %s2263]]
          %s2265 = sadd.s32 %s210, 125
          %s2266 = sadd.s32 %s207, %s2265
          %s2267 = sld [smem:[#allocation2 + %s2266]]
          %s2268 = sadd.s32 %s210, 126
          %s2269 = sadd.s32 %s207, %s2268
          %s2270 = sld [smem:[#allocation2 + %s2269]]
          %s2271 = sadd.s32 %s210, 127
          %s2272 = sadd.s32 %s207, %s2271
          %s2273 = sld [smem:[#allocation2 + %s2272]]
          %s2274 = sld [smem:[#allocation5 + %s2263]]
          %s2275 = sshra.s32 %s2264, 3
          %s2276 = sand.u32 %s2264, 7
          %s2277 = sshra.s32 %s2264, 3
          %s2278 = sand.u32 %s2264, 7
          %s2279 = smul.u32 %s2275, 2
          %s2280 = smul.u32 %s2279, 8
          %s2281 = sadd.s32 %s2280, %s2278
          %s2282 = scalar_lea.vmem [#allocation7], %s2281
          %v2283 = vld [vmem:[%s2282] ss:$8 sm:$0x3]
          %v2284 = vstv %s2274
          %v2285 = vmul.f32 %v2284, %v2283
          %s2286 = sld [smem:[#allocation5 + %s2266]]
          %s2287 = sshra.s32 %s2267, 3
          %s2288 = sand.u32 %s2267, 7
          %s2289 = sshra.s32 %s2267, 3
          %s2290 = sand.u32 %s2267, 7
          %s2291 = smul.u32 %s2287, 2
          %s2292 = smul.u32 %s2291, 8
          %s2293 = sadd.s32 %s2292, %s2290
          %s2294 = scalar_lea.vmem [#allocation7], %s2293
          %v2295 = vld [vmem:[%s2294] ss:$8 sm:$0x3]
          %v2296 = vstv %s2286
          %v2297 = vmul.f32 %v2296, %v2295
          %v2298 = vadd.f32 %v2285, %v2297
          %s2299 = sld [smem:[#allocation5 + %s2269]]
          %s2300 = sshra.s32 %s2270, 3
          %s2301 = sand.u32 %s2270, 7
          %s2302 = sshra.s32 %s2270, 3
          %s2303 = sand.u32 %s2270, 7
          %s2304 = smul.u32 %s2300, 2
          %s2305 = smul.u32 %s2304, 8
          %s2306 = sadd.s32 %s2305, %s2303
          %s2307 = scalar_lea.vmem [#allocation7], %s2306
          %v2308 = vld [vmem:[%s2307] ss:$8 sm:$0x3]
          %v2309 = vstv %s2299
          %v2310 = vmul.f32 %v2309, %v2308
          %v2311 = vadd.f32 %v2298, %v2310
          %s2312 = sld [smem:[#allocation5 + %s2272]]
          %s2313 = sshra.s32 %s2273, 3
          %s2314 = sand.u32 %s2273, 7
          %s2315 = sshra.s32 %s2273, 3
          %s2316 = sand.u32 %s2273, 7
          %s2317 = smul.u32 %s2313, 2
          %s2318 = smul.u32 %s2317, 8
          %s2319 = sadd.s32 %s2318, %s2316
          %s2320 = scalar_lea.vmem [#allocation7], %s2319
          %v2321 = vld [vmem:[%s2320] ss:$8 sm:$0x3]
          %v2322 = vstv %s2312
          %v2323 = vmul.f32 %v2322, %v2321
          %v2324 = vadd.f32 %v2311, %v2323
          %s2325 = scalar_lea.vmem %s275, 55
          %2326 = vst.msk [vmem:[%s2325] ss:$8 sm:$0x3] %vm279, %v2324
          %2327 = vst.msk [vmem:[%s2325] ss:$8 sm:$0x0] %vm279, %v2324
          %s2328 = sadd.s32 1, %s206
          %s2329 = smul.u32 %s2328, 1024
          %s2330 = sadd.s32 %s2329, %s210
          %s2331 = sld [smem:[#allocation2 + %s2330]]
          %s2332 = sadd.s32 %s2329, %s213
          %s2333 = sld [smem:[#allocation2 + %s2332]]
          %s2334 = sadd.s32 %s2329, %s216
          %s2335 = sld [smem:[#allocation2 + %s2334]]
          %s2336 = sadd.s32 %s2329, %s219
          %s2337 = sld [smem:[#allocation2 + %s2336]]
          %s2338 = sld [smem:[#allocation5 + %s2330]]
          %s2339 = sshra.s32 %s2331, 3
          %s2340 = sand.u32 %s2331, 7
          %s2341 = sshra.s32 %s2331, 3
          %s2342 = sand.u32 %s2331, 7
          %s2343 = smul.u32 %s2339, 2
          %s2344 = smul.u32 %s2343, 8
          %s2345 = sadd.s32 %s2344, %s2342
          %s2346 = scalar_lea.vmem [#allocation7], %s2345
          %v2347 = vld [vmem:[%s2346] ss:$8 sm:$0x3]
          %v2348 = vstv %s2338
          %v2349 = vmul.f32 %v2348, %v2347
          %s2350 = sld [smem:[#allocation5 + %s2332]]
          %s2351 = sshra.s32 %s2333, 3
          %s2352 = sand.u32 %s2333, 7
          %s2353 = sshra.s32 %s2333, 3
          %s2354 = sand.u32 %s2333, 7
          %s2355 = smul.u32 %s2351, 2
          %s2356 = smul.u32 %s2355, 8
          %s2357 = sadd.s32 %s2356, %s2354
          %s2358 = scalar_lea.vmem [#allocation7], %s2357
          %v2359 = vld [vmem:[%s2358] ss:$8 sm:$0x3]
          %v2360 = vstv %s2350
          %v2361 = vmul.f32 %v2360, %v2359
          %v2362 = vadd.f32 %v2349, %v2361
          %s2363 = sld [smem:[#allocation5 + %s2334]]
          %s2364 = sshra.s32 %s2335, 3
          %s2365 = sand.u32 %s2335, 7
          %s2366 = sshra.s32 %s2335, 3
          %s2367 = sand.u32 %s2335, 7
          %s2368 = smul.u32 %s2364, 2
          %s2369 = smul.u32 %s2368, 8
          %s2370 = sadd.s32 %s2369, %s2367
          %s2371 = scalar_lea.vmem [#allocation7], %s2370
          %v2372 = vld [vmem:[%s2371] ss:$8 sm:$0x3]
          %v2373 = vstv %s2363
          %v2374 = vmul.f32 %v2373, %v2372
          %v2375 = vadd.f32 %v2362, %v2374
          %s2376 = sld [smem:[#allocation5 + %s2336]]
          %s2377 = sshra.s32 %s2337, 3
          %s2378 = sand.u32 %s2337, 7
          %s2379 = sshra.s32 %s2337, 3
          %s2380 = sand.u32 %s2337, 7
          %s2381 = smul.u32 %s2377, 2
          %s2382 = smul.u32 %s2381, 8
          %s2383 = sadd.s32 %s2382, %s2380
          %s2384 = scalar_lea.vmem [#allocation7], %s2383
          %v2385 = vld [vmem:[%s2384] ss:$8 sm:$0x3]
          %v2386 = vstv %s2376
          %v2387 = vmul.f32 %v2386, %v2385
          %v2388 = vadd.f32 %v2375, %v2387
          %s2389 = scalar_lea.vmem %s275, 64
          %2390 = vst.msk [vmem:[%s2389] ss:$8 sm:$0x3] %vm279, %v2388
          %2391 = vst.msk [vmem:[%s2389] ss:$8 sm:$0x0] %vm279, %v2388
          %s2392 = sadd.s32 %s2329, %s282
          %s2393 = sld [smem:[#allocation2 + %s2392]]
          %s2394 = sadd.s32 %s2329, %s285
          %s2395 = sld [smem:[#allocation2 + %s2394]]
          %s2396 = sadd.s32 %s2329, %s288
          %s2397 = sld [smem:[#allocation2 + %s2396]]
          %s2398 = sadd.s32 %s2329, %s291
          %s2399 = sld [smem:[#allocation2 + %s2398]]
          %s2400 = sld [smem:[#allocation5 + %s2392]]
          %s2401 = sshra.s32 %s2393, 3
          %s2402 = sand.u32 %s2393, 7
          %s2403 = sshra.s32 %s2393, 3
          %s2404 = sand.u32 %s2393, 7
          %s2405 = smul.u32 %s2401, 2
          %s2406 = smul.u32 %s2405, 8
          %s2407 = sadd.s32 %s2406, %s2404
          %s2408 = scalar_lea.vmem [#allocation7], %s2407
          %v2409 = vld [vmem:[%s2408] ss:$8 sm:$0x3]
          %v2410 = vstv %s2400
          %v2411 = vmul.f32 %v2410, %v2409
          %s2412 = sld [smem:[#allocation5 + %s2394]]
          %s2413 = sshra.s32 %s2395, 3
          %s2414 = sand.u32 %s2395, 7
          %s2415 = sshra.s32 %s2395, 3
          %s2416 = sand.u32 %s2395, 7
          %s2417 = smul.u32 %s2413, 2
          %s2418 = smul.u32 %s2417, 8
          %s2419 = sadd.s32 %s2418, %s2416
          %s2420 = scalar_lea.vmem [#allocation7], %s2419
          %v2421 = vld [vmem:[%s2420] ss:$8 sm:$0x3]
          %v2422 = vstv %s2412
          %v2423 = vmul.f32 %v2422, %v2421
          %v2424 = vadd.f32 %v2411, %v2423
          %s2425 = sld [smem:[#allocation5 + %s2396]]
          %s2426 = sshra.s32 %s2397, 3
          %s2427 = sand.u32 %s2397, 7
          %s2428 = sshra.s32 %s2397, 3
          %s2429 = sand.u32 %s2397, 7
          %s2430 = smul.u32 %s2426, 2
          %s2431 = smul.u32 %s2430, 8
          %s2432 = sadd.s32 %s2431, %s2429
          %s2433 = scalar_lea.vmem [#allocation7], %s2432
          %v2434 = vld [vmem:[%s2433] ss:$8 sm:$0x3]
          %v2435 = vstv %s2425
          %v2436 = vmul.f32 %v2435, %v2434
          %v2437 = vadd.f32 %v2424, %v2436
          %s2438 = sld [smem:[#allocation5 + %s2398]]
          %s2439 = sshra.s32 %s2399, 3
          %s2440 = sand.u32 %s2399, 7
          %s2441 = sshra.s32 %s2399, 3
          %s2442 = sand.u32 %s2399, 7
          %s2443 = smul.u32 %s2439, 2
          %s2444 = smul.u32 %s2443, 8
          %s2445 = sadd.s32 %s2444, %s2442
          %s2446 = scalar_lea.vmem [#allocation7], %s2445
          %v2447 = vld [vmem:[%s2446] ss:$8 sm:$0x3]
          %v2448 = vstv %s2438
          %v2449 = vmul.f32 %v2448, %v2447
          %v2450 = vadd.f32 %v2437, %v2449
          %s2451 = scalar_lea.vmem %s275, 65
          %2452 = vst.msk [vmem:[%s2451] ss:$8 sm:$0x3] %vm279, %v2450
          %2453 = vst.msk [vmem:[%s2451] ss:$8 sm:$0x0] %vm279, %v2450
          %s2454 = sadd.s32 %s2329, %s348
          %s2455 = sld [smem:[#allocation2 + %s2454]]
          %s2456 = sadd.s32 %s2329, %s351
          %s2457 = sld [smem:[#allocation2 + %s2456]]
          %s2458 = sadd.s32 %s2329, %s354
          %s2459 = sld [smem:[#allocation2 + %s2458]]
          %s2460 = sadd.s32 %s2329, %s357
          %s2461 = sld [smem:[#allocation2 + %s2460]]
          %s2462 = sld [smem:[#allocation5 + %s2454]]
          %s2463 = sshra.s32 %s2455, 3
          %s2464 = sand.u32 %s2455, 7
          %s2465 = sshra.s32 %s2455, 3
          %s2466 = sand.u32 %s2455, 7
          %s2467 = smul.u32 %s2463, 2
          %s2468 = smul.u32 %s2467, 8
          %s2469 = sadd.s32 %s2468, %s2466
          %s2470 = scalar_lea.vmem [#allocation7], %s2469
          %v2471 = vld [vmem:[%s2470] ss:$8 sm:$0x3]
          %v2472 = vstv %s2462
          %v2473 = vmul.f32 %v2472, %v2471
          %s2474 = sld [smem:[#allocation5 + %s2456]]
          %s2475 = sshra.s32 %s2457, 3
          %s2476 = sand.u32 %s2457, 7
          %s2477 = sshra.s32 %s2457, 3
          %s2478 = sand.u32 %s2457, 7
          %s2479 = smul.u32 %s2475, 2
          %s2480 = smul.u32 %s2479, 8
          %s2481 = sadd.s32 %s2480, %s2478
          %s2482 = scalar_lea.vmem [#allocation7], %s2481
          %v2483 = vld [vmem:[%s2482] ss:$8 sm:$0x3]
          %v2484 = vstv %s2474
          %v2485 = vmul.f32 %v2484, %v2483
          %v2486 = vadd.f32 %v2473, %v2485
          %s2487 = sld [smem:[#allocation5 + %s2458]]
          %s2488 = sshra.s32 %s2459, 3
          %s2489 = sand.u32 %s2459, 7
          %s2490 = sshra.s32 %s2459, 3
          %s2491 = sand.u32 %s2459, 7
          %s2492 = smul.u32 %s2488, 2
          %s2493 = smul.u32 %s2492, 8
          %s2494 = sadd.s32 %s2493, %s2491
          %s2495 = scalar_lea.vmem [#allocation7], %s2494
          %v2496 = vld [vmem:[%s2495] ss:$8 sm:$0x3]
          %v2497 = vstv %s2487
          %v2498 = vmul.f32 %v2497, %v2496
          %v2499 = vadd.f32 %v2486, %v2498
          %s2500 = sld [smem:[#allocation5 + %s2460]]
          %s2501 = sshra.s32 %s2461, 3
          %s2502 = sand.u32 %s2461, 7
          %s2503 = sshra.s32 %s2461, 3
          %s2504 = sand.u32 %s2461, 7
          %s2505 = smul.u32 %s2501, 2
          %s2506 = smul.u32 %s2505, 8
          %s2507 = sadd.s32 %s2506, %s2504
          %s2508 = scalar_lea.vmem [#allocation7], %s2507
          %v2509 = vld [vmem:[%s2508] ss:$8 sm:$0x3]
          %v2510 = vstv %s2500
          %v2511 = vmul.f32 %v2510, %v2509
          %v2512 = vadd.f32 %v2499, %v2511
          %s2513 = scalar_lea.vmem %s275, 66
          %2514 = vst.msk [vmem:[%s2513] ss:$8 sm:$0x3] %vm279, %v2512
          %2515 = vst.msk [vmem:[%s2513] ss:$8 sm:$0x0] %vm279, %v2512
          %s2516 = sadd.s32 %s2329, %s414
          %s2517 = sld [smem:[#allocation2 + %s2516]]
          %s2518 = sadd.s32 %s2329, %s417
          %s2519 = sld [smem:[#allocation2 + %s2518]]
          %s2520 = sadd.s32 %s2329, %s420
          %s2521 = sld [smem:[#allocation2 + %s2520]]
          %s2522 = sadd.s32 %s2329, %s423
          %s2523 = sld [smem:[#allocation2 + %s2522]]
          %s2524 = sld [smem:[#allocation5 + %s2516]]
          %s2525 = sshra.s32 %s2517, 3
          %s2526 = sand.u32 %s2517, 7
          %s2527 = sshra.s32 %s2517, 3
          %s2528 = sand.u32 %s2517, 7
          %s2529 = smul.u32 %s2525, 2
          %s2530 = smul.u32 %s2529, 8
          %s2531 = sadd.s32 %s2530, %s2528
          %s2532 = scalar_lea.vmem [#allocation7], %s2531
          %v2533 = vld [vmem:[%s2532] ss:$8 sm:$0x3]
          %v2534 = vstv %s2524
          %v2535 = vmul.f32 %v2534, %v2533
          %s2536 = sld [smem:[#allocation5 + %s2518]]
          %s2537 = sshra.s32 %s2519, 3
          %s2538 = sand.u32 %s2519, 7
          %s2539 = sshra.s32 %s2519, 3
          %s2540 = sand.u32 %s2519, 7
          %s2541 = smul.u32 %s2537, 2
          %s2542 = smul.u32 %s2541, 8
          %s2543 = sadd.s32 %s2542, %s2540
          %s2544 = scalar_lea.vmem [#allocation7], %s2543
          %v2545 = vld [vmem:[%s2544] ss:$8 sm:$0x3]
          %v2546 = vstv %s2536
          %v2547 = vmul.f32 %v2546, %v2545
          %v2548 = vadd.f32 %v2535, %v2547
          %s2549 = sld [smem:[#allocation5 + %s2520]]
          %s2550 = sshra.s32 %s2521, 3
          %s2551 = sand.u32 %s2521, 7
          %s2552 = sshra.s32 %s2521, 3
          %s2553 = sand.u32 %s2521, 7
          %s2554 = smul.u32 %s2550, 2
          %s2555 = smul.u32 %s2554, 8
          %s2556 = sadd.s32 %s2555, %s2553
          %s2557 = scalar_lea.vmem [#allocation7], %s2556
          %v2558 = vld [vmem:[%s2557] ss:$8 sm:$0x3]
          %v2559 = vstv %s2549
          %v2560 = vmul.f32 %v2559, %v2558
          %v2561 = vadd.f32 %v2548, %v2560
          %s2562 = sld [smem:[#allocation5 + %s2522]]
          %s2563 = sshra.s32 %s2523, 3
          %s2564 = sand.u32 %s2523, 7
          %s2565 = sshra.s32 %s2523, 3
          %s2566 = sand.u32 %s2523, 7
          %s2567 = smul.u32 %s2563, 2
          %s2568 = smul.u32 %s2567, 8
          %s2569 = sadd.s32 %s2568, %s2566
          %s2570 = scalar_lea.vmem [#allocation7], %s2569
          %v2571 = vld [vmem:[%s2570] ss:$8 sm:$0x3]
          %v2572 = vstv %s2562
          %v2573 = vmul.f32 %v2572, %v2571
          %v2574 = vadd.f32 %v2561, %v2573
          %s2575 = scalar_lea.vmem %s275, 67
          %2576 = vst.msk [vmem:[%s2575] ss:$8 sm:$0x3] %vm279, %v2574
          %2577 = vst.msk [vmem:[%s2575] ss:$8 sm:$0x0] %vm279, %v2574
          %s2578 = sadd.s32 %s2329, %s480
          %s2579 = sld [smem:[#allocation2 + %s2578]]
          %s2580 = sadd.s32 %s2329, %s483
          %s2581 = sld [smem:[#allocation2 + %s2580]]
          %s2582 = sadd.s32 %s2329, %s486
          %s2583 = sld [smem:[#allocation2 + %s2582]]
          %s2584 = sadd.s32 %s2329, %s489
          %s2585 = sld [smem:[#allocation2 + %s2584]]
          %s2586 = sld [smem:[#allocation5 + %s2578]]
          %s2587 = sshra.s32 %s2579, 3
          %s2588 = sand.u32 %s2579, 7
          %s2589 = sshra.s32 %s2579, 3
          %s2590 = sand.u32 %s2579, 7
          %s2591 = smul.u32 %s2587, 2
          %s2592 = smul.u32 %s2591, 8
          %s2593 = sadd.s32 %s2592, %s2590
          %s2594 = scalar_lea.vmem [#allocation7], %s2593
          %v2595 = vld [vmem:[%s2594] ss:$8 sm:$0x3]
          %v2596 = vstv %s2586
          %v2597 = vmul.f32 %v2596, %v2595
          %s2598 = sld [smem:[#allocation5 + %s2580]]
          %s2599 = sshra.s32 %s2581, 3
          %s2600 = sand.u32 %s2581, 7
          %s2601 = sshra.s32 %s2581, 3
          %s2602 = sand.u32 %s2581, 7
          %s2603 = smul.u32 %s2599, 2
          %s2604 = smul.u32 %s2603, 8
          %s2605 = sadd.s32 %s2604, %s2602
          %s2606 = scalar_lea.vmem [#allocation7], %s2605
          %v2607 = vld [vmem:[%s2606] ss:$8 sm:$0x3]
          %v2608 = vstv %s2598
          %v2609 = vmul.f32 %v2608, %v2607
          %v2610 = vadd.f32 %v2597, %v2609
          %s2611 = sld [smem:[#allocation5 + %s2582]]
          %s2612 = sshra.s32 %s2583, 3
          %s2613 = sand.u32 %s2583, 7
          %s2614 = sshra.s32 %s2583, 3
          %s2615 = sand.u32 %s2583, 7
          %s2616 = smul.u32 %s2612, 2
          %s2617 = smul.u32 %s2616, 8
          %s2618 = sadd.s32 %s2617, %s2615
          %s2619 = scalar_lea.vmem [#allocation7], %s2618
          %v2620 = vld [vmem:[%s2619] ss:$8 sm:$0x3]
          %v2621 = vstv %s2611
          %v2622 = vmul.f32 %v2621, %v2620
          %v2623 = vadd.f32 %v2610, %v2622
          %s2624 = sld [smem:[#allocation5 + %s2584]]
          %s2625 = sshra.s32 %s2585, 3
          %s2626 = sand.u32 %s2585, 7
          %s2627 = sshra.s32 %s2585, 3
          %s2628 = sand.u32 %s2585, 7
          %s2629 = smul.u32 %s2625, 2
          %s2630 = smul.u32 %s2629, 8
          %s2631 = sadd.s32 %s2630, %s2628
          %s2632 = scalar_lea.vmem [#allocation7], %s2631
          %v2633 = vld [vmem:[%s2632] ss:$8 sm:$0x3]
          %v2634 = vstv %s2624
          %v2635 = vmul.f32 %v2634, %v2633
          %v2636 = vadd.f32 %v2623, %v2635
          %s2637 = scalar_lea.vmem %s275, 68
          %2638 = vst.msk [vmem:[%s2637] ss:$8 sm:$0x3] %vm279, %v2636
          %2639 = vst.msk [vmem:[%s2637] ss:$8 sm:$0x0] %vm279, %v2636
          %s2640 = sadd.s32 %s2329, %s546
          %s2641 = sld [smem:[#allocation2 + %s2640]]
          %s2642 = sadd.s32 %s2329, %s549
          %s2643 = sld [smem:[#allocation2 + %s2642]]
          %s2644 = sadd.s32 %s2329, %s552
          %s2645 = sld [smem:[#allocation2 + %s2644]]
          %s2646 = sadd.s32 %s2329, %s555
          %s2647 = sld [smem:[#allocation2 + %s2646]]
          %s2648 = sld [smem:[#allocation5 + %s2640]]
          %s2649 = sshra.s32 %s2641, 3
          %s2650 = sand.u32 %s2641, 7
          %s2651 = sshra.s32 %s2641, 3
          %s2652 = sand.u32 %s2641, 7
          %s2653 = smul.u32 %s2649, 2
          %s2654 = smul.u32 %s2653, 8
          %s2655 = sadd.s32 %s2654, %s2652
          %s2656 = scalar_lea.vmem [#allocation7], %s2655
          %v2657 = vld [vmem:[%s2656] ss:$8 sm:$0x3]
          %v2658 = vstv %s2648
          %v2659 = vmul.f32 %v2658, %v2657
          %s2660 = sld [smem:[#allocation5 + %s2642]]
          %s2661 = sshra.s32 %s2643, 3
          %s2662 = sand.u32 %s2643, 7
          %s2663 = sshra.s32 %s2643, 3
          %s2664 = sand.u32 %s2643, 7
          %s2665 = smul.u32 %s2661, 2
          %s2666 = smul.u32 %s2665, 8
          %s2667 = sadd.s32 %s2666, %s2664
          %s2668 = scalar_lea.vmem [#allocation7], %s2667
          %v2669 = vld [vmem:[%s2668] ss:$8 sm:$0x3]
          %v2670 = vstv %s2660
          %v2671 = vmul.f32 %v2670, %v2669
          %v2672 = vadd.f32 %v2659, %v2671
          %s2673 = sld [smem:[#allocation5 + %s2644]]
          %s2674 = sshra.s32 %s2645, 3
          %s2675 = sand.u32 %s2645, 7
          %s2676 = sshra.s32 %s2645, 3
          %s2677 = sand.u32 %s2645, 7
          %s2678 = smul.u32 %s2674, 2
          %s2679 = smul.u32 %s2678, 8
          %s2680 = sadd.s32 %s2679, %s2677
          %s2681 = scalar_lea.vmem [#allocation7], %s2680
          %v2682 = vld [vmem:[%s2681] ss:$8 sm:$0x3]
          %v2683 = vstv %s2673
          %v2684 = vmul.f32 %v2683, %v2682
          %v2685 = vadd.f32 %v2672, %v2684
          %s2686 = sld [smem:[#allocation5 + %s2646]]
          %s2687 = sshra.s32 %s2647, 3
          %s2688 = sand.u32 %s2647, 7
          %s2689 = sshra.s32 %s2647, 3
          %s2690 = sand.u32 %s2647, 7
          %s2691 = smul.u32 %s2687, 2
          %s2692 = smul.u32 %s2691, 8
          %s2693 = sadd.s32 %s2692, %s2690
          %s2694 = scalar_lea.vmem [#allocation7], %s2693
          %v2695 = vld [vmem:[%s2694] ss:$8 sm:$0x3]
          %v2696 = vstv %s2686
          %v2697 = vmul.f32 %v2696, %v2695
          %v2698 = vadd.f32 %v2685, %v2697
          %s2699 = scalar_lea.vmem %s275, 69
          %2700 = vst.msk [vmem:[%s2699] ss:$8 sm:$0x3] %vm279, %v2698
          %2701 = vst.msk [vmem:[%s2699] ss:$8 sm:$0x0] %vm279, %v2698
          %s2702 = sadd.s32 %s2329, %s612
          %s2703 = sld [smem:[#allocation2 + %s2702]]
          %s2704 = sadd.s32 %s2329, %s615
          %s2705 = sld [smem:[#allocation2 + %s2704]]
          %s2706 = sadd.s32 %s2329, %s618
          %s2707 = sld [smem:[#allocation2 + %s2706]]
          %s2708 = sadd.s32 %s2329, %s621
          %s2709 = sld [smem:[#allocation2 + %s2708]]
          %s2710 = sld [smem:[#allocation5 + %s2702]]
          %s2711 = sshra.s32 %s2703, 3
          %s2712 = sand.u32 %s2703, 7
          %s2713 = sshra.s32 %s2703, 3
          %s2714 = sand.u32 %s2703, 7
          %s2715 = smul.u32 %s2711, 2
          %s2716 = smul.u32 %s2715, 8
          %s2717 = sadd.s32 %s2716, %s2714
          %s2718 = scalar_lea.vmem [#allocation7], %s2717
          %v2719 = vld [vmem:[%s2718] ss:$8 sm:$0x3]
          %v2720 = vstv %s2710
          %v2721 = vmul.f32 %v2720, %v2719
          %s2722 = sld [smem:[#allocation5 + %s2704]]
          %s2723 = sshra.s32 %s2705, 3
          %s2724 = sand.u32 %s2705, 7
          %s2725 = sshra.s32 %s2705, 3
          %s2726 = sand.u32 %s2705, 7
          %s2727 = smul.u32 %s2723, 2
          %s2728 = smul.u32 %s2727, 8
          %s2729 = sadd.s32 %s2728, %s2726
          %s2730 = scalar_lea.vmem [#allocation7], %s2729
          %v2731 = vld [vmem:[%s2730] ss:$8 sm:$0x3]
          %v2732 = vstv %s2722
          %v2733 = vmul.f32 %v2732, %v2731
          %v2734 = vadd.f32 %v2721, %v2733
          %s2735 = sld [smem:[#allocation5 + %s2706]]
          %s2736 = sshra.s32 %s2707, 3
          %s2737 = sand.u32 %s2707, 7
          %s2738 = sshra.s32 %s2707, 3
          %s2739 = sand.u32 %s2707, 7
          %s2740 = smul.u32 %s2736, 2
          %s2741 = smul.u32 %s2740, 8
          %s2742 = sadd.s32 %s2741, %s2739
          %s2743 = scalar_lea.vmem [#allocation7], %s2742
          %v2744 = vld [vmem:[%s2743] ss:$8 sm:$0x3]
          %v2745 = vstv %s2735
          %v2746 = vmul.f32 %v2745, %v2744
          %v2747 = vadd.f32 %v2734, %v2746
          %s2748 = sld [smem:[#allocation5 + %s2708]]
          %s2749 = sshra.s32 %s2709, 3
          %s2750 = sand.u32 %s2709, 7
          %s2751 = sshra.s32 %s2709, 3
          %s2752 = sand.u32 %s2709, 7
          %s2753 = smul.u32 %s2749, 2
          %s2754 = smul.u32 %s2753, 8
          %s2755 = sadd.s32 %s2754, %s2752
          %s2756 = scalar_lea.vmem [#allocation7], %s2755
          %v2757 = vld [vmem:[%s2756] ss:$8 sm:$0x3]
          %v2758 = vstv %s2748
          %v2759 = vmul.f32 %v2758, %v2757
          %v2760 = vadd.f32 %v2747, %v2759
          %s2761 = scalar_lea.vmem %s275, 70
          %2762 = vst.msk [vmem:[%s2761] ss:$8 sm:$0x3] %vm279, %v2760
          %2763 = vst.msk [vmem:[%s2761] ss:$8 sm:$0x0] %vm279, %v2760
          %s2764 = sadd.s32 %s2329, %s678
          %s2765 = sld [smem:[#allocation2 + %s2764]]
          %s2766 = sadd.s32 %s2329, %s681
          %s2767 = sld [smem:[#allocation2 + %s2766]]
          %s2768 = sadd.s32 %s2329, %s684
          %s2769 = sld [smem:[#allocation2 + %s2768]]
          %s2770 = sadd.s32 %s2329, %s687
          %s2771 = sld [smem:[#allocation2 + %s2770]]
          %s2772 = sld [smem:[#allocation5 + %s2764]]
          %s2773 = sshra.s32 %s2765, 3
          %s2774 = sand.u32 %s2765, 7
          %s2775 = sshra.s32 %s2765, 3
          %s2776 = sand.u32 %s2765, 7
          %s2777 = smul.u32 %s2773, 2
          %s2778 = smul.u32 %s2777, 8
          %s2779 = sadd.s32 %s2778, %s2776
          %s2780 = scalar_lea.vmem [#allocation7], %s2779
          %v2781 = vld [vmem:[%s2780] ss:$8 sm:$0x3]
          %v2782 = vstv %s2772
          %v2783 = vmul.f32 %v2782, %v2781
          %s2784 = sld [smem:[#allocation5 + %s2766]]
          %s2785 = sshra.s32 %s2767, 3
          %s2786 = sand.u32 %s2767, 7
          %s2787 = sshra.s32 %s2767, 3
          %s2788 = sand.u32 %s2767, 7
          %s2789 = smul.u32 %s2785, 2
          %s2790 = smul.u32 %s2789, 8
          %s2791 = sadd.s32 %s2790, %s2788
          %s2792 = scalar_lea.vmem [#allocation7], %s2791
          %v2793 = vld [vmem:[%s2792] ss:$8 sm:$0x3]
          %v2794 = vstv %s2784
          %v2795 = vmul.f32 %v2794, %v2793
          %v2796 = vadd.f32 %v2783, %v2795
          %s2797 = sld [smem:[#allocation5 + %s2768]]
          %s2798 = sshra.s32 %s2769, 3
          %s2799 = sand.u32 %s2769, 7
          %s2800 = sshra.s32 %s2769, 3
          %s2801 = sand.u32 %s2769, 7
          %s2802 = smul.u32 %s2798, 2
          %s2803 = smul.u32 %s2802, 8
          %s2804 = sadd.s32 %s2803, %s2801
          %s2805 = scalar_lea.vmem [#allocation7], %s2804
          %v2806 = vld [vmem:[%s2805] ss:$8 sm:$0x3]
          %v2807 = vstv %s2797
          %v2808 = vmul.f32 %v2807, %v2806
          %v2809 = vadd.f32 %v2796, %v2808
          %s2810 = sld [smem:[#allocation5 + %s2770]]
          %s2811 = sshra.s32 %s2771, 3
          %s2812 = sand.u32 %s2771, 7
          %s2813 = sshra.s32 %s2771, 3
          %s2814 = sand.u32 %s2771, 7
          %s2815 = smul.u32 %s2811, 2
          %s2816 = smul.u32 %s2815, 8
          %s2817 = sadd.s32 %s2816, %s2814
          %s2818 = scalar_lea.vmem [#allocation7], %s2817
          %v2819 = vld [vmem:[%s2818] ss:$8 sm:$0x3]
          %v2820 = vstv %s2810
          %v2821 = vmul.f32 %v2820, %v2819
          %v2822 = vadd.f32 %v2809, %v2821
          %s2823 = scalar_lea.vmem %s275, 71
          %2824 = vst.msk [vmem:[%s2823] ss:$8 sm:$0x3] %vm279, %v2822
          %2825 = vst.msk [vmem:[%s2823] ss:$8 sm:$0x0] %vm279, %v2822
          %s2826 = sadd.s32 %s2329, %s744
          %s2827 = sld [smem:[#allocation2 + %s2826]]
          %s2828 = sadd.s32 %s2329, %s747
          %s2829 = sld [smem:[#allocation2 + %s2828]]
          %s2830 = sadd.s32 %s2329, %s750
          %s2831 = sld [smem:[#allocation2 + %s2830]]
          %s2832 = sadd.s32 %s2329, %s753
          %s2833 = sld [smem:[#allocation2 + %s2832]]
          %s2834 = sld [smem:[#allocation5 + %s2826]]
          %s2835 = sshra.s32 %s2827, 3
          %s2836 = sand.u32 %s2827, 7
          %s2837 = sshra.s32 %s2827, 3
          %s2838 = sand.u32 %s2827, 7
          %s2839 = smul.u32 %s2835, 2
          %s2840 = smul.u32 %s2839, 8
          %s2841 = sadd.s32 %s2840, %s2838
          %s2842 = scalar_lea.vmem [#allocation7], %s2841
          %v2843 = vld [vmem:[%s2842] ss:$8 sm:$0x3]
          %v2844 = vstv %s2834
          %v2845 = vmul.f32 %v2844, %v2843
          %s2846 = sld [smem:[#allocation5 + %s2828]]
          %s2847 = sshra.s32 %s2829, 3
          %s2848 = sand.u32 %s2829, 7
          %s2849 = sshra.s32 %s2829, 3
          %s2850 = sand.u32 %s2829, 7
          %s2851 = smul.u32 %s2847, 2
          %s2852 = smul.u32 %s2851, 8
          %s2853 = sadd.s32 %s2852, %s2850
          %s2854 = scalar_lea.vmem [#allocation7], %s2853
          %v2855 = vld [vmem:[%s2854] ss:$8 sm:$0x3]
          %v2856 = vstv %s2846
          %v2857 = vmul.f32 %v2856, %v2855
          %v2858 = vadd.f32 %v2845, %v2857
          %s2859 = sld [smem:[#allocation5 + %s2830]]
          %s2860 = sshra.s32 %s2831, 3
          %s2861 = sand.u32 %s2831, 7
          %s2862 = sshra.s32 %s2831, 3
          %s2863 = sand.u32 %s2831, 7
          %s2864 = smul.u32 %s2860, 2
          %s2865 = smul.u32 %s2864, 8
          %s2866 = sadd.s32 %s2865, %s2863
          %s2867 = scalar_lea.vmem [#allocation7], %s2866
          %v2868 = vld [vmem:[%s2867] ss:$8 sm:$0x3]
          %v2869 = vstv %s2859
          %v2870 = vmul.f32 %v2869, %v2868
          %v2871 = vadd.f32 %v2858, %v2870
          %s2872 = sld [smem:[#allocation5 + %s2832]]
          %s2873 = sshra.s32 %s2833, 3
          %s2874 = sand.u32 %s2833, 7
          %s2875 = sshra.s32 %s2833, 3
          %s2876 = sand.u32 %s2833, 7
          %s2877 = smul.u32 %s2873, 2
          %s2878 = smul.u32 %s2877, 8
          %s2879 = sadd.s32 %s2878, %s2876
          %s2880 = scalar_lea.vmem [#allocation7], %s2879
          %v2881 = vld [vmem:[%s2880] ss:$8 sm:$0x3]
          %v2882 = vstv %s2872
          %v2883 = vmul.f32 %v2882, %v2881
          %v2884 = vadd.f32 %v2871, %v2883
          %s2885 = scalar_lea.vmem %s275, 80
          %2886 = vst.msk [vmem:[%s2885] ss:$8 sm:$0x3] %vm279, %v2884
          %2887 = vst.msk [vmem:[%s2885] ss:$8 sm:$0x0] %vm279, %v2884
          %s2888 = sadd.s32 %s2329, %s810
          %s2889 = sld [smem:[#allocation2 + %s2888]]
          %s2890 = sadd.s32 %s2329, %s813
          %s2891 = sld [smem:[#allocation2 + %s2890]]
          %s2892 = sadd.s32 %s2329, %s816
          %s2893 = sld [smem:[#allocation2 + %s2892]]
          %s2894 = sadd.s32 %s2329, %s819
          %s2895 = sld [smem:[#allocation2 + %s2894]]
          %s2896 = sld [smem:[#allocation5 + %s2888]]
          %s2897 = sshra.s32 %s2889, 3
          %s2898 = sand.u32 %s2889, 7
          %s2899 = sshra.s32 %s2889, 3
          %s2900 = sand.u32 %s2889, 7
          %s2901 = smul.u32 %s2897, 2
          %s2902 = smul.u32 %s2901, 8
          %s2903 = sadd.s32 %s2902, %s2900
          %s2904 = scalar_lea.vmem [#allocation7], %s2903
          %v2905 = vld [vmem:[%s2904] ss:$8 sm:$0x3]
          %v2906 = vstv %s2896
          %v2907 = vmul.f32 %v2906, %v2905
          %s2908 = sld [smem:[#allocation5 + %s2890]]
          %s2909 = sshra.s32 %s2891, 3
          %s2910 = sand.u32 %s2891, 7
          %s2911 = sshra.s32 %s2891, 3
          %s2912 = sand.u32 %s2891, 7
          %s2913 = smul.u32 %s2909, 2
          %s2914 = smul.u32 %s2913, 8
          %s2915 = sadd.s32 %s2914, %s2912
          %s2916 = scalar_lea.vmem [#allocation7], %s2915
          %v2917 = vld [vmem:[%s2916] ss:$8 sm:$0x3]
          %v2918 = vstv %s2908
          %v2919 = vmul.f32 %v2918, %v2917
          %v2920 = vadd.f32 %v2907, %v2919
          %s2921 = sld [smem:[#allocation5 + %s2892]]
          %s2922 = sshra.s32 %s2893, 3
          %s2923 = sand.u32 %s2893, 7
          %s2924 = sshra.s32 %s2893, 3
          %s2925 = sand.u32 %s2893, 7
          %s2926 = smul.u32 %s2922, 2
          %s2927 = smul.u32 %s2926, 8
          %s2928 = sadd.s32 %s2927, %s2925
          %s2929 = scalar_lea.vmem [#allocation7], %s2928
          %v2930 = vld [vmem:[%s2929] ss:$8 sm:$0x3]
          %v2931 = vstv %s2921
          %v2932 = vmul.f32 %v2931, %v2930
          %v2933 = vadd.f32 %v2920, %v2932
          %s2934 = sld [smem:[#allocation5 + %s2894]]
          %s2935 = sshra.s32 %s2895, 3
          %s2936 = sand.u32 %s2895, 7
          %s2937 = sshra.s32 %s2895, 3
          %s2938 = sand.u32 %s2895, 7
          %s2939 = smul.u32 %s2935, 2
          %s2940 = smul.u32 %s2939, 8
          %s2941 = sadd.s32 %s2940, %s2938
          %s2942 = scalar_lea.vmem [#allocation7], %s2941
          %v2943 = vld [vmem:[%s2942] ss:$8 sm:$0x3]
          %v2944 = vstv %s2934
          %v2945 = vmul.f32 %v2944, %v2943
          %v2946 = vadd.f32 %v2933, %v2945
          %s2947 = scalar_lea.vmem %s275, 81
          %2948 = vst.msk [vmem:[%s2947] ss:$8 sm:$0x3] %vm279, %v2946
          %2949 = vst.msk [vmem:[%s2947] ss:$8 sm:$0x0] %vm279, %v2946
          %s2950 = sadd.s32 %s2329, %s876
          %s2951 = sld [smem:[#allocation2 + %s2950]]
          %s2952 = sadd.s32 %s2329, %s879
          %s2953 = sld [smem:[#allocation2 + %s2952]]
          %s2954 = sadd.s32 %s2329, %s882
          %s2955 = sld [smem:[#allocation2 + %s2954]]
          %s2956 = sadd.s32 %s2329, %s885
          %s2957 = sld [smem:[#allocation2 + %s2956]]
          %s2958 = sld [smem:[#allocation5 + %s2950]]
          %s2959 = sshra.s32 %s2951, 3
          %s2960 = sand.u32 %s2951, 7
          %s2961 = sshra.s32 %s2951, 3
          %s2962 = sand.u32 %s2951, 7
          %s2963 = smul.u32 %s2959, 2
          %s2964 = smul.u32 %s2963, 8
          %s2965 = sadd.s32 %s2964, %s2962
          %s2966 = scalar_lea.vmem [#allocation7], %s2965
          %v2967 = vld [vmem:[%s2966] ss:$8 sm:$0x3]
          %v2968 = vstv %s2958
          %v2969 = vmul.f32 %v2968, %v2967
          %s2970 = sld [smem:[#allocation5 + %s2952]]
          %s2971 = sshra.s32 %s2953, 3
          %s2972 = sand.u32 %s2953, 7
          %s2973 = sshra.s32 %s2953, 3
          %s2974 = sand.u32 %s2953, 7
          %s2975 = smul.u32 %s2971, 2
          %s2976 = smul.u32 %s2975, 8
          %s2977 = sadd.s32 %s2976, %s2974
          %s2978 = scalar_lea.vmem [#allocation7], %s2977
          %v2979 = vld [vmem:[%s2978] ss:$8 sm:$0x3]
          %v2980 = vstv %s2970
          %v2981 = vmul.f32 %v2980, %v2979
          %v2982 = vadd.f32 %v2969, %v2981
          %s2983 = sld [smem:[#allocation5 + %s2954]]
          %s2984 = sshra.s32 %s2955, 3
          %s2985 = sand.u32 %s2955, 7
          %s2986 = sshra.s32 %s2955, 3
          %s2987 = sand.u32 %s2955, 7
          %s2988 = smul.u32 %s2984, 2
          %s2989 = smul.u32 %s2988, 8
          %s2990 = sadd.s32 %s2989, %s2987
          %s2991 = scalar_lea.vmem [#allocation7], %s2990
          %v2992 = vld [vmem:[%s2991] ss:$8 sm:$0x3]
          %v2993 = vstv %s2983
          %v2994 = vmul.f32 %v2993, %v2992
          %v2995 = vadd.f32 %v2982, %v2994
          %s2996 = sld [smem:[#allocation5 + %s2956]]
          %s2997 = sshra.s32 %s2957, 3
          %s2998 = sand.u32 %s2957, 7
          %s2999 = sshra.s32 %s2957, 3
          %s3000 = sand.u32 %s2957, 7
          %s3001 = smul.u32 %s2997, 2
          %s3002 = smul.u32 %s3001, 8
          %s3003 = sadd.s32 %s3002, %s3000
          %s3004 = scalar_lea.vmem [#allocation7], %s3003
          %v3005 = vld [vmem:[%s3004] ss:$8 sm:$0x3]
          %v3006 = vstv %s2996
          %v3007 = vmul.f32 %v3006, %v3005
          %v3008 = vadd.f32 %v2995, %v3007
          %s3009 = scalar_lea.vmem %s275, 82
          %3010 = vst.msk [vmem:[%s3009] ss:$8 sm:$0x3] %vm279, %v3008
          %3011 = vst.msk [vmem:[%s3009] ss:$8 sm:$0x0] %vm279, %v3008
          %s3012 = sadd.s32 %s2329, %s942
          %s3013 = sld [smem:[#allocation2 + %s3012]]
          %s3014 = sadd.s32 %s2329, %s945
          %s3015 = sld [smem:[#allocation2 + %s3014]]
          %s3016 = sadd.s32 %s2329, %s948
          %s3017 = sld [smem:[#allocation2 + %s3016]]
          %s3018 = sadd.s32 %s2329, %s951
          %s3019 = sld [smem:[#allocation2 + %s3018]]
          %s3020 = sld [smem:[#allocation5 + %s3012]]
          %s3021 = sshra.s32 %s3013, 3
          %s3022 = sand.u32 %s3013, 7
          %s3023 = sshra.s32 %s3013, 3
          %s3024 = sand.u32 %s3013, 7
          %s3025 = smul.u32 %s3021, 2
          %s3026 = smul.u32 %s3025, 8
          %s3027 = sadd.s32 %s3026, %s3024
          %s3028 = scalar_lea.vmem [#allocation7], %s3027
          %v3029 = vld [vmem:[%s3028] ss:$8 sm:$0x3]
          %v3030 = vstv %s3020
          %v3031 = vmul.f32 %v3030, %v3029
          %s3032 = sld [smem:[#allocation5 + %s3014]]
          %s3033 = sshra.s32 %s3015, 3
          %s3034 = sand.u32 %s3015, 7
          %s3035 = sshra.s32 %s3015, 3
          %s3036 = sand.u32 %s3015, 7
          %s3037 = smul.u32 %s3033, 2
          %s3038 = smul.u32 %s3037, 8
          %s3039 = sadd.s32 %s3038, %s3036
          %s3040 = scalar_lea.vmem [#allocation7], %s3039
          %v3041 = vld [vmem:[%s3040] ss:$8 sm:$0x3]
          %v3042 = vstv %s3032
          %v3043 = vmul.f32 %v3042, %v3041
          %v3044 = vadd.f32 %v3031, %v3043
          %s3045 = sld [smem:[#allocation5 + %s3016]]
          %s3046 = sshra.s32 %s3017, 3
          %s3047 = sand.u32 %s3017, 7
          %s3048 = sshra.s32 %s3017, 3
          %s3049 = sand.u32 %s3017, 7
          %s3050 = smul.u32 %s3046, 2
          %s3051 = smul.u32 %s3050, 8
          %s3052 = sadd.s32 %s3051, %s3049
          %s3053 = scalar_lea.vmem [#allocation7], %s3052
          %v3054 = vld [vmem:[%s3053] ss:$8 sm:$0x3]
          %v3055 = vstv %s3045
          %v3056 = vmul.f32 %v3055, %v3054
          %v3057 = vadd.f32 %v3044, %v3056
          %s3058 = sld [smem:[#allocation5 + %s3018]]
          %s3059 = sshra.s32 %s3019, 3
          %s3060 = sand.u32 %s3019, 7
          %s3061 = sshra.s32 %s3019, 3
          %s3062 = sand.u32 %s3019, 7
          %s3063 = smul.u32 %s3059, 2
          %s3064 = smul.u32 %s3063, 8
          %s3065 = sadd.s32 %s3064, %s3062
          %s3066 = scalar_lea.vmem [#allocation7], %s3065
          %v3067 = vld [vmem:[%s3066] ss:$8 sm:$0x3]
          %v3068 = vstv %s3058
          %v3069 = vmul.f32 %v3068, %v3067
          %v3070 = vadd.f32 %v3057, %v3069
          %s3071 = scalar_lea.vmem %s275, 83
          %3072 = vst.msk [vmem:[%s3071] ss:$8 sm:$0x3] %vm279, %v3070
          %3073 = vst.msk [vmem:[%s3071] ss:$8 sm:$0x0] %vm279, %v3070
          %s3074 = sadd.s32 %s2329, %s1008
          %s3075 = sld [smem:[#allocation2 + %s3074]]
          %s3076 = sadd.s32 %s2329, %s1011
          %s3077 = sld [smem:[#allocation2 + %s3076]]
          %s3078 = sadd.s32 %s2329, %s1014
          %s3079 = sld [smem:[#allocation2 + %s3078]]
          %s3080 = sadd.s32 %s2329, %s1017
          %s3081 = sld [smem:[#allocation2 + %s3080]]
          %s3082 = sld [smem:[#allocation5 + %s3074]]
          %s3083 = sshra.s32 %s3075, 3
          %s3084 = sand.u32 %s3075, 7
          %s3085 = sshra.s32 %s3075, 3
          %s3086 = sand.u32 %s3075, 7
          %s3087 = smul.u32 %s3083, 2
          %s3088 = smul.u32 %s3087, 8
          %s3089 = sadd.s32 %s3088, %s3086
          %s3090 = scalar_lea.vmem [#allocation7], %s3089
          %v3091 = vld [vmem:[%s3090] ss:$8 sm:$0x3]
          %v3092 = vstv %s3082
          %v3093 = vmul.f32 %v3092, %v3091
          %s3094 = sld [smem:[#allocation5 + %s3076]]
          %s3095 = sshra.s32 %s3077, 3
          %s3096 = sand.u32 %s3077, 7
          %s3097 = sshra.s32 %s3077, 3
          %s3098 = sand.u32 %s3077, 7
          %s3099 = smul.u32 %s3095, 2
          %s3100 = smul.u32 %s3099, 8
          %s3101 = sadd.s32 %s3100, %s3098
          %s3102 = scalar_lea.vmem [#allocation7], %s3101
          %v3103 = vld [vmem:[%s3102] ss:$8 sm:$0x3]
          %v3104 = vstv %s3094
          %v3105 = vmul.f32 %v3104, %v3103
          %v3106 = vadd.f32 %v3093, %v3105
          %s3107 = sld [smem:[#allocation5 + %s3078]]
          %s3108 = sshra.s32 %s3079, 3
          %s3109 = sand.u32 %s3079, 7
          %s3110 = sshra.s32 %s3079, 3
          %s3111 = sand.u32 %s3079, 7
          %s3112 = smul.u32 %s3108, 2
          %s3113 = smul.u32 %s3112, 8
          %s3114 = sadd.s32 %s3113, %s3111
          %s3115 = scalar_lea.vmem [#allocation7], %s3114
          %v3116 = vld [vmem:[%s3115] ss:$8 sm:$0x3]
          %v3117 = vstv %s3107
          %v3118 = vmul.f32 %v3117, %v3116
          %v3119 = vadd.f32 %v3106, %v3118
          %s3120 = sld [smem:[#allocation5 + %s3080]]
          %s3121 = sshra.s32 %s3081, 3
          %s3122 = sand.u32 %s3081, 7
          %s3123 = sshra.s32 %s3081, 3
          %s3124 = sand.u32 %s3081, 7
          %s3125 = smul.u32 %s3121, 2
          %s3126 = smul.u32 %s3125, 8
          %s3127 = sadd.s32 %s3126, %s3124
          %s3128 = scalar_lea.vmem [#allocation7], %s3127
          %v3129 = vld [vmem:[%s3128] ss:$8 sm:$0x3]
          %v3130 = vstv %s3120
          %v3131 = vmul.f32 %v3130, %v3129
          %v3132 = vadd.f32 %v3119, %v3131
          %s3133 = scalar_lea.vmem %s275, 84
          %3134 = vst.msk [vmem:[%s3133] ss:$8 sm:$0x3] %vm279, %v3132
          %3135 = vst.msk [vmem:[%s3133] ss:$8 sm:$0x0] %vm279, %v3132
          %s3136 = sadd.s32 %s2329, %s1074
          %s3137 = sld [smem:[#allocation2 + %s3136]]
          %s3138 = sadd.s32 %s2329, %s1077
          %s3139 = sld [smem:[#allocation2 + %s3138]]
          %s3140 = sadd.s32 %s2329, %s1080
          %s3141 = sld [smem:[#allocation2 + %s3140]]
          %s3142 = sadd.s32 %s2329, %s1083
          %s3143 = sld [smem:[#allocation2 + %s3142]]
          %s3144 = sld [smem:[#allocation5 + %s3136]]
          %s3145 = sshra.s32 %s3137, 3
          %s3146 = sand.u32 %s3137, 7
          %s3147 = sshra.s32 %s3137, 3
          %s3148 = sand.u32 %s3137, 7
          %s3149 = smul.u32 %s3145, 2
          %s3150 = smul.u32 %s3149, 8
          %s3151 = sadd.s32 %s3150, %s3148
          %s3152 = scalar_lea.vmem [#allocation7], %s3151
          %v3153 = vld [vmem:[%s3152] ss:$8 sm:$0x3]
          %v3154 = vstv %s3144
          %v3155 = vmul.f32 %v3154, %v3153
          %s3156 = sld [smem:[#allocation5 + %s3138]]
          %s3157 = sshra.s32 %s3139, 3
          %s3158 = sand.u32 %s3139, 7
          %s3159 = sshra.s32 %s3139, 3
          %s3160 = sand.u32 %s3139, 7
          %s3161 = smul.u32 %s3157, 2
          %s3162 = smul.u32 %s3161, 8
          %s3163 = sadd.s32 %s3162, %s3160
          %s3164 = scalar_lea.vmem [#allocation7], %s3163
          %v3165 = vld [vmem:[%s3164] ss:$8 sm:$0x3]
          %v3166 = vstv %s3156
          %v3167 = vmul.f32 %v3166, %v3165
          %v3168 = vadd.f32 %v3155, %v3167
          %s3169 = sld [smem:[#allocation5 + %s3140]]
          %s3170 = sshra.s32 %s3141, 3
          %s3171 = sand.u32 %s3141, 7
          %s3172 = sshra.s32 %s3141, 3
          %s3173 = sand.u32 %s3141, 7
          %s3174 = smul.u32 %s3170, 2
          %s3175 = smul.u32 %s3174, 8
          %s3176 = sadd.s32 %s3175, %s3173
          %s3177 = scalar_lea.vmem [#allocation7], %s3176
          %v3178 = vld [vmem:[%s3177] ss:$8 sm:$0x3]
          %v3179 = vstv %s3169
          %v3180 = vmul.f32 %v3179, %v3178
          %v3181 = vadd.f32 %v3168, %v3180
          %s3182 = sld [smem:[#allocation5 + %s3142]]
          %s3183 = sshra.s32 %s3143, 3
          %s3184 = sand.u32 %s3143, 7
          %s3185 = sshra.s32 %s3143, 3
          %s3186 = sand.u32 %s3143, 7
          %s3187 = smul.u32 %s3183, 2
          %s3188 = smul.u32 %s3187, 8
          %s3189 = sadd.s32 %s3188, %s3186
          %s3190 = scalar_lea.vmem [#allocation7], %s3189
          %v3191 = vld [vmem:[%s3190] ss:$8 sm:$0x3]
          %v3192 = vstv %s3182
          %v3193 = vmul.f32 %v3192, %v3191
          %v3194 = vadd.f32 %v3181, %v3193
          %s3195 = scalar_lea.vmem %s275, 85
          %3196 = vst.msk [vmem:[%s3195] ss:$8 sm:$0x3] %vm279, %v3194
          %3197 = vst.msk [vmem:[%s3195] ss:$8 sm:$0x0] %vm279, %v3194
          %s3198 = sadd.s32 %s2329, %s1140
          %s3199 = sld [smem:[#allocation2 + %s3198]]
          %s3200 = sadd.s32 %s2329, %s1143
          %s3201 = sld [smem:[#allocation2 + %s3200]]
          %s3202 = sadd.s32 %s2329, %s1146
          %s3203 = sld [smem:[#allocation2 + %s3202]]
          %s3204 = sadd.s32 %s2329, %s1149
          %s3205 = sld [smem:[#allocation2 + %s3204]]
          %s3206 = sld [smem:[#allocation5 + %s3198]]
          %s3207 = sshra.s32 %s3199, 3
          %s3208 = sand.u32 %s3199, 7
          %s3209 = sshra.s32 %s3199, 3
          %s3210 = sand.u32 %s3199, 7
          %s3211 = smul.u32 %s3207, 2
          %s3212 = smul.u32 %s3211, 8
          %s3213 = sadd.s32 %s3212, %s3210
          %s3214 = scalar_lea.vmem [#allocation7], %s3213
          %v3215 = vld [vmem:[%s3214] ss:$8 sm:$0x3]
          %v3216 = vstv %s3206
          %v3217 = vmul.f32 %v3216, %v3215
          %s3218 = sld [smem:[#allocation5 + %s3200]]
          %s3219 = sshra.s32 %s3201, 3
          %s3220 = sand.u32 %s3201, 7
          %s3221 = sshra.s32 %s3201, 3
          %s3222 = sand.u32 %s3201, 7
          %s3223 = smul.u32 %s3219, 2
          %s3224 = smul.u32 %s3223, 8
          %s3225 = sadd.s32 %s3224, %s3222
          %s3226 = scalar_lea.vmem [#allocation7], %s3225
          %v3227 = vld [vmem:[%s3226] ss:$8 sm:$0x3]
          %v3228 = vstv %s3218
          %v3229 = vmul.f32 %v3228, %v3227
          %v3230 = vadd.f32 %v3217, %v3229
          %s3231 = sld [smem:[#allocation5 + %s3202]]
          %s3232 = sshra.s32 %s3203, 3
          %s3233 = sand.u32 %s3203, 7
          %s3234 = sshra.s32 %s3203, 3
          %s3235 = sand.u32 %s3203, 7
          %s3236 = smul.u32 %s3232, 2
          %s3237 = smul.u32 %s3236, 8
          %s3238 = sadd.s32 %s3237, %s3235
          %s3239 = scalar_lea.vmem [#allocation7], %s3238
          %v3240 = vld [vmem:[%s3239] ss:$8 sm:$0x3]
          %v3241 = vstv %s3231
          %v3242 = vmul.f32 %v3241, %v3240
          %v3243 = vadd.f32 %v3230, %v3242
          %s3244 = sld [smem:[#allocation5 + %s3204]]
          %s3245 = sshra.s32 %s3205, 3
          %s3246 = sand.u32 %s3205, 7
          %s3247 = sshra.s32 %s3205, 3
          %s3248 = sand.u32 %s3205, 7
          %s3249 = smul.u32 %s3245, 2
          %s3250 = smul.u32 %s3249, 8
          %s3251 = sadd.s32 %s3250, %s3248
          %s3252 = scalar_lea.vmem [#allocation7], %s3251
          %v3253 = vld [vmem:[%s3252] ss:$8 sm:$0x3]
          %v3254 = vstv %s3244
          %v3255 = vmul.f32 %v3254, %v3253
          %v3256 = vadd.f32 %v3243, %v3255
          %s3257 = scalar_lea.vmem %s275, 86
          %3258 = vst.msk [vmem:[%s3257] ss:$8 sm:$0x3] %vm279, %v3256
          %3259 = vst.msk [vmem:[%s3257] ss:$8 sm:$0x0] %vm279, %v3256
          %s3260 = sadd.s32 %s2329, %s1206
          %s3261 = sld [smem:[#allocation2 + %s3260]]
          %s3262 = sadd.s32 %s2329, %s1209
          %s3263 = sld [smem:[#allocation2 + %s3262]]
          %s3264 = sadd.s32 %s2329, %s1212
          %s3265 = sld [smem:[#allocation2 + %s3264]]
          %s3266 = sadd.s32 %s2329, %s1215
          %s3267 = sld [smem:[#allocation2 + %s3266]]
          %s3268 = sld [smem:[#allocation5 + %s3260]]
          %s3269 = sshra.s32 %s3261, 3
          %s3270 = sand.u32 %s3261, 7
          %s3271 = sshra.s32 %s3261, 3
          %s3272 = sand.u32 %s3261, 7
          %s3273 = smul.u32 %s3269, 2
          %s3274 = smul.u32 %s3273, 8
          %s3275 = sadd.s32 %s3274, %s3272
          %s3276 = scalar_lea.vmem [#allocation7], %s3275
          %v3277 = vld [vmem:[%s3276] ss:$8 sm:$0x3]
          %v3278 = vstv %s3268
          %v3279 = vmul.f32 %v3278, %v3277
          %s3280 = sld [smem:[#allocation5 + %s3262]]
          %s3281 = sshra.s32 %s3263, 3
          %s3282 = sand.u32 %s3263, 7
          %s3283 = sshra.s32 %s3263, 3
          %s3284 = sand.u32 %s3263, 7
          %s3285 = smul.u32 %s3281, 2
          %s3286 = smul.u32 %s3285, 8
          %s3287 = sadd.s32 %s3286, %s3284
          %s3288 = scalar_lea.vmem [#allocation7], %s3287
          %v3289 = vld [vmem:[%s3288] ss:$8 sm:$0x3]
          %v3290 = vstv %s3280
          %v3291 = vmul.f32 %v3290, %v3289
          %v3292 = vadd.f32 %v3279, %v3291
          %s3293 = sld [smem:[#allocation5 + %s3264]]
          %s3294 = sshra.s32 %s3265, 3
          %s3295 = sand.u32 %s3265, 7
          %s3296 = sshra.s32 %s3265, 3
          %s3297 = sand.u32 %s3265, 7
          %s3298 = smul.u32 %s3294, 2
          %s3299 = smul.u32 %s3298, 8
          %s3300 = sadd.s32 %s3299, %s3297
          %s3301 = scalar_lea.vmem [#allocation7], %s3300
          %v3302 = vld [vmem:[%s3301] ss:$8 sm:$0x3]
          %v3303 = vstv %s3293
          %v3304 = vmul.f32 %v3303, %v3302
          %v3305 = vadd.f32 %v3292, %v3304
          %s3306 = sld [smem:[#allocation5 + %s3266]]
          %s3307 = sshra.s32 %s3267, 3
          %s3308 = sand.u32 %s3267, 7
          %s3309 = sshra.s32 %s3267, 3
          %s3310 = sand.u32 %s3267, 7
          %s3311 = smul.u32 %s3307, 2
          %s3312 = smul.u32 %s3311, 8
          %s3313 = sadd.s32 %s3312, %s3310
          %s3314 = scalar_lea.vmem [#allocation7], %s3313
          %v3315 = vld [vmem:[%s3314] ss:$8 sm:$0x3]
          %v3316 = vstv %s3306
          %v3317 = vmul.f32 %v3316, %v3315
          %v3318 = vadd.f32 %v3305, %v3317
          %s3319 = scalar_lea.vmem %s275, 87
          %3320 = vst.msk [vmem:[%s3319] ss:$8 sm:$0x3] %vm279, %v3318
          %3321 = vst.msk [vmem:[%s3319] ss:$8 sm:$0x0] %vm279, %v3318
          %s3322 = sadd.s32 %s2329, %s1272
          %s3323 = sld [smem:[#allocation2 + %s3322]]
          %s3324 = sadd.s32 %s2329, %s1275
          %s3325 = sld [smem:[#allocation2 + %s3324]]
          %s3326 = sadd.s32 %s2329, %s1278
          %s3327 = sld [smem:[#allocation2 + %s3326]]
          %s3328 = sadd.s32 %s2329, %s1281
          %s3329 = sld [smem:[#allocation2 + %s3328]]
          %s3330 = sld [smem:[#allocation5 + %s3322]]
          %s3331 = sshra.s32 %s3323, 3
          %s3332 = sand.u32 %s3323, 7
          %s3333 = sshra.s32 %s3323, 3
          %s3334 = sand.u32 %s3323, 7
          %s3335 = smul.u32 %s3331, 2
          %s3336 = smul.u32 %s3335, 8
          %s3337 = sadd.s32 %s3336, %s3334
          %s3338 = scalar_lea.vmem [#allocation7], %s3337
          %v3339 = vld [vmem:[%s3338] ss:$8 sm:$0x3]
          %v3340 = vstv %s3330
          %v3341 = vmul.f32 %v3340, %v3339
          %s3342 = sld [smem:[#allocation5 + %s3324]]
          %s3343 = sshra.s32 %s3325, 3
          %s3344 = sand.u32 %s3325, 7
          %s3345 = sshra.s32 %s3325, 3
          %s3346 = sand.u32 %s3325, 7
          %s3347 = smul.u32 %s3343, 2
          %s3348 = smul.u32 %s3347, 8
          %s3349 = sadd.s32 %s3348, %s3346
          %s3350 = scalar_lea.vmem [#allocation7], %s3349
          %v3351 = vld [vmem:[%s3350] ss:$8 sm:$0x3]
          %v3352 = vstv %s3342
          %v3353 = vmul.f32 %v3352, %v3351
          %v3354 = vadd.f32 %v3341, %v3353
          %s3355 = sld [smem:[#allocation5 + %s3326]]
          %s3356 = sshra.s32 %s3327, 3
          %s3357 = sand.u32 %s3327, 7
          %s3358 = sshra.s32 %s3327, 3
          %s3359 = sand.u32 %s3327, 7
          %s3360 = smul.u32 %s3356, 2
          %s3361 = smul.u32 %s3360, 8
          %s3362 = sadd.s32 %s3361, %s3359
          %s3363 = scalar_lea.vmem [#allocation7], %s3362
          %v3364 = vld [vmem:[%s3363] ss:$8 sm:$0x3]
          %v3365 = vstv %s3355
          %v3366 = vmul.f32 %v3365, %v3364
          %v3367 = vadd.f32 %v3354, %v3366
          %s3368 = sld [smem:[#allocation5 + %s3328]]
          %s3369 = sshra.s32 %s3329, 3
          %s3370 = sand.u32 %s3329, 7
          %s3371 = sshra.s32 %s3329, 3
          %s3372 = sand.u32 %s3329, 7
          %s3373 = smul.u32 %s3369, 2
          %s3374 = smul.u32 %s3373, 8
          %s3375 = sadd.s32 %s3374, %s3372
          %s3376 = scalar_lea.vmem [#allocation7], %s3375
          %v3377 = vld [vmem:[%s3376] ss:$8 sm:$0x3]
          %v3378 = vstv %s3368
          %v3379 = vmul.f32 %v3378, %v3377
          %v3380 = vadd.f32 %v3367, %v3379
          %s3381 = scalar_lea.vmem %s275, 96
          %3382 = vst.msk [vmem:[%s3381] ss:$8 sm:$0x3] %vm279, %v3380
          %3383 = vst.msk [vmem:[%s3381] ss:$8 sm:$0x0] %vm279, %v3380
        $region49: #{tpu_custom_call.1} parent=31 // loop_footer
          %s201 = sadd.s32 1, %s197
        $region50: #{tpu_custom_call.1} parent=31 // loop_footer_branch
          %196 = sbr.rel target = $region46
        $region51: #{tpu_custom_call.1} parent=31 // loop_exit
          _
        %s3384 = smul.u32 8, %s17
        %p3385 = scmp.lt.s32.totalorder %s3384, 15
        %s3386 = scalar_select %p3385, %s3384, 15
        %s3387 = smul.addr %s3386, 14
        %s3388 = smul.addr %s3387, 8
        %s3389 = scalar_lea.vmem %s3, %s3388
        // Predicated region
        $region52: #{tpu_custom_call.1} parent=31 // pred_check
          %p3390 = pneg %p98
        $region53: #{tpu_custom_call.1} parent=31 // pred_check_branch
          %3392 = sbr.rel (%p3390) target = $region55
        $region54: #{tpu_custom_call.1} parent=31 // pred_region
          %s3393 = smul.u32 8, %s17
        $region55: #{tpu_custom_call.1} parent=31 // pred_fallthru
          _
      $region32: #{tpu_custom_call.1} parent=5 // pred_fallthru
        _
      %p3394 = scmp.le.s32.totalorder 2, %s12
      // Predicated region
      $region56: #{tpu_custom_call.1} parent=5 // pred_check
        %p3395 = pneg %p3394
      $region57: #{tpu_custom_call.1} parent=5 // pred_check_branch
        %3397 = sbr.rel (%p3395) target = $region59
      $region58: #{tpu_custom_call.1} parent=5 // pred_region
        %s3398 = ssub.s32 %s12, 2
        // Predicated region
        $region60: #{tpu_custom_call.1} parent=58 // pred_check
          %p3399 = pneg %p104
        $region61: #{tpu_custom_call.1} parent=58 // pred_check_branch
          %3401 = sbr.rel (%p3399) target = $region63
        $region62: #{tpu_custom_call.1} parent=58 // pred_region
          %s3402 = smul.u32 8, %s18
          %p3403 = scmp.lt.s32.totalorder %s3402, 15
          %s3404 = scalar_select %p3403, %s3402, 15
          %s3405 = smul.addr %s3404, 14
          %s3406 = smul.addr %s3405, 8
          %s3407 = scalar_lea.vmem %s3, %s3406
        $region63: #{tpu_custom_call.1} parent=58 // pred_fallthru
          _
      $region59: #{tpu_custom_call.1} parent=5 // pred_fallthru
        _
    $region6: #{tpu_custom_call.1} parent=1 // loop_footer
      %s16 = sadd.s32 1, %s12
    $region7: #{tpu_custom_call.1} parent=1 // loop_footer_branch
      %11 = sbr.rel target = $region3
    $region8: #{tpu_custom_call.1} parent=1 // loop_exit
      _
    %3408 = vsyncpa [#allocation3], 1
    %s3409 = scalar_lea.sflag [#allocation3], 1
    %3410 = vsyncpa %s3409, 1
    %3411 = vsyncpa [#allocation4], 1
    %s3412 = scalar_lea.sflag [#allocation4], 1
    %3413 = vsyncpa %s3412, 1
    %3414 = vsyncpa [#allocation6], 1

</llo_original>
